<compile_context>
chip_gen: v7x
topology: tpu7x:2x2x1
jax: 0.10.0
libtpu: 0.0.40
codegen_flags: <defaults>
</compile_context>

<pallas_src>
import jax
import jax.numpy as jnp
import numpy as np
from jax.experimental import pallas as pl
from jax.experimental.pallas import tpu as pltpu

EPS = 1e-5


def _round_up(x, m):
    return (x + m - 1) // m * m


def _fill_reflect_pad(pad_ref, img):
    """Write ReflectionPad2d(1)(img) into the persistent VMEM scratch.

    pad_ref: (H+3, WP, C) f32 scratch.  Rows 0..H+1 / cols 0..W+1 hold the
    padded image; the slack columns (>= W+2) and the guard row (H+2) are
    zeroed.  They only provide overflow slack for the flattened
    shift-and-accumulate in `_conv3x3` and never feed a valid output.
    """
    H, W, C = img.shape
    WP = pad_ref.shape[1]
    pad_ref[1:H + 1, 1:W + 1, :] = img                             # interior
    pad_ref[0:1, 1:W + 1, :] = img[1:2]                            # top    (= row 1)
    pad_ref[H + 1:H + 2, 1:W + 1, :] = img[H - 2:H - 1]            # bottom (= row H-2)
    pad_ref[H + 2:H + 3, :, :] = jnp.zeros((1, WP, C), img.dtype)  # guard row
    if WP > W + 2:                                                 # unused slack cols
        pad_ref[:, W + 2:WP, :] = jnp.zeros(
            (pad_ref.shape[0], WP - (W + 2), C), img.dtype)
    # Left/right reflection, applied to the already row-padded buffer so the
    # four corners come out correct (matches nn.ReflectionPad2d).
    pad_ref[:, 0:1, :] = pad_ref[:, 2:3, :]
    pad_ref[:, W + 1:W + 2, :] = pad_ref[:, W - 1:W, :]


def _conv3x3(pad_ref, w_ref, b_ref, H, W, C):
    """3x3 cross-correlation conv, bias folded into the accumulator init.

    The padded image is flattened to 2-D once (WP is a multiple of 8, so the
    (H+3, WP, C) -> ((H+3)*WP, C) collapse is layout-preserving), cast to bf16
    and pushed through 9 MXU matmuls with f32 accumulation.  Tap (dy, dx) is a
    row offset of dy*WP + dx into the matmul result, so no per-tap strided
    slice + reshape relayouts are needed.  Returns (H, W, C) f32.
    """
    WP = pad_ref.shape[1]
    rows = pad_ref.shape[0] * WP
    m = H * WP                               # valid outputs live at h*WP + w, w < W
    p2 = pad_ref[...].reshape(rows, C).astype(jnp.bfloat16)
    acc = jnp.broadcast_to(b_ref[...], (m, C))                     # f32 bias init
    for dy in range(3):
        for dx in range(3):
            t = jnp.dot(p2, w_ref[dy, dx],
                        preferred_element_type=jnp.float32)        # (rows, C) f32
            off = dy * WP + dx
            acc = acc + t[off:off + m, :]
    return acc.reshape(H, WP, C)[:, :W, :]


def _inorm_scale_shift(y, g_ref, be_ref):
    """Fold affine InstanceNorm into one per-channel (scale, shift) pair."""
    H, W, C = y.shape
    inv_hw = 1.0 / (H * W)
    s = jnp.sum(jnp.sum(y, axis=0, keepdims=True), axis=1, keepdims=True)
    ss = jnp.sum(jnp.sum(y * y, axis=0, keepdims=True), axis=1, keepdims=True)
    mean = s * inv_hw
    var = jnp.maximum(ss * inv_hw - mean * mean, 0.0)              # biased variance
    scale = g_ref[...].reshape(1, 1, C) * jax.lax.rsqrt(var + EPS)
    shift = be_ref[...].reshape(1, 1, C) - mean * scale
    return scale, shift


def residual_block_kernel(x_ref, w1_ref, b1_ref, g1_ref, be1_ref,
                          w2_ref, b2_ref, g2_ref, be2_ref, o_ref, pad_ref):
    _, H, W, C = x_ref.shape
    x = x_ref[0]                                                   # (H, W, C) f32

    # conv1 -> InstanceNorm1 -> ReLU  (norm affine + relu fused into one pass)
    _fill_reflect_pad(pad_ref, x)
    y = _conv3x3(pad_ref, w1_ref, b1_ref, H, W, C)
    scale1, shift1 = _inorm_scale_shift(y, g1_ref, be1_ref)
    y = jnp.maximum(y * scale1 + shift1, 0.0)

    # conv2 -> InstanceNorm2 -> + residual  (norm affine + residual add fused)
    _fill_reflect_pad(pad_ref, y)
    z = _conv3x3(pad_ref, w2_ref, b2_ref, H, W, C)
    scale2, shift2 = _inorm_scale_shift(z, g2_ref, be2_ref)
    o_ref[0] = (z * scale2 + shift2 + x).astype(o_ref.dtype)


def residual_block(x_nchw, params):
    """x_nchw: (N, C, H, W) float32 (PyTorch layout). Returns (N, C, H, W)."""
    N, C, H, W = x_nchw.shape
    assert H >= 2 and W >= 2, "ReflectionPad2d(1) needs H, W >= 2"
    x = jnp.transpose(x_nchw, (0, 2, 3, 1))                        # -> NHWC (C on lanes)

    w1, b1, g1, be1, w2, b2, g2, be2 = params
    w1 = w1.astype(jnp.bfloat16)                                   # native MXU operands
    w2 = w2.astype(jnp.bfloat16)
    b1, g1, be1, b2, g2, be2 = [v.reshape(1, C).astype(jnp.float32)
                                for v in (b1, g1, be1, b2, g2, be2)]

    WP = _round_up(W + 2, 8)                                       # padded scratch width

    def full_spec(shape):
        return pl.BlockSpec(shape, lambda n, _s=shape: (0,) * len(_s))

    # Explicit VMEM budget: double-buffered in/out blocks + f32 padded scratch
    # + bf16 weights + flattened bf16 operand, f32 matmul result & accumulator
    # + a few full-image f32 temporaries.
    img = H * W * C
    pad_elems = (H + 3) * WP * C
    need = (4 * img * 4                  # double-buffered in + out blocks (f32)
            + pad_elems * 4              # padded scratch (f32)
            + 4 * 9 * C * C * 2          # double-buffered bf16 conv weights
            + pad_elems * (2 + 4 + 4)    # flattened bf16 operand + matmul out + acc
            + 4 * img * 4)               # x / y / z / fused-norm temporaries
    try:
        vmem_cap = pltpu.get_tpu_info().vmem_capacity_bytes
    except Exception:
        vmem_cap = 64 * 1024 * 1024      # conservative (v7x-sized) fallback
    vmem_limit = int(min(0.75 * vmem_cap, max(4 * 1024 * 1024, 1.5 * need)))

    # TODO(synk): for very large images (or v7x's 64 MiB VMEM) switch to
    # row-strip tiling with a 1-row halo + two-pass instance norm, and when
    # N == 1 add a parallel spatial-strip grid axis so both v7x TCs get work.
    out = pl.pallas_call(
        residual_block_kernel,
        out_shape=jax.ShapeDtypeStruct((N, H, W, C), x.dtype),
        grid_spec=pltpu.PrefetchScalarGridSpec(
            num_scalar_prefetch=0,
            grid=(N,),                                             # one image per step
            in_specs=[
                pl.BlockSpec((1, H, W, C), lambda n: (n, 0, 0, 0)),
                full_spec((3, 3, C, C)),
                full_spec((1, C)), full_spec((1, C)), full_spec((1, C)),
                full_spec((3, 3, C, C)),
                full_spec((1, C)), full_spec((1, C)), full_spec((1, C)),
            ],
            out_specs=pl.BlockSpec((1, H, W, C), lambda n: (n, 0, 0, 0)),
            scratch_shapes=[pltpu.VMEM((H + 3, WP, C), jnp.float32)],
        ),
        compiler_params=pltpu.CompilerParams(
            dimension_semantics=("parallel",),
            vmem_limit_bytes=vmem_limit),
    )(x, w1, b1, g1, be1, w2, b2, g2, be2)
    return jnp.transpose(out, (0, 3, 1, 2))                        # -> NCHW


def residual_block_reference(x_nchw, params):
    """Pure-JAX (f32) reference mirroring the PyTorch ResidualBlock."""
    w1, b1, g1, be1, w2, b2, g2, be2 = params

    def conv(x, w, b):  # x: NHWC, w: (3, 3, Cin, Cout)
        _, H, W, _ = x.shape
        xp = jnp.pad(x, ((0, 0), (1, 1), (1, 1), (0, 0)), mode="reflect")
        out = 0.0
        for dy in range(3):
            for dx in range(3):
                out = out + jnp.einsum("nhwc,co->nhwo",
                                       xp[:, dy:dy + H, dx:dx + W, :], w[dy, dx])
        return out + b

    def inorm(x, g, be):
        mean = jnp.mean(x, axis=(1, 2), keepdims=True)
        var = jnp.mean((x - mean) ** 2, axis=(1, 2), keepdims=True)
        return (x - mean) * jax.lax.rsqrt(var + EPS) * g + be

    x = jnp.transpose(x_nchw, (0, 2, 3, 1))
    y = jax.nn.relu(inorm(conv(x, w1, b1), g1, be1))
    z = inorm(conv(y, w2, b2), g2, be2)
    return jnp.transpose(z + x, (0, 3, 1, 2))


if __name__ == "__main__":
    N, C, H, W = 2, 4, 16, 16
    keys = jax.random.split(jax.random.PRNGKey(0), 9)
    x = jax.random.normal(keys[0], (N, C, H, W), jnp.float32)

    # Deterministic synthetic parameters (shapes from ResidualBlock.__init__).
    w1 = 0.1 * jax.random.normal(keys[1], (3, 3, C, C), jnp.float32)
    b1 = 0.1 * jax.random.normal(keys[2], (C,), jnp.float32)
    g1 = 1.0 + 0.1 * jax.random.normal(keys[3], (C,), jnp.float32)
    be1 = 0.1 * jax.random.normal(keys[4], (C,), jnp.float32)
    w2 = 0.1 * jax.random.normal(keys[5], (3, 3, C, C), jnp.float32)
    b2 = 0.1 * jax.random.normal(keys[6], (C,), jnp.float32)
    g2 = 1.0 + 0.1 * jax.random.normal(keys[7], (C,), jnp.float32)
    be2 = 0.1 * jax.random.normal(keys[8], (C,), jnp.float32)
    params = (w1, b1, g1, be1, w2, b2, g2, be2)

    out = jax.block_until_ready(residual_block(x, params))
    ref = jax.block_until_ready(residual_block_reference(x, params))
    np.testing.assert_allclose(np.asarray(out), np.asarray(ref),
                               rtol=3e-2, atol=3e-2)
    print("KERNEL_OK")
</pallas_src>

<mosaic_0001>
module attributes {stable_mosaic.version = 11 : i64} {
  func.func @residual_block_kernel(%arg0: i32, %arg1: memref<1x16x16x4xf32, #tpu.memory_space<vmem>>, %arg2: memref<3x3x4x4xbf16, #tpu.memory_space<vmem>>, %arg3: memref<1x4xf32, #tpu.memory_space<vmem>>, %arg4: memref<1x4xf32, #tpu.memory_space<vmem>>, %arg5: memref<1x4xf32, #tpu.memory_space<vmem>>, %arg6: memref<3x3x4x4xbf16, #tpu.memory_space<vmem>>, %arg7: memref<1x4xf32, #tpu.memory_space<vmem>>, %arg8: memref<1x4xf32, #tpu.memory_space<vmem>>, %arg9: memref<1x4xf32, #tpu.memory_space<vmem>>, %arg10: memref<1x16x16x4xf32, #tpu.memory_space<vmem>>, %arg11: memref<19x24x4xf32, #tpu.memory_space<vmem>>) attributes {dimension_semantics = [#tpu.dimension_semantics<parallel>], iteration_bounds = array<i64: 2>, scalar_prefetch = 0 : i64, scratch_operands = 1 : i64, tpu.core_type = #tpu.core_type<tc>, window_params = [{transform_indices = @transform_0, window_bounds = array<i64: 1, 16, 16, 4>}, {pipeline_mode = #tpu.pipeline_mode<synchronous>, transform_indices = @transform_1, window_bounds = array<i64: 3, 3, 4, 4>}, {pipeline_mode = #tpu.pipeline_mode<synchronous>, transform_indices = @transform_2, window_bounds = array<i64: 1, 4>}, {pipeline_mode = #tpu.pipeline_mode<synchronous>, transform_indices = @transform_3, window_bounds = array<i64: 1, 4>}, {pipeline_mode = #tpu.pipeline_mode<synchronous>, transform_indices = @transform_4, window_bounds = array<i64: 1, 4>}, {pipeline_mode = #tpu.pipeline_mode<synchronous>, transform_indices = @transform_5, window_bounds = array<i64: 3, 3, 4, 4>}, {pipeline_mode = #tpu.pipeline_mode<synchronous>, transform_indices = @transform_6, window_bounds = array<i64: 1, 4>}, {pipeline_mode = #tpu.pipeline_mode<synchronous>, transform_indices = @transform_7, window_bounds = array<i64: 1, 4>}, {pipeline_mode = #tpu.pipeline_mode<synchronous>, transform_indices = @transform_8, window_bounds = array<i64: 1, 4>}, {transform_indices = @transform_9, window_bounds = array<i64: 1, 16, 16, 4>}]} {
    %c0 = arith.constant 0 : index
    %c0_0 = arith.constant 0 : index
    %c0_1 = arith.constant 0 : index
    %c0_2 = arith.constant 0 : index
    %0 = vector.load %arg1[%c0, %c0_0, %c0_1, %c0_2] : memref<1x16x16x4xf32, #tpu.memory_space<vmem>>, vector<1x16x16x4xf32>
    %1 = vector.shape_cast %0 : vector<1x16x16x4xf32> to vector<16x16x4xf32>
    %c1 = arith.constant 1 : index
    %c1_3 = arith.constant 1 : index
    %c0_4 = arith.constant 0 : index
    %2 = vector.load %arg11[%c1, %c1_3, %c0_4] : memref<19x24x4xf32, #tpu.memory_space<vmem>>, vector<16x16x4xf32>
    tpu.vector_store %arg11[%c1, %c1_3, %c0_4], %1 {strides = array<i32>} : memref<19x24x4xf32, #tpu.memory_space<vmem>>, vector<16x16x4xf32>,
    %3 = vector.extract_strided_slice %1 {offsets = [1, 0, 0], sizes = [1, 16, 4], strides = [1, 1, 1]} : vector<16x16x4xf32> to vector<1x16x4xf32>
    %c0_5 = arith.constant 0 : index
    %c1_6 = arith.constant 1 : index
    %c0_7 = arith.constant 0 : index
    %4 = vector.load %arg11[%c0_5, %c1_6, %c0_7] : memref<19x24x4xf32, #tpu.memory_space<vmem>>, vector<1x16x4xf32>
    tpu.vector_store %arg11[%c0_5, %c1_6, %c0_7], %3 {strides = array<i32>} : memref<19x24x4xf32, #tpu.memory_space<vmem>>, vector<1x16x4xf32>,
    %5 = vector.extract_strided_slice %1 {offsets = [14, 0, 0], sizes = [1, 16, 4], strides = [1, 1, 1]} : vector<16x16x4xf32> to vector<1x16x4xf32>
    %c17 = arith.constant 17 : index
    %c1_8 = arith.constant 1 : index
    %c0_9 = arith.constant 0 : index
    %6 = vector.load %arg11[%c17, %c1_8, %c0_9] : memref<19x24x4xf32, #tpu.memory_space<vmem>>, vector<1x16x4xf32>
    tpu.vector_store %arg11[%c17, %c1_8, %c0_9], %5 {strides = array<i32>} : memref<19x24x4xf32, #tpu.memory_space<vmem>>, vector<1x16x4xf32>,
    %cst = arith.constant 0.000000e+00 : f32
    %7 = vector.broadcast %cst : f32 to vector<1x24x4xf32>
    %c18 = arith.constant 18 : index
    %c0_10 = arith.constant 0 : index
    %c0_11 = arith.constant 0 : index
    %8 = vector.load %arg11[%c18, %c0_10, %c0_11] : memref<19x24x4xf32, #tpu.memory_space<vmem>>, vector<1x24x4xf32>
    tpu.vector_store %arg11[%c18, %c0_10, %c0_11], %7 {strides = array<i32>} : memref<19x24x4xf32, #tpu.memory_space<vmem>>, vector<1x24x4xf32>,
    %cst_12 = arith.constant 0.000000e+00 : f32
    %9 = vector.broadcast %cst_12 : f32 to vector<19x6x4xf32>
    %c0_13 = arith.constant 0 : index
    %c18_14 = arith.constant 18 : index
    %c0_15 = arith.constant 0 : index
    %10 = vector.load %arg11[%c0_13, %c18_14, %c0_15] : memref<19x24x4xf32, #tpu.memory_space<vmem>>, vector<19x6x4xf32>
    tpu.vector_store %arg11[%c0_13, %c18_14, %c0_15], %9 {strides = array<i32>} : memref<19x24x4xf32, #tpu.memory_space<vmem>>, vector<19x6x4xf32>,
    %c0_16 = arith.constant 0 : index
    %c2 = arith.constant 2 : index
    %c0_17 = arith.constant 0 : index
    %11 = vector.load %arg11[%c0_16, %c2, %c0_17] : memref<19x24x4xf32, #tpu.memory_space<vmem>>, vector<19x1x4xf32>
    %c0_18 = arith.constant 0 : index
    %c0_19 = arith.constant 0 : index
    %c0_20 = arith.constant 0 : index
    %12 = vector.load %arg11[%c0_18, %c0_19, %c0_20] : memref<19x24x4xf32, #tpu.memory_space<vmem>>, vector<19x1x4xf32>
    tpu.vector_store %arg11[%c0_18, %c0_19, %c0_20], %11 {strides = array<i32>} : memref<19x24x4xf32, #tpu.memory_space<vmem>>, vector<19x1x4xf32>,
    %c0_21 = arith.constant 0 : index
    %c15 = arith.constant 15 : index
    %c0_22 = arith.constant 0 : index
    %13 = vector.load %arg11[%c0_21, %c15, %c0_22] : memref<19x24x4xf32, #tpu.memory_space<vmem>>, vector<19x1x4xf32>
    %c0_23 = arith.constant 0 : index
    %c17_24 = arith.constant 17 : index
    %c0_25 = arith.constant 0 : index
    %14 = vector.load %arg11[%c0_23, %c17_24, %c0_25] : memref<19x24x4xf32, #tpu.memory_space<vmem>>, vector<19x1x4xf32>
    tpu.vector_store %arg11[%c0_23, %c17_24, %c0_25], %13 {strides = array<i32>} : memref<19x24x4xf32, #tpu.memory_space<vmem>>, vector<19x1x4xf32>,
    %c0_26 = arith.constant 0 : index
    %c0_27 = arith.constant 0 : index
    %c0_28 = arith.constant 0 : index
    %15 = vector.load %arg11[%c0_26, %c0_27, %c0_28] : memref<19x24x4xf32, #tpu.memory_space<vmem>>, vector<19x24x4xf32>
    %16 = vector.shape_cast %15 : vector<19x24x4xf32> to vector<456x4xf32>
    %17 = arith.truncf %16 : vector<456x4xf32> to vector<456x4xbf16>
    %c0_29 = arith.constant 0 : index
    %c0_30 = arith.constant 0 : index
    %18 = vector.load %arg3[%c0_29, %c0_30] : memref<1x4xf32, #tpu.memory_space<vmem>>, vector<1x4xf32>
    %19 = vector.shape_cast %18 : vector<1x4xf32> to vector<1x4xf32>
    %20 = vector.broadcast %19 : vector<1x4xf32> to vector<384x4xf32>
    %c0_31 = arith.constant 0 : index
    %c0_32 = arith.constant 0 : index
    %c0_33 = arith.constant 0 : index
    %c0_34 = arith.constant 0 : index
    %21 = vector.load %arg2[%c0_31, %c0_32, %c0_33, %c0_34] : memref<3x3x4x4xbf16, #tpu.memory_space<vmem>>, vector<1x1x4x4xbf16>
    %22 = vector.shape_cast %21 : vector<1x1x4x4xbf16> to vector<4x4xbf16>
    %cst_35 = arith.constant dense<0.000000e+00> : vector<456x4xf32>
    %23 = tpu.matmul %17, %22, %cst_35 {dimension_numbers = #tpu.dot_dimension_numbers<[1], [0], [0], [1], [0, 0, 1, 1], [], []>} : vector<456x4xbf16>, vector<4x4xbf16>, vector<456x4xf32> -> vector<456x4xf32>
    %24 = vector.extract_strided_slice %23 {offsets = [0, 0], sizes = [384, 4], strides = [1, 1]} : vector<456x4xf32> to vector<384x4xf32>
    %25 = arith.addf %20, %24 : vector<384x4xf32>
    %c0_36 = arith.constant 0 : index
    %c1_37 = arith.constant 1 : index
    %c0_38 = arith.constant 0 : index
    %c0_39 = arith.constant 0 : index
    %26 = vector.load %arg2[%c0_36, %c1_37, %c0_38, %c0_39] : memref<3x3x4x4xbf16, #tpu.memory_space<vmem>>, vector<1x1x4x4xbf16>
    %27 = vector.shape_cast %26 : vector<1x1x4x4xbf16> to vector<4x4xbf16>
    %cst_40 = arith.constant dense<0.000000e+00> : vector<456x4xf32>
    %28 = tpu.matmul %17, %27, %cst_40 {dimension_numbers = #tpu.dot_dimension_numbers<[1], [0], [0], [1], [0, 0, 1, 1], [], []>} : vector<456x4xbf16>, vector<4x4xbf16>, vector<456x4xf32> -> vector<456x4xf32>
    %29 = vector.extract_strided_slice %28 {offsets = [1, 0], sizes = [384, 4], strides = [1, 1]} : vector<456x4xf32> to vector<384x4xf32>
    %30 = arith.addf %25, %29 : vector<384x4xf32>
    %c0_41 = arith.constant 0 : index
    %c2_42 = arith.constant 2 : index
    %c0_43 = arith.constant 0 : index
    %c0_44 = arith.constant 0 : index
    %31 = vector.load %arg2[%c0_41, %c2_42, %c0_43, %c0_44] : memref<3x3x4x4xbf16, #tpu.memory_space<vmem>>, vector<1x1x4x4xbf16>
    %32 = vector.shape_cast %31 : vector<1x1x4x4xbf16> to vector<4x4xbf16>
    %cst_45 = arith.constant dense<0.000000e+00> : vector<456x4xf32>
    %33 = tpu.matmul %17, %32, %cst_45 {dimension_numbers = #tpu.dot_dimension_numbers<[1], [0], [0], [1], [0, 0, 1, 1], [], []>} : vector<456x4xbf16>, vector<4x4xbf16>, vector<456x4xf32> -> vector<456x4xf32>
    %34 = vector.extract_strided_slice %33 {offsets = [2, 0], sizes = [384, 4], strides = [1, 1]} : vector<456x4xf32> to vector<384x4xf32>
    %35 = arith.addf %30, %34 : vector<384x4xf32>
    %c1_46 = arith.constant 1 : index
    %c0_47 = arith.constant 0 : index
    %c0_48 = arith.constant 0 : index
    %c0_49 = arith.constant 0 : index
    %36 = vector.load %arg2[%c1_46, %c0_47, %c0_48, %c0_49] : memref<3x3x4x4xbf16, #tpu.memory_space<vmem>>, vector<1x1x4x4xbf16>
    %37 = vector.shape_cast %36 : vector<1x1x4x4xbf16> to vector<4x4xbf16>
    %cst_50 = arith.constant dense<0.000000e+00> : vector<456x4xf32>
    %38 = tpu.matmul %17, %37, %cst_50 {dimension_numbers = #tpu.dot_dimension_numbers<[1], [0], [0], [1], [0, 0, 1, 1], [], []>} : vector<456x4xbf16>, vector<4x4xbf16>, vector<456x4xf32> -> vector<456x4xf32>
    %39 = vector.extract_strided_slice %38 {offsets = [24, 0], sizes = [384, 4], strides = [1, 1]} : vector<456x4xf32> to vector<384x4xf32>
    %40 = arith.addf %35, %39 : vector<384x4xf32>
    %c1_51 = arith.constant 1 : index
    %c1_52 = arith.constant 1 : index
    %c0_53 = arith.constant 0 : index
    %c0_54 = arith.constant 0 : index
    %41 = vector.load %arg2[%c1_51, %c1_52, %c0_53, %c0_54] : memref<3x3x4x4xbf16, #tpu.memory_space<vmem>>, vector<1x1x4x4xbf16>
    %42 = vector.shape_cast %41 : vector<1x1x4x4xbf16> to vector<4x4xbf16>
    %cst_55 = arith.constant dense<0.000000e+00> : vector<456x4xf32>
    %43 = tpu.matmul %17, %42, %cst_55 {dimension_numbers = #tpu.dot_dimension_numbers<[1], [0], [0], [1], [0, 0, 1, 1], [], []>} : vector<456x4xbf16>, vector<4x4xbf16>, vector<456x4xf32> -> vector<456x4xf32>
    %44 = vector.extract_strided_slice %43 {offsets = [25, 0], sizes = [384, 4], strides = [1, 1]} : vector<456x4xf32> to vector<384x4xf32>
    %45 = arith.addf %40, %44 : vector<384x4xf32>
    %c1_56 = arith.constant 1 : index
    %c2_57 = arith.constant 2 : index
    %c0_58 = arith.constant 0 : index
    %c0_59 = arith.constant 0 : index
    %46 = vector.load %arg2[%c1_56, %c2_57, %c0_58, %c0_59] : memref<3x3x4x4xbf16, #tpu.memory_space<vmem>>, vector<1x1x4x4xbf16>
    %47 = vector.shape_cast %46 : vector<1x1x4x4xbf16> to vector<4x4xbf16>
    %cst_60 = arith.constant dense<0.000000e+00> : vector<456x4xf32>
    %48 = tpu.matmul %17, %47, %cst_60 {dimension_numbers = #tpu.dot_dimension_numbers<[1], [0], [0], [1], [0, 0, 1, 1], [], []>} : vector<456x4xbf16>, vector<4x4xbf16>, vector<456x4xf32> -> vector<456x4xf32>
    %49 = vector.extract_strided_slice %48 {offsets = [26, 0], sizes = [384, 4], strides = [1, 1]} : vector<456x4xf32> to vector<384x4xf32>
    %50 = arith.addf %45, %49 : vector<384x4xf32>
    %c2_61 = arith.constant 2 : index
    %c0_62 = arith.constant 0 : index
    %c0_63 = arith.constant 0 : index
    %c0_64 = arith.constant 0 : index
    %51 = vector.load %arg2[%c2_61, %c0_62, %c0_63, %c0_64] : memref<3x3x4x4xbf16, #tpu.memory_space<vmem>>, vector<1x1x4x4xbf16>
    %52 = vector.shape_cast %51 : vector<1x1x4x4xbf16> to vector<4x4xbf16>
    %cst_65 = arith.constant dense<0.000000e+00> : vector<456x4xf32>
    %53 = tpu.matmul %17, %52, %cst_65 {dimension_numbers = #tpu.dot_dimension_numbers<[1], [0], [0], [1], [0, 0, 1, 1], [], []>} : vector<456x4xbf16>, vector<4x4xbf16>, vector<456x4xf32> -> vector<456x4xf32>
    %54 = vector.extract_strided_slice %53 {offsets = [48, 0], sizes = [384, 4], strides = [1, 1]} : vector<456x4xf32> to vector<384x4xf32>
    %55 = arith.addf %50, %54 : vector<384x4xf32>
    %c2_66 = arith.constant 2 : index
    %c1_67 = arith.constant 1 : index
    %c0_68 = arith.constant 0 : index
    %c0_69 = arith.constant 0 : index
    %56 = vector.load %arg2[%c2_66, %c1_67, %c0_68, %c0_69] : memref<3x3x4x4xbf16, #tpu.memory_space<vmem>>, vector<1x1x4x4xbf16>
    %57 = vector.shape_cast %56 : vector<1x1x4x4xbf16> to vector<4x4xbf16>
    %cst_70 = arith.constant dense<0.000000e+00> : vector<456x4xf32>
    %58 = tpu.matmul %17, %57, %cst_70 {dimension_numbers = #tpu.dot_dimension_numbers<[1], [0], [0], [1], [0, 0, 1, 1], [], []>} : vector<456x4xbf16>, vector<4x4xbf16>, vector<456x4xf32> -> vector<456x4xf32>
    %59 = vector.extract_strided_slice %58 {offsets = [49, 0], sizes = [384, 4], strides = [1, 1]} : vector<456x4xf32> to vector<384x4xf32>
    %60 = arith.addf %55, %59 : vector<384x4xf32>
    %c2_71 = arith.constant 2 : index
    %c2_72 = arith.constant 2 : index
    %c0_73 = arith.constant 0 : index
    %c0_74 = arith.constant 0 : index
    %61 = vector.load %arg2[%c2_71, %c2_72, %c0_73, %c0_74] : memref<3x3x4x4xbf16, #tpu.memory_space<vmem>>, vector<1x1x4x4xbf16>
    %62 = vector.shape_cast %61 : vector<1x1x4x4xbf16> to vector<4x4xbf16>
    %cst_75 = arith.constant dense<0.000000e+00> : vector<456x4xf32>
    %63 = tpu.matmul %17, %62, %cst_75 {dimension_numbers = #tpu.dot_dimension_numbers<[1], [0], [0], [1], [0, 0, 1, 1], [], []>} : vector<456x4xbf16>, vector<4x4xbf16>, vector<456x4xf32> -> vector<456x4xf32>
    %64 = vector.extract_strided_slice %63 {offsets = [50, 0], sizes = [384, 4], strides = [1, 1]} : vector<456x4xf32> to vector<384x4xf32>
    %65 = arith.addf %60, %64 : vector<384x4xf32>
    %66 = vector.shape_cast %65 : vector<384x4xf32> to vector<16x24x4xf32>
    %67 = vector.extract_strided_slice %66 {offsets = [0, 0, 0], sizes = [16, 16, 4], strides = [1, 1, 1]} : vector<16x24x4xf32> to vector<16x16x4xf32>
    %cst_76 = arith.constant dense<0.000000e+00> : vector<16x4xf32>
    %68 = vector.multi_reduction <add>, %67, %cst_76 [0] : vector<16x16x4xf32> to vector<16x4xf32>
    %69 = vector.shape_cast %68 : vector<16x4xf32> to vector<1x16x4xf32>
    %cst_77 = arith.constant dense<0.000000e+00> : vector<1x4xf32>
    %70 = vector.multi_reduction <add>, %69, %cst_77 [1] : vector<1x16x4xf32> to vector<1x4xf32>
    %71 = vector.shape_cast %70 : vector<1x4xf32> to vector<1x1x4xf32>
    %72 = arith.mulf %67, %67 : vector<16x16x4xf32>
    %cst_78 = arith.constant dense<0.000000e+00> : vector<16x4xf32>
    %73 = vector.multi_reduction <add>, %72, %cst_78 [0] : vector<16x16x4xf32> to vector<16x4xf32>
    %74 = vector.shape_cast %73 : vector<16x4xf32> to vector<1x16x4xf32>
    %cst_79 = arith.constant dense<0.000000e+00> : vector<1x4xf32>
    %75 = vector.multi_reduction <add>, %74, %cst_79 [1] : vector<1x16x4xf32> to vector<1x4xf32>
    %76 = vector.shape_cast %75 : vector<1x4xf32> to vector<1x1x4xf32>
    %cst_80 = arith.constant 3.906250e-03 : f32
    %77 = vector.broadcast %cst_80 : f32 to vector<1x1x4xf32>
    %78 = arith.mulf %71, %77 : vector<1x1x4xf32>
    %cst_81 = arith.constant 3.906250e-03 : f32
    %79 = vector.broadcast %cst_81 : f32 to vector<1x1x4xf32>
    %80 = arith.mulf %76, %79 : vector<1x1x4xf32>
    %81 = arith.mulf %78, %78 : vector<1x1x4xf32>
    %82 = arith.subf %80, %81 : vector<1x1x4xf32>
    %cst_82 = arith.constant 0.000000e+00 : f32
    %83 = vector.broadcast %cst_82 : f32 to vector<1x1x4xf32>
    %84 = arith.maximumf %82, %83 : vector<1x1x4xf32>
    %c0_83 = arith.constant 0 : index
    %c0_84 = arith.constant 0 : index
    %85 = vector.load %arg4[%c0_83, %c0_84] : memref<1x4xf32, #tpu.memory_space<vmem>>, vector<1x4xf32>
    %86 = vector.shape_cast %85 : vector<1x4xf32> to vector<1x1x4xf32>
    %cst_85 = arith.constant 9.99999974E-6 : f32
    %87 = vector.broadcast %cst_85 : f32 to vector<1x1x4xf32>
    %88 = arith.addf %84, %87 : vector<1x1x4xf32>
    %89 = math.rsqrt %88 : vector<1x1x4xf32>
    %90 = arith.mulf %86, %89 : vector<1x1x4xf32>
    %c0_86 = arith.constant 0 : index
    %c0_87 = arith.constant 0 : index
    %91 = vector.load %arg5[%c0_86, %c0_87] : memref<1x4xf32, #tpu.memory_space<vmem>>, vector<1x4xf32>
    %92 = vector.shape_cast %91 : vector<1x4xf32> to vector<1x1x4xf32>
    %93 = arith.mulf %78, %90 : vector<1x1x4xf32>
    %94 = arith.subf %92, %93 : vector<1x1x4xf32>
    %95 = vector.broadcast %90 : vector<1x1x4xf32> to vector<16x16x4xf32>
    %96 = arith.mulf %67, %95 : vector<16x16x4xf32>
    %97 = vector.broadcast %94 : vector<1x1x4xf32> to vector<16x16x4xf32>
    %98 = arith.addf %96, %97 : vector<16x16x4xf32>
    %cst_88 = arith.constant 0.000000e+00 : f32
    %99 = vector.broadcast %cst_88 : f32 to vector<16x16x4xf32>
    %100 = arith.maximumf %98, %99 : vector<16x16x4xf32>
    %c1_89 = arith.constant 1 : index
    %c1_90 = arith.constant 1 : index
    %c0_91 = arith.constant 0 : index
    %101 = vector.load %arg11[%c1_89, %c1_90, %c0_91] : memref<19x24x4xf32, #tpu.memory_space<vmem>>, vector<16x16x4xf32>
    tpu.vector_store %arg11[%c1_89, %c1_90, %c0_91], %100 {strides = array<i32>} : memref<19x24x4xf32, #tpu.memory_space<vmem>>, vector<16x16x4xf32>,
    %102 = vector.extract_strided_slice %100 {offsets = [1, 0, 0], sizes = [1, 16, 4], strides = [1, 1, 1]} : vector<16x16x4xf32> to vector<1x16x4xf32>
    %c0_92 = arith.constant 0 : index
    %c1_93 = arith.constant 1 : index
    %c0_94 = arith.constant 0 : index
    %103 = vector.load %arg11[%c0_92, %c1_93, %c0_94] : memref<19x24x4xf32, #tpu.memory_space<vmem>>, vector<1x16x4xf32>
    tpu.vector_store %arg11[%c0_92, %c1_93, %c0_94], %102 {strides = array<i32>} : memref<19x24x4xf32, #tpu.memory_space<vmem>>, vector<1x16x4xf32>,
    %104 = vector.extract_strided_slice %100 {offsets = [14, 0, 0], sizes = [1, 16, 4], strides = [1, 1, 1]} : vector<16x16x4xf32> to vector<1x16x4xf32>
    %c17_95 = arith.constant 17 : index
    %c1_96 = arith.constant 1 : index
    %c0_97 = arith.constant 0 : index
    %105 = vector.load %arg11[%c17_95, %c1_96, %c0_97] : memref<19x24x4xf32, #tpu.memory_space<vmem>>, vector<1x16x4xf32>
    tpu.vector_store %arg11[%c17_95, %c1_96, %c0_97], %104 {strides = array<i32>} : memref<19x24x4xf32, #tpu.memory_space<vmem>>, vector<1x16x4xf32>,
    %cst_98 = arith.constant 0.000000e+00 : f32
    %106 = vector.broadcast %cst_98 : f32 to vector<1x24x4xf32>
    %c18_99 = arith.constant 18 : index
    %c0_100 = arith.constant 0 : index
    %c0_101 = arith.constant 0 : index
    %107 = vector.load %arg11[%c18_99, %c0_100, %c0_101] : memref<19x24x4xf32, #tpu.memory_space<vmem>>, vector<1x24x4xf32>
    tpu.vector_store %arg11[%c18_99, %c0_100, %c0_101], %106 {strides = array<i32>} : memref<19x24x4xf32, #tpu.memory_space<vmem>>, vector<1x24x4xf32>,
    %cst_102 = arith.constant 0.000000e+00 : f32
    %108 = vector.broadcast %cst_102 : f32 to vector<19x6x4xf32>
    %c0_103 = arith.constant 0 : index
    %c18_104 = arith.constant 18 : index
    %c0_105 = arith.constant 0 : index
    %109 = vector.load %arg11[%c0_103, %c18_104, %c0_105] : memref<19x24x4xf32, #tpu.memory_space<vmem>>, vector<19x6x4xf32>
    tpu.vector_store %arg11[%c0_103, %c18_104, %c0_105], %108 {strides = array<i32>} : memref<19x24x4xf32, #tpu.memory_space<vmem>>, vector<19x6x4xf32>,
    %c0_106 = arith.constant 0 : index
    %c2_107 = arith.constant 2 : index
    %c0_108 = arith.constant 0 : index
    %110 = vector.load %arg11[%c0_106, %c2_107, %c0_108] : memref<19x24x4xf32, #tpu.memory_space<vmem>>, vector<19x1x4xf32>
    %c0_109 = arith.constant 0 : index
    %c0_110 = arith.constant 0 : index
    %c0_111 = arith.constant 0 : index
    %111 = vector.load %arg11[%c0_109, %c0_110, %c0_111] : memref<19x24x4xf32, #tpu.memory_space<vmem>>, vector<19x1x4xf32>
    tpu.vector_store %arg11[%c0_109, %c0_110, %c0_111], %110 {strides = array<i32>} : memref<19x24x4xf32, #tpu.memory_space<vmem>>, vector<19x1x4xf32>,
    %c0_112 = arith.constant 0 : index
    %c15_113 = arith.constant 15 : index
    %c0_114 = arith.constant 0 : index
    %112 = vector.load %arg11[%c0_112, %c15_113, %c0_114] : memref<19x24x4xf32, #tpu.memory_space<vmem>>, vector<19x1x4xf32>
    %c0_115 = arith.constant 0 : index
    %c17_116 = arith.constant 17 : index
    %c0_117 = arith.constant 0 : index
    %113 = vector.load %arg11[%c0_115, %c17_116, %c0_117] : memref<19x24x4xf32, #tpu.memory_space<vmem>>, vector<19x1x4xf32>
    tpu.vector_store %arg11[%c0_115, %c17_116, %c0_117], %112 {strides = array<i32>} : memref<19x24x4xf32, #tpu.memory_space<vmem>>, vector<19x1x4xf32>,
    %c0_118 = arith.constant 0 : index
    %c0_119 = arith.constant 0 : index
    %c0_120 = arith.constant 0 : index
    %114 = vector.load %arg11[%c0_118, %c0_119, %c0_120] : memref<19x24x4xf32, #tpu.memory_space<vmem>>, vector<19x24x4xf32>
    %115 = vector.shape_cast %114 : vector<19x24x4xf32> to vector<456x4xf32>
    %116 = arith.truncf %115 : vector<456x4xf32> to vector<456x4xbf16>
    %c0_121 = arith.constant 0 : index
    %c0_122 = arith.constant 0 : index
    %117 = vector.load %arg7[%c0_121, %c0_122] : memref<1x4xf32, #tpu.memory_space<vmem>>, vector<1x4xf32>
    %118 = vector.shape_cast %117 : vector<1x4xf32> to vector<1x4xf32>
    %119 = vector.broadcast %118 : vector<1x4xf32> to vector<384x4xf32>
    %c0_123 = arith.constant 0 : index
    %c0_124 = arith.constant 0 : index
    %c0_125 = arith.constant 0 : index
    %c0_126 = arith.constant 0 : index
    %120 = vector.load %arg6[%c0_123, %c0_124, %c0_125, %c0_126] : memref<3x3x4x4xbf16, #tpu.memory_space<vmem>>, vector<1x1x4x4xbf16>
    %121 = vector.shape_cast %120 : vector<1x1x4x4xbf16> to vector<4x4xbf16>
    %cst_127 = arith.constant dense<0.000000e+00> : vector<456x4xf32>
    %122 = tpu.matmul %116, %121, %cst_127 {dimension_numbers = #tpu.dot_dimension_numbers<[1], [0], [0], [1], [0, 0, 1, 1], [], []>} : vector<456x4xbf16>, vector<4x4xbf16>, vector<456x4xf32> -> vector<456x4xf32>
    %123 = vector.extract_strided_slice %122 {offsets = [0, 0], sizes = [384, 4], strides = [1, 1]} : vector<456x4xf32> to vector<384x4xf32>
    %124 = arith.addf %119, %123 : vector<384x4xf32>
    %c0_128 = arith.constant 0 : index
    %c1_129 = arith.constant 1 : index
    %c0_130 = arith.constant 0 : index
    %c0_131 = arith.constant 0 : index
    %125 = vector.load %arg6[%c0_128, %c1_129, %c0_130, %c0_131] : memref<3x3x4x4xbf16, #tpu.memory_space<vmem>>, vector<1x1x4x4xbf16>
    %126 = vector.shape_cast %125 : vector<1x1x4x4xbf16> to vector<4x4xbf16>
    %cst_132 = arith.constant dense<0.000000e+00> : vector<456x4xf32>
    %127 = tpu.matmul %116, %126, %cst_132 {dimension_numbers = #tpu.dot_dimension_numbers<[1], [0], [0], [1], [0, 0, 1, 1], [], []>} : vector<456x4xbf16>, vector<4x4xbf16>, vector<456x4xf32> -> vector<456x4xf32>
    %128 = vector.extract_strided_slice %127 {offsets = [1, 0], sizes = [384, 4], strides = [1, 1]} : vector<456x4xf32> to vector<384x4xf32>
    %129 = arith.addf %124, %128 : vector<384x4xf32>
    %c0_133 = arith.constant 0 : index
    %c2_134 = arith.constant 2 : index
    %c0_135 = arith.constant 0 : index
    %c0_136 = arith.constant 0 : index
    %130 = vector.load %arg6[%c0_133, %c2_134, %c0_135, %c0_136] : memref<3x3x4x4xbf16, #tpu.memory_space<vmem>>, vector<1x1x4x4xbf16>
    %131 = vector.shape_cast %130 : vector<1x1x4x4xbf16> to vector<4x4xbf16>
    %cst_137 = arith.constant dense<0.000000e+00> : vector<456x4xf32>
    %132 = tpu.matmul %116, %131, %cst_137 {dimension_numbers = #tpu.dot_dimension_numbers<[1], [0], [0], [1], [0, 0, 1, 1], [], []>} : vector<456x4xbf16>, vector<4x4xbf16>, vector<456x4xf32> -> vector<456x4xf32>
    %133 = vector.extract_strided_slice %132 {offsets = [2, 0], sizes = [384, 4], strides = [1, 1]} : vector<456x4xf32> to vector<384x4xf32>
    %134 = arith.addf %129, %133 : vector<384x4xf32>
    %c1_138 = arith.constant 1 : index
    %c0_139 = arith.constant 0 : index
    %c0_140 = arith.constant 0 : index
    %c0_141 = arith.constant 0 : index
    %135 = vector.load %arg6[%c1_138, %c0_139, %c0_140, %c0_141] : memref<3x3x4x4xbf16, #tpu.memory_space<vmem>>, vector<1x1x4x4xbf16>
    %136 = vector.shape_cast %135 : vector<1x1x4x4xbf16> to vector<4x4xbf16>
    %cst_142 = arith.constant dense<0.000000e+00> : vector<456x4xf32>
    %137 = tpu.matmul %116, %136, %cst_142 {dimension_numbers = #tpu.dot_dimension_numbers<[1], [0], [0], [1], [0, 0, 1, 1], [], []>} : vector<456x4xbf16>, vector<4x4xbf16>, vector<456x4xf32> -> vector<456x4xf32>
    %138 = vector.extract_strided_slice %137 {offsets = [24, 0], sizes = [384, 4], strides = [1, 1]} : vector<456x4xf32> to vector<384x4xf32>
    %139 = arith.addf %134, %138 : vector<384x4xf32>
    %c1_143 = arith.constant 1 : index
    %c1_144 = arith.constant 1 : index
    %c0_145 = arith.constant 0 : index
    %c0_146 = arith.constant 0 : index
    %140 = vector.load %arg6[%c1_143, %c1_144, %c0_145, %c0_146] : memref<3x3x4x4xbf16, #tpu.memory_space<vmem>>, vector<1x1x4x4xbf16>
    %141 = vector.shape_cast %140 : vector<1x1x4x4xbf16> to vector<4x4xbf16>
    %cst_147 = arith.constant dense<0.000000e+00> : vector<456x4xf32>
    %142 = tpu.matmul %116, %141, %cst_147 {dimension_numbers = #tpu.dot_dimension_numbers<[1], [0], [0], [1], [0, 0, 1, 1], [], []>} : vector<456x4xbf16>, vector<4x4xbf16>, vector<456x4xf32> -> vector<456x4xf32>
    %143 = vector.extract_strided_slice %142 {offsets = [25, 0], sizes = [384, 4], strides = [1, 1]} : vector<456x4xf32> to vector<384x4xf32>
    %144 = arith.addf %139, %143 : vector<384x4xf32>
    %c1_148 = arith.constant 1 : index
    %c2_149 = arith.constant 2 : index
    %c0_150 = arith.constant 0 : index
    %c0_151 = arith.constant 0 : index
    %145 = vector.load %arg6[%c1_148, %c2_149, %c0_150, %c0_151] : memref<3x3x4x4xbf16, #tpu.memory_space<vmem>>, vector<1x1x4x4xbf16>
    %146 = vector.shape_cast %145 : vector<1x1x4x4xbf16> to vector<4x4xbf16>
    %cst_152 = arith.constant dense<0.000000e+00> : vector<456x4xf32>
    %147 = tpu.matmul %116, %146, %cst_152 {dimension_numbers = #tpu.dot_dimension_numbers<[1], [0], [0], [1], [0, 0, 1, 1], [], []>} : vector<456x4xbf16>, vector<4x4xbf16>, vector<456x4xf32> -> vector<456x4xf32>
    %148 = vector.extract_strided_slice %147 {offsets = [26, 0], sizes = [384, 4], strides = [1, 1]} : vector<456x4xf32> to vector<384x4xf32>
    %149 = arith.addf %144, %148 : vector<384x4xf32>
    %c2_153 = arith.constant 2 : index
    %c0_154 = arith.constant 0 : index
    %c0_155 = arith.constant 0 : index
    %c0_156 = arith.constant 0 : index
    %150 = vector.load %arg6[%c2_153, %c0_154, %c0_155, %c0_156] : memref<3x3x4x4xbf16, #tpu.memory_space<vmem>>, vector<1x1x4x4xbf16>
    %151 = vector.shape_cast %150 : vector<1x1x4x4xbf16> to vector<4x4xbf16>
    %cst_157 = arith.constant dense<0.000000e+00> : vector<456x4xf32>
    %152 = tpu.matmul %116, %151, %cst_157 {dimension_numbers = #tpu.dot_dimension_numbers<[1], [0], [0], [1], [0, 0, 1, 1], [], []>} : vector<456x4xbf16>, vector<4x4xbf16>, vector<456x4xf32> -> vector<456x4xf32>
    %153 = vector.extract_strided_slice %152 {offsets = [48, 0], sizes = [384, 4], strides = [1, 1]} : vector<456x4xf32> to vector<384x4xf32>
    %154 = arith.addf %149, %153 : vector<384x4xf32>
    %c2_158 = arith.constant 2 : index
    %c1_159 = arith.constant 1 : index
    %c0_160 = arith.constant 0 : index
    %c0_161 = arith.constant 0 : index
    %155 = vector.load %arg6[%c2_158, %c1_159, %c0_160, %c0_161] : memref<3x3x4x4xbf16, #tpu.memory_space<vmem>>, vector<1x1x4x4xbf16>
    %156 = vector.shape_cast %155 : vector<1x1x4x4xbf16> to vector<4x4xbf16>
    %cst_162 = arith.constant dense<0.000000e+00> : vector<456x4xf32>
    %157 = tpu.matmul %116, %156, %cst_162 {dimension_numbers = #tpu.dot_dimension_numbers<[1], [0], [0], [1], [0, 0, 1, 1], [], []>} : vector<456x4xbf16>, vector<4x4xbf16>, vector<456x4xf32> -> vector<456x4xf32>
    %158 = vector.extract_strided_slice %157 {offsets = [49, 0], sizes = [384, 4], strides = [1, 1]} : vector<456x4xf32> to vector<384x4xf32>
    %159 = arith.addf %154, %158 : vector<384x4xf32>
    %c2_163 = arith.constant 2 : index
    %c2_164 = arith.constant 2 : index
    %c0_165 = arith.constant 0 : index
    %c0_166 = arith.constant 0 : index
    %160 = vector.load %arg6[%c2_163, %c2_164, %c0_165, %c0_166] : memref<3x3x4x4xbf16, #tpu.memory_space<vmem>>, vector<1x1x4x4xbf16>
    %161 = vector.shape_cast %160 : vector<1x1x4x4xbf16> to vector<4x4xbf16>
    %cst_167 = arith.constant dense<0.000000e+00> : vector<456x4xf32>
    %162 = tpu.matmul %116, %161, %cst_167 {dimension_numbers = #tpu.dot_dimension_numbers<[1], [0], [0], [1], [0, 0, 1, 1], [], []>} : vector<456x4xbf16>, vector<4x4xbf16>, vector<456x4xf32> -> vector<456x4xf32>
    %163 = vector.extract_strided_slice %162 {offsets = [50, 0], sizes = [384, 4], strides = [1, 1]} : vector<456x4xf32> to vector<384x4xf32>
    %164 = arith.addf %159, %163 : vector<384x4xf32>
    %165 = vector.shape_cast %164 : vector<384x4xf32> to vector<16x24x4xf32>
    %166 = vector.extract_strided_slice %165 {offsets = [0, 0, 0], sizes = [16, 16, 4], strides = [1, 1, 1]} : vector<16x24x4xf32> to vector<16x16x4xf32>
    %cst_168 = arith.constant dense<0.000000e+00> : vector<16x4xf32>
    %167 = vector.multi_reduction <add>, %166, %cst_168 [0] : vector<16x16x4xf32> to vector<16x4xf32>
    %168 = vector.shape_cast %167 : vector<16x4xf32> to vector<1x16x4xf32>
    %cst_169 = arith.constant dense<0.000000e+00> : vector<1x4xf32>
    %169 = vector.multi_reduction <add>, %168, %cst_169 [1] : vector<1x16x4xf32> to vector<1x4xf32>
    %170 = vector.shape_cast %169 : vector<1x4xf32> to vector<1x1x4xf32>
    %171 = arith.mulf %166, %166 : vector<16x16x4xf32>
    %cst_170 = arith.constant dense<0.000000e+00> : vector<16x4xf32>
    %172 = vector.multi_reduction <add>, %171, %cst_170 [0] : vector<16x16x4xf32> to vector<16x4xf32>
    %173 = vector.shape_cast %172 : vector<16x4xf32> to vector<1x16x4xf32>
    %cst_171 = arith.constant dense<0.000000e+00> : vector<1x4xf32>
    %174 = vector.multi_reduction <add>, %173, %cst_171 [1] : vector<1x16x4xf32> to vector<1x4xf32>
    %175 = vector.shape_cast %174 : vector<1x4xf32> to vector<1x1x4xf32>
    %cst_172 = arith.constant 3.906250e-03 : f32
    %176 = vector.broadcast %cst_172 : f32 to vector<1x1x4xf32>
    %177 = arith.mulf %170, %176 : vector<1x1x4xf32>
    %cst_173 = arith.constant 3.906250e-03 : f32
    %178 = vector.broadcast %cst_173 : f32 to vector<1x1x4xf32>
    %179 = arith.mulf %175, %178 : vector<1x1x4xf32>
    %180 = arith.mulf %177, %177 : vector<1x1x4xf32>
    %181 = arith.subf %179, %180 : vector<1x1x4xf32>
    %cst_174 = arith.constant 0.000000e+00 : f32
    %182 = vector.broadcast %cst_174 : f32 to vector<1x1x4xf32>
    %183 = arith.maximumf %181, %182 : vector<1x1x4xf32>
    %c0_175 = arith.constant 0 : index
    %c0_176 = arith.constant 0 : index
    %184 = vector.load %arg8[%c0_175, %c0_176] : memref<1x4xf32, #tpu.memory_space<vmem>>, vector<1x4xf32>
    %185 = vector.shape_cast %184 : vector<1x4xf32> to vector<1x1x4xf32>
    %cst_177 = arith.constant 9.99999974E-6 : f32
    %186 = vector.broadcast %cst_177 : f32 to vector<1x1x4xf32>
    %187 = arith.addf %183, %186 : vector<1x1x4xf32>
    %188 = math.rsqrt %187 : vector<1x1x4xf32>
    %189 = arith.mulf %185, %188 : vector<1x1x4xf32>
    %c0_178 = arith.constant 0 : index
    %c0_179 = arith.constant 0 : index
    %190 = vector.load %arg9[%c0_178, %c0_179] : memref<1x4xf32, #tpu.memory_space<vmem>>, vector<1x4xf32>
    %191 = vector.shape_cast %190 : vector<1x4xf32> to vector<1x1x4xf32>
    %192 = arith.mulf %177, %189 : vector<1x1x4xf32>
    %193 = arith.subf %191, %192 : vector<1x1x4xf32>
    %194 = vector.broadcast %189 : vector<1x1x4xf32> to vector<16x16x4xf32>
    %195 = arith.mulf %166, %194 : vector<16x16x4xf32>
    %196 = vector.broadcast %193 : vector<1x1x4xf32> to vector<16x16x4xf32>
    %197 = arith.addf %195, %196 : vector<16x16x4xf32>
    %198 = arith.addf %197, %1 : vector<16x16x4xf32>
    %c0_180 = arith.constant 0 : index
    %c0_181 = arith.constant 0 : index
    %c0_182 = arith.constant 0 : index
    %c0_183 = arith.constant 0 : index
    %199 = vector.load %arg10[%c0_180, %c0_181, %c0_182, %c0_183] : memref<1x16x16x4xf32, #tpu.memory_space<vmem>>, vector<1x16x16x4xf32>
    %200 = vector.shape_cast %199 : vector<1x16x16x4xf32> to vector<16x16x4xf32>
    %201 = vector.shape_cast %198 : vector<16x16x4xf32> to vector<1x16x16x4xf32>
    tpu.vector_store %arg10[%c0_180, %c0_181, %c0_182, %c0_183], %201 {strides = array<i32>} : memref<1x16x16x4xf32, #tpu.memory_space<vmem>>, vector<1x16x16x4xf32>,
    return
  }
  func.func @transform_0(%arg0: i32) -> (i32, i32, i32, i32) {
    %c0_i32 = arith.constant 0 : i32
    %c0_i32_0 = arith.constant 0 : i32
    %c0_i32_1 = arith.constant 0 : i32
    %c0_i32_2 = arith.constant 0 : i32
    return %arg0, %c0_i32, %c0_i32_0, %c0_i32_1 : i32, i32, i32, i32
  }
  func.func @transform_1(%arg0: i32) -> (i32, i32, i32, i32) {
    %c0_i32 = arith.constant 0 : i32
    %c0_i32_0 = arith.constant 0 : i32
    %c0_i32_1 = arith.constant 0 : i32
    %c0_i32_2 = arith.constant 0 : i32
    %c0_i32_3 = arith.constant 0 : i32
    return %c0_i32, %c0_i32_0, %c0_i32_1, %c0_i32_2 : i32, i32, i32, i32
  }
  func.func @transform_2(%arg0: i32) -> (i32, i32) {
    %c0_i32 = arith.constant 0 : i32
    %c0_i32_0 = arith.constant 0 : i32
    %c0_i32_1 = arith.constant 0 : i32
    return %c0_i32, %c0_i32_0 : i32, i32
  }
  func.func @transform_3(%arg0: i32) -> (i32, i32) {
    %c0_i32 = arith.constant 0 : i32
    %c0_i32_0 = arith.constant 0 : i32
    %c0_i32_1 = arith.constant 0 : i32
    return %c0_i32, %c0_i32_0 : i32, i32
  }
  func.func @transform_4(%arg0: i32) -> (i32, i32) {
    %c0_i32 = arith.constant 0 : i32
    %c0_i32_0 = arith.constant 0 : i32
    %c0_i32_1 = arith.constant 0 : i32
    return %c0_i32, %c0_i32_0 : i32, i32
  }
  func.func @transform_5(%arg0: i32) -> (i32, i32, i32, i32) {
    %c0_i32 = arith.constant 0 : i32
    %c0_i32_0 = arith.constant 0 : i32
    %c0_i32_1 = arith.constant 0 : i32
    %c0_i32_2 = arith.constant 0 : i32
    %c0_i32_3 = arith.constant 0 : i32
    return %c0_i32, %c0_i32_0, %c0_i32_1, %c0_i32_2 : i32, i32, i32, i32
  }
  func.func @transform_6(%arg0: i32) -> (i32, i32) {
    %c0_i32 = arith.constant 0 : i32
    %c0_i32_0 = arith.constant 0 : i32
    %c0_i32_1 = arith.constant 0 : i32
    return %c0_i32, %c0_i32_0 : i32, i32
  }
  func.func @transform_7(%arg0: i32) -> (i32, i32) {
    %c0_i32 = arith.constant 0 : i32
    %c0_i32_0 = arith.constant 0 : i32
    %c0_i32_1 = arith.constant 0 : i32
    return %c0_i32, %c0_i32_0 : i32, i32
  }
  func.func @transform_8(%arg0: i32) -> (i32, i32) {
    %c0_i32 = arith.constant 0 : i32
    %c0_i32_0 = arith.constant 0 : i32
    %c0_i32_1 = arith.constant 0 : i32
    return %c0_i32, %c0_i32_0 : i32, i32
  }
  func.func @transform_9(%arg0: i32) -> (i32, i32, i32, i32) {
    %c0_i32 = arith.constant 0 : i32
    %c0_i32_0 = arith.constant 0 : i32
    %c0_i32_1 = arith.constant 0 : i32
    %c0_i32_2 = arith.constant 0 : i32
    return %arg0, %c0_i32, %c0_i32_0, %c0_i32_1 : i32, i32, i32, i32
  }
}

</mosaic_0001>

<llo_original>
// kernel: tpu_custom_call.1
$region0: #{tpu_custom_call.1}
  #allocation0 [shape = 'u32[]', space=smem, size = 0x4, offset = 0x4, fixed_abs, tag = 'smem constant byte address 0x4 - core index']
  #allocation1 [shape = 'u32[144,128]{1,0:T(1,128)}', space=vmem, size = 0x12000, scoped, tag = 'internal scratch']
  #allocation2 [shape = 'f32[19,24,4]{2,1,0:T(8,128)}', space=vmem, size = 0x39000, scoped, tag = 'scratch operand']
  %s0 = inlined_call_operand.vmem [shape: f32[2,16,16,4], index: 0, kind: input, shape index: {}]
  %s1 = inlined_call_operand.vmem [shape: bf16[3,3,4,4], index: 1, kind: input, shape index: {}]
  %s2 = inlined_call_operand.vmem [shape: f32[1,4], index: 2, kind: input, shape index: {}]
  %s3 = inlined_call_operand.vmem [shape: f32[1,4], index: 3, kind: input, shape index: {}]
  %s4 = inlined_call_operand.vmem [shape: f32[1,4], index: 4, kind: input, shape index: {}]
  %s5 = inlined_call_operand.vmem [shape: bf16[3,3,4,4], index: 5, kind: input, shape index: {}]
  %s6 = inlined_call_operand.vmem [shape: f32[1,4], index: 6, kind: input, shape index: {}]
  %s7 = inlined_call_operand.vmem [shape: f32[1,4], index: 7, kind: input, shape index: {}]
  %s8 = inlined_call_operand.vmem [shape: f32[1,4], index: 8, kind: input, shape index: {}]
  %s9 = inlined_call_operand.vmem [shape: f32[2,16,16,4], index: 9, kind: output, shape index: {}]
  %s10 = sld [smem:[#allocation0]]
  $region69: #{tpu_custom_call.1} parent=0
    _
  %s12 = ssub.s32 1, %s10
  %s13 = scalar_select 0, %s12, %s10
  loop: start=0, step=1, limit=4
  $region2: #{tpu_custom_call.1} parent=0 // loop_pre_header
    _
  $region3: #{tpu_custom_call.1} parent=0 // loop_header
    %s15 = sphi 0, %s19
    %p16 = scmp.ge.s32.totalorder %s15, 4
    %s25 = sphi 0, %s27
    %s28 = sphi 0, %s25
    %s29 = sphi 0, %s28
    %s45 = sphi 0, %s29
    %s49 = sphi 0, %s49
    %s51 = sphi 0, %s49
    %s52 = sphi 0, %s51
    %s66 = sphi 0, %s52
    %s70 = sphi 0, %s70
    %s72 = sphi 0, %s70
    %s73 = sphi 0, %s72
    %s87 = sphi 0, %s73
    %s91 = sphi 0, %s91
    %s93 = sphi 0, %s91
    %s94 = sphi 0, %s93
    %s108 = sphi 0, %s94
    %s112 = sphi 0, %s112
    %s114 = sphi 0, %s112
    %s115 = sphi 0, %s114
    %s129 = sphi 0, %s115
    %s133 = sphi 0, %s133
    %s135 = sphi 0, %s133
    %s136 = sphi 0, %s135
    %s150 = sphi 0, %s136
    %s154 = sphi 0, %s154
    %s156 = sphi 0, %s154
    %s157 = sphi 0, %s156
    %s171 = sphi 0, %s157
    %s175 = sphi 0, %s175
    %s177 = sphi 0, %s175
    %s178 = sphi 0, %s177
    %s192 = sphi 0, %s178
    %s196 = sphi 0, %s196
    %s198 = sphi 0, %s196
    %s199 = sphi 0, %s198
    %s213 = sphi 0, %s199
    %s219 = sphi 0, %s221
    %s222 = sphi 0, %s219
    %s223 = sphi 0, %s222
    %s239 = sphi 0, %s223
  $region4: #{tpu_custom_call.1} parent=0 // loop_header_branch
    %18 = sbr.rel (%p16) target = $region8
  $region5: #{tpu_custom_call.1} parent=0 // loop_body
    %s20 = ssub.s32 %s15, 1
    %s21 = ssub.s32 %s15, 2
    %s22 = sadd.s32 %s15, 1
    %s23 = ssub.s32 %s15, %s22
    %p24 = scmp.eq.s32.totalorder %s23, 0
    %s26 = sadd.s32 %s25, 1
    %s27 = scalar_select %p24, %s25, %s26
    %p30 = pneg %p24
    %p31 = scmp.eq.s32.totalorder %s15, 1
    %p32 = por %p30, %p31
    %p33 = scmp.ne.s32.totalorder %s25, %s28
    %p34 = scmp.eq.s32.totalorder %s15, 0
    %p35 = por %p33, %p34
    %p36 = scmp.ne.s32.totalorder %s25, %s28
    %p37 = scmp.eq.s32.totalorder %s20, 1
    %p38 = por %p36, %p37
    %p39 = scmp.ne.s32.totalorder %s28, %s29
    %p40 = scmp.eq.s32.totalorder %s20, 0
    %p41 = por %p39, %p40
    %p42 = scmp.ne.s32.totalorder %s28, %s29
    %p43 = scmp.eq.s32.totalorder %s21, 1
    %p44 = por %p42, %p43
    %p46 = scmp.ne.s32.totalorder %s29, %s45
    %p47 = scmp.eq.s32.totalorder %s21, 0
    %p48 = por %p46, %p47
    %s50 = sadd.s32 %s49, 1
    %p53 = scmp.eq.s32.totalorder %s15, 1
    %p54 = scmp.ne.s32.totalorder %s49, %s51
    %p55 = scmp.eq.s32.totalorder %s15, 0
    %p56 = por %p54, %p55
    %p57 = scmp.ne.s32.totalorder %s49, %s51
    %p58 = scmp.eq.s32.totalorder %s20, 1
    %p59 = por %p57, %p58
    %p60 = scmp.ne.s32.totalorder %s51, %s52
    %p61 = scmp.eq.s32.totalorder %s20, 0
    %p62 = por %p60, %p61
    %p63 = scmp.ne.s32.totalorder %s51, %s52
    %p64 = scmp.eq.s32.totalorder %s21, 1
    %p65 = por %p63, %p64
    %p67 = scmp.ne.s32.totalorder %s52, %s66
    %p68 = scmp.eq.s32.totalorder %s21, 0
    %p69 = por %p67, %p68
    %s71 = sadd.s32 %s70, 1
    %p74 = scmp.eq.s32.totalorder %s15, 1
    %p75 = scmp.ne.s32.totalorder %s70, %s72
    %p76 = scmp.eq.s32.totalorder %s15, 0
    %p77 = por %p75, %p76
    %p78 = scmp.ne.s32.totalorder %s70, %s72
    %p79 = scmp.eq.s32.totalorder %s20, 1
    %p80 = por %p78, %p79
    %p81 = scmp.ne.s32.totalorder %s72, %s73
    %p82 = scmp.eq.s32.totalorder %s20, 0
    %p83 = por %p81, %p82
    %p84 = scmp.ne.s32.totalorder %s72, %s73
    %p85 = scmp.eq.s32.totalorder %s21, 1
    %p86 = por %p84, %p85
    %p88 = scmp.ne.s32.totalorder %s73, %s87
    %p89 = scmp.eq.s32.totalorder %s21, 0
    %p90 = por %p88, %p89
    %s92 = sadd.s32 %s91, 1
    %p95 = scmp.eq.s32.totalorder %s15, 1
    %p96 = scmp.ne.s32.totalorder %s91, %s93
    %p97 = scmp.eq.s32.totalorder %s15, 0
    %p98 = por %p96, %p97
    %p99 = scmp.ne.s32.totalorder %s91, %s93
    %p100 = scmp.eq.s32.totalorder %s20, 1
    %p101 = por %p99, %p100
    %p102 = scmp.ne.s32.totalorder %s93, %s94
    %p103 = scmp.eq.s32.totalorder %s20, 0
    %p104 = por %p102, %p103
    %p105 = scmp.ne.s32.totalorder %s93, %s94
    %p106 = scmp.eq.s32.totalorder %s21, 1
    %p107 = por %p105, %p106
    %p109 = scmp.ne.s32.totalorder %s94, %s108
    %p110 = scmp.eq.s32.totalorder %s21, 0
    %p111 = por %p109, %p110
    %s113 = sadd.s32 %s112, 1
    %p116 = scmp.eq.s32.totalorder %s15, 1
    %p117 = scmp.ne.s32.totalorder %s112, %s114
    %p118 = scmp.eq.s32.totalorder %s15, 0
    %p119 = por %p117, %p118
    %p120 = scmp.ne.s32.totalorder %s112, %s114
    %p121 = scmp.eq.s32.totalorder %s20, 1
    %p122 = por %p120, %p121
    %p123 = scmp.ne.s32.totalorder %s114, %s115
    %p124 = scmp.eq.s32.totalorder %s20, 0
    %p125 = por %p123, %p124
    %p126 = scmp.ne.s32.totalorder %s114, %s115
    %p127 = scmp.eq.s32.totalorder %s21, 1
    %p128 = por %p126, %p127
    %p130 = scmp.ne.s32.totalorder %s115, %s129
    %p131 = scmp.eq.s32.totalorder %s21, 0
    %p132 = por %p130, %p131
    %s134 = sadd.s32 %s133, 1
    %p137 = scmp.eq.s32.totalorder %s15, 1
    %p138 = scmp.ne.s32.totalorder %s133, %s135
    %p139 = scmp.eq.s32.totalorder %s15, 0
    %p140 = por %p138, %p139
    %p141 = scmp.ne.s32.totalorder %s133, %s135
    %p142 = scmp.eq.s32.totalorder %s20, 1
    %p143 = por %p141, %p142
    %p144 = scmp.ne.s32.totalorder %s135, %s136
    %p145 = scmp.eq.s32.totalorder %s20, 0
    %p146 = por %p144, %p145
    %p147 = scmp.ne.s32.totalorder %s135, %s136
    %p148 = scmp.eq.s32.totalorder %s21, 1
    %p149 = por %p147, %p148
    %p151 = scmp.ne.s32.totalorder %s136, %s150
    %p152 = scmp.eq.s32.totalorder %s21, 0
    %p153 = por %p151, %p152
    %s155 = sadd.s32 %s154, 1
    %p158 = scmp.eq.s32.totalorder %s15, 1
    %p159 = scmp.ne.s32.totalorder %s154, %s156
    %p160 = scmp.eq.s32.totalorder %s15, 0
    %p161 = por %p159, %p160
    %p162 = scmp.ne.s32.totalorder %s154, %s156
    %p163 = scmp.eq.s32.totalorder %s20, 1
    %p164 = por %p162, %p163
    %p165 = scmp.ne.s32.totalorder %s156, %s157
    %p166 = scmp.eq.s32.totalorder %s20, 0
    %p167 = por %p165, %p166
    %p168 = scmp.ne.s32.totalorder %s156, %s157
    %p169 = scmp.eq.s32.totalorder %s21, 1
    %p170 = por %p168, %p169
    %p172 = scmp.ne.s32.totalorder %s157, %s171
    %p173 = scmp.eq.s32.totalorder %s21, 0
    %p174 = por %p172, %p173
    %s176 = sadd.s32 %s175, 1
    %p179 = scmp.eq.s32.totalorder %s15, 1
    %p180 = scmp.ne.s32.totalorder %s175, %s177
    %p181 = scmp.eq.s32.totalorder %s15, 0
    %p182 = por %p180, %p181
    %p183 = scmp.ne.s32.totalorder %s175, %s177
    %p184 = scmp.eq.s32.totalorder %s20, 1
    %p185 = por %p183, %p184
    %p186 = scmp.ne.s32.totalorder %s177, %s178
    %p187 = scmp.eq.s32.totalorder %s20, 0
    %p188 = por %p186, %p187
    %p189 = scmp.ne.s32.totalorder %s177, %s178
    %p190 = scmp.eq.s32.totalorder %s21, 1
    %p191 = por %p189, %p190
    %p193 = scmp.ne.s32.totalorder %s178, %s192
    %p194 = scmp.eq.s32.totalorder %s21, 0
    %p195 = por %p193, %p194
    %s197 = sadd.s32 %s196, 1
    %p200 = scmp.eq.s32.totalorder %s15, 1
    %p201 = scmp.ne.s32.totalorder %s196, %s198
    %p202 = scmp.eq.s32.totalorder %s15, 0
    %p203 = por %p201, %p202
    %p204 = scmp.ne.s32.totalorder %s196, %s198
    %p205 = scmp.eq.s32.totalorder %s20, 1
    %p206 = por %p204, %p205
    %p207 = scmp.ne.s32.totalorder %s198, %s199
    %p208 = scmp.eq.s32.totalorder %s20, 0
    %p209 = por %p207, %p208
    %p210 = scmp.ne.s32.totalorder %s198, %s199
    %p211 = scmp.eq.s32.totalorder %s21, 1
    %p212 = por %p210, %p211
    %p214 = scmp.ne.s32.totalorder %s199, %s213
    %p215 = scmp.eq.s32.totalorder %s21, 0
    %p216 = por %p214, %p215
    %s217 = ssub.s32 %s15, %s22
    %p218 = scmp.eq.s32.totalorder %s217, 0
    %s220 = sadd.s32 %s219, 1
    %s221 = scalar_select %p218, %s219, %s220
    %p224 = pneg %p218
    %p225 = scmp.eq.s32.totalorder %s15, 1
    %p226 = por %p224, %p225
    %p227 = scmp.ne.s32.totalorder %s219, %s222
    %p228 = scmp.eq.s32.totalorder %s15, 0
    %p229 = por %p227, %p228
    %p230 = scmp.ne.s32.totalorder %s219, %s222
    %p231 = scmp.eq.s32.totalorder %s20, 1
    %p232 = por %p230, %p231
    %p233 = scmp.ne.s32.totalorder %s222, %s223
    %p234 = scmp.eq.s32.totalorder %s20, 0
    %p235 = por %p233, %p234
    %p236 = scmp.ne.s32.totalorder %s222, %s223
    %p237 = scmp.eq.s32.totalorder %s21, 1
    %p238 = por %p236, %p237
    %p240 = scmp.ne.s32.totalorder %s223, %s239
    %p241 = scmp.eq.s32.totalorder %s21, 0
    %p242 = por %p240, %p241
    %p243 = scmp.le.s32.totalorder 1, %s15
    %p244 = scmp.lt.s32.totalorder %s15, 3
    %p245 = pnand %p243, %p244
    %p246 = pneg %p245
    // Predicated region
    $region9: #{tpu_custom_call.1} parent=5 // pred_check
      _
    $region10: #{tpu_custom_call.1} parent=5 // pred_check_branch
      %248 = sbr.rel (%p245) target = $region12
    $region11: #{tpu_custom_call.1} parent=5 // pred_region
      %s249 = ssub.s32 %s15, 1
      // Predicated region
      $region13: #{tpu_custom_call.1} parent=11 // pred_check
        %p250 = pneg %p62
      $region14: #{tpu_custom_call.1} parent=11 // pred_check_branch
        %252 = sbr.rel (%p250) target = $region16
      $region15: #{tpu_custom_call.1} parent=11 // pred_region
        _
      $region16: #{tpu_custom_call.1} parent=11 // pred_fallthru
        _
      // Predicated region
      $region17: #{tpu_custom_call.1} parent=11 // pred_check
        %p253 = pneg %p83
      $region18: #{tpu_custom_call.1} parent=11 // pred_check_branch
        %255 = sbr.rel (%p253) target = $region20
      $region19: #{tpu_custom_call.1} parent=11 // pred_region
        _
      $region20: #{tpu_custom_call.1} parent=11 // pred_fallthru
        _
      // Predicated region
      $region21: #{tpu_custom_call.1} parent=11 // pred_check
        %p256 = pneg %p104
      $region22: #{tpu_custom_call.1} parent=11 // pred_check_branch
        %258 = sbr.rel (%p256) target = $region24
      $region23: #{tpu_custom_call.1} parent=11 // pred_region
        _
      $region24: #{tpu_custom_call.1} parent=11 // pred_fallthru
        _
      // Predicated region
      $region25: #{tpu_custom_call.1} parent=11 // pred_check
        %p259 = pneg %p125
      $region26: #{tpu_custom_call.1} parent=11 // pred_check_branch
        %261 = sbr.rel (%p259) target = $region28
      $region27: #{tpu_custom_call.1} parent=11 // pred_region
        _
      $region28: #{tpu_custom_call.1} parent=11 // pred_fallthru
        _
      // Predicated region
      $region29: #{tpu_custom_call.1} parent=11 // pred_check
        %p262 = pneg %p146
      $region30: #{tpu_custom_call.1} parent=11 // pred_check_branch
        %264 = sbr.rel (%p262) target = $region32
      $region31: #{tpu_custom_call.1} parent=11 // pred_region
        _
      $region32: #{tpu_custom_call.1} parent=11 // pred_fallthru
        _
      // Predicated region
      $region33: #{tpu_custom_call.1} parent=11 // pred_check
        %p265 = pneg %p167
      $region34: #{tpu_custom_call.1} parent=11 // pred_check_branch
        %267 = sbr.rel (%p265) target = $region36
      $region35: #{tpu_custom_call.1} parent=11 // pred_region
        _
      $region36: #{tpu_custom_call.1} parent=11 // pred_fallthru
        _
      // Predicated region
      $region37: #{tpu_custom_call.1} parent=11 // pred_check
        %p268 = pneg %p188
      $region38: #{tpu_custom_call.1} parent=11 // pred_check_branch
        %270 = sbr.rel (%p268) target = $region40
      $region39: #{tpu_custom_call.1} parent=11 // pred_region
        _
      $region40: #{tpu_custom_call.1} parent=11 // pred_fallthru
        _
      // Predicated region
      $region41: #{tpu_custom_call.1} parent=11 // pred_check
        %p271 = pneg %p209
      $region42: #{tpu_custom_call.1} parent=11 // pred_check_branch
        %273 = sbr.rel (%p271) target = $region44
      $region43: #{tpu_custom_call.1} parent=11 // pred_region
        _
      $region44: #{tpu_custom_call.1} parent=11 // pred_fallthru
        _
    $region12: #{tpu_custom_call.1} parent=5 // pred_fallthru
      _
    %p274 = scmp.lt.s32.totalorder %s15, 2
    // Predicated region
    $region45: #{tpu_custom_call.1} parent=5 // pred_check
      %p275 = pneg %p274
    $region46: #{tpu_custom_call.1} parent=5 // pred_check_branch
      %277 = sbr.rel (%p275) target = $region48
    $region47: #{tpu_custom_call.1} parent=5 // pred_region
      // Predicated region
      $region49: #{tpu_custom_call.1} parent=47 // pred_check
        %p278 = pneg %p35
      $region50: #{tpu_custom_call.1} parent=47 // pred_check_branch
        %280 = sbr.rel (%p278) target = $region52
      $region51: #{tpu_custom_call.1} parent=47 // pred_region
        %p281 = scmp.lt.s32.totalorder %s15, 1
        %s282 = scalar_select %p281, %s15, 1
        %s283 = smul.addr %s282, 32
        %s284 = smul.addr %s283, 8
        %s285 = scalar_lea.vmem %s0, %s284
      $region52: #{tpu_custom_call.1} parent=47 // pred_fallthru
        _
    $region48: #{tpu_custom_call.1} parent=5 // pred_fallthru
      _
    %p286 = scmp.le.s32.totalorder 1, %s15
    %p287 = scmp.lt.s32.totalorder %s15, 3
    %p288 = pnand %p286, %p287
    %p289 = pneg %p288
    // Predicated region
    $region53: #{tpu_custom_call.1} parent=5 // pred_check
      _
    $region54: #{tpu_custom_call.1} parent=5 // pred_check_branch
      %291 = sbr.rel (%p288) target = $region56
    $region55: #{tpu_custom_call.1} parent=5 // pred_region
      %s292 = ssub.s32 %s15, 1
      %p293 = scmp.lt.s32.totalorder %s20, 1
      %s294 = scalar_select %p293, %s20, 1
      %s295 = smul.addr %s294, 32
      %s296 = smul.addr %s295, 8
      %s297 = scalar_lea.vmem %s0, %s296
      %p298 = pneg %p41
      %p299 = pneg %p38
      %p300 = pneg %p62
      %p301 = pneg %p59
      %p302 = pneg %p83
      %p303 = pneg %p80
      %p304 = pneg %p104
      %p305 = pneg %p101
      %p306 = pneg %p125
      %p307 = pneg %p122
      %p308 = pneg %p146
      %p309 = pneg %p143
      %p310 = pneg %p167
      %p311 = pneg %p164
      %p312 = pneg %p188
      %p313 = pneg %p185
      %p314 = pneg %p209
      %p315 = pneg %p206
      %p316 = pneg %p235
      %p317 = pneg %p232
      %p318 = scmp.lt.s32.totalorder %s20, 1
      %s319 = scalar_select %p318, %s20, 1
      %s320 = smul.addr %s319, 32
      %s321 = smul.addr %s320, 8
      %s322 = scalar_lea.vmem %s9, %s321
      %p323 = scmp.lt.s32.totalorder %s20, 1
      %s324 = scalar_select %p323, %s20, 1
      %s325 = smul.addr %s324, 32
      %s326 = smul.addr %s325, 8
      %s327 = scalar_lea.vmem %s0, %s326
      %p328 = scmp.lt.s32.totalorder %s20, 1
      %s329 = scalar_select %p328, %s20, 1
      %s330 = smul.addr %s329, 32
      %s331 = smul.addr %s330, 8
      %s332 = scalar_lea.vmem %s9, %s331
      %v334 = vld [vmem:[%s327] sm:$0xff]
      %v335 = vld [vmem:[%s327 + $0x8] sm:$0xff]
      %v336 = vld [vmem:[%s327 + $0x10] sm:$0xff]
      %v337 = vld [vmem:[%s327 + $0x18] sm:$0xff]
      %v338 = vld [vmem:[%s327 + $0x20] sm:$0xff]
      %v339 = vld [vmem:[%s327 + $0x28] sm:$0xff]
      %v340 = vld [vmem:[%s327 + $0x30] sm:$0xff]
      %v341 = vld [vmem:[%s327 + $0x38] sm:$0xff]
      %v342 = vld [vmem:[%s327 + $0x40] sm:$0xff]
      %v343 = vld [vmem:[%s327 + $0x48] sm:$0xff]
      %v344 = vld [vmem:[%s327 + $0x50] sm:$0xff]
      %v345 = vld [vmem:[%s327 + $0x58] sm:$0xff]
      %v346 = vld [vmem:[%s327 + $0x60] sm:$0xff]
      %v347 = vld [vmem:[%s327 + $0x68] sm:$0xff]
      %v348 = vld [vmem:[%s327 + $0x70] sm:$0xff]
      %v349 = vld [vmem:[%s327 + $0x78] sm:$0xff]
      %v350 = vld [vmem:[%s327 + $0x80] sm:$0xff]
      %v351 = vld [vmem:[%s327 + $0x88] sm:$0xff]
      %v352 = vld [vmem:[%s327 + $0x90] sm:$0xff]
      %v353 = vld [vmem:[%s327 + $0x98] sm:$0xff]
      %v354 = vld [vmem:[%s327 + $0xa0] sm:$0xff]
      %v355 = vld [vmem:[%s327 + $0xa8] sm:$0xff]
      %v356 = vld [vmem:[%s327 + $0xb0] sm:$0xff]
      %v357 = vld [vmem:[%s327 + $0xb8] sm:$0xff]
      %v358 = vld [vmem:[%s327 + $0xc0] sm:$0xff]
      %v359 = vld [vmem:[%s327 + $0xc8] sm:$0xff]
      %v360 = vld [vmem:[%s327 + $0xd0] sm:$0xff]
      %v361 = vld [vmem:[%s327 + $0xd8] sm:$0xff]
      %v362 = vld [vmem:[%s327 + $0xe0] sm:$0xff]
      %v363 = vld [vmem:[%s327 + $0xe8] sm:$0xff]
      %v364 = vld [vmem:[%s327 + $0xf0] sm:$0xff]
      %v365 = vld [vmem:[%s327 + $0xf8] sm:$0xff]
      %s366 = scalar_lea.vmem [#allocation2], 24
      %vm367 = vcmask 31744
      %368 = vst.msk [vmem:[%s366 + $0x1] sm:$0xff] %vm367, %v334
      %369 = vst.msk [vmem:[%s366 + $0x9] sm:$0xff] %vm367, %v335
      %370 = vst.msk [vmem:[%s366 + $0x19] sm:$0xff] %vm367, %v336
      %371 = vst.msk [vmem:[%s366 + $0x21] sm:$0xff] %vm367, %v337
      %372 = vst.msk [vmem:[%s366 + $0x31] sm:$0xff] %vm367, %v338
      %373 = vst.msk [vmem:[%s366 + $0x39] sm:$0xff] %vm367, %v339
      %374 = vst.msk [vmem:[%s366 + $0x49] sm:$0xff] %vm367, %v340
      %375 = vst.msk [vmem:[%s366 + $0x51] sm:$0xff] %vm367, %v341
      %376 = vst.msk [vmem:[%s366 + $0x61] sm:$0xff] %vm367, %v342
      %377 = vst.msk [vmem:[%s366 + $0x69] sm:$0xff] %vm367, %v343
      %378 = vst.msk [vmem:[%s366 + $0x79] sm:$0xff] %vm367, %v344
      %379 = vst.msk [vmem:[%s366 + $0x81] sm:$0xff] %vm367, %v345
      %380 = vst.msk [vmem:[%s366 + $0x91] sm:$0xff] %vm367, %v346
      %381 = vst.msk [vmem:[%s366 + $0x99] sm:$0xff] %vm367, %v347
      %382 = vst.msk [vmem:[%s366 + $0xa9] sm:$0xff] %vm367, %v348
      %383 = vst.msk [vmem:[%s366 + $0xb1] sm:$0xff] %vm367, %v349
      %384 = vst.msk [vmem:[%s366 + $0xc1] sm:$0xff] %vm367, %v350
      %385 = vst.msk [vmem:[%s366 + $0xc9] sm:$0xff] %vm367, %v351
      %386 = vst.msk [vmem:[%s366 + $0xd9] sm:$0xff] %vm367, %v352
      %387 = vst.msk [vmem:[%s366 + $0xe1] sm:$0xff] %vm367, %v353
      %388 = vst.msk [vmem:[%s366 + $0xf1] sm:$0xff] %vm367, %v354
      %389 = vst.msk [vmem:[%s366 + $0xf9] sm:$0xff] %vm367, %v355
      %390 = vst.msk [vmem:[%s366 + $0x109] sm:$0xff] %vm367, %v356
      %391 = vst.msk [vmem:[%s366 + $0x111] sm:$0xff] %vm367, %v357
      %392 = vst.msk [vmem:[%s366 + $0x121] sm:$0xff] %vm367, %v358
      %393 = vst.msk [vmem:[%s366 + $0x129] sm:$0xff] %vm367, %v359
      %394 = vst.msk [vmem:[%s366 + $0x139] sm:$0xff] %vm367, %v360
      %395 = vst.msk [vmem:[%s366 + $0x141] sm:$0xff] %vm367, %v361
      %396 = vst.msk [vmem:[%s366 + $0x151] sm:$0xff] %vm367, %v362
      %397 = vst.msk [vmem:[%s366 + $0x159] sm:$0xff] %vm367, %v363
      %398 = vst.msk [vmem:[%s366 + $0x169] sm:$0xff] %vm367, %v364
      %399 = vst.msk [vmem:[%s366 + $0x171] sm:$0xff] %vm367, %v365
      %400 = vst.msk [vmem:[#allocation2 + $0x1] sm:$0xff] %vm367, %v336
      %401 = vst.msk [vmem:[#allocation2 + $0x9] sm:$0xff] %vm367, %v337
      %s402 = scalar_lea.vmem [#allocation2], 408
      %403 = vst.msk [vmem:[%s402 + $0x1] sm:$0xff] %vm367, %v362
      %404 = vst.msk [vmem:[%s402 + $0x9] sm:$0xff] %vm367, %v363
      %s405 = scalar_lea.vmem [#allocation2], 432
      %406 = vst.msk [vmem:[%s405] sm:$0xff] %vm367, 0.0
      %407 = vst.msk [vmem:[%s405 + $0x8] sm:$0xff] %vm367, 0.0
      %408 = vst.msk [vmem:[%s405 + $0x10] sm:$0xff] %vm367, 0.0
      %vm409 = vcmask 29696
      %410 = vst.msk [vmem:[#allocation2 + $0x12] sm:$0x3f] %vm409, 0.0
      %411 = vst.msk [vmem:[#allocation2 + $0x2a] sm:$0x3f] %vm409, 0.0
      %412 = vst.msk [vmem:[#allocation2 + $0x42] sm:$0x3f] %vm409, 0.0
      %413 = vst.msk [vmem:[#allocation2 + $0x5a] sm:$0x3f] %vm409, 0.0
      %414 = vst.msk [vmem:[#allocation2 + $0x72] sm:$0x3f] %vm409, 0.0
      %415 = vst.msk [vmem:[#allocation2 + $0x8a] sm:$0x3f] %vm409, 0.0
      %416 = vst.msk [vmem:[#allocation2 + $0xa2] sm:$0x3f] %vm409, 0.0
      %417 = vst.msk [vmem:[#allocation2 + $0xba] sm:$0x3f] %vm409, 0.0
      %418 = vst.msk [vmem:[#allocation2 + $0xd2] sm:$0x3f] %vm409, 0.0
      %419 = vst.msk [vmem:[#allocation2 + $0xea] sm:$0x3f] %vm409, 0.0
      %420 = vst.msk [vmem:[#allocation2 + $0x102] sm:$0x3f] %vm409, 0.0
      %421 = vst.msk [vmem:[#allocation2 + $0x11a] sm:$0x3f] %vm409, 0.0
      %422 = vst.msk [vmem:[#allocation2 + $0x132] sm:$0x3f] %vm409, 0.0
      %423 = vst.msk [vmem:[#allocation2 + $0x14a] sm:$0x3f] %vm409, 0.0
      %424 = vst.msk [vmem:[#allocation2 + $0x162] sm:$0x3f] %vm409, 0.0
      %425 = vst.msk [vmem:[#allocation2 + $0x17a] sm:$0x3f] %vm409, 0.0
      %426 = vst.msk [vmem:[#allocation2 + $0x192] sm:$0x3f] %vm409, 0.0
      %427 = vst.msk [vmem:[#allocation2 + $0x1aa] sm:$0x3f] %vm409, 0.0
      %428 = vst.msk [vmem:[#allocation2 + $0x1c2] sm:$0x3f] %vm409, 0.0
      %v429 = vld [vmem:[#allocation2 + $0x2] sm:$0x1]
      %v430 = vld [vmem:[#allocation2 + $0x1a] sm:$0x1]
      %v431 = vld [vmem:[#allocation2 + $0x32] sm:$0x1]
      %v432 = vld [vmem:[#allocation2 + $0x4a] sm:$0x1]
      %v433 = vld [vmem:[#allocation2 + $0x62] sm:$0x1]
      %v434 = vld [vmem:[#allocation2 + $0x7a] sm:$0x1]
      %v435 = vld [vmem:[#allocation2 + $0x92] sm:$0x1]
      %v436 = vld [vmem:[#allocation2 + $0xaa] sm:$0x1]
      %v437 = vld [vmem:[#allocation2 + $0xc2] sm:$0x1]
      %v438 = vld [vmem:[#allocation2 + $0xda] sm:$0x1]
      %v439 = vld [vmem:[#allocation2 + $0xf2] sm:$0x1]
      %v440 = vld [vmem:[#allocation2 + $0x10a] sm:$0x1]
      %v441 = vld [vmem:[#allocation2 + $0x122] sm:$0x1]
      %v442 = vld [vmem:[#allocation2 + $0x13a] sm:$0x1]
      %v443 = vld [vmem:[#allocation2 + $0x152] sm:$0x1]
      %v444 = vld [vmem:[#allocation2 + $0x16a] sm:$0x1]
      %v445 = vld [vmem:[#allocation2 + $0x182] sm:$0x1]
      %v446 = vld [vmem:[#allocation2 + $0x19a] sm:$0x1]
      %v447 = vld [vmem:[#allocation2 + $0x1b2] sm:$0x1]
      %vm448 = vcmask 24576
      %449 = vst.msk [vmem:[#allocation2] sm:$0x1] %vm448, %v429
      %450 = vst.msk [vmem:[#allocation2 + $0x18] sm:$0x1] %vm448, %v430
      %451 = vst.msk [vmem:[#allocation2 + $0x30] sm:$0x1] %vm448, %v431
      %452 = vst.msk [vmem:[#allocation2 + $0x48] sm:$0x1] %vm448, %v432
      %453 = vst.msk [vmem:[#allocation2 + $0x60] sm:$0x1] %vm448, %v433
      %454 = vst.msk [vmem:[#allocation2 + $0x78] sm:$0x1] %vm448, %v434
      %455 = vst.msk [vmem:[#allocation2 + $0x90] sm:$0x1] %vm448, %v435
      %456 = vst.msk [vmem:[#allocation2 + $0xa8] sm:$0x1] %vm448, %v436
      %457 = vst.msk [vmem:[#allocation2 + $0xc0] sm:$0x1] %vm448, %v437
      %458 = vst.msk [vmem:[#allocation2 + $0xd8] sm:$0x1] %vm448, %v438
      %459 = vst.msk [vmem:[#allocation2 + $0xf0] sm:$0x1] %vm448, %v439
      %460 = vst.msk [vmem:[#allocation2 + $0x108] sm:$0x1] %vm448, %v440
      %461 = vst.msk [vmem:[#allocation2 + $0x120] sm:$0x1] %vm448, %v441
      %462 = vst.msk [vmem:[#allocation2 + $0x138] sm:$0x1] %vm448, %v442
      %463 = vst.msk [vmem:[#allocation2 + $0x150] sm:$0x1] %vm448, %v443
      %464 = vst.msk [vmem:[#allocation2 + $0x168] sm:$0x1] %vm448, %v444
      %465 = vst.msk [vmem:[#allocation2 + $0x180] sm:$0x1] %vm448, %v445
      %466 = vst.msk [vmem:[#allocation2 + $0x198] sm:$0x1] %vm448, %v446
      %467 = vst.msk [vmem:[#allocation2 + $0x1b0] sm:$0x1] %vm448, %v447
      %v468 = vld [vmem:[#allocation2 + $0xf] sm:$0x1]
      %v469 = vld [vmem:[#allocation2 + $0x27] sm:$0x1]
      %v470 = vld [vmem:[#allocation2 + $0x3f] sm:$0x1]
      %v471 = vld [vmem:[#allocation2 + $0x57] sm:$0x1]
      %v472 = vld [vmem:[#allocation2 + $0x6f] sm:$0x1]
      %v473 = vld [vmem:[#allocation2 + $0x87] sm:$0x1]
      %v474 = vld [vmem:[#allocation2 + $0x9f] sm:$0x1]
      %v475 = vld [vmem:[#allocation2 + $0xb7] sm:$0x1]
      %v476 = vld [vmem:[#allocation2 + $0xcf] sm:$0x1]
      %v477 = vld [vmem:[#allocation2 + $0xe7] sm:$0x1]
      %v478 = vld [vmem:[#allocation2 + $0xff] sm:$0x1]
      %v479 = vld [vmem:[#allocation2 + $0x117] sm:$0x1]
      %v480 = vld [vmem:[#allocation2 + $0x12f] sm:$0x1]
      %v481 = vld [vmem:[#allocation2 + $0x147] sm:$0x1]
      %v482 = vld [vmem:[#allocation2 + $0x15f] sm:$0x1]
      %v483 = vld [vmem:[#allocation2 + $0x177] sm:$0x1]
      %v484 = vld [vmem:[#allocation2 + $0x18f] sm:$0x1]
      %v485 = vld [vmem:[#allocation2 + $0x1a7] sm:$0x1]
      %v486 = vld [vmem:[#allocation2 + $0x1bf] sm:$0x1]
      %487 = vst.msk [vmem:[#allocation2 + $0x11] sm:$0x1] %vm448, %v468
      %488 = vst.msk [vmem:[#allocation2 + $0x29] sm:$0x1] %vm448, %v469
      %489 = vst.msk [vmem:[#allocation2 + $0x41] sm:$0x1] %vm448, %v470
      %490 = vst.msk [vmem:[#allocation2 + $0x59] sm:$0x1] %vm448, %v471
      %491 = vst.msk [vmem:[#allocation2 + $0x71] sm:$0x1] %vm448, %v472
      %492 = vst.msk [vmem:[#allocation2 + $0x89] sm:$0x1] %vm448, %v473
      %493 = vst.msk [vmem:[#allocation2 + $0xa1] sm:$0x1] %vm448, %v474
      %494 = vst.msk [vmem:[#allocation2 + $0xb9] sm:$0x1] %vm448, %v475
      %495 = vst.msk [vmem:[#allocation2 + $0xd1] sm:$0x1] %vm448, %v476
      %496 = vst.msk [vmem:[#allocation2 + $0xe9] sm:$0x1] %vm448, %v477
      %497 = vst.msk [vmem:[#allocation2 + $0x101] sm:$0x1] %vm448, %v478
      %498 = vst.msk [vmem:[#allocation2 + $0x119] sm:$0x1] %vm448, %v479
      %499 = vst.msk [vmem:[#allocation2 + $0x131] sm:$0x1] %vm448, %v480
      %500 = vst.msk [vmem:[#allocation2 + $0x149] sm:$0x1] %vm448, %v481
      %501 = vst.msk [vmem:[#allocation2 + $0x161] sm:$0x1] %vm448, %v482
      %502 = vst.msk [vmem:[#allocation2 + $0x179] sm:$0x1] %vm448, %v483
      %503 = vst.msk [vmem:[#allocation2 + $0x191] sm:$0x1] %vm448, %v484
      %504 = vst.msk [vmem:[#allocation2 + $0x1a9] sm:$0x1] %vm448, %v485
      %505 = vst.msk [vmem:[#allocation2 + $0x1c1] sm:$0x1] %vm448, %v486
      %v506 = vld [vmem:[#allocation2] sm:$0xff]
      %v507 = vld [vmem:[#allocation2 + $0x8] sm:$0xff]
      %v508 = vld [vmem:[#allocation2 + $0x10] sm:$0xff]
      %v509 = vld [vmem:[#allocation2 + $0x18] sm:$0xff]
      %v510 = vld [vmem:[#allocation2 + $0x20] sm:$0xff]
      %v511 = vld [vmem:[#allocation2 + $0x28] sm:$0xff]
      %v512 = vld [vmem:[#allocation2 + $0x30] sm:$0xff]
      %v513 = vld [vmem:[#allocation2 + $0x38] sm:$0xff]
      %v514 = vld [vmem:[#allocation2 + $0x40] sm:$0xff]
      %v515 = vld [vmem:[#allocation2 + $0x48] sm:$0xff]
      %v516 = vld [vmem:[#allocation2 + $0x50] sm:$0xff]
      %v517 = vld [vmem:[#allocation2 + $0x58] sm:$0xff]
      %v518 = vld [vmem:[#allocation2 + $0x60] sm:$0xff]
      %v519 = vld [vmem:[#allocation2 + $0x68] sm:$0xff]
      %v520 = vld [vmem:[#allocation2 + $0x70] sm:$0xff]
      %v521 = vld [vmem:[#allocation2 + $0x78] sm:$0xff]
      %v522 = vld [vmem:[#allocation2 + $0x80] sm:$0xff]
      %v523 = vld [vmem:[#allocation2 + $0x88] sm:$0xff]
      %v524 = vld [vmem:[#allocation2 + $0x90] sm:$0xff]
      %v525 = vld [vmem:[#allocation2 + $0x98] sm:$0xff]
      %v526 = vld [vmem:[#allocation2 + $0xa0] sm:$0xff]
      %v527 = vld [vmem:[#allocation2 + $0xa8] sm:$0xff]
      %v528 = vld [vmem:[#allocation2 + $0xb0] sm:$0xff]
      %v529 = vld [vmem:[#allocation2 + $0xb8] sm:$0xff]
      %v530 = vld [vmem:[#allocation2 + $0xc0] sm:$0xff]
      %v531 = vld [vmem:[#allocation2 + $0xc8] sm:$0xff]
      %v532 = vld [vmem:[#allocation2 + $0xd0] sm:$0xff]
      %v533 = vld [vmem:[#allocation2 + $0xd8] sm:$0xff]
      %v534 = vld [vmem:[#allocation2 + $0xe0] sm:$0xff]
      %v535 = vld [vmem:[#allocation2 + $0xe8] sm:$0xff]
      %v536 = vld [vmem:[#allocation2 + $0xf0] sm:$0xff]
      %v537 = vld [vmem:[#allocation2 + $0xf8] sm:$0xff]
      %v538 = vld [vmem:[#allocation2 + $0x100] sm:$0xff]
      %v539 = vld [vmem:[#allocation2 + $0x108] sm:$0xff]
      %v540 = vld [vmem:[#allocation2 + $0x110] sm:$0xff]
      %v541 = vld [vmem:[#allocation2 + $0x118] sm:$0xff]
      %v542 = vld [vmem:[#allocation2 + $0x120] sm:$0xff]
      %v543 = vld [vmem:[#allocation2 + $0x128] sm:$0xff]
      %v544 = vld [vmem:[#allocation2 + $0x130] sm:$0xff]
      %v545 = vld [vmem:[#allocation2 + $0x138] sm:$0xff]
      %v546 = vld [vmem:[#allocation2 + $0x140] sm:$0xff]
      %v547 = vld [vmem:[#allocation2 + $0x148] sm:$0xff]
      %v548 = vld [vmem:[#allocation2 + $0x150] sm:$0xff]
      %v549 = vld [vmem:[#allocation2 + $0x158] sm:$0xff]
      %v550 = vld [vmem:[#allocation2 + $0x160] sm:$0xff]
      %v551 = vld [vmem:[#allocation2 + $0x168] sm:$0xff]
      %v552 = vld [vmem:[#allocation2 + $0x170] sm:$0xff]
      %v553 = vld [vmem:[#allocation2 + $0x178] sm:$0xff]
      %v554 = vld [vmem:[#allocation2 + $0x180] sm:$0xff]
      %v555 = vld [vmem:[#allocation2 + $0x188] sm:$0xff]
      %v556 = vld [vmem:[#allocation2 + $0x190] sm:$0xff]
      %v557 = vld [vmem:[#allocation2 + $0x198] sm:$0xff]
      %v558 = vld [vmem:[#allocation2 + $0x1a0] sm:$0xff]
      %v559 = vld [vmem:[#allocation2 + $0x1a8] sm:$0xff]
      %v560 = vld [vmem:[#allocation2 + $0x1b0] sm:$0xff]
      %v561 = vld [vmem:[#allocation2 + $0x1b8] sm:$0xff]
      %v562 = vld [vmem:[#allocation2 + $0x1c0] sm:$0xff]
      %v563 = vpack.c.bf16 %v507, %v506
      %v564 = vpack.c.bf16 %v509, %v508
      %v565 = vpack.c.bf16 %v511, %v510
      %v566 = vpack.c.bf16 %v513, %v512
      %v567 = vpack.c.bf16 %v515, %v514
      %v568 = vpack.c.bf16 %v517, %v516
      %v569 = vpack.c.bf16 %v519, %v518
      %v570 = vpack.c.bf16 %v521, %v520
      %v571 = vpack.c.bf16 %v523, %v522
      %v572 = vpack.c.bf16 %v525, %v524
      %v573 = vpack.c.bf16 %v527, %v526
      %v574 = vpack.c.bf16 %v529, %v528
      %v575 = vpack.c.bf16 %v531, %v530
      %v576 = vpack.c.bf16 %v533, %v532
      %v577 = vpack.c.bf16 %v535, %v534
      %v578 = vpack.c.bf16 %v537, %v536
      %v579 = vpack.c.bf16 %v539, %v538
      %v580 = vpack.c.bf16 %v541, %v540
      %v581 = vpack.c.bf16 %v543, %v542
      %v582 = vpack.c.bf16 %v545, %v544
      %v583 = vpack.c.bf16 %v547, %v546
      %v584 = vpack.c.bf16 %v549, %v548
      %v585 = vpack.c.bf16 %v551, %v550
      %v586 = vpack.c.bf16 %v553, %v552
      %v587 = vpack.c.bf16 %v555, %v554
      %v588 = vpack.c.bf16 %v557, %v556
      %v589 = vpack.c.bf16 %v559, %v558
      %v590 = vpack.c.bf16 %v561, %v560
      %v591 = vpack.c.bf16 %v562, %v562
      %v592 = vld [vmem:[%s2] sm:$0x1]
      %v594 = vlaneseq
      %v595 = vshrl.u32 %v594, 7
      %v596 = vsub.s32 0, %v595
      %v597 = vrot.slane %v592, %v596
      %v599 = vld [vmem:[%s1] sm:$0x3]
      %v601 = vsel %vm367, %v563, 0
      %v604 = vsel %vm367, %v564, 0
      %v607 = vsel %vm367, %v565, 0
      %v610 = vsel %vm367, %v566, 0
      %v613 = vsel %vm367, %v567, 0
      %v616 = vsel %vm367, %v568, 0
      %v619 = vsel %vm367, %v569, 0
      %v622 = vsel %vm367, %v570, 0
      %v625 = vsel %vm367, %v571, 0
      %v628 = vsel %vm367, %v572, 0
      %v631 = vsel %vm367, %v573, 0
      %v634 = vsel %vm367, %v574, 0
      %v637 = vsel %vm367, %v575, 0
      %v640 = vsel %vm367, %v576, 0
      %v643 = vsel %vm367, %v577, 0
      %v646 = vsel %vm367, %v578, 0
      %v649 = vsel %vm367, %v579, 0
      %v652 = vsel %vm367, %v580, 0
      %v655 = vsel %vm367, %v581, 0
      %v658 = vsel %vm367, %v582, 0
      %v661 = vsel %vm367, %v583, 0
      %v664 = vsel %vm367, %v584, 0
      %v667 = vsel %vm367, %v585, 0
      %v670 = vsel %vm367, %v586, 0
      %v673 = vsel %vm367, %v587, 0
      %v676 = vsel %vm367, %v588, 0
      %v679 = vsel %vm367, %v589, 0
      %v682 = vsel %vm367, %v590, 0
      %v685 = vsel %vm367, %v591, 0
      %vm687 = vcmask 1041408
      %v689 = vsel %vm687, %v599, 0
      %691 = vmatprep.subr.bf16.mxu0 0
      %692 = vmatpush1.bf16.msra.mxu0 %v689
      %693 = vmatprep.subr.bf16.mxu0 0
      %694 = vmatpush1.bf16.msra.mxu0 0
      %695 = vmatprep.subr.bf16.mxu0 0
      %696 = vmatpush1.bf16.msra.mxu0 0
      %697 = vmatprep.subr.bf16.mxu0 0
      %698 = vmatpush1.bf16.msra.mxu0 0
      %699 = vmatprep.subr.bf16.mxu0 0
      %700 = vmatpush1.bf16.msra.mxu0 0
      %701 = vmatprep.subr.bf16.mxu0 0
      %702 = vmatpush1.bf16.msra.mxu0 0
      %703 = vmatprep.subr.bf16.mxu0 0
      %704 = vmatpush1.bf16.msra.mxu0 0
      %705 = vmatprep.subr.bf16.mxu0 0
      %706 = vmatpush1.bf16.msra.mxu0 0
      %707 = vmatprep.subr.bf16.mxu0 0
      %708 = vmatpush1.bf16.msra.mxu0 0
      %709 = vmatprep.subr.bf16.mxu0 0
      %710 = vmatpush1.bf16.msra.mxu0 0
      %711 = vmatprep.subr.bf16.mxu0 0
      %712 = vmatpush1.bf16.msra.mxu0 0
      %713 = vmatprep.subr.bf16.mxu0 0
      %714 = vmatpush1.bf16.msra.mxu0 0
      %715 = vmatprep.subr.bf16.mxu0 0
      %716 = vmatpush1.bf16.msra.mxu0 0
      %717 = vmatprep.subr.bf16.mxu0 0
      %718 = vmatpush1.bf16.msra.mxu0 0
      %719 = vmatprep.subr.bf16.mxu0 0
      %720 = vmatpush1.bf16.msra.mxu0 0
      %721 = vmatprep.subr.bf16.mxu0 0
      %722 = vmatpush1.bf16.msra.mxu0 0
      %723 = vmatprep.mubr.bf16.mxu0 0
      %724 = vmatmul.mubr.bf16.gmra.mrb[0].mxu0 %v601
      %v725 = vpop.f32.mrb[0].mxu0
      %v726 = vadd.f32 0.0, %v725
      %v727 = vpop.f32.mrb[0].mxu0
      %v728 = vpop.f32.mrb[0].mxu0
      %v729 = vadd.f32 0.0, %v728
      %v730 = vpop.f32.mrb[0].mxu0
      %731 = vmatprep.mubr.bf16.mxu0 0
      %732 = vmatmul.mubr.bf16.gmra.mrb[0].mxu0 %v604
      %v733 = vpop.f32.mrb[0].mxu0
      %v734 = vpop.f32.mrb[0].mxu0
      %v735 = vpop.f32.mrb[0].mxu0
      %v736 = vadd.f32 0.0, %v735
      %v737 = vpop.f32.mrb[0].mxu0
      %738 = vmatprep.mubr.bf16.mxu0 0
      %739 = vmatmul.mubr.bf16.gmra.mrb[0].mxu0 %v607
      %v740 = vpop.f32.mrb[0].mxu0
      %v741 = vadd.f32 0.0, %v740
      %v742 = vpop.f32.mrb[0].mxu0
      %v743 = vpop.f32.mrb[0].mxu0
      %v744 = vpop.f32.mrb[0].mxu0
      %745 = vmatprep.mubr.bf16.mxu0 0
      %746 = vmatmul.mubr.bf16.gmra.mrb[0].mxu0 %v610
      %v747 = vpop.f32.mrb[0].mxu0
      %v748 = vadd.f32 0.0, %v747
      %v749 = vpop.f32.mrb[0].mxu0
      %v750 = vpop.f32.mrb[0].mxu0
      %v751 = vadd.f32 0.0, %v750
      %v752 = vpop.f32.mrb[0].mxu0
      %753 = vmatprep.mubr.bf16.mxu0 0
      %754 = vmatmul.mubr.bf16.gmra.mrb[0].mxu0 %v613
      %v755 = vpop.f32.mrb[0].mxu0
      %v756 = vpop.f32.mrb[0].mxu0
      %v757 = vpop.f32.mrb[0].mxu0
      %v758 = vadd.f32 0.0, %v757
      %v759 = vpop.f32.mrb[0].mxu0
      %760 = vmatprep.mubr.bf16.mxu0 0
      %761 = vmatmul.mubr.bf16.gmra.mrb[0].mxu0 %v616
      %v762 = vpop.f32.mrb[0].mxu0
      %v763 = vadd.f32 0.0, %v762
      %v764 = vpop.f32.mrb[0].mxu0
      %v765 = vpop.f32.mrb[0].mxu0
      %v766 = vpop.f32.mrb[0].mxu0
      %767 = vmatprep.mubr.bf16.mxu0 0
      %768 = vmatmul.mubr.bf16.gmra.mrb[0].mxu0 %v619
      %v769 = vpop.f32.mrb[0].mxu0
      %v770 = vadd.f32 0.0, %v769
      %v771 = vpop.f32.mrb[0].mxu0
      %v772 = vpop.f32.mrb[0].mxu0
      %v773 = vadd.f32 0.0, %v772
      %v774 = vpop.f32.mrb[0].mxu0
      %775 = vmatprep.mubr.bf16.mxu0 0
      %776 = vmatmul.mubr.bf16.gmra.mrb[0].mxu0 %v622
      %v777 = vpop.f32.mrb[0].mxu0
      %v778 = vpop.f32.mrb[0].mxu0
      %v779 = vpop.f32.mrb[0].mxu0
      %v780 = vadd.f32 0.0, %v779
      %v781 = vpop.f32.mrb[0].mxu0
      %782 = vmatprep.mubr.bf16.mxu0 0
      %783 = vmatmul.mubr.bf16.gmra.mrb[0].mxu0 %v625
      %v784 = vpop.f32.mrb[0].mxu0
      %v785 = vadd.f32 0.0, %v784
      %v786 = vpop.f32.mrb[0].mxu0
      %v787 = vpop.f32.mrb[0].mxu0
      %v788 = vpop.f32.mrb[0].mxu0
      %789 = vmatprep.mubr.bf16.mxu0 0
      %790 = vmatmul.mubr.bf16.gmra.mrb[0].mxu0 %v628
      %v791 = vpop.f32.mrb[0].mxu0
      %v792 = vadd.f32 0.0, %v791
      %v793 = vpop.f32.mrb[0].mxu0
      %v794 = vpop.f32.mrb[0].mxu0
      %v795 = vadd.f32 0.0, %v794
      %v796 = vpop.f32.mrb[0].mxu0
      %797 = vmatprep.mubr.bf16.mxu0 0
      %798 = vmatmul.mubr.bf16.gmra.mrb[0].mxu0 %v631
      %v799 = vpop.f32.mrb[0].mxu0
      %v800 = vpop.f32.mrb[0].mxu0
      %v801 = vpop.f32.mrb[0].mxu0
      %v802 = vadd.f32 0.0, %v801
      %v803 = vpop.f32.mrb[0].mxu0
      %804 = vmatprep.mubr.bf16.mxu0 0
      %805 = vmatmul.mubr.bf16.gmra.mrb[0].mxu0 %v634
      %v806 = vpop.f32.mrb[0].mxu0
      %v807 = vadd.f32 0.0, %v806
      %v808 = vpop.f32.mrb[0].mxu0
      %v809 = vpop.f32.mrb[0].mxu0
      %v810 = vpop.f32.mrb[0].mxu0
      %811 = vmatprep.mubr.bf16.mxu0 0
      %812 = vmatmul.mubr.bf16.gmra.mrb[0].mxu0 %v637
      %v813 = vpop.f32.mrb[0].mxu0
      %v814 = vadd.f32 0.0, %v813
      %v815 = vpop.f32.mrb[0].mxu0
      %v816 = vpop.f32.mrb[0].mxu0
      %v817 = vadd.f32 0.0, %v816
      %v818 = vpop.f32.mrb[0].mxu0
      %819 = vmatprep.mubr.bf16.mxu0 0
      %820 = vmatmul.mubr.bf16.gmra.mrb[0].mxu0 %v640
      %v821 = vpop.f32.mrb[0].mxu0
      %v822 = vpop.f32.mrb[0].mxu0
      %v823 = vpop.f32.mrb[0].mxu0
      %v824 = vadd.f32 0.0, %v823
      %v825 = vpop.f32.mrb[0].mxu0
      %826 = vmatprep.mubr.bf16.mxu0 0
      %827 = vmatmul.mubr.bf16.gmra.mrb[0].mxu0 %v643
      %v828 = vpop.f32.mrb[0].mxu0
      %v829 = vadd.f32 0.0, %v828
      %v830 = vpop.f32.mrb[0].mxu0
      %v831 = vpop.f32.mrb[0].mxu0
      %v832 = vpop.f32.mrb[0].mxu0
      %833 = vmatprep.mubr.bf16.mxu0 0
      %834 = vmatmul.mubr.bf16.gmra.mrb[0].mxu0 %v646
      %v835 = vpop.f32.mrb[0].mxu0
      %v836 = vadd.f32 0.0, %v835
      %v837 = vpop.f32.mrb[0].mxu0
      %v838 = vpop.f32.mrb[0].mxu0
      %v839 = vadd.f32 0.0, %v838
      %v840 = vpop.f32.mrb[0].mxu0
      %841 = vmatprep.mubr.bf16.mxu0 0
      %842 = vmatmul.mubr.bf16.gmra.mrb[0].mxu0 %v649
      %v843 = vpop.f32.mrb[0].mxu0
      %v844 = vpop.f32.mrb[0].mxu0
      %v845 = vpop.f32.mrb[0].mxu0
      %v846 = vadd.f32 0.0, %v845
      %v847 = vpop.f32.mrb[0].mxu0
      %848 = vmatprep.mubr.bf16.mxu0 0
      %849 = vmatmul.mubr.bf16.gmra.mrb[0].mxu0 %v652
      %v850 = vpop.f32.mrb[0].mxu0
      %v851 = vadd.f32 0.0, %v850
      %v852 = vpop.f32.mrb[0].mxu0
      %v853 = vpop.f32.mrb[0].mxu0
      %v854 = vpop.f32.mrb[0].mxu0
      %855 = vmatprep.mubr.bf16.mxu0 0
      %856 = vmatmul.mubr.bf16.gmra.mrb[0].mxu0 %v655
      %v857 = vpop.f32.mrb[0].mxu0
      %v858 = vadd.f32 0.0, %v857
      %v859 = vpop.f32.mrb[0].mxu0
      %v860 = vpop.f32.mrb[0].mxu0
      %v861 = vadd.f32 0.0, %v860
      %v862 = vpop.f32.mrb[0].mxu0
      %863 = vmatprep.mubr.bf16.mxu0 0
      %864 = vmatmul.mubr.bf16.gmra.mrb[0].mxu0 %v658
      %v865 = vpop.f32.mrb[0].mxu0
      %v866 = vpop.f32.mrb[0].mxu0
      %v867 = vpop.f32.mrb[0].mxu0
      %v868 = vadd.f32 0.0, %v867
      %v869 = vpop.f32.mrb[0].mxu0
      %870 = vmatprep.mubr.bf16.mxu0 0
      %871 = vmatmul.mubr.bf16.gmra.mrb[0].mxu0 %v661
      %v872 = vpop.f32.mrb[0].mxu0
      %v873 = vadd.f32 0.0, %v872
      %v874 = vpop.f32.mrb[0].mxu0
      %v875 = vpop.f32.mrb[0].mxu0
      %v876 = vpop.f32.mrb[0].mxu0
      %877 = vmatprep.mubr.bf16.mxu0 0
      %878 = vmatmul.mubr.bf16.gmra.mrb[0].mxu0 %v664
      %v879 = vpop.f32.mrb[0].mxu0
      %v880 = vadd.f32 0.0, %v879
      %v881 = vpop.f32.mrb[0].mxu0
      %v882 = vpop.f32.mrb[0].mxu0
      %v883 = vadd.f32 0.0, %v882
      %v884 = vpop.f32.mrb[0].mxu0
      %885 = vmatprep.mubr.bf16.mxu0 0
      %886 = vmatmul.mubr.bf16.gmra.mrb[0].mxu0 %v667
      %v887 = vpop.f32.mrb[0].mxu0
      %v888 = vpop.f32.mrb[0].mxu0
      %v889 = vpop.f32.mrb[0].mxu0
      %v890 = vadd.f32 0.0, %v889
      %v891 = vpop.f32.mrb[0].mxu0
      %892 = vmatprep.mubr.bf16.mxu0 0
      %893 = vmatmul.mubr.bf16.gmra.mrb[0].mxu0 %v670
      %v894 = vpop.f32.mrb[0].mxu0
      %v895 = vadd.f32 0.0, %v894
      %v896 = vpop.f32.mrb[0].mxu0
      %v897 = vpop.f32.mrb[0].mxu0
      %v898 = vpop.f32.mrb[0].mxu0
      %899 = vmatprep.mubr.bf16.mxu0 0
      %900 = vmatmul.mubr.bf16.gmra.mrb[0].mxu0 %v673
      %v901 = vpop.f32.mrb[0].mxu0
      %v902 = vpop.f32.mrb[0].mxu0
      %v903 = vpop.f32.mrb[0].mxu0
      %v904 = vpop.f32.mrb[0].mxu0
      %905 = vmatprep.mubr.bf16.mxu0 0
      %906 = vmatmul.mubr.bf16.gmra.mrb[0].mxu0 %v676
      %v907 = vpop.f32.mrb[0].mxu0
      %v908 = vpop.f32.mrb[0].mxu0
      %v909 = vpop.f32.mrb[0].mxu0
      %v910 = vpop.f32.mrb[0].mxu0
      %911 = vmatprep.mubr.bf16.mxu0 0
      %912 = vmatmul.mubr.bf16.gmra.mrb[0].mxu0 %v679
      %v913 = vpop.f32.mrb[0].mxu0
      %v914 = vpop.f32.mrb[0].mxu0
      %v915 = vpop.f32.mrb[0].mxu0
      %v916 = vpop.f32.mrb[0].mxu0
      %917 = vmatprep.mubr.bf16.mxu0 0
      %918 = vmatmul.mubr.bf16.gmra.mrb[0].mxu0 %v682
      %v919 = vpop.f32.mrb[0].mxu0
      %v920 = vpop.f32.mrb[0].mxu0
      %v921 = vpop.f32.mrb[0].mxu0
      %v922 = vpop.f32.mrb[0].mxu0
      %923 = vmatprep.mubr.bf16.mxu0 0
      %924 = vmatmul.mubr.bf16.gmra.mrb[0].mxu0 %v685
      %v925 = vpop.f32.mrb[0].mxu0
      %v926 = vpop.f32.mrb[0].mxu0
      %v927 = vpop.f32.mrb[0].mxu0
      %v928 = vpop.f32.mrb[0].mxu0
      %929 = vdwg.mxu0
      %v930 = vadd.f32 %v597, %v726
      %v931 = vadd.f32 %v597, %v729
      %v932 = vadd.f32 %v597, %v736
      %v933 = vadd.f32 %v597, %v741
      %v934 = vadd.f32 %v597, %v748
      %v935 = vadd.f32 %v597, %v751
      %v936 = vadd.f32 %v597, %v758
      %v937 = vadd.f32 %v597, %v763
      %v938 = vadd.f32 %v597, %v770
      %v939 = vadd.f32 %v597, %v773
      %v940 = vadd.f32 %v597, %v780
      %v941 = vadd.f32 %v597, %v785
      %v942 = vadd.f32 %v597, %v792
      %v943 = vadd.f32 %v597, %v795
      %v944 = vadd.f32 %v597, %v802
      %v945 = vadd.f32 %v597, %v807
      %v946 = vadd.f32 %v597, %v814
      %v947 = vadd.f32 %v597, %v817
      %v948 = vadd.f32 %v597, %v824
      %v949 = vadd.f32 %v597, %v829
      %v950 = vadd.f32 %v597, %v836
      %v951 = vadd.f32 %v597, %v839
      %v952 = vadd.f32 %v597, %v846
      %v953 = vadd.f32 %v597, %v851
      %v954 = vadd.f32 %v597, %v858
      %v955 = vadd.f32 %v597, %v861
      %v956 = vadd.f32 %v597, %v868
      %v957 = vadd.f32 %v597, %v873
      %v958 = vadd.f32 %v597, %v880
      %v959 = vadd.f32 %v597, %v883
      %v960 = vadd.f32 %v597, %v890
      %v961 = vadd.f32 %v597, %v895
      %s962 = scalar_lea.vmem %s1, 2
      %v963 = vld [vmem:[%s962] sm:$0x3]
      %v965 = vsel %vm687, %v963, 0
      %967 = vmatprep.subr.bf16.mxu0 0
      %968 = vmatpush1.bf16.msra.mxu0 %v965
      %969 = vmatprep.subr.bf16.mxu0 0
      %970 = vmatpush1.bf16.msra.mxu0 0
      %971 = vmatprep.subr.bf16.mxu0 0
      %972 = vmatpush1.bf16.msra.mxu0 0
      %973 = vmatprep.subr.bf16.mxu0 0
      %974 = vmatpush1.bf16.msra.mxu0 0
      %975 = vmatprep.subr.bf16.mxu0 0
      %976 = vmatpush1.bf16.msra.mxu0 0
      %977 = vmatprep.subr.bf16.mxu0 0
      %978 = vmatpush1.bf16.msra.mxu0 0
      %979 = vmatprep.subr.bf16.mxu0 0
      %980 = vmatpush1.bf16.msra.mxu0 0
      %981 = vmatprep.subr.bf16.mxu0 0
      %982 = vmatpush1.bf16.msra.mxu0 0
      %983 = vmatprep.subr.bf16.mxu0 0
      %984 = vmatpush1.bf16.msra.mxu0 0
      %985 = vmatprep.subr.bf16.mxu0 0
      %986 = vmatpush1.bf16.msra.mxu0 0
      %987 = vmatprep.subr.bf16.mxu0 0
      %988 = vmatpush1.bf16.msra.mxu0 0
      %989 = vmatprep.subr.bf16.mxu0 0
      %990 = vmatpush1.bf16.msra.mxu0 0
      %991 = vmatprep.subr.bf16.mxu0 0
      %992 = vmatpush1.bf16.msra.mxu0 0
      %993 = vmatprep.subr.bf16.mxu0 0
      %994 = vmatpush1.bf16.msra.mxu0 0
      %995 = vmatprep.subr.bf16.mxu0 0
      %996 = vmatpush1.bf16.msra.mxu0 0
      %997 = vmatprep.subr.bf16.mxu0 0
      %998 = vmatpush1.bf16.msra.mxu0 0
      %999 = vmatprep.mubr.bf16.mxu0 0
      %1000 = vmatmul.mubr.bf16.gmra.mrb[0].mxu0 %v601
      %v1001 = vpop.f32.mrb[0].mxu0
      %v1002 = vadd.f32 0.0, %v1001
      %v1003 = vpop.f32.mrb[0].mxu0
      %v1004 = vpop.f32.mrb[0].mxu0
      %v1005 = vadd.f32 0.0, %v1004
      %v1006 = vpop.f32.mrb[0].mxu0
      %1007 = vmatprep.mubr.bf16.mxu0 0
      %1008 = vmatmul.mubr.bf16.gmra.mrb[0].mxu0 %v604
      %v1009 = vpop.f32.mrb[0].mxu0
      %v1010 = vadd.f32 0.0, %v1009
      %v1011 = vpop.f32.mrb[0].mxu0
      %v1012 = vpop.f32.mrb[0].mxu0
      %v1013 = vadd.f32 0.0, %v1012
      %v1014 = vpop.f32.mrb[0].mxu0
      %1015 = vmatprep.mubr.bf16.mxu0 0
      %1016 = vmatmul.mubr.bf16.gmra.mrb[0].mxu0 %v607
      %v1017 = vpop.f32.mrb[0].mxu0
      %v1018 = vadd.f32 0.0, %v1017
      %v1019 = vpop.f32.mrb[0].mxu0
      %v1020 = vpop.f32.mrb[0].mxu0
      %v1021 = vadd.f32 0.0, %v1020
      %v1022 = vpop.f32.mrb[0].mxu0
      %1023 = vmatprep.mubr.bf16.mxu0 0
      %1024 = vmatmul.mubr.bf16.gmra.mrb[0].mxu0 %v610
      %v1025 = vpop.f32.mrb[0].mxu0
      %v1026 = vadd.f32 0.0, %v1025
      %v1027 = vpop.f32.mrb[0].mxu0
      %v1028 = vpop.f32.mrb[0].mxu0
      %v1029 = vadd.f32 0.0, %v1028
      %v1030 = vpop.f32.mrb[0].mxu0
      %1031 = vmatprep.mubr.bf16.mxu0 0
      %1032 = vmatmul.mubr.bf16.gmra.mrb[0].mxu0 %v613
      %v1033 = vpop.f32.mrb[0].mxu0
      %v1034 = vadd.f32 0.0, %v1033
      %v1035 = vpop.f32.mrb[0].mxu0
      %v1036 = vpop.f32.mrb[0].mxu0
      %v1037 = vadd.f32 0.0, %v1036
      %v1038 = vpop.f32.mrb[0].mxu0
      %1039 = vmatprep.mubr.bf16.mxu0 0
      %1040 = vmatmul.mubr.bf16.gmra.mrb[0].mxu0 %v616
      %v1041 = vpop.f32.mrb[0].mxu0
      %v1042 = vadd.f32 0.0, %v1041
      %v1043 = vpop.f32.mrb[0].mxu0
      %v1044 = vpop.f32.mrb[0].mxu0
      %v1045 = vadd.f32 0.0, %v1044
      %v1046 = vpop.f32.mrb[0].mxu0
      %1047 = vmatprep.mubr.bf16.mxu0 0
      %1048 = vmatmul.mubr.bf16.gmra.mrb[0].mxu0 %v619
      %v1049 = vpop.f32.mrb[0].mxu0
      %v1050 = vadd.f32 0.0, %v1049
      %v1051 = vpop.f32.mrb[0].mxu0
      %v1052 = vpop.f32.mrb[0].mxu0
      %v1053 = vadd.f32 0.0, %v1052
      %v1054 = vpop.f32.mrb[0].mxu0
      %1055 = vmatprep.mubr.bf16.mxu0 0
      %1056 = vmatmul.mubr.bf16.gmra.mrb[0].mxu0 %v622
      %v1057 = vpop.f32.mrb[0].mxu0
      %v1058 = vadd.f32 0.0, %v1057
      %v1059 = vpop.f32.mrb[0].mxu0
      %v1060 = vpop.f32.mrb[0].mxu0
      %v1061 = vadd.f32 0.0, %v1060
      %v1062 = vpop.f32.mrb[0].mxu0
      %1063 = vmatprep.mubr.bf16.mxu0 0
      %1064 = vmatmul.mubr.bf16.gmra.mrb[0].mxu0 %v625
      %v1065 = vpop.f32.mrb[0].mxu0
      %v1066 = vadd.f32 0.0, %v1065
      %v1067 = vpop.f32.mrb[0].mxu0
      %v1068 = vpop.f32.mrb[0].mxu0
      %v1069 = vadd.f32 0.0, %v1068
      %v1070 = vpop.f32.mrb[0].mxu0
      %1071 = vmatprep.mubr.bf16.mxu0 0
      %1072 = vmatmul.mubr.bf16.gmra.mrb[0].mxu0 %v628
      %v1073 = vpop.f32.mrb[0].mxu0
      %v1074 = vadd.f32 0.0, %v1073
      %v1075 = vpop.f32.mrb[0].mxu0
      %v1076 = vpop.f32.mrb[0].mxu0
      %v1077 = vadd.f32 0.0, %v1076
      %v1078 = vpop.f32.mrb[0].mxu0
      %1079 = vmatprep.mubr.bf16.mxu0 0
      %1080 = vmatmul.mubr.bf16.gmra.mrb[0].mxu0 %v631
      %v1081 = vpop.f32.mrb[0].mxu0
      %v1082 = vadd.f32 0.0, %v1081
      %v1083 = vpop.f32.mrb[0].mxu0
      %v1084 = vpop.f32.mrb[0].mxu0
      %v1085 = vadd.f32 0.0, %v1084
      %v1086 = vpop.f32.mrb[0].mxu0
      %1087 = vmatprep.mubr.bf16.mxu0 0
      %1088 = vmatmul.mubr.bf16.gmra.mrb[0].mxu0 %v634
      %v1089 = vpop.f32.mrb[0].mxu0
      %v1090 = vadd.f32 0.0, %v1089
      %v1091 = vpop.f32.mrb[0].mxu0
      %v1092 = vpop.f32.mrb[0].mxu0
      %v1093 = vadd.f32 0.0, %v1092
      %v1094 = vpop.f32.mrb[0].mxu0
      %1095 = vmatprep.mubr.bf16.mxu0 0
      %1096 = vmatmul.mubr.bf16.gmra.mrb[0].mxu0 %v637
      %v1097 = vpop.f32.mrb[0].mxu0
      %v1098 = vadd.f32 0.0, %v1097
      %v1099 = vpop.f32.mrb[0].mxu0
      %v1100 = vpop.f32.mrb[0].mxu0
      %v1101 = vadd.f32 0.0, %v1100
      %v1102 = vpop.f32.mrb[0].mxu0
      %1103 = vmatprep.mubr.bf16.mxu0 0
      %1104 = vmatmul.mubr.bf16.gmra.mrb[0].mxu0 %v640
      %v1105 = vpop.f32.mrb[0].mxu0
      %v1106 = vadd.f32 0.0, %v1105
      %v1107 = vpop.f32.mrb[0].mxu0
      %v1108 = vpop.f32.mrb[0].mxu0
      %v1109 = vadd.f32 0.0, %v1108
      %v1110 = vpop.f32.mrb[0].mxu0
      %1111 = vmatprep.mubr.bf16.mxu0 0
      %1112 = vmatmul.mubr.bf16.gmra.mrb[0].mxu0 %v643
      %v1113 = vpop.f32.mrb[0].mxu0
      %v1114 = vadd.f32 0.0, %v1113
      %v1115 = vpop.f32.mrb[0].mxu0
      %v1116 = vpop.f32.mrb[0].mxu0
      %v1117 = vadd.f32 0.0, %v1116
      %v1118 = vpop.f32.mrb[0].mxu0
      %1119 = vmatprep.mubr.bf16.mxu0 0
      %1120 = vmatmul.mubr.bf16.gmra.mrb[0].mxu0 %v646
      %v1121 = vpop.f32.mrb[0].mxu0
      %v1122 = vadd.f32 0.0, %v1121
      %v1123 = vpop.f32.mrb[0].mxu0
      %v1124 = vpop.f32.mrb[0].mxu0
      %v1125 = vadd.f32 0.0, %v1124
      %v1126 = vpop.f32.mrb[0].mxu0
      %1127 = vmatprep.mubr.bf16.mxu0 0
      %1128 = vmatmul.mubr.bf16.gmra.mrb[0].mxu0 %v649
      %v1129 = vpop.f32.mrb[0].mxu0
      %v1130 = vadd.f32 0.0, %v1129
      %v1131 = vpop.f32.mrb[0].mxu0
      %v1132 = vpop.f32.mrb[0].mxu0
      %v1133 = vadd.f32 0.0, %v1132
      %v1134 = vpop.f32.mrb[0].mxu0
      %1135 = vmatprep.mubr.bf16.mxu0 0
      %1136 = vmatmul.mubr.bf16.gmra.mrb[0].mxu0 %v652
      %v1137 = vpop.f32.mrb[0].mxu0
      %v1138 = vadd.f32 0.0, %v1137
      %v1139 = vpop.f32.mrb[0].mxu0
      %v1140 = vpop.f32.mrb[0].mxu0
      %v1141 = vadd.f32 0.0, %v1140
      %v1142 = vpop.f32.mrb[0].mxu0
      %1143 = vmatprep.mubr.bf16.mxu0 0
      %1144 = vmatmul.mubr.bf16.gmra.mrb[0].mxu0 %v655
      %v1145 = vpop.f32.mrb[0].mxu0
      %v1146 = vadd.f32 0.0, %v1145
      %v1147 = vpop.f32.mrb[0].mxu0
      %v1148 = vpop.f32.mrb[0].mxu0
      %v1149 = vadd.f32 0.0, %v1148
      %v1150 = vpop.f32.mrb[0].mxu0
      %1151 = vmatprep.mubr.bf16.mxu0 0
      %1152 = vmatmul.mubr.bf16.gmra.mrb[0].mxu0 %v658
      %v1153 = vpop.f32.mrb[0].mxu0
      %v1154 = vadd.f32 0.0, %v1153
      %v1155 = vpop.f32.mrb[0].mxu0
      %v1156 = vpop.f32.mrb[0].mxu0
      %v1157 = vadd.f32 0.0, %v1156
      %v1158 = vpop.f32.mrb[0].mxu0
      %1159 = vmatprep.mubr.bf16.mxu0 0
      %1160 = vmatmul.mubr.bf16.gmra.mrb[0].mxu0 %v661
      %v1161 = vpop.f32.mrb[0].mxu0
      %v1162 = vadd.f32 0.0, %v1161
      %v1163 = vpop.f32.mrb[0].mxu0
      %v1164 = vpop.f32.mrb[0].mxu0
      %v1165 = vadd.f32 0.0, %v1164
      %v1166 = vpop.f32.mrb[0].mxu0
      %1167 = vmatprep.mubr.bf16.mxu0 0
      %1168 = vmatmul.mubr.bf16.gmra.mrb[0].mxu0 %v664
      %v1169 = vpop.f32.mrb[0].mxu0
      %v1170 = vadd.f32 0.0, %v1169
      %v1171 = vpop.f32.mrb[0].mxu0
      %v1172 = vpop.f32.mrb[0].mxu0
      %v1173 = vadd.f32 0.0, %v1172
      %v1174 = vpop.f32.mrb[0].mxu0
      %1175 = vmatprep.mubr.bf16.mxu0 0
      %1176 = vmatmul.mubr.bf16.gmra.mrb[0].mxu0 %v667
      %v1177 = vpop.f32.mrb[0].mxu0
      %v1178 = vadd.f32 0.0, %v1177
      %v1179 = vpop.f32.mrb[0].mxu0
      %v1180 = vpop.f32.mrb[0].mxu0
      %v1181 = vadd.f32 0.0, %v1180
      %v1182 = vpop.f32.mrb[0].mxu0
      %1183 = vmatprep.mubr.bf16.mxu0 0
      %1184 = vmatmul.mubr.bf16.gmra.mrb[0].mxu0 %v670
      %v1185 = vpop.f32.mrb[0].mxu0
      %v1186 = vadd.f32 0.0, %v1185
      %v1187 = vpop.f32.mrb[0].mxu0
      %v1188 = vpop.f32.mrb[0].mxu0
      %v1189 = vadd.f32 0.0, %v1188
      %v1190 = vpop.f32.mrb[0].mxu0
      %1191 = vmatprep.mubr.bf16.mxu0 0
      %1192 = vmatmul.mubr.bf16.gmra.mrb[0].mxu0 %v673
      %v1193 = vpop.f32.mrb[0].mxu0
      %v1194 = vpop.f32.mrb[0].mxu0
      %v1195 = vpop.f32.mrb[0].mxu0
      %v1196 = vpop.f32.mrb[0].mxu0
      %1197 = vmatprep.mubr.bf16.mxu0 0
      %1198 = vmatmul.mubr.bf16.gmra.mrb[0].mxu0 %v676
      %v1199 = vpop.f32.mrb[0].mxu0
      %v1200 = vpop.f32.mrb[0].mxu0
      %v1201 = vpop.f32.mrb[0].mxu0
      %v1202 = vpop.f32.mrb[0].mxu0
      %1203 = vmatprep.mubr.bf16.mxu0 0
      %1204 = vmatmul.mubr.bf16.gmra.mrb[0].mxu0 %v679
      %v1205 = vpop.f32.mrb[0].mxu0
      %v1206 = vpop.f32.mrb[0].mxu0
      %v1207 = vpop.f32.mrb[0].mxu0
      %v1208 = vpop.f32.mrb[0].mxu0
      %1209 = vmatprep.mubr.bf16.mxu0 0
      %1210 = vmatmul.mubr.bf16.gmra.mrb[0].mxu0 %v682
      %v1211 = vpop.f32.mrb[0].mxu0
      %v1212 = vpop.f32.mrb[0].mxu0
      %v1213 = vpop.f32.mrb[0].mxu0
      %v1214 = vpop.f32.mrb[0].mxu0
      %1215 = vmatprep.mubr.bf16.mxu0 0
      %1216 = vmatmul.mubr.bf16.gmra.mrb[0].mxu0 %v685
      %v1217 = vpop.f32.mrb[0].mxu0
      %v1218 = vpop.f32.mrb[0].mxu0
      %v1219 = vpop.f32.mrb[0].mxu0
      %v1220 = vpop.f32.mrb[0].mxu0
      %1221 = vdwg.mxu0
      %vm1270 = vcmask 1046528
      %v1271 = vrot.slane %v1002, 1
      %v1272 = vrot.slane %v1005, 1
      %v1273 = vsel %vm1270, %v1271, %v1272
      %v1274 = vrot.slane %v1010, 1
      %v1275 = vsel %vm1270, %v1272, %v1274
      %v1276 = vrot.slane %v1013, 1
      %v1277 = vrot.slane %v1018, 1
      %v1278 = vsel %vm1270, %v1276, %v1277
      %v1279 = vrot.slane %v1021, 1
      %v1280 = vsel %vm1270, %v1277, %v1279
      %v1281 = vrot.slane %v1026, 1
      %v1282 = vrot.slane %v1029, 1
      %v1283 = vsel %vm1270, %v1281, %v1282
      %v1284 = vrot.slane %v1034, 1
      %v1285 = vsel %vm1270, %v1282, %v1284
      %v1286 = vrot.slane %v1037, 1
      %v1287 = vrot.slane %v1042, 1
      %v1288 = vsel %vm1270, %v1286, %v1287
      %v1289 = vrot.slane %v1045, 1
      %v1290 = vsel %vm1270, %v1287, %v1289
      %v1291 = vrot.slane %v1050, 1
      %v1292 = vrot.slane %v1053, 1
      %v1293 = vsel %vm1270, %v1291, %v1292
      %v1294 = vrot.slane %v1058, 1
      %v1295 = vsel %vm1270, %v1292, %v1294
      %v1296 = vrot.slane %v1061, 1
      %v1297 = vrot.slane %v1066, 1
      %v1298 = vsel %vm1270, %v1296, %v1297
      %v1299 = vrot.slane %v1069, 1
      %v1300 = vsel %vm1270, %v1297, %v1299
      %v1301 = vrot.slane %v1074, 1
      %v1302 = vrot.slane %v1077, 1
      %v1303 = vsel %vm1270, %v1301, %v1302
      %v1304 = vrot.slane %v1082, 1
      %v1305 = vsel %vm1270, %v1302, %v1304
      %v1306 = vrot.slane %v1085, 1
      %v1307 = vrot.slane %v1090, 1
      %v1308 = vsel %vm1270, %v1306, %v1307
      %v1309 = vrot.slane %v1093, 1
      %v1310 = vsel %vm1270, %v1307, %v1309
      %v1311 = vrot.slane %v1098, 1
      %v1312 = vrot.slane %v1101, 1
      %v1313 = vsel %vm1270, %v1311, %v1312
      %v1314 = vrot.slane %v1106, 1
      %v1315 = vsel %vm1270, %v1312, %v1314
      %v1316 = vrot.slane %v1109, 1
      %v1317 = vrot.slane %v1114, 1
      %v1318 = vsel %vm1270, %v1316, %v1317
      %v1319 = vrot.slane %v1117, 1
      %v1320 = vsel %vm1270, %v1317, %v1319
      %v1321 = vrot.slane %v1122, 1
      %v1322 = vrot.slane %v1125, 1
      %v1323 = vsel %vm1270, %v1321, %v1322
      %v1324 = vrot.slane %v1130, 1
      %v1325 = vsel %vm1270, %v1322, %v1324
      %v1326 = vrot.slane %v1133, 1
      %v1327 = vrot.slane %v1138, 1
      %v1328 = vsel %vm1270, %v1326, %v1327
      %v1329 = vrot.slane %v1141, 1
      %v1330 = vsel %vm1270, %v1327, %v1329
      %v1331 = vrot.slane %v1146, 1
      %v1332 = vrot.slane %v1149, 1
      %v1333 = vsel %vm1270, %v1331, %v1332
      %v1334 = vrot.slane %v1154, 1
      %v1335 = vsel %vm1270, %v1332, %v1334
      %v1336 = vrot.slane %v1157, 1
      %v1337 = vrot.slane %v1162, 1
      %v1338 = vsel %vm1270, %v1336, %v1337
      %v1339 = vrot.slane %v1165, 1
      %v1340 = vsel %vm1270, %v1337, %v1339
      %v1341 = vrot.slane %v1170, 1
      %v1342 = vrot.slane %v1173, 1
      %v1343 = vsel %vm1270, %v1341, %v1342
      %v1344 = vrot.slane %v1178, 1
      %v1345 = vsel %vm1270, %v1342, %v1344
      %v1346 = vrot.slane %v1181, 1
      %v1347 = vrot.slane %v1186, 1
      %v1348 = vsel %vm1270, %v1346, %v1347
      %v1349 = vrot.slane %v1189, 1
      %v1350 = vsel %vm1270, %v1347, %v1349
      %v1383 = vadd.f32 %v930, %v1273
      %v1384 = vadd.f32 %v931, %v1275
      %v1385 = vadd.f32 %v932, %v1278
      %v1386 = vadd.f32 %v933, %v1280
      %v1387 = vadd.f32 %v934, %v1283
      %v1388 = vadd.f32 %v935, %v1285
      %v1389 = vadd.f32 %v936, %v1288
      %v1390 = vadd.f32 %v937, %v1290
      %v1391 = vadd.f32 %v938, %v1293
      %v1392 = vadd.f32 %v939, %v1295
      %v1393 = vadd.f32 %v940, %v1298
      %v1394 = vadd.f32 %v941, %v1300
      %v1395 = vadd.f32 %v942, %v1303
      %v1396 = vadd.f32 %v943, %v1305
      %v1397 = vadd.f32 %v944, %v1308
      %v1398 = vadd.f32 %v945, %v1310
      %v1399 = vadd.f32 %v946, %v1313
      %v1400 = vadd.f32 %v947, %v1315
      %v1401 = vadd.f32 %v948, %v1318
      %v1402 = vadd.f32 %v949, %v1320
      %v1403 = vadd.f32 %v950, %v1323
      %v1404 = vadd.f32 %v951, %v1325
      %v1405 = vadd.f32 %v952, %v1328
      %v1406 = vadd.f32 %v953, %v1330
      %v1407 = vadd.f32 %v954, %v1333
      %v1408 = vadd.f32 %v955, %v1335
      %v1409 = vadd.f32 %v956, %v1338
      %v1410 = vadd.f32 %v957, %v1340
      %v1411 = vadd.f32 %v958, %v1343
      %v1412 = vadd.f32 %v959, %v1345
      %v1413 = vadd.f32 %v960, %v1348
      %v1414 = vadd.f32 %v961, %v1350
      %s1415 = scalar_lea.vmem %s1, 4
      %v1416 = vld [vmem:[%s1415] sm:$0x3]
      %v1418 = vsel %vm687, %v1416, 0
      %1420 = vmatprep.subr.bf16.mxu0 0
      %1421 = vmatpush1.bf16.msra.mxu0 %v1418
      %1422 = vmatprep.subr.bf16.mxu0 0
      %1423 = vmatpush1.bf16.msra.mxu0 0
      %1424 = vmatprep.subr.bf16.mxu0 0
      %1425 = vmatpush1.bf16.msra.mxu0 0
      %1426 = vmatprep.subr.bf16.mxu0 0
      %1427 = vmatpush1.bf16.msra.mxu0 0
      %1428 = vmatprep.subr.bf16.mxu0 0
      %1429 = vmatpush1.bf16.msra.mxu0 0
      %1430 = vmatprep.subr.bf16.mxu0 0
      %1431 = vmatpush1.bf16.msra.mxu0 0
      %1432 = vmatprep.subr.bf16.mxu0 0
      %1433 = vmatpush1.bf16.msra.mxu0 0
      %1434 = vmatprep.subr.bf16.mxu0 0
      %1435 = vmatpush1.bf16.msra.mxu0 0
      %1436 = vmatprep.subr.bf16.mxu0 0
      %1437 = vmatpush1.bf16.msra.mxu0 0
      %1438 = vmatprep.subr.bf16.mxu0 0
      %1439 = vmatpush1.bf16.msra.mxu0 0
      %1440 = vmatprep.subr.bf16.mxu0 0
      %1441 = vmatpush1.bf16.msra.mxu0 0
      %1442 = vmatprep.subr.bf16.mxu0 0
      %1443 = vmatpush1.bf16.msra.mxu0 0
      %1444 = vmatprep.subr.bf16.mxu0 0
      %1445 = vmatpush1.bf16.msra.mxu0 0
      %1446 = vmatprep.subr.bf16.mxu0 0
      %1447 = vmatpush1.bf16.msra.mxu0 0
      %1448 = vmatprep.subr.bf16.mxu0 0
      %1449 = vmatpush1.bf16.msra.mxu0 0
      %1450 = vmatprep.subr.bf16.mxu0 0
      %1451 = vmatpush1.bf16.msra.mxu0 0
      %1452 = vmatprep.mubr.bf16.mxu0 0
      %1453 = vmatmul.mubr.bf16.gmra.mrb[0].mxu0 %v601
      %v1454 = vpop.f32.mrb[0].mxu0
      %v1455 = vadd.f32 0.0, %v1454
      %v1456 = vpop.f32.mrb[0].mxu0
      %v1457 = vpop.f32.mrb[0].mxu0
      %v1458 = vadd.f32 0.0, %v1457
      %v1459 = vpop.f32.mrb[0].mxu0
      %1460 = vmatprep.mubr.bf16.mxu0 0
      %1461 = vmatmul.mubr.bf16.gmra.mrb[0].mxu0 %v604
      %v1462 = vpop.f32.mrb[0].mxu0
      %v1463 = vadd.f32 0.0, %v1462
      %v1464 = vpop.f32.mrb[0].mxu0
      %v1465 = vpop.f32.mrb[0].mxu0
      %v1466 = vadd.f32 0.0, %v1465
      %v1467 = vpop.f32.mrb[0].mxu0
      %1468 = vmatprep.mubr.bf16.mxu0 0
      %1469 = vmatmul.mubr.bf16.gmra.mrb[0].mxu0 %v607
      %v1470 = vpop.f32.mrb[0].mxu0
      %v1471 = vadd.f32 0.0, %v1470
      %v1472 = vpop.f32.mrb[0].mxu0
      %v1473 = vpop.f32.mrb[0].mxu0
      %v1474 = vadd.f32 0.0, %v1473
      %v1475 = vpop.f32.mrb[0].mxu0
      %1476 = vmatprep.mubr.bf16.mxu0 0
      %1477 = vmatmul.mubr.bf16.gmra.mrb[0].mxu0 %v610
      %v1478 = vpop.f32.mrb[0].mxu0
      %v1479 = vadd.f32 0.0, %v1478
      %v1480 = vpop.f32.mrb[0].mxu0
      %v1481 = vpop.f32.mrb[0].mxu0
      %v1482 = vadd.f32 0.0, %v1481
      %v1483 = vpop.f32.mrb[0].mxu0
      %1484 = vmatprep.mubr.bf16.mxu0 0
      %1485 = vmatmul.mubr.bf16.gmra.mrb[0].mxu0 %v613
      %v1486 = vpop.f32.mrb[0].mxu0
      %v1487 = vadd.f32 0.0, %v1486
      %v1488 = vpop.f32.mrb[0].mxu0
      %v1489 = vpop.f32.mrb[0].mxu0
      %v1490 = vadd.f32 0.0, %v1489
      %v1491 = vpop.f32.mrb[0].mxu0
      %1492 = vmatprep.mubr.bf16.mxu0 0
      %1493 = vmatmul.mubr.bf16.gmra.mrb[0].mxu0 %v616
      %v1494 = vpop.f32.mrb[0].mxu0
      %v1495 = vadd.f32 0.0, %v1494
      %v1496 = vpop.f32.mrb[0].mxu0
      %v1497 = vpop.f32.mrb[0].mxu0
      %v1498 = vadd.f32 0.0, %v1497
      %v1499 = vpop.f32.mrb[0].mxu0
      %1500 = vmatprep.mubr.bf16.mxu0 0
      %1501 = vmatmul.mubr.bf16.gmra.mrb[0].mxu0 %v619
      %v1502 = vpop.f32.mrb[0].mxu0
      %v1503 = vadd.f32 0.0, %v1502
      %v1504 = vpop.f32.mrb[0].mxu0
      %v1505 = vpop.f32.mrb[0].mxu0
      %v1506 = vadd.f32 0.0, %v1505
      %v1507 = vpop.f32.mrb[0].mxu0
      %1508 = vmatprep.mubr.bf16.mxu0 0
      %1509 = vmatmul.mubr.bf16.gmra.mrb[0].mxu0 %v622
      %v1510 = vpop.f32.mrb[0].mxu0
      %v1511 = vadd.f32 0.0, %v1510
      %v1512 = vpop.f32.mrb[0].mxu0
      %v1513 = vpop.f32.mrb[0].mxu0
      %v1514 = vadd.f32 0.0, %v1513
      %v1515 = vpop.f32.mrb[0].mxu0
      %1516 = vmatprep.mubr.bf16.mxu0 0
      %1517 = vmatmul.mubr.bf16.gmra.mrb[0].mxu0 %v625
      %v1518 = vpop.f32.mrb[0].mxu0
      %v1519 = vadd.f32 0.0, %v1518
      %v1520 = vpop.f32.mrb[0].mxu0
      %v1521 = vpop.f32.mrb[0].mxu0
      %v1522 = vadd.f32 0.0, %v1521
      %v1523 = vpop.f32.mrb[0].mxu0
      %1524 = vmatprep.mubr.bf16.mxu0 0
      %1525 = vmatmul.mubr.bf16.gmra.mrb[0].mxu0 %v628
      %v1526 = vpop.f32.mrb[0].mxu0
      %v1527 = vadd.f32 0.0, %v1526
      %v1528 = vpop.f32.mrb[0].mxu0
      %v1529 = vpop.f32.mrb[0].mxu0
      %v1530 = vadd.f32 0.0, %v1529
      %v1531 = vpop.f32.mrb[0].mxu0
      %1532 = vmatprep.mubr.bf16.mxu0 0
      %1533 = vmatmul.mubr.bf16.gmra.mrb[0].mxu0 %v631
      %v1534 = vpop.f32.mrb[0].mxu0
      %v1535 = vadd.f32 0.0, %v1534
      %v1536 = vpop.f32.mrb[0].mxu0
      %v1537 = vpop.f32.mrb[0].mxu0
      %v1538 = vadd.f32 0.0, %v1537
      %v1539 = vpop.f32.mrb[0].mxu0
      %1540 = vmatprep.mubr.bf16.mxu0 0
      %1541 = vmatmul.mubr.bf16.gmra.mrb[0].mxu0 %v634
      %v1542 = vpop.f32.mrb[0].mxu0
      %v1543 = vadd.f32 0.0, %v1542
      %v1544 = vpop.f32.mrb[0].mxu0
      %v1545 = vpop.f32.mrb[0].mxu0
      %v1546 = vadd.f32 0.0, %v1545
      %v1547 = vpop.f32.mrb[0].mxu0
      %1548 = vmatprep.mubr.bf16.mxu0 0
      %1549 = vmatmul.mubr.bf16.gmra.mrb[0].mxu0 %v637
      %v1550 = vpop.f32.mrb[0].mxu0
      %v1551 = vadd.f32 0.0, %v1550
      %v1552 = vpop.f32.mrb[0].mxu0
      %v1553 = vpop.f32.mrb[0].mxu0
      %v1554 = vadd.f32 0.0, %v1553
      %v1555 = vpop.f32.mrb[0].mxu0
      %1556 = vmatprep.mubr.bf16.mxu0 0
      %1557 = vmatmul.mubr.bf16.gmra.mrb[0].mxu0 %v640
      %v1558 = vpop.f32.mrb[0].mxu0
      %v1559 = vadd.f32 0.0, %v1558
      %v1560 = vpop.f32.mrb[0].mxu0
      %v1561 = vpop.f32.mrb[0].mxu0
      %v1562 = vadd.f32 0.0, %v1561
      %v1563 = vpop.f32.mrb[0].mxu0
      %1564 = vmatprep.mubr.bf16.mxu0 0
      %1565 = vmatmul.mubr.bf16.gmra.mrb[0].mxu0 %v643
      %v1566 = vpop.f32.mrb[0].mxu0
      %v1567 = vadd.f32 0.0, %v1566
      %v1568 = vpop.f32.mrb[0].mxu0
      %v1569 = vpop.f32.mrb[0].mxu0
      %v1570 = vadd.f32 0.0, %v1569
      %v1571 = vpop.f32.mrb[0].mxu0
      %1572 = vmatprep.mubr.bf16.mxu0 0
      %1573 = vmatmul.mubr.bf16.gmra.mrb[0].mxu0 %v646
      %v1574 = vpop.f32.mrb[0].mxu0
      %v1575 = vadd.f32 0.0, %v1574
      %v1576 = vpop.f32.mrb[0].mxu0
      %v1577 = vpop.f32.mrb[0].mxu0
      %v1578 = vadd.f32 0.0, %v1577
      %v1579 = vpop.f32.mrb[0].mxu0
      %1580 = vmatprep.mubr.bf16.mxu0 0
      %1581 = vmatmul.mubr.bf16.gmra.mrb[0].mxu0 %v649
      %v1582 = vpop.f32.mrb[0].mxu0
      %v1583 = vadd.f32 0.0, %v1582
      %v1584 = vpop.f32.mrb[0].mxu0
      %v1585 = vpop.f32.mrb[0].mxu0
      %v1586 = vadd.f32 0.0, %v1585
      %v1587 = vpop.f32.mrb[0].mxu0
      %1588 = vmatprep.mubr.bf16.mxu0 0
      %1589 = vmatmul.mubr.bf16.gmra.mrb[0].mxu0 %v652
      %v1590 = vpop.f32.mrb[0].mxu0
      %v1591 = vadd.f32 0.0, %v1590
      %v1592 = vpop.f32.mrb[0].mxu0
      %v1593 = vpop.f32.mrb[0].mxu0
      %v1594 = vadd.f32 0.0, %v1593
      %v1595 = vpop.f32.mrb[0].mxu0
      %1596 = vmatprep.mubr.bf16.mxu0 0
      %1597 = vmatmul.mubr.bf16.gmra.mrb[0].mxu0 %v655
      %v1598 = vpop.f32.mrb[0].mxu0
      %v1599 = vadd.f32 0.0, %v1598
      %v1600 = vpop.f32.mrb[0].mxu0
      %v1601 = vpop.f32.mrb[0].mxu0
      %v1602 = vadd.f32 0.0, %v1601
      %v1603 = vpop.f32.mrb[0].mxu0
      %1604 = vmatprep.mubr.bf16.mxu0 0
      %1605 = vmatmul.mubr.bf16.gmra.mrb[0].mxu0 %v658
      %v1606 = vpop.f32.mrb[0].mxu0
      %v1607 = vadd.f32 0.0, %v1606
      %v1608 = vpop.f32.mrb[0].mxu0
      %v1609 = vpop.f32.mrb[0].mxu0
      %v1610 = vadd.f32 0.0, %v1609
      %v1611 = vpop.f32.mrb[0].mxu0
      %1612 = vmatprep.mubr.bf16.mxu0 0
      %1613 = vmatmul.mubr.bf16.gmra.mrb[0].mxu0 %v661
      %v1614 = vpop.f32.mrb[0].mxu0
      %v1615 = vadd.f32 0.0, %v1614
      %v1616 = vpop.f32.mrb[0].mxu0
      %v1617 = vpop.f32.mrb[0].mxu0
      %v1618 = vadd.f32 0.0, %v1617
      %v1619 = vpop.f32.mrb[0].mxu0
      %1620 = vmatprep.mubr.bf16.mxu0 0
      %1621 = vmatmul.mubr.bf16.gmra.mrb[0].mxu0 %v664
      %v1622 = vpop.f32.mrb[0].mxu0
      %v1623 = vadd.f32 0.0, %v1622
      %v1624 = vpop.f32.mrb[0].mxu0
      %v1625 = vpop.f32.mrb[0].mxu0
      %v1626 = vadd.f32 0.0, %v1625
      %v1627 = vpop.f32.mrb[0].mxu0
      %1628 = vmatprep.mubr.bf16.mxu0 0
      %1629 = vmatmul.mubr.bf16.gmra.mrb[0].mxu0 %v667
      %v1630 = vpop.f32.mrb[0].mxu0
      %v1631 = vadd.f32 0.0, %v1630
      %v1632 = vpop.f32.mrb[0].mxu0
      %v1633 = vpop.f32.mrb[0].mxu0
      %v1634 = vadd.f32 0.0, %v1633
      %v1635 = vpop.f32.mrb[0].mxu0
      %1636 = vmatprep.mubr.bf16.mxu0 0
      %1637 = vmatmul.mubr.bf16.gmra.mrb[0].mxu0 %v670
      %v1638 = vpop.f32.mrb[0].mxu0
      %v1639 = vadd.f32 0.0, %v1638
      %v1640 = vpop.f32.mrb[0].mxu0
      %v1641 = vpop.f32.mrb[0].mxu0
      %v1642 = vadd.f32 0.0, %v1641
      %v1643 = vpop.f32.mrb[0].mxu0
      %1644 = vmatprep.mubr.bf16.mxu0 0
      %1645 = vmatmul.mubr.bf16.gmra.mrb[0].mxu0 %v673
      %v1646 = vpop.f32.mrb[0].mxu0
      %v1647 = vpop.f32.mrb[0].mxu0
      %v1648 = vpop.f32.mrb[0].mxu0
      %v1649 = vpop.f32.mrb[0].mxu0
      %1650 = vmatprep.mubr.bf16.mxu0 0
      %1651 = vmatmul.mubr.bf16.gmra.mrb[0].mxu0 %v676
      %v1652 = vpop.f32.mrb[0].mxu0
      %v1653 = vpop.f32.mrb[0].mxu0
      %v1654 = vpop.f32.mrb[0].mxu0
      %v1655 = vpop.f32.mrb[0].mxu0
      %1656 = vmatprep.mubr.bf16.mxu0 0
      %1657 = vmatmul.mubr.bf16.gmra.mrb[0].mxu0 %v679
      %v1658 = vpop.f32.mrb[0].mxu0
      %v1659 = vpop.f32.mrb[0].mxu0
      %v1660 = vpop.f32.mrb[0].mxu0
      %v1661 = vpop.f32.mrb[0].mxu0
      %1662 = vmatprep.mubr.bf16.mxu0 0
      %1663 = vmatmul.mubr.bf16.gmra.mrb[0].mxu0 %v682
      %v1664 = vpop.f32.mrb[0].mxu0
      %v1665 = vpop.f32.mrb[0].mxu0
      %v1666 = vpop.f32.mrb[0].mxu0
      %v1667 = vpop.f32.mrb[0].mxu0
      %1668 = vmatprep.mubr.bf16.mxu0 0
      %1669 = vmatmul.mubr.bf16.gmra.mrb[0].mxu0 %v685
      %v1670 = vpop.f32.mrb[0].mxu0
      %v1671 = vpop.f32.mrb[0].mxu0
      %v1672 = vpop.f32.mrb[0].mxu0
      %v1673 = vpop.f32.mrb[0].mxu0
      %1674 = vdwg.mxu0
      %vm1723 = vcmask 1045504
      %v1724 = vrot.slane %v1455, 2
      %v1725 = vrot.slane %v1458, 2
      %v1726 = vsel %vm1723, %v1724, %v1725
      %v1727 = vrot.slane %v1463, 2
      %v1728 = vsel %vm1723, %v1725, %v1727
      %v1729 = vrot.slane %v1466, 2
      %v1730 = vrot.slane %v1471, 2
      %v1731 = vsel %vm1723, %v1729, %v1730
      %v1732 = vrot.slane %v1474, 2
      %v1733 = vsel %vm1723, %v1730, %v1732
      %v1734 = vrot.slane %v1479, 2
      %v1735 = vrot.slane %v1482, 2
      %v1736 = vsel %vm1723, %v1734, %v1735
      %v1737 = vrot.slane %v1487, 2
      %v1738 = vsel %vm1723, %v1735, %v1737
      %v1739 = vrot.slane %v1490, 2
      %v1740 = vrot.slane %v1495, 2
      %v1741 = vsel %vm1723, %v1739, %v1740
      %v1742 = vrot.slane %v1498, 2
      %v1743 = vsel %vm1723, %v1740, %v1742
      %v1744 = vrot.slane %v1503, 2
      %v1745 = vrot.slane %v1506, 2
      %v1746 = vsel %vm1723, %v1744, %v1745
      %v1747 = vrot.slane %v1511, 2
      %v1748 = vsel %vm1723, %v1745, %v1747
      %v1749 = vrot.slane %v1514, 2
      %v1750 = vrot.slane %v1519, 2
      %v1751 = vsel %vm1723, %v1749, %v1750
      %v1752 = vrot.slane %v1522, 2
      %v1753 = vsel %vm1723, %v1750, %v1752
      %v1754 = vrot.slane %v1527, 2
      %v1755 = vrot.slane %v1530, 2
      %v1756 = vsel %vm1723, %v1754, %v1755
      %v1757 = vrot.slane %v1535, 2
      %v1758 = vsel %vm1723, %v1755, %v1757
      %v1759 = vrot.slane %v1538, 2
      %v1760 = vrot.slane %v1543, 2
      %v1761 = vsel %vm1723, %v1759, %v1760
      %v1762 = vrot.slane %v1546, 2
      %v1763 = vsel %vm1723, %v1760, %v1762
      %v1764 = vrot.slane %v1551, 2
      %v1765 = vrot.slane %v1554, 2
      %v1766 = vsel %vm1723, %v1764, %v1765
      %v1767 = vrot.slane %v1559, 2
      %v1768 = vsel %vm1723, %v1765, %v1767
      %v1769 = vrot.slane %v1562, 2
      %v1770 = vrot.slane %v1567, 2
      %v1771 = vsel %vm1723, %v1769, %v1770
      %v1772 = vrot.slane %v1570, 2
      %v1773 = vsel %vm1723, %v1770, %v1772
      %v1774 = vrot.slane %v1575, 2
      %v1775 = vrot.slane %v1578, 2
      %v1776 = vsel %vm1723, %v1774, %v1775
      %v1777 = vrot.slane %v1583, 2
      %v1778 = vsel %vm1723, %v1775, %v1777
      %v1779 = vrot.slane %v1586, 2
      %v1780 = vrot.slane %v1591, 2
      %v1781 = vsel %vm1723, %v1779, %v1780
      %v1782 = vrot.slane %v1594, 2
      %v1783 = vsel %vm1723, %v1780, %v1782
      %v1784 = vrot.slane %v1599, 2
      %v1785 = vrot.slane %v1602, 2
      %v1786 = vsel %vm1723, %v1784, %v1785
      %v1787 = vrot.slane %v1607, 2
      %v1788 = vsel %vm1723, %v1785, %v1787
      %v1789 = vrot.slane %v1610, 2
      %v1790 = vrot.slane %v1615, 2
      %v1791 = vsel %vm1723, %v1789, %v1790
      %v1792 = vrot.slane %v1618, 2
      %v1793 = vsel %vm1723, %v1790, %v1792
      %v1794 = vrot.slane %v1623, 2
      %v1795 = vrot.slane %v1626, 2
      %v1796 = vsel %vm1723, %v1794, %v1795
      %v1797 = vrot.slane %v1631, 2
      %v1798 = vsel %vm1723, %v1795, %v1797
      %v1799 = vrot.slane %v1634, 2
      %v1800 = vrot.slane %v1639, 2
      %v1801 = vsel %vm1723, %v1799, %v1800
      %v1802 = vrot.slane %v1642, 2
      %v1803 = vsel %vm1723, %v1800, %v1802
      %v1836 = vadd.f32 %v1383, %v1726
      %v1837 = vadd.f32 %v1384, %v1728
      %v1838 = vadd.f32 %v1385, %v1731
      %v1839 = vadd.f32 %v1386, %v1733
      %v1840 = vadd.f32 %v1387, %v1736
      %v1841 = vadd.f32 %v1388, %v1738
      %v1842 = vadd.f32 %v1389, %v1741
      %v1843 = vadd.f32 %v1390, %v1743
      %v1844 = vadd.f32 %v1391, %v1746
      %v1845 = vadd.f32 %v1392, %v1748
      %v1846 = vadd.f32 %v1393, %v1751
      %v1847 = vadd.f32 %v1394, %v1753
      %v1848 = vadd.f32 %v1395, %v1756
      %v1849 = vadd.f32 %v1396, %v1758
      %v1850 = vadd.f32 %v1397, %v1761
      %v1851 = vadd.f32 %v1398, %v1763
      %v1852 = vadd.f32 %v1399, %v1766
      %v1853 = vadd.f32 %v1400, %v1768
      %v1854 = vadd.f32 %v1401, %v1771
      %v1855 = vadd.f32 %v1402, %v1773
      %v1856 = vadd.f32 %v1403, %v1776
      %v1857 = vadd.f32 %v1404, %v1778
      %v1858 = vadd.f32 %v1405, %v1781
      %v1859 = vadd.f32 %v1406, %v1783
      %v1860 = vadd.f32 %v1407, %v1786
      %v1861 = vadd.f32 %v1408, %v1788
      %v1862 = vadd.f32 %v1409, %v1791
      %v1863 = vadd.f32 %v1410, %v1793
      %v1864 = vadd.f32 %v1411, %v1796
      %v1865 = vadd.f32 %v1412, %v1798
      %v1866 = vadd.f32 %v1413, %v1801
      %v1867 = vadd.f32 %v1414, %v1803
      %s1868 = scalar_lea.vmem %s1, 6
      %v1869 = vld [vmem:[%s1868] sm:$0x3]
      %v1871 = vsel %vm687, %v1869, 0
      %1873 = vmatprep.subr.bf16.mxu0 0
      %1874 = vmatpush1.bf16.msra.mxu0 %v1871
      %1875 = vmatprep.subr.bf16.mxu0 0
      %1876 = vmatpush1.bf16.msra.mxu0 0
      %1877 = vmatprep.subr.bf16.mxu0 0
      %1878 = vmatpush1.bf16.msra.mxu0 0
      %1879 = vmatprep.subr.bf16.mxu0 0
      %1880 = vmatpush1.bf16.msra.mxu0 0
      %1881 = vmatprep.subr.bf16.mxu0 0
      %1882 = vmatpush1.bf16.msra.mxu0 0
      %1883 = vmatprep.subr.bf16.mxu0 0
      %1884 = vmatpush1.bf16.msra.mxu0 0
      %1885 = vmatprep.subr.bf16.mxu0 0
      %1886 = vmatpush1.bf16.msra.mxu0 0
      %1887 = vmatprep.subr.bf16.mxu0 0
      %1888 = vmatpush1.bf16.msra.mxu0 0
      %1889 = vmatprep.subr.bf16.mxu0 0
      %1890 = vmatpush1.bf16.msra.mxu0 0
      %1891 = vmatprep.subr.bf16.mxu0 0
      %1892 = vmatpush1.bf16.msra.mxu0 0
      %1893 = vmatprep.subr.bf16.mxu0 0
      %1894 = vmatpush1.bf16.msra.mxu0 0
      %1895 = vmatprep.subr.bf16.mxu0 0
      %1896 = vmatpush1.bf16.msra.mxu0 0
      %1897 = vmatprep.subr.bf16.mxu0 0
      %1898 = vmatpush1.bf16.msra.mxu0 0
      %1899 = vmatprep.subr.bf16.mxu0 0
      %1900 = vmatpush1.bf16.msra.mxu0 0
      %1901 = vmatprep.subr.bf16.mxu0 0
      %1902 = vmatpush1.bf16.msra.mxu0 0
      %1903 = vmatprep.subr.bf16.mxu0 0
      %1904 = vmatpush1.bf16.msra.mxu0 0
      %1905 = vmatprep.mubr.bf16.mxu0 0
      %1906 = vmatmul.mubr.bf16.gmra.mrb[0].mxu0 %v601
      %v1907 = vpop.f32.mrb[0].mxu0
      %v1908 = vpop.f32.mrb[0].mxu0
      %v1909 = vpop.f32.mrb[0].mxu0
      %v1910 = vpop.f32.mrb[0].mxu0
      %1911 = vmatprep.mubr.bf16.mxu0 0
      %1912 = vmatmul.mubr.bf16.gmra.mrb[0].mxu0 %v604
      %v1913 = vpop.f32.mrb[0].mxu0
      %v1914 = vpop.f32.mrb[0].mxu0
      %v1915 = vpop.f32.mrb[0].mxu0
      %v1916 = vadd.f32 0.0, %v1915
      %v1917 = vpop.f32.mrb[0].mxu0
      %1918 = vmatprep.mubr.bf16.mxu0 0
      %1919 = vmatmul.mubr.bf16.gmra.mrb[0].mxu0 %v607
      %v1920 = vpop.f32.mrb[0].mxu0
      %v1921 = vadd.f32 0.0, %v1920
      %v1922 = vpop.f32.mrb[0].mxu0
      %v1923 = vpop.f32.mrb[0].mxu0
      %v1924 = vpop.f32.mrb[0].mxu0
      %1925 = vmatprep.mubr.bf16.mxu0 0
      %1926 = vmatmul.mubr.bf16.gmra.mrb[0].mxu0 %v610
      %v1927 = vpop.f32.mrb[0].mxu0
      %v1928 = vadd.f32 0.0, %v1927
      %v1929 = vpop.f32.mrb[0].mxu0
      %v1930 = vpop.f32.mrb[0].mxu0
      %v1931 = vadd.f32 0.0, %v1930
      %v1932 = vpop.f32.mrb[0].mxu0
      %1933 = vmatprep.mubr.bf16.mxu0 0
      %1934 = vmatmul.mubr.bf16.gmra.mrb[0].mxu0 %v613
      %v1935 = vpop.f32.mrb[0].mxu0
      %v1936 = vpop.f32.mrb[0].mxu0
      %v1937 = vpop.f32.mrb[0].mxu0
      %v1938 = vadd.f32 0.0, %v1937
      %v1939 = vpop.f32.mrb[0].mxu0
      %1940 = vmatprep.mubr.bf16.mxu0 0
      %1941 = vmatmul.mubr.bf16.gmra.mrb[0].mxu0 %v616
      %v1942 = vpop.f32.mrb[0].mxu0
      %v1943 = vadd.f32 0.0, %v1942
      %v1944 = vpop.f32.mrb[0].mxu0
      %v1945 = vpop.f32.mrb[0].mxu0
      %v1946 = vpop.f32.mrb[0].mxu0
      %1947 = vmatprep.mubr.bf16.mxu0 0
      %1948 = vmatmul.mubr.bf16.gmra.mrb[0].mxu0 %v619
      %v1949 = vpop.f32.mrb[0].mxu0
      %v1950 = vadd.f32 0.0, %v1949
      %v1951 = vpop.f32.mrb[0].mxu0
      %v1952 = vpop.f32.mrb[0].mxu0
      %v1953 = vadd.f32 0.0, %v1952
      %v1954 = vpop.f32.mrb[0].mxu0
      %1955 = vmatprep.mubr.bf16.mxu0 0
      %1956 = vmatmul.mubr.bf16.gmra.mrb[0].mxu0 %v622
      %v1957 = vpop.f32.mrb[0].mxu0
      %v1958 = vpop.f32.mrb[0].mxu0
      %v1959 = vpop.f32.mrb[0].mxu0
      %v1960 = vadd.f32 0.0, %v1959
      %v1961 = vpop.f32.mrb[0].mxu0
      %1962 = vmatprep.mubr.bf16.mxu0 0
      %1963 = vmatmul.mubr.bf16.gmra.mrb[0].mxu0 %v625
      %v1964 = vpop.f32.mrb[0].mxu0
      %v1965 = vadd.f32 0.0, %v1964
      %v1966 = vpop.f32.mrb[0].mxu0
      %v1967 = vpop.f32.mrb[0].mxu0
      %v1968 = vpop.f32.mrb[0].mxu0
      %1969 = vmatprep.mubr.bf16.mxu0 0
      %1970 = vmatmul.mubr.bf16.gmra.mrb[0].mxu0 %v628
      %v1971 = vpop.f32.mrb[0].mxu0
      %v1972 = vadd.f32 0.0, %v1971
      %v1973 = vpop.f32.mrb[0].mxu0
      %v1974 = vpop.f32.mrb[0].mxu0
      %v1975 = vadd.f32 0.0, %v1974
      %v1976 = vpop.f32.mrb[0].mxu0
      %1977 = vmatprep.mubr.bf16.mxu0 0
      %1978 = vmatmul.mubr.bf16.gmra.mrb[0].mxu0 %v631
      %v1979 = vpop.f32.mrb[0].mxu0
      %v1980 = vpop.f32.mrb[0].mxu0
      %v1981 = vpop.f32.mrb[0].mxu0
      %v1982 = vadd.f32 0.0, %v1981
      %v1983 = vpop.f32.mrb[0].mxu0
      %1984 = vmatprep.mubr.bf16.mxu0 0
      %1985 = vmatmul.mubr.bf16.gmra.mrb[0].mxu0 %v634
      %v1986 = vpop.f32.mrb[0].mxu0
      %v1987 = vadd.f32 0.0, %v1986
      %v1988 = vpop.f32.mrb[0].mxu0
      %v1989 = vpop.f32.mrb[0].mxu0
      %v1990 = vpop.f32.mrb[0].mxu0
      %1991 = vmatprep.mubr.bf16.mxu0 0
      %1992 = vmatmul.mubr.bf16.gmra.mrb[0].mxu0 %v637
      %v1993 = vpop.f32.mrb[0].mxu0
      %v1994 = vadd.f32 0.0, %v1993
      %v1995 = vpop.f32.mrb[0].mxu0
      %v1996 = vpop.f32.mrb[0].mxu0
      %v1997 = vadd.f32 0.0, %v1996
      %v1998 = vpop.f32.mrb[0].mxu0
      %1999 = vmatprep.mubr.bf16.mxu0 0
      %2000 = vmatmul.mubr.bf16.gmra.mrb[0].mxu0 %v640
      %v2001 = vpop.f32.mrb[0].mxu0
      %v2002 = vpop.f32.mrb[0].mxu0
      %v2003 = vpop.f32.mrb[0].mxu0
      %v2004 = vadd.f32 0.0, %v2003
      %v2005 = vpop.f32.mrb[0].mxu0
      %2006 = vmatprep.mubr.bf16.mxu0 0
      %2007 = vmatmul.mubr.bf16.gmra.mrb[0].mxu0 %v643
      %v2008 = vpop.f32.mrb[0].mxu0
      %v2009 = vadd.f32 0.0, %v2008
      %v2010 = vpop.f32.mrb[0].mxu0
      %v2011 = vpop.f32.mrb[0].mxu0
      %v2012 = vpop.f32.mrb[0].mxu0
      %2013 = vmatprep.mubr.bf16.mxu0 0
      %2014 = vmatmul.mubr.bf16.gmra.mrb[0].mxu0 %v646
      %v2015 = vpop.f32.mrb[0].mxu0
      %v2016 = vadd.f32 0.0, %v2015
      %v2017 = vpop.f32.mrb[0].mxu0
      %v2018 = vpop.f32.mrb[0].mxu0
      %v2019 = vadd.f32 0.0, %v2018
      %v2020 = vpop.f32.mrb[0].mxu0
      %2021 = vmatprep.mubr.bf16.mxu0 0
      %2022 = vmatmul.mubr.bf16.gmra.mrb[0].mxu0 %v649
      %v2023 = vpop.f32.mrb[0].mxu0
      %v2024 = vpop.f32.mrb[0].mxu0
      %v2025 = vpop.f32.mrb[0].mxu0
      %v2026 = vadd.f32 0.0, %v2025
      %v2027 = vpop.f32.mrb[0].mxu0
      %2028 = vmatprep.mubr.bf16.mxu0 0
      %2029 = vmatmul.mubr.bf16.gmra.mrb[0].mxu0 %v652
      %v2030 = vpop.f32.mrb[0].mxu0
      %v2031 = vadd.f32 0.0, %v2030
      %v2032 = vpop.f32.mrb[0].mxu0
      %v2033 = vpop.f32.mrb[0].mxu0
      %v2034 = vpop.f32.mrb[0].mxu0
      %2035 = vmatprep.mubr.bf16.mxu0 0
      %2036 = vmatmul.mubr.bf16.gmra.mrb[0].mxu0 %v655
      %v2037 = vpop.f32.mrb[0].mxu0
      %v2038 = vadd.f32 0.0, %v2037
      %v2039 = vpop.f32.mrb[0].mxu0
      %v2040 = vpop.f32.mrb[0].mxu0
      %v2041 = vadd.f32 0.0, %v2040
      %v2042 = vpop.f32.mrb[0].mxu0
      %2043 = vmatprep.mubr.bf16.mxu0 0
      %2044 = vmatmul.mubr.bf16.gmra.mrb[0].mxu0 %v658
      %v2045 = vpop.f32.mrb[0].mxu0
      %v2046 = vpop.f32.mrb[0].mxu0
      %v2047 = vpop.f32.mrb[0].mxu0
      %v2048 = vadd.f32 0.0, %v2047
      %v2049 = vpop.f32.mrb[0].mxu0
      %2050 = vmatprep.mubr.bf16.mxu0 0
      %2051 = vmatmul.mubr.bf16.gmra.mrb[0].mxu0 %v661
      %v2052 = vpop.f32.mrb[0].mxu0
      %v2053 = vadd.f32 0.0, %v2052
      %v2054 = vpop.f32.mrb[0].mxu0
      %v2055 = vpop.f32.mrb[0].mxu0
      %v2056 = vpop.f32.mrb[0].mxu0
      %2057 = vmatprep.mubr.bf16.mxu0 0
      %2058 = vmatmul.mubr.bf16.gmra.mrb[0].mxu0 %v664
      %v2059 = vpop.f32.mrb[0].mxu0
      %v2060 = vadd.f32 0.0, %v2059
      %v2061 = vpop.f32.mrb[0].mxu0
      %v2062 = vpop.f32.mrb[0].mxu0
      %v2063 = vadd.f32 0.0, %v2062
      %v2064 = vpop.f32.mrb[0].mxu0
      %2065 = vmatprep.mubr.bf16.mxu0 0
      %2066 = vmatmul.mubr.bf16.gmra.mrb[0].mxu0 %v667
      %v2067 = vpop.f32.mrb[0].mxu0
      %v2068 = vpop.f32.mrb[0].mxu0
      %v2069 = vpop.f32.mrb[0].mxu0
      %v2070 = vadd.f32 0.0, %v2069
      %v2071 = vpop.f32.mrb[0].mxu0
      %2072 = vmatprep.mubr.bf16.mxu0 0
      %2073 = vmatmul.mubr.bf16.gmra.mrb[0].mxu0 %v670
      %v2074 = vpop.f32.mrb[0].mxu0
      %v2075 = vadd.f32 0.0, %v2074
      %v2076 = vpop.f32.mrb[0].mxu0
      %v2077 = vpop.f32.mrb[0].mxu0
      %v2078 = vpop.f32.mrb[0].mxu0
      %2079 = vmatprep.mubr.bf16.mxu0 0
      %2080 = vmatmul.mubr.bf16.gmra.mrb[0].mxu0 %v673
      %v2081 = vpop.f32.mrb[0].mxu0
      %v2082 = vadd.f32 0.0, %v2081
      %v2083 = vpop.f32.mrb[0].mxu0
      %v2084 = vpop.f32.mrb[0].mxu0
      %v2085 = vadd.f32 0.0, %v2084
      %v2086 = vpop.f32.mrb[0].mxu0
      %2087 = vmatprep.mubr.bf16.mxu0 0
      %2088 = vmatmul.mubr.bf16.gmra.mrb[0].mxu0 %v676
      %v2089 = vpop.f32.mrb[0].mxu0
      %v2090 = vpop.f32.mrb[0].mxu0
      %v2091 = vpop.f32.mrb[0].mxu0
      %v2092 = vpop.f32.mrb[0].mxu0
      %2093 = vmatprep.mubr.bf16.mxu0 0
      %2094 = vmatmul.mubr.bf16.gmra.mrb[0].mxu0 %v679
      %v2095 = vpop.f32.mrb[0].mxu0
      %v2096 = vpop.f32.mrb[0].mxu0
      %v2097 = vpop.f32.mrb[0].mxu0
      %v2098 = vpop.f32.mrb[0].mxu0
      %2099 = vmatprep.mubr.bf16.mxu0 0
      %2100 = vmatmul.mubr.bf16.gmra.mrb[0].mxu0 %v682
      %v2101 = vpop.f32.mrb[0].mxu0
      %v2102 = vpop.f32.mrb[0].mxu0
      %v2103 = vpop.f32.mrb[0].mxu0
      %v2104 = vpop.f32.mrb[0].mxu0
      %2105 = vmatprep.mubr.bf16.mxu0 0
      %2106 = vmatmul.mubr.bf16.gmra.mrb[0].mxu0 %v685
      %v2107 = vpop.f32.mrb[0].mxu0
      %v2108 = vpop.f32.mrb[0].mxu0
      %v2109 = vpop.f32.mrb[0].mxu0
      %v2110 = vpop.f32.mrb[0].mxu0
      %2111 = vdwg.mxu0
      %v2112 = vadd.f32 %v1836, %v1916
      %v2113 = vadd.f32 %v1837, %v1921
      %v2114 = vadd.f32 %v1838, %v1928
      %v2115 = vadd.f32 %v1839, %v1931
      %v2116 = vadd.f32 %v1840, %v1938
      %v2117 = vadd.f32 %v1841, %v1943
      %v2118 = vadd.f32 %v1842, %v1950
      %v2119 = vadd.f32 %v1843, %v1953
      %v2120 = vadd.f32 %v1844, %v1960
      %v2121 = vadd.f32 %v1845, %v1965
      %v2122 = vadd.f32 %v1846, %v1972
      %v2123 = vadd.f32 %v1847, %v1975
      %v2124 = vadd.f32 %v1848, %v1982
      %v2125 = vadd.f32 %v1849, %v1987
      %v2126 = vadd.f32 %v1850, %v1994
      %v2127 = vadd.f32 %v1851, %v1997
      %v2128 = vadd.f32 %v1852, %v2004
      %v2129 = vadd.f32 %v1853, %v2009
      %v2130 = vadd.f32 %v1854, %v2016
      %v2131 = vadd.f32 %v1855, %v2019
      %v2132 = vadd.f32 %v1856, %v2026
      %v2133 = vadd.f32 %v1857, %v2031
      %v2134 = vadd.f32 %v1858, %v2038
      %v2135 = vadd.f32 %v1859, %v2041
      %v2136 = vadd.f32 %v1860, %v2048
      %v2137 = vadd.f32 %v1861, %v2053
      %v2138 = vadd.f32 %v1862, %v2060
      %v2139 = vadd.f32 %v1863, %v2063
      %v2140 = vadd.f32 %v1864, %v2070
      %v2141 = vadd.f32 %v1865, %v2075
      %v2142 = vadd.f32 %v1866, %v2082
      %v2143 = vadd.f32 %v1867, %v2085
      %s2144 = scalar_lea.vmem %s1, 8
      %v2145 = vld [vmem:[%s2144] sm:$0x3]
      %v2147 = vsel %vm687, %v2145, 0
      %2149 = vmatprep.subr.bf16.mxu0 0
      %2150 = vmatpush1.bf16.msra.mxu0 %v2147
      %2151 = vmatprep.subr.bf16.mxu0 0
      %2152 = vmatpush1.bf16.msra.mxu0 0
      %2153 = vmatprep.subr.bf16.mxu0 0
      %2154 = vmatpush1.bf16.msra.mxu0 0
      %2155 = vmatprep.subr.bf16.mxu0 0
      %2156 = vmatpush1.bf16.msra.mxu0 0
      %2157 = vmatprep.subr.bf16.mxu0 0
      %2158 = vmatpush1.bf16.msra.mxu0 0
      %2159 = vmatprep.subr.bf16.mxu0 0
      %2160 = vmatpush1.bf16.msra.mxu0 0
      %2161 = vmatprep.subr.bf16.mxu0 0
      %2162 = vmatpush1.bf16.msra.mxu0 0
      %2163 = vmatprep.subr.bf16.mxu0 0
      %2164 = vmatpush1.bf16.msra.mxu0 0
      %2165 = vmatprep.subr.bf16.mxu0 0
      %2166 = vmatpush1.bf16.msra.mxu0 0
      %2167 = vmatprep.subr.bf16.mxu0 0
      %2168 = vmatpush1.bf16.msra.mxu0 0
      %2169 = vmatprep.subr.bf16.mxu0 0
      %2170 = vmatpush1.bf16.msra.mxu0 0
      %2171 = vmatprep.subr.bf16.mxu0 0
      %2172 = vmatpush1.bf16.msra.mxu0 0
      %2173 = vmatprep.subr.bf16.mxu0 0
      %2174 = vmatpush1.bf16.msra.mxu0 0
      %2175 = vmatprep.subr.bf16.mxu0 0
      %2176 = vmatpush1.bf16.msra.mxu0 0
      %2177 = vmatprep.subr.bf16.mxu0 0
      %2178 = vmatpush1.bf16.msra.mxu0 0
      %2179 = vmatprep.subr.bf16.mxu0 0
      %2180 = vmatpush1.bf16.msra.mxu0 0
      %2181 = vmatprep.mubr.bf16.mxu0 0
      %2182 = vmatmul.mubr.bf16.gmra.mrb[0].mxu0 %v601
      %v2183 = vpop.f32.mrb[0].mxu0
      %v2184 = vpop.f32.mrb[0].mxu0
      %v2185 = vpop.f32.mrb[0].mxu0
      %v2186 = vpop.f32.mrb[0].mxu0
      %2187 = vmatprep.mubr.bf16.mxu0 0
      %2188 = vmatmul.mubr.bf16.gmra.mrb[0].mxu0 %v604
      %v2189 = vpop.f32.mrb[0].mxu0
      %v2190 = vpop.f32.mrb[0].mxu0
      %v2191 = vpop.f32.mrb[0].mxu0
      %v2192 = vadd.f32 0.0, %v2191
      %v2193 = vpop.f32.mrb[0].mxu0
      %2194 = vmatprep.mubr.bf16.mxu0 0
      %2195 = vmatmul.mubr.bf16.gmra.mrb[0].mxu0 %v607
      %v2196 = vpop.f32.mrb[0].mxu0
      %v2197 = vadd.f32 0.0, %v2196
      %v2198 = vpop.f32.mrb[0].mxu0
      %v2199 = vpop.f32.mrb[0].mxu0
      %v2200 = vadd.f32 0.0, %v2199
      %v2201 = vpop.f32.mrb[0].mxu0
      %2202 = vmatprep.mubr.bf16.mxu0 0
      %2203 = vmatmul.mubr.bf16.gmra.mrb[0].mxu0 %v610
      %v2204 = vpop.f32.mrb[0].mxu0
      %v2205 = vadd.f32 0.0, %v2204
      %v2206 = vpop.f32.mrb[0].mxu0
      %v2207 = vpop.f32.mrb[0].mxu0
      %v2208 = vadd.f32 0.0, %v2207
      %v2209 = vpop.f32.mrb[0].mxu0
      %2210 = vmatprep.mubr.bf16.mxu0 0
      %2211 = vmatmul.mubr.bf16.gmra.mrb[0].mxu0 %v613
      %v2212 = vpop.f32.mrb[0].mxu0
      %v2213 = vadd.f32 0.0, %v2212
      %v2214 = vpop.f32.mrb[0].mxu0
      %v2215 = vpop.f32.mrb[0].mxu0
      %v2216 = vadd.f32 0.0, %v2215
      %v2217 = vpop.f32.mrb[0].mxu0
      %2218 = vmatprep.mubr.bf16.mxu0 0
      %2219 = vmatmul.mubr.bf16.gmra.mrb[0].mxu0 %v616
      %v2220 = vpop.f32.mrb[0].mxu0
      %v2221 = vadd.f32 0.0, %v2220
      %v2222 = vpop.f32.mrb[0].mxu0
      %v2223 = vpop.f32.mrb[0].mxu0
      %v2224 = vadd.f32 0.0, %v2223
      %v2225 = vpop.f32.mrb[0].mxu0
      %2226 = vmatprep.mubr.bf16.mxu0 0
      %2227 = vmatmul.mubr.bf16.gmra.mrb[0].mxu0 %v619
      %v2228 = vpop.f32.mrb[0].mxu0
      %v2229 = vadd.f32 0.0, %v2228
      %v2230 = vpop.f32.mrb[0].mxu0
      %v2231 = vpop.f32.mrb[0].mxu0
      %v2232 = vadd.f32 0.0, %v2231
      %v2233 = vpop.f32.mrb[0].mxu0
      %2234 = vmatprep.mubr.bf16.mxu0 0
      %2235 = vmatmul.mubr.bf16.gmra.mrb[0].mxu0 %v622
      %v2236 = vpop.f32.mrb[0].mxu0
      %v2237 = vadd.f32 0.0, %v2236
      %v2238 = vpop.f32.mrb[0].mxu0
      %v2239 = vpop.f32.mrb[0].mxu0
      %v2240 = vadd.f32 0.0, %v2239
      %v2241 = vpop.f32.mrb[0].mxu0
      %2242 = vmatprep.mubr.bf16.mxu0 0
      %2243 = vmatmul.mubr.bf16.gmra.mrb[0].mxu0 %v625
      %v2244 = vpop.f32.mrb[0].mxu0
      %v2245 = vadd.f32 0.0, %v2244
      %v2246 = vpop.f32.mrb[0].mxu0
      %v2247 = vpop.f32.mrb[0].mxu0
      %v2248 = vadd.f32 0.0, %v2247
      %v2249 = vpop.f32.mrb[0].mxu0
      %2250 = vmatprep.mubr.bf16.mxu0 0
      %2251 = vmatmul.mubr.bf16.gmra.mrb[0].mxu0 %v628
      %v2252 = vpop.f32.mrb[0].mxu0
      %v2253 = vadd.f32 0.0, %v2252
      %v2254 = vpop.f32.mrb[0].mxu0
      %v2255 = vpop.f32.mrb[0].mxu0
      %v2256 = vadd.f32 0.0, %v2255
      %v2257 = vpop.f32.mrb[0].mxu0
      %2258 = vmatprep.mubr.bf16.mxu0 0
      %2259 = vmatmul.mubr.bf16.gmra.mrb[0].mxu0 %v631
      %v2260 = vpop.f32.mrb[0].mxu0
      %v2261 = vadd.f32 0.0, %v2260
      %v2262 = vpop.f32.mrb[0].mxu0
      %v2263 = vpop.f32.mrb[0].mxu0
      %v2264 = vadd.f32 0.0, %v2263
      %v2265 = vpop.f32.mrb[0].mxu0
      %2266 = vmatprep.mubr.bf16.mxu0 0
      %2267 = vmatmul.mubr.bf16.gmra.mrb[0].mxu0 %v634
      %v2268 = vpop.f32.mrb[0].mxu0
      %v2269 = vadd.f32 0.0, %v2268
      %v2270 = vpop.f32.mrb[0].mxu0
      %v2271 = vpop.f32.mrb[0].mxu0
      %v2272 = vadd.f32 0.0, %v2271
      %v2273 = vpop.f32.mrb[0].mxu0
      %2274 = vmatprep.mubr.bf16.mxu0 0
      %2275 = vmatmul.mubr.bf16.gmra.mrb[0].mxu0 %v637
      %v2276 = vpop.f32.mrb[0].mxu0
      %v2277 = vadd.f32 0.0, %v2276
      %v2278 = vpop.f32.mrb[0].mxu0
      %v2279 = vpop.f32.mrb[0].mxu0
      %v2280 = vadd.f32 0.0, %v2279
      %v2281 = vpop.f32.mrb[0].mxu0
      %2282 = vmatprep.mubr.bf16.mxu0 0
      %2283 = vmatmul.mubr.bf16.gmra.mrb[0].mxu0 %v640
      %v2284 = vpop.f32.mrb[0].mxu0
      %v2285 = vadd.f32 0.0, %v2284
      %v2286 = vpop.f32.mrb[0].mxu0
      %v2287 = vpop.f32.mrb[0].mxu0
      %v2288 = vadd.f32 0.0, %v2287
      %v2289 = vpop.f32.mrb[0].mxu0
      %2290 = vmatprep.mubr.bf16.mxu0 0
      %2291 = vmatmul.mubr.bf16.gmra.mrb[0].mxu0 %v643
      %v2292 = vpop.f32.mrb[0].mxu0
      %v2293 = vadd.f32 0.0, %v2292
      %v2294 = vpop.f32.mrb[0].mxu0
      %v2295 = vpop.f32.mrb[0].mxu0
      %v2296 = vadd.f32 0.0, %v2295
      %v2297 = vpop.f32.mrb[0].mxu0
      %2298 = vmatprep.mubr.bf16.mxu0 0
      %2299 = vmatmul.mubr.bf16.gmra.mrb[0].mxu0 %v646
      %v2300 = vpop.f32.mrb[0].mxu0
      %v2301 = vadd.f32 0.0, %v2300
      %v2302 = vpop.f32.mrb[0].mxu0
      %v2303 = vpop.f32.mrb[0].mxu0
      %v2304 = vadd.f32 0.0, %v2303
      %v2305 = vpop.f32.mrb[0].mxu0
      %2306 = vmatprep.mubr.bf16.mxu0 0
      %2307 = vmatmul.mubr.bf16.gmra.mrb[0].mxu0 %v649
      %v2308 = vpop.f32.mrb[0].mxu0
      %v2309 = vadd.f32 0.0, %v2308
      %v2310 = vpop.f32.mrb[0].mxu0
      %v2311 = vpop.f32.mrb[0].mxu0
      %v2312 = vadd.f32 0.0, %v2311
      %v2313 = vpop.f32.mrb[0].mxu0
      %2314 = vmatprep.mubr.bf16.mxu0 0
      %2315 = vmatmul.mubr.bf16.gmra.mrb[0].mxu0 %v652
      %v2316 = vpop.f32.mrb[0].mxu0
      %v2317 = vadd.f32 0.0, %v2316
      %v2318 = vpop.f32.mrb[0].mxu0
      %v2319 = vpop.f32.mrb[0].mxu0
      %v2320 = vadd.f32 0.0, %v2319
      %v2321 = vpop.f32.mrb[0].mxu0
      %2322 = vmatprep.mubr.bf16.mxu0 0
      %2323 = vmatmul.mubr.bf16.gmra.mrb[0].mxu0 %v655
      %v2324 = vpop.f32.mrb[0].mxu0
      %v2325 = vadd.f32 0.0, %v2324
      %v2326 = vpop.f32.mrb[0].mxu0
      %v2327 = vpop.f32.mrb[0].mxu0
      %v2328 = vadd.f32 0.0, %v2327
      %v2329 = vpop.f32.mrb[0].mxu0
      %2330 = vmatprep.mubr.bf16.mxu0 0
      %2331 = vmatmul.mubr.bf16.gmra.mrb[0].mxu0 %v658
      %v2332 = vpop.f32.mrb[0].mxu0
      %v2333 = vadd.f32 0.0, %v2332
      %v2334 = vpop.f32.mrb[0].mxu0
      %v2335 = vpop.f32.mrb[0].mxu0
      %v2336 = vadd.f32 0.0, %v2335
      %v2337 = vpop.f32.mrb[0].mxu0
      %2338 = vmatprep.mubr.bf16.mxu0 0
      %2339 = vmatmul.mubr.bf16.gmra.mrb[0].mxu0 %v661
      %v2340 = vpop.f32.mrb[0].mxu0
      %v2341 = vadd.f32 0.0, %v2340
      %v2342 = vpop.f32.mrb[0].mxu0
      %v2343 = vpop.f32.mrb[0].mxu0
      %v2344 = vadd.f32 0.0, %v2343
      %v2345 = vpop.f32.mrb[0].mxu0
      %2346 = vmatprep.mubr.bf16.mxu0 0
      %2347 = vmatmul.mubr.bf16.gmra.mrb[0].mxu0 %v664
      %v2348 = vpop.f32.mrb[0].mxu0
      %v2349 = vadd.f32 0.0, %v2348
      %v2350 = vpop.f32.mrb[0].mxu0
      %v2351 = vpop.f32.mrb[0].mxu0
      %v2352 = vadd.f32 0.0, %v2351
      %v2353 = vpop.f32.mrb[0].mxu0
      %2354 = vmatprep.mubr.bf16.mxu0 0
      %2355 = vmatmul.mubr.bf16.gmra.mrb[0].mxu0 %v667
      %v2356 = vpop.f32.mrb[0].mxu0
      %v2357 = vadd.f32 0.0, %v2356
      %v2358 = vpop.f32.mrb[0].mxu0
      %v2359 = vpop.f32.mrb[0].mxu0
      %v2360 = vadd.f32 0.0, %v2359
      %v2361 = vpop.f32.mrb[0].mxu0
      %2362 = vmatprep.mubr.bf16.mxu0 0
      %2363 = vmatmul.mubr.bf16.gmra.mrb[0].mxu0 %v670
      %v2364 = vpop.f32.mrb[0].mxu0
      %v2365 = vadd.f32 0.0, %v2364
      %v2366 = vpop.f32.mrb[0].mxu0
      %v2367 = vpop.f32.mrb[0].mxu0
      %v2368 = vadd.f32 0.0, %v2367
      %v2369 = vpop.f32.mrb[0].mxu0
      %2370 = vmatprep.mubr.bf16.mxu0 0
      %2371 = vmatmul.mubr.bf16.gmra.mrb[0].mxu0 %v673
      %v2372 = vpop.f32.mrb[0].mxu0
      %v2373 = vadd.f32 0.0, %v2372
      %v2374 = vpop.f32.mrb[0].mxu0
      %v2375 = vpop.f32.mrb[0].mxu0
      %v2376 = vadd.f32 0.0, %v2375
      %v2377 = vpop.f32.mrb[0].mxu0
      %2378 = vmatprep.mubr.bf16.mxu0 0
      %2379 = vmatmul.mubr.bf16.gmra.mrb[0].mxu0 %v676
      %v2380 = vpop.f32.mrb[0].mxu0
      %v2381 = vadd.f32 0.0, %v2380
      %v2382 = vpop.f32.mrb[0].mxu0
      %v2383 = vpop.f32.mrb[0].mxu0
      %v2384 = vpop.f32.mrb[0].mxu0
      %2385 = vmatprep.mubr.bf16.mxu0 0
      %2386 = vmatmul.mubr.bf16.gmra.mrb[0].mxu0 %v679
      %v2387 = vpop.f32.mrb[0].mxu0
      %v2388 = vpop.f32.mrb[0].mxu0
      %v2389 = vpop.f32.mrb[0].mxu0
      %v2390 = vpop.f32.mrb[0].mxu0
      %2391 = vmatprep.mubr.bf16.mxu0 0
      %2392 = vmatmul.mubr.bf16.gmra.mrb[0].mxu0 %v682
      %v2393 = vpop.f32.mrb[0].mxu0
      %v2394 = vpop.f32.mrb[0].mxu0
      %v2395 = vpop.f32.mrb[0].mxu0
      %v2396 = vpop.f32.mrb[0].mxu0
      %2397 = vmatprep.mubr.bf16.mxu0 0
      %2398 = vmatmul.mubr.bf16.gmra.mrb[0].mxu0 %v685
      %v2399 = vpop.f32.mrb[0].mxu0
      %v2400 = vpop.f32.mrb[0].mxu0
      %v2401 = vpop.f32.mrb[0].mxu0
      %v2402 = vpop.f32.mrb[0].mxu0
      %2403 = vdwg.mxu0
      %v2452 = vrot.slane %v2192, 1
      %v2453 = vrot.slane %v2197, 1
      %v2454 = vsel %vm1270, %v2452, %v2453
      %v2455 = vrot.slane %v2200, 1
      %v2456 = vsel %vm1270, %v2453, %v2455
      %v2457 = vrot.slane %v2205, 1
      %v2458 = vrot.slane %v2208, 1
      %v2459 = vsel %vm1270, %v2457, %v2458
      %v2460 = vrot.slane %v2213, 1
      %v2461 = vsel %vm1270, %v2458, %v2460
      %v2462 = vrot.slane %v2216, 1
      %v2463 = vrot.slane %v2221, 1
      %v2464 = vsel %vm1270, %v2462, %v2463
      %v2465 = vrot.slane %v2224, 1
      %v2466 = vsel %vm1270, %v2463, %v2465
      %v2467 = vrot.slane %v2229, 1
      %v2468 = vrot.slane %v2232, 1
      %v2469 = vsel %vm1270, %v2467, %v2468
      %v2470 = vrot.slane %v2237, 1
      %v2471 = vsel %vm1270, %v2468, %v2470
      %v2472 = vrot.slane %v2240, 1
      %v2473 = vrot.slane %v2245, 1
      %v2474 = vsel %vm1270, %v2472, %v2473
      %v2475 = vrot.slane %v2248, 1
      %v2476 = vsel %vm1270, %v2473, %v2475
      %v2477 = vrot.slane %v2253, 1
      %v2478 = vrot.slane %v2256, 1
      %v2479 = vsel %vm1270, %v2477, %v2478
      %v2480 = vrot.slane %v2261, 1
      %v2481 = vsel %vm1270, %v2478, %v2480
      %v2482 = vrot.slane %v2264, 1
      %v2483 = vrot.slane %v2269, 1
      %v2484 = vsel %vm1270, %v2482, %v2483
      %v2485 = vrot.slane %v2272, 1
      %v2486 = vsel %vm1270, %v2483, %v2485
      %v2487 = vrot.slane %v2277, 1
      %v2488 = vrot.slane %v2280, 1
      %v2489 = vsel %vm1270, %v2487, %v2488
      %v2490 = vrot.slane %v2285, 1
      %v2491 = vsel %vm1270, %v2488, %v2490
      %v2492 = vrot.slane %v2288, 1
      %v2493 = vrot.slane %v2293, 1
      %v2494 = vsel %vm1270, %v2492, %v2493
      %v2495 = vrot.slane %v2296, 1
      %v2496 = vsel %vm1270, %v2493, %v2495
      %v2497 = vrot.slane %v2301, 1
      %v2498 = vrot.slane %v2304, 1
      %v2499 = vsel %vm1270, %v2497, %v2498
      %v2500 = vrot.slane %v2309, 1
      %v2501 = vsel %vm1270, %v2498, %v2500
      %v2502 = vrot.slane %v2312, 1
      %v2503 = vrot.slane %v2317, 1
      %v2504 = vsel %vm1270, %v2502, %v2503
      %v2505 = vrot.slane %v2320, 1
      %v2506 = vsel %vm1270, %v2503, %v2505
      %v2507 = vrot.slane %v2325, 1
      %v2508 = vrot.slane %v2328, 1
      %v2509 = vsel %vm1270, %v2507, %v2508
      %v2510 = vrot.slane %v2333, 1
      %v2511 = vsel %vm1270, %v2508, %v2510
      %v2512 = vrot.slane %v2336, 1
      %v2513 = vrot.slane %v2341, 1
      %v2514 = vsel %vm1270, %v2512, %v2513
      %v2515 = vrot.slane %v2344, 1
      %v2516 = vsel %vm1270, %v2513, %v2515
      %v2517 = vrot.slane %v2349, 1
      %v2518 = vrot.slane %v2352, 1
      %v2519 = vsel %vm1270, %v2517, %v2518
      %v2520 = vrot.slane %v2357, 1
      %v2521 = vsel %vm1270, %v2518, %v2520
      %v2522 = vrot.slane %v2360, 1
      %v2523 = vrot.slane %v2365, 1
      %v2524 = vsel %vm1270, %v2522, %v2523
      %v2525 = vrot.slane %v2368, 1
      %v2526 = vsel %vm1270, %v2523, %v2525
      %v2527 = vrot.slane %v2373, 1
      %v2528 = vrot.slane %v2376, 1
      %v2529 = vsel %vm1270, %v2527, %v2528
      %v2530 = vrot.slane %v2381, 1
      %v2531 = vsel %vm1270, %v2528, %v2530
      %v2564 = vadd.f32 %v2112, %v2454
      %v2565 = vadd.f32 %v2113, %v2456
      %v2566 = vadd.f32 %v2114, %v2459
      %v2567 = vadd.f32 %v2115, %v2461
      %v2568 = vadd.f32 %v2116, %v2464
      %v2569 = vadd.f32 %v2117, %v2466
      %v2570 = vadd.f32 %v2118, %v2469
      %v2571 = vadd.f32 %v2119, %v2471
      %v2572 = vadd.f32 %v2120, %v2474
      %v2573 = vadd.f32 %v2121, %v2476
      %v2574 = vadd.f32 %v2122, %v2479
      %v2575 = vadd.f32 %v2123, %v2481
      %v2576 = vadd.f32 %v2124, %v2484
      %v2577 = vadd.f32 %v2125, %v2486
      %v2578 = vadd.f32 %v2126, %v2489
      %v2579 = vadd.f32 %v2127, %v2491
      %v2580 = vadd.f32 %v2128, %v2494
      %v2581 = vadd.f32 %v2129, %v2496
      %v2582 = vadd.f32 %v2130, %v2499
      %v2583 = vadd.f32 %v2131, %v2501
      %v2584 = vadd.f32 %v2132, %v2504
      %v2585 = vadd.f32 %v2133, %v2506
      %v2586 = vadd.f32 %v2134, %v2509
      %v2587 = vadd.f32 %v2135, %v2511
      %v2588 = vadd.f32 %v2136, %v2514
      %v2589 = vadd.f32 %v2137, %v2516
      %v2590 = vadd.f32 %v2138, %v2519
      %v2591 = vadd.f32 %v2139, %v2521
      %v2592 = vadd.f32 %v2140, %v2524
      %v2593 = vadd.f32 %v2141, %v2526
      %v2594 = vadd.f32 %v2142, %v2529
      %v2595 = vadd.f32 %v2143, %v2531
      %s2596 = scalar_lea.vmem %s1, 10
      %v2597 = vld [vmem:[%s2596] sm:$0x3]
      %v2599 = vsel %vm687, %v2597, 0
      %2601 = vmatprep.subr.bf16.mxu0 0
      %2602 = vmatpush1.bf16.msra.mxu0 %v2599
      %2603 = vmatprep.subr.bf16.mxu0 0
      %2604 = vmatpush1.bf16.msra.mxu0 0
      %2605 = vmatprep.subr.bf16.mxu0 0
      %2606 = vmatpush1.bf16.msra.mxu0 0
      %2607 = vmatprep.subr.bf16.mxu0 0
      %2608 = vmatpush1.bf16.msra.mxu0 0
      %2609 = vmatprep.subr.bf16.mxu0 0
      %2610 = vmatpush1.bf16.msra.mxu0 0
      %2611 = vmatprep.subr.bf16.mxu0 0
      %2612 = vmatpush1.bf16.msra.mxu0 0
      %2613 = vmatprep.subr.bf16.mxu0 0
      %2614 = vmatpush1.bf16.msra.mxu0 0
      %2615 = vmatprep.subr.bf16.mxu0 0
      %2616 = vmatpush1.bf16.msra.mxu0 0
      %2617 = vmatprep.subr.bf16.mxu0 0
      %2618 = vmatpush1.bf16.msra.mxu0 0
      %2619 = vmatprep.subr.bf16.mxu0 0
      %2620 = vmatpush1.bf16.msra.mxu0 0
      %2621 = vmatprep.subr.bf16.mxu0 0
      %2622 = vmatpush1.bf16.msra.mxu0 0
      %2623 = vmatprep.subr.bf16.mxu0 0
      %2624 = vmatpush1.bf16.msra.mxu0 0
      %2625 = vmatprep.subr.bf16.mxu0 0
      %2626 = vmatpush1.bf16.msra.mxu0 0
      %2627 = vmatprep.subr.bf16.mxu0 0
      %2628 = vmatpush1.bf16.msra.mxu0 0
      %2629 = vmatprep.subr.bf16.mxu0 0
      %2630 = vmatpush1.bf16.msra.mxu0 0
      %2631 = vmatprep.subr.bf16.mxu0 0
      %2632 = vmatpush1.bf16.msra.mxu0 0
      %2633 = vmatprep.mubr.bf16.mxu0 0
      %2634 = vmatmul.mubr.bf16.gmra.mrb[0].mxu0 %v601
      %v2635 = vpop.f32.mrb[0].mxu0
      %v2636 = vpop.f32.mrb[0].mxu0
      %v2637 = vpop.f32.mrb[0].mxu0
      %v2638 = vpop.f32.mrb[0].mxu0
      %2639 = vmatprep.mubr.bf16.mxu0 0
      %2640 = vmatmul.mubr.bf16.gmra.mrb[0].mxu0 %v604
      %v2641 = vpop.f32.mrb[0].mxu0
      %v2642 = vpop.f32.mrb[0].mxu0
      %v2643 = vpop.f32.mrb[0].mxu0
      %v2644 = vadd.f32 0.0, %v2643
      %v2645 = vpop.f32.mrb[0].mxu0
      %2646 = vmatprep.mubr.bf16.mxu0 0
      %2647 = vmatmul.mubr.bf16.gmra.mrb[0].mxu0 %v607
      %v2648 = vpop.f32.mrb[0].mxu0
      %v2649 = vadd.f32 0.0, %v2648
      %v2650 = vpop.f32.mrb[0].mxu0
      %v2651 = vpop.f32.mrb[0].mxu0
      %v2652 = vadd.f32 0.0, %v2651
      %v2653 = vpop.f32.mrb[0].mxu0
      %2654 = vmatprep.mubr.bf16.mxu0 0
      %2655 = vmatmul.mubr.bf16.gmra.mrb[0].mxu0 %v610
      %v2656 = vpop.f32.mrb[0].mxu0
      %v2657 = vadd.f32 0.0, %v2656
      %v2658 = vpop.f32.mrb[0].mxu0
      %v2659 = vpop.f32.mrb[0].mxu0
      %v2660 = vadd.f32 0.0, %v2659
      %v2661 = vpop.f32.mrb[0].mxu0
      %2662 = vmatprep.mubr.bf16.mxu0 0
      %2663 = vmatmul.mubr.bf16.gmra.mrb[0].mxu0 %v613
      %v2664 = vpop.f32.mrb[0].mxu0
      %v2665 = vadd.f32 0.0, %v2664
      %v2666 = vpop.f32.mrb[0].mxu0
      %v2667 = vpop.f32.mrb[0].mxu0
      %v2668 = vadd.f32 0.0, %v2667
      %v2669 = vpop.f32.mrb[0].mxu0
      %2670 = vmatprep.mubr.bf16.mxu0 0
      %2671 = vmatmul.mubr.bf16.gmra.mrb[0].mxu0 %v616
      %v2672 = vpop.f32.mrb[0].mxu0
      %v2673 = vadd.f32 0.0, %v2672
      %v2674 = vpop.f32.mrb[0].mxu0
      %v2675 = vpop.f32.mrb[0].mxu0
      %v2676 = vadd.f32 0.0, %v2675
      %v2677 = vpop.f32.mrb[0].mxu0
      %2678 = vmatprep.mubr.bf16.mxu0 0
      %2679 = vmatmul.mubr.bf16.gmra.mrb[0].mxu0 %v619
      %v2680 = vpop.f32.mrb[0].mxu0
      %v2681 = vadd.f32 0.0, %v2680
      %v2682 = vpop.f32.mrb[0].mxu0
      %v2683 = vpop.f32.mrb[0].mxu0
      %v2684 = vadd.f32 0.0, %v2683
      %v2685 = vpop.f32.mrb[0].mxu0
      %2686 = vmatprep.mubr.bf16.mxu0 0
      %2687 = vmatmul.mubr.bf16.gmra.mrb[0].mxu0 %v622
      %v2688 = vpop.f32.mrb[0].mxu0
      %v2689 = vadd.f32 0.0, %v2688
      %v2690 = vpop.f32.mrb[0].mxu0
      %v2691 = vpop.f32.mrb[0].mxu0
      %v2692 = vadd.f32 0.0, %v2691
      %v2693 = vpop.f32.mrb[0].mxu0
      %2694 = vmatprep.mubr.bf16.mxu0 0
      %2695 = vmatmul.mubr.bf16.gmra.mrb[0].mxu0 %v625
      %v2696 = vpop.f32.mrb[0].mxu0
      %v2697 = vadd.f32 0.0, %v2696
      %v2698 = vpop.f32.mrb[0].mxu0
      %v2699 = vpop.f32.mrb[0].mxu0
      %v2700 = vadd.f32 0.0, %v2699
      %v2701 = vpop.f32.mrb[0].mxu0
      %2702 = vmatprep.mubr.bf16.mxu0 0
      %2703 = vmatmul.mubr.bf16.gmra.mrb[0].mxu0 %v628
      %v2704 = vpop.f32.mrb[0].mxu0
      %v2705 = vadd.f32 0.0, %v2704
      %v2706 = vpop.f32.mrb[0].mxu0
      %v2707 = vpop.f32.mrb[0].mxu0
      %v2708 = vadd.f32 0.0, %v2707
      %v2709 = vpop.f32.mrb[0].mxu0
      %2710 = vmatprep.mubr.bf16.mxu0 0
      %2711 = vmatmul.mubr.bf16.gmra.mrb[0].mxu0 %v631
      %v2712 = vpop.f32.mrb[0].mxu0
      %v2713 = vadd.f32 0.0, %v2712
      %v2714 = vpop.f32.mrb[0].mxu0
      %v2715 = vpop.f32.mrb[0].mxu0
      %v2716 = vadd.f32 0.0, %v2715
      %v2717 = vpop.f32.mrb[0].mxu0
      %2718 = vmatprep.mubr.bf16.mxu0 0
      %2719 = vmatmul.mubr.bf16.gmra.mrb[0].mxu0 %v634
      %v2720 = vpop.f32.mrb[0].mxu0
      %v2721 = vadd.f32 0.0, %v2720
      %v2722 = vpop.f32.mrb[0].mxu0
      %v2723 = vpop.f32.mrb[0].mxu0
      %v2724 = vadd.f32 0.0, %v2723
      %v2725 = vpop.f32.mrb[0].mxu0
      %2726 = vmatprep.mubr.bf16.mxu0 0
      %2727 = vmatmul.mubr.bf16.gmra.mrb[0].mxu0 %v637
      %v2728 = vpop.f32.mrb[0].mxu0
      %v2729 = vadd.f32 0.0, %v2728
      %v2730 = vpop.f32.mrb[0].mxu0
      %v2731 = vpop.f32.mrb[0].mxu0
      %v2732 = vadd.f32 0.0, %v2731
      %v2733 = vpop.f32.mrb[0].mxu0
      %2734 = vmatprep.mubr.bf16.mxu0 0
      %2735 = vmatmul.mubr.bf16.gmra.mrb[0].mxu0 %v640
      %v2736 = vpop.f32.mrb[0].mxu0
      %v2737 = vadd.f32 0.0, %v2736
      %v2738 = vpop.f32.mrb[0].mxu0
      %v2739 = vpop.f32.mrb[0].mxu0
      %v2740 = vadd.f32 0.0, %v2739
      %v2741 = vpop.f32.mrb[0].mxu0
      %2742 = vmatprep.mubr.bf16.mxu0 0
      %2743 = vmatmul.mubr.bf16.gmra.mrb[0].mxu0 %v643
      %v2744 = vpop.f32.mrb[0].mxu0
      %v2745 = vadd.f32 0.0, %v2744
      %v2746 = vpop.f32.mrb[0].mxu0
      %v2747 = vpop.f32.mrb[0].mxu0
      %v2748 = vadd.f32 0.0, %v2747
      %v2749 = vpop.f32.mrb[0].mxu0
      %2750 = vmatprep.mubr.bf16.mxu0 0
      %2751 = vmatmul.mubr.bf16.gmra.mrb[0].mxu0 %v646
      %v2752 = vpop.f32.mrb[0].mxu0
      %v2753 = vadd.f32 0.0, %v2752
      %v2754 = vpop.f32.mrb[0].mxu0
      %v2755 = vpop.f32.mrb[0].mxu0
      %v2756 = vadd.f32 0.0, %v2755
      %v2757 = vpop.f32.mrb[0].mxu0
      %2758 = vmatprep.mubr.bf16.mxu0 0
      %2759 = vmatmul.mubr.bf16.gmra.mrb[0].mxu0 %v649
      %v2760 = vpop.f32.mrb[0].mxu0
      %v2761 = vadd.f32 0.0, %v2760
      %v2762 = vpop.f32.mrb[0].mxu0
      %v2763 = vpop.f32.mrb[0].mxu0
      %v2764 = vadd.f32 0.0, %v2763
      %v2765 = vpop.f32.mrb[0].mxu0
      %2766 = vmatprep.mubr.bf16.mxu0 0
      %2767 = vmatmul.mubr.bf16.gmra.mrb[0].mxu0 %v652
      %v2768 = vpop.f32.mrb[0].mxu0
      %v2769 = vadd.f32 0.0, %v2768
      %v2770 = vpop.f32.mrb[0].mxu0
      %v2771 = vpop.f32.mrb[0].mxu0
      %v2772 = vadd.f32 0.0, %v2771
      %v2773 = vpop.f32.mrb[0].mxu0
      %2774 = vmatprep.mubr.bf16.mxu0 0
      %2775 = vmatmul.mubr.bf16.gmra.mrb[0].mxu0 %v655
      %v2776 = vpop.f32.mrb[0].mxu0
      %v2777 = vadd.f32 0.0, %v2776
      %v2778 = vpop.f32.mrb[0].mxu0
      %v2779 = vpop.f32.mrb[0].mxu0
      %v2780 = vadd.f32 0.0, %v2779
      %v2781 = vpop.f32.mrb[0].mxu0
      %2782 = vmatprep.mubr.bf16.mxu0 0
      %2783 = vmatmul.mubr.bf16.gmra.mrb[0].mxu0 %v658
      %v2784 = vpop.f32.mrb[0].mxu0
      %v2785 = vadd.f32 0.0, %v2784
      %v2786 = vpop.f32.mrb[0].mxu0
      %v2787 = vpop.f32.mrb[0].mxu0
      %v2788 = vadd.f32 0.0, %v2787
      %v2789 = vpop.f32.mrb[0].mxu0
      %2790 = vmatprep.mubr.bf16.mxu0 0
      %2791 = vmatmul.mubr.bf16.gmra.mrb[0].mxu0 %v661
      %v2792 = vpop.f32.mrb[0].mxu0
      %v2793 = vadd.f32 0.0, %v2792
      %v2794 = vpop.f32.mrb[0].mxu0
      %v2795 = vpop.f32.mrb[0].mxu0
      %v2796 = vadd.f32 0.0, %v2795
      %v2797 = vpop.f32.mrb[0].mxu0
      %2798 = vmatprep.mubr.bf16.mxu0 0
      %2799 = vmatmul.mubr.bf16.gmra.mrb[0].mxu0 %v664
      %v2800 = vpop.f32.mrb[0].mxu0
      %v2801 = vadd.f32 0.0, %v2800
      %v2802 = vpop.f32.mrb[0].mxu0
      %v2803 = vpop.f32.mrb[0].mxu0
      %v2804 = vadd.f32 0.0, %v2803
      %v2805 = vpop.f32.mrb[0].mxu0
      %2806 = vmatprep.mubr.bf16.mxu0 0
      %2807 = vmatmul.mubr.bf16.gmra.mrb[0].mxu0 %v667
      %v2808 = vpop.f32.mrb[0].mxu0
      %v2809 = vadd.f32 0.0, %v2808
      %v2810 = vpop.f32.mrb[0].mxu0
      %v2811 = vpop.f32.mrb[0].mxu0
      %v2812 = vadd.f32 0.0, %v2811
      %v2813 = vpop.f32.mrb[0].mxu0
      %2814 = vmatprep.mubr.bf16.mxu0 0
      %2815 = vmatmul.mubr.bf16.gmra.mrb[0].mxu0 %v670
      %v2816 = vpop.f32.mrb[0].mxu0
      %v2817 = vadd.f32 0.0, %v2816
      %v2818 = vpop.f32.mrb[0].mxu0
      %v2819 = vpop.f32.mrb[0].mxu0
      %v2820 = vadd.f32 0.0, %v2819
      %v2821 = vpop.f32.mrb[0].mxu0
      %2822 = vmatprep.mubr.bf16.mxu0 0
      %2823 = vmatmul.mubr.bf16.gmra.mrb[0].mxu0 %v673
      %v2824 = vpop.f32.mrb[0].mxu0
      %v2825 = vadd.f32 0.0, %v2824
      %v2826 = vpop.f32.mrb[0].mxu0
      %v2827 = vpop.f32.mrb[0].mxu0
      %v2828 = vadd.f32 0.0, %v2827
      %v2829 = vpop.f32.mrb[0].mxu0
      %2830 = vmatprep.mubr.bf16.mxu0 0
      %2831 = vmatmul.mubr.bf16.gmra.mrb[0].mxu0 %v676
      %v2832 = vpop.f32.mrb[0].mxu0
      %v2833 = vadd.f32 0.0, %v2832
      %v2834 = vpop.f32.mrb[0].mxu0
      %v2835 = vpop.f32.mrb[0].mxu0
      %v2836 = vpop.f32.mrb[0].mxu0
      %2837 = vmatprep.mubr.bf16.mxu0 0
      %2838 = vmatmul.mubr.bf16.gmra.mrb[0].mxu0 %v679
      %v2839 = vpop.f32.mrb[0].mxu0
      %v2840 = vpop.f32.mrb[0].mxu0
      %v2841 = vpop.f32.mrb[0].mxu0
      %v2842 = vpop.f32.mrb[0].mxu0
      %2843 = vmatprep.mubr.bf16.mxu0 0
      %2844 = vmatmul.mubr.bf16.gmra.mrb[0].mxu0 %v682
      %v2845 = vpop.f32.mrb[0].mxu0
      %v2846 = vpop.f32.mrb[0].mxu0
      %v2847 = vpop.f32.mrb[0].mxu0
      %v2848 = vpop.f32.mrb[0].mxu0
      %2849 = vmatprep.mubr.bf16.mxu0 0
      %2850 = vmatmul.mubr.bf16.gmra.mrb[0].mxu0 %v685
      %v2851 = vpop.f32.mrb[0].mxu0
      %v2852 = vpop.f32.mrb[0].mxu0
      %v2853 = vpop.f32.mrb[0].mxu0
      %v2854 = vpop.f32.mrb[0].mxu0
      %2855 = vdwg.mxu0
      %v2904 = vrot.slane %v2644, 2
      %v2905 = vrot.slane %v2649, 2
      %v2906 = vsel %vm1723, %v2904, %v2905
      %v2907 = vrot.slane %v2652, 2
      %v2908 = vsel %vm1723, %v2905, %v2907
      %v2909 = vrot.slane %v2657, 2
      %v2910 = vrot.slane %v2660, 2
      %v2911 = vsel %vm1723, %v2909, %v2910
      %v2912 = vrot.slane %v2665, 2
      %v2913 = vsel %vm1723, %v2910, %v2912
      %v2914 = vrot.slane %v2668, 2
      %v2915 = vrot.slane %v2673, 2
      %v2916 = vsel %vm1723, %v2914, %v2915
      %v2917 = vrot.slane %v2676, 2
      %v2918 = vsel %vm1723, %v2915, %v2917
      %v2919 = vrot.slane %v2681, 2
      %v2920 = vrot.slane %v2684, 2
      %v2921 = vsel %vm1723, %v2919, %v2920
      %v2922 = vrot.slane %v2689, 2
      %v2923 = vsel %vm1723, %v2920, %v2922
      %v2924 = vrot.slane %v2692, 2
      %v2925 = vrot.slane %v2697, 2
      %v2926 = vsel %vm1723, %v2924, %v2925
      %v2927 = vrot.slane %v2700, 2
      %v2928 = vsel %vm1723, %v2925, %v2927
      %v2929 = vrot.slane %v2705, 2
      %v2930 = vrot.slane %v2708, 2
      %v2931 = vsel %vm1723, %v2929, %v2930
      %v2932 = vrot.slane %v2713, 2
      %v2933 = vsel %vm1723, %v2930, %v2932
      %v2934 = vrot.slane %v2716, 2
      %v2935 = vrot.slane %v2721, 2
      %v2936 = vsel %vm1723, %v2934, %v2935
      %v2937 = vrot.slane %v2724, 2
      %v2938 = vsel %vm1723, %v2935, %v2937
      %v2939 = vrot.slane %v2729, 2
      %v2940 = vrot.slane %v2732, 2
      %v2941 = vsel %vm1723, %v2939, %v2940
      %v2942 = vrot.slane %v2737, 2
      %v2943 = vsel %vm1723, %v2940, %v2942
      %v2944 = vrot.slane %v2740, 2
      %v2945 = vrot.slane %v2745, 2
      %v2946 = vsel %vm1723, %v2944, %v2945
      %v2947 = vrot.slane %v2748, 2
      %v2948 = vsel %vm1723, %v2945, %v2947
      %v2949 = vrot.slane %v2753, 2
      %v2950 = vrot.slane %v2756, 2
      %v2951 = vsel %vm1723, %v2949, %v2950
      %v2952 = vrot.slane %v2761, 2
      %v2953 = vsel %vm1723, %v2950, %v2952
      %v2954 = vrot.slane %v2764, 2
      %v2955 = vrot.slane %v2769, 2
      %v2956 = vsel %vm1723, %v2954, %v2955
      %v2957 = vrot.slane %v2772, 2
      %v2958 = vsel %vm1723, %v2955, %v2957
      %v2959 = vrot.slane %v2777, 2
      %v2960 = vrot.slane %v2780, 2
      %v2961 = vsel %vm1723, %v2959, %v2960
      %v2962 = vrot.slane %v2785, 2
      %v2963 = vsel %vm1723, %v2960, %v2962
      %v2964 = vrot.slane %v2788, 2
      %v2965 = vrot.slane %v2793, 2
      %v2966 = vsel %vm1723, %v2964, %v2965
      %v2967 = vrot.slane %v2796, 2
      %v2968 = vsel %vm1723, %v2965, %v2967
      %v2969 = vrot.slane %v2801, 2
      %v2970 = vrot.slane %v2804, 2
      %v2971 = vsel %vm1723, %v2969, %v2970
      %v2972 = vrot.slane %v2809, 2
      %v2973 = vsel %vm1723, %v2970, %v2972
      %v2974 = vrot.slane %v2812, 2
      %v2975 = vrot.slane %v2817, 2
      %v2976 = vsel %vm1723, %v2974, %v2975
      %v2977 = vrot.slane %v2820, 2
      %v2978 = vsel %vm1723, %v2975, %v2977
      %v2979 = vrot.slane %v2825, 2
      %v2980 = vrot.slane %v2828, 2
      %v2981 = vsel %vm1723, %v2979, %v2980
      %v2982 = vrot.slane %v2833, 2
      %v2983 = vsel %vm1723, %v2980, %v2982
      %v3016 = vadd.f32 %v2564, %v2906
      %v3017 = vadd.f32 %v2565, %v2908
      %v3018 = vadd.f32 %v2566, %v2911
      %v3019 = vadd.f32 %v2567, %v2913
      %v3020 = vadd.f32 %v2568, %v2916
      %v3021 = vadd.f32 %v2569, %v2918
      %v3022 = vadd.f32 %v2570, %v2921
      %v3023 = vadd.f32 %v2571, %v2923
      %v3024 = vadd.f32 %v2572, %v2926
      %v3025 = vadd.f32 %v2573, %v2928
      %v3026 = vadd.f32 %v2574, %v2931
      %v3027 = vadd.f32 %v2575, %v2933
      %v3028 = vadd.f32 %v2576, %v2936
      %v3029 = vadd.f32 %v2577, %v2938
      %v3030 = vadd.f32 %v2578, %v2941
      %v3031 = vadd.f32 %v2579, %v2943
      %v3032 = vadd.f32 %v2580, %v2946
      %v3033 = vadd.f32 %v2581, %v2948
      %v3034 = vadd.f32 %v2582, %v2951
      %v3035 = vadd.f32 %v2583, %v2953
      %v3036 = vadd.f32 %v2584, %v2956
      %v3037 = vadd.f32 %v2585, %v2958
      %v3038 = vadd.f32 %v2586, %v2961
      %v3039 = vadd.f32 %v2587, %v2963
      %v3040 = vadd.f32 %v2588, %v2966
      %v3041 = vadd.f32 %v2589, %v2968
      %v3042 = vadd.f32 %v2590, %v2971
      %v3043 = vadd.f32 %v2591, %v2973
      %v3044 = vadd.f32 %v2592, %v2976
      %v3045 = vadd.f32 %v2593, %v2978
      %v3046 = vadd.f32 %v2594, %v2981
      %v3047 = vadd.f32 %v2595, %v2983
      %s3048 = scalar_lea.vmem %s1, 12
      %v3049 = vld [vmem:[%s3048] sm:$0x3]
      %v3051 = vsel %vm687, %v3049, 0
      %3053 = vmatprep.subr.bf16.mxu0 0
      %3054 = vmatpush1.bf16.msra.mxu0 %v3051
      %3055 = vmatprep.subr.bf16.mxu0 0
      %3056 = vmatpush1.bf16.msra.mxu0 0
      %3057 = vmatprep.subr.bf16.mxu0 0
      %3058 = vmatpush1.bf16.msra.mxu0 0
      %3059 = vmatprep.subr.bf16.mxu0 0
      %3060 = vmatpush1.bf16.msra.mxu0 0
      %3061 = vmatprep.subr.bf16.mxu0 0
      %3062 = vmatpush1.bf16.msra.mxu0 0
      %3063 = vmatprep.subr.bf16.mxu0 0
      %3064 = vmatpush1.bf16.msra.mxu0 0
      %3065 = vmatprep.subr.bf16.mxu0 0
      %3066 = vmatpush1.bf16.msra.mxu0 0
      %3067 = vmatprep.subr.bf16.mxu0 0
      %3068 = vmatpush1.bf16.msra.mxu0 0
      %3069 = vmatprep.subr.bf16.mxu0 0
      %3070 = vmatpush1.bf16.msra.mxu0 0
      %3071 = vmatprep.subr.bf16.mxu0 0
      %3072 = vmatpush1.bf16.msra.mxu0 0
      %3073 = vmatprep.subr.bf16.mxu0 0
      %3074 = vmatpush1.bf16.msra.mxu0 0
      %3075 = vmatprep.subr.bf16.mxu0 0
      %3076 = vmatpush1.bf16.msra.mxu0 0
      %3077 = vmatprep.subr.bf16.mxu0 0
      %3078 = vmatpush1.bf16.msra.mxu0 0
      %3079 = vmatprep.subr.bf16.mxu0 0
      %3080 = vmatpush1.bf16.msra.mxu0 0
      %3081 = vmatprep.subr.bf16.mxu0 0
      %3082 = vmatpush1.bf16.msra.mxu0 0
      %3083 = vmatprep.subr.bf16.mxu0 0
      %3084 = vmatpush1.bf16.msra.mxu0 0
      %3085 = vmatprep.mubr.bf16.mxu0 0
      %3086 = vmatmul.mubr.bf16.gmra.mrb[0].mxu0 %v601
      %v3087 = vpop.f32.mrb[0].mxu0
      %v3088 = vpop.f32.mrb[0].mxu0
      %v3089 = vpop.f32.mrb[0].mxu0
      %v3090 = vpop.f32.mrb[0].mxu0
      %3091 = vmatprep.mubr.bf16.mxu0 0
      %3092 = vmatmul.mubr.bf16.gmra.mrb[0].mxu0 %v604
      %v3093 = vpop.f32.mrb[0].mxu0
      %v3094 = vpop.f32.mrb[0].mxu0
      %v3095 = vpop.f32.mrb[0].mxu0
      %v3096 = vpop.f32.mrb[0].mxu0
      %3097 = vmatprep.mubr.bf16.mxu0 0
      %3098 = vmatmul.mubr.bf16.gmra.mrb[0].mxu0 %v607
      %v3099 = vpop.f32.mrb[0].mxu0
      %v3100 = vpop.f32.mrb[0].mxu0
      %v3101 = vpop.f32.mrb[0].mxu0
      %v3102 = vpop.f32.mrb[0].mxu0
      %3103 = vmatprep.mubr.bf16.mxu0 0
      %3104 = vmatmul.mubr.bf16.gmra.mrb[0].mxu0 %v610
      %v3105 = vpop.f32.mrb[0].mxu0
      %v3106 = vadd.f32 0.0, %v3105
      %v3107 = vpop.f32.mrb[0].mxu0
      %v3108 = vpop.f32.mrb[0].mxu0
      %v3109 = vadd.f32 0.0, %v3108
      %v3110 = vpop.f32.mrb[0].mxu0
      %3111 = vmatprep.mubr.bf16.mxu0 0
      %3112 = vmatmul.mubr.bf16.gmra.mrb[0].mxu0 %v613
      %v3113 = vpop.f32.mrb[0].mxu0
      %v3114 = vpop.f32.mrb[0].mxu0
      %v3115 = vpop.f32.mrb[0].mxu0
      %v3116 = vadd.f32 0.0, %v3115
      %v3117 = vpop.f32.mrb[0].mxu0
      %3118 = vmatprep.mubr.bf16.mxu0 0
      %3119 = vmatmul.mubr.bf16.gmra.mrb[0].mxu0 %v616
      %v3120 = vpop.f32.mrb[0].mxu0
      %v3121 = vadd.f32 0.0, %v3120
      %v3122 = vpop.f32.mrb[0].mxu0
      %v3123 = vpop.f32.mrb[0].mxu0
      %v3124 = vpop.f32.mrb[0].mxu0
      %3125 = vmatprep.mubr.bf16.mxu0 0
      %3126 = vmatmul.mubr.bf16.gmra.mrb[0].mxu0 %v619
      %v3127 = vpop.f32.mrb[0].mxu0
      %v3128 = vadd.f32 0.0, %v3127
      %v3129 = vpop.f32.mrb[0].mxu0
      %v3130 = vpop.f32.mrb[0].mxu0
      %v3131 = vadd.f32 0.0, %v3130
      %v3132 = vpop.f32.mrb[0].mxu0
      %3133 = vmatprep.mubr.bf16.mxu0 0
      %3134 = vmatmul.mubr.bf16.gmra.mrb[0].mxu0 %v622
      %v3135 = vpop.f32.mrb[0].mxu0
      %v3136 = vpop.f32.mrb[0].mxu0
      %v3137 = vpop.f32.mrb[0].mxu0
      %v3138 = vadd.f32 0.0, %v3137
      %v3139 = vpop.f32.mrb[0].mxu0
      %3140 = vmatprep.mubr.bf16.mxu0 0
      %3141 = vmatmul.mubr.bf16.gmra.mrb[0].mxu0 %v625
      %v3142 = vpop.f32.mrb[0].mxu0
      %v3143 = vadd.f32 0.0, %v3142
      %v3144 = vpop.f32.mrb[0].mxu0
      %v3145 = vpop.f32.mrb[0].mxu0
      %v3146 = vpop.f32.mrb[0].mxu0
      %3147 = vmatprep.mubr.bf16.mxu0 0
      %3148 = vmatmul.mubr.bf16.gmra.mrb[0].mxu0 %v628
      %v3149 = vpop.f32.mrb[0].mxu0
      %v3150 = vadd.f32 0.0, %v3149
      %v3151 = vpop.f32.mrb[0].mxu0
      %v3152 = vpop.f32.mrb[0].mxu0
      %v3153 = vadd.f32 0.0, %v3152
      %v3154 = vpop.f32.mrb[0].mxu0
      %3155 = vmatprep.mubr.bf16.mxu0 0
      %3156 = vmatmul.mubr.bf16.gmra.mrb[0].mxu0 %v631
      %v3157 = vpop.f32.mrb[0].mxu0
      %v3158 = vpop.f32.mrb[0].mxu0
      %v3159 = vpop.f32.mrb[0].mxu0
      %v3160 = vadd.f32 0.0, %v3159
      %v3161 = vpop.f32.mrb[0].mxu0
      %3162 = vmatprep.mubr.bf16.mxu0 0
      %3163 = vmatmul.mubr.bf16.gmra.mrb[0].mxu0 %v634
      %v3164 = vpop.f32.mrb[0].mxu0
      %v3165 = vadd.f32 0.0, %v3164
      %v3166 = vpop.f32.mrb[0].mxu0
      %v3167 = vpop.f32.mrb[0].mxu0
      %v3168 = vpop.f32.mrb[0].mxu0
      %3169 = vmatprep.mubr.bf16.mxu0 0
      %3170 = vmatmul.mubr.bf16.gmra.mrb[0].mxu0 %v637
      %v3171 = vpop.f32.mrb[0].mxu0
      %v3172 = vadd.f32 0.0, %v3171
      %v3173 = vpop.f32.mrb[0].mxu0
      %v3174 = vpop.f32.mrb[0].mxu0
      %v3175 = vadd.f32 0.0, %v3174
      %v3176 = vpop.f32.mrb[0].mxu0
      %3177 = vmatprep.mubr.bf16.mxu0 0
      %3178 = vmatmul.mubr.bf16.gmra.mrb[0].mxu0 %v640
      %v3179 = vpop.f32.mrb[0].mxu0
      %v3180 = vpop.f32.mrb[0].mxu0
      %v3181 = vpop.f32.mrb[0].mxu0
      %v3182 = vadd.f32 0.0, %v3181
      %v3183 = vpop.f32.mrb[0].mxu0
      %3184 = vmatprep.mubr.bf16.mxu0 0
      %3185 = vmatmul.mubr.bf16.gmra.mrb[0].mxu0 %v643
      %v3186 = vpop.f32.mrb[0].mxu0
      %v3187 = vadd.f32 0.0, %v3186
      %v3188 = vpop.f32.mrb[0].mxu0
      %v3189 = vpop.f32.mrb[0].mxu0
      %v3190 = vpop.f32.mrb[0].mxu0
      %3191 = vmatprep.mubr.bf16.mxu0 0
      %3192 = vmatmul.mubr.bf16.gmra.mrb[0].mxu0 %v646
      %v3193 = vpop.f32.mrb[0].mxu0
      %v3194 = vadd.f32 0.0, %v3193
      %v3195 = vpop.f32.mrb[0].mxu0
      %v3196 = vpop.f32.mrb[0].mxu0
      %v3197 = vadd.f32 0.0, %v3196
      %v3198 = vpop.f32.mrb[0].mxu0
      %3199 = vmatprep.mubr.bf16.mxu0 0
      %3200 = vmatmul.mubr.bf16.gmra.mrb[0].mxu0 %v649
      %v3201 = vpop.f32.mrb[0].mxu0
      %v3202 = vpop.f32.mrb[0].mxu0
      %v3203 = vpop.f32.mrb[0].mxu0
      %v3204 = vadd.f32 0.0, %v3203
      %v3205 = vpop.f32.mrb[0].mxu0
      %3206 = vmatprep.mubr.bf16.mxu0 0
      %3207 = vmatmul.mubr.bf16.gmra.mrb[0].mxu0 %v652
      %v3208 = vpop.f32.mrb[0].mxu0
      %v3209 = vadd.f32 0.0, %v3208
      %v3210 = vpop.f32.mrb[0].mxu0
      %v3211 = vpop.f32.mrb[0].mxu0
      %v3212 = vpop.f32.mrb[0].mxu0
      %3213 = vmatprep.mubr.bf16.mxu0 0
      %3214 = vmatmul.mubr.bf16.gmra.mrb[0].mxu0 %v655
      %v3215 = vpop.f32.mrb[0].mxu0
      %v3216 = vadd.f32 0.0, %v3215
      %v3217 = vpop.f32.mrb[0].mxu0
      %v3218 = vpop.f32.mrb[0].mxu0
      %v3219 = vadd.f32 0.0, %v3218
      %v3220 = vpop.f32.mrb[0].mxu0
      %3221 = vmatprep.mubr.bf16.mxu0 0
      %3222 = vmatmul.mubr.bf16.gmra.mrb[0].mxu0 %v658
      %v3223 = vpop.f32.mrb[0].mxu0
      %v3224 = vpop.f32.mrb[0].mxu0
      %v3225 = vpop.f32.mrb[0].mxu0
      %v3226 = vadd.f32 0.0, %v3225
      %v3227 = vpop.f32.mrb[0].mxu0
      %3228 = vmatprep.mubr.bf16.mxu0 0
      %3229 = vmatmul.mubr.bf16.gmra.mrb[0].mxu0 %v661
      %v3230 = vpop.f32.mrb[0].mxu0
      %v3231 = vadd.f32 0.0, %v3230
      %v3232 = vpop.f32.mrb[0].mxu0
      %v3233 = vpop.f32.mrb[0].mxu0
      %v3234 = vpop.f32.mrb[0].mxu0
      %3235 = vmatprep.mubr.bf16.mxu0 0
      %3236 = vmatmul.mubr.bf16.gmra.mrb[0].mxu0 %v664
      %v3237 = vpop.f32.mrb[0].mxu0
      %v3238 = vadd.f32 0.0, %v3237
      %v3239 = vpop.f32.mrb[0].mxu0
      %v3240 = vpop.f32.mrb[0].mxu0
      %v3241 = vadd.f32 0.0, %v3240
      %v3242 = vpop.f32.mrb[0].mxu0
      %3243 = vmatprep.mubr.bf16.mxu0 0
      %3244 = vmatmul.mubr.bf16.gmra.mrb[0].mxu0 %v667
      %v3245 = vpop.f32.mrb[0].mxu0
      %v3246 = vpop.f32.mrb[0].mxu0
      %v3247 = vpop.f32.mrb[0].mxu0
      %v3248 = vadd.f32 0.0, %v3247
      %v3249 = vpop.f32.mrb[0].mxu0
      %3250 = vmatprep.mubr.bf16.mxu0 0
      %3251 = vmatmul.mubr.bf16.gmra.mrb[0].mxu0 %v670
      %v3252 = vpop.f32.mrb[0].mxu0
      %v3253 = vadd.f32 0.0, %v3252
      %v3254 = vpop.f32.mrb[0].mxu0
      %v3255 = vpop.f32.mrb[0].mxu0
      %v3256 = vpop.f32.mrb[0].mxu0
      %3257 = vmatprep.mubr.bf16.mxu0 0
      %3258 = vmatmul.mubr.bf16.gmra.mrb[0].mxu0 %v673
      %v3259 = vpop.f32.mrb[0].mxu0
      %v3260 = vadd.f32 0.0, %v3259
      %v3261 = vpop.f32.mrb[0].mxu0
      %v3262 = vpop.f32.mrb[0].mxu0
      %v3263 = vadd.f32 0.0, %v3262
      %v3264 = vpop.f32.mrb[0].mxu0
      %3265 = vmatprep.mubr.bf16.mxu0 0
      %3266 = vmatmul.mubr.bf16.gmra.mrb[0].mxu0 %v676
      %v3267 = vpop.f32.mrb[0].mxu0
      %v3268 = vpop.f32.mrb[0].mxu0
      %v3269 = vpop.f32.mrb[0].mxu0
      %v3270 = vadd.f32 0.0, %v3269
      %v3271 = vpop.f32.mrb[0].mxu0
      %3272 = vmatprep.mubr.bf16.mxu0 0
      %3273 = vmatmul.mubr.bf16.gmra.mrb[0].mxu0 %v679
      %v3274 = vpop.f32.mrb[0].mxu0
      %v3275 = vadd.f32 0.0, %v3274
      %v3276 = vpop.f32.mrb[0].mxu0
      %v3277 = vpop.f32.mrb[0].mxu0
      %v3278 = vpop.f32.mrb[0].mxu0
      %3279 = vmatprep.mubr.bf16.mxu0 0
      %3280 = vmatmul.mubr.bf16.gmra.mrb[0].mxu0 %v682
      %v3281 = vpop.f32.mrb[0].mxu0
      %v3282 = vpop.f32.mrb[0].mxu0
      %v3283 = vpop.f32.mrb[0].mxu0
      %v3284 = vpop.f32.mrb[0].mxu0
      %3285 = vmatprep.mubr.bf16.mxu0 0
      %3286 = vmatmul.mubr.bf16.gmra.mrb[0].mxu0 %v685
      %v3287 = vpop.f32.mrb[0].mxu0
      %v3288 = vpop.f32.mrb[0].mxu0
      %v3289 = vpop.f32.mrb[0].mxu0
      %v3290 = vpop.f32.mrb[0].mxu0
      %3291 = vdwg.mxu0
      %v3292 = vadd.f32 %v3016, %v3106
      %v3293 = vadd.f32 %v3017, %v3109
      %v3294 = vadd.f32 %v3018, %v3116
      %v3295 = vadd.f32 %v3019, %v3121
      %v3296 = vadd.f32 %v3020, %v3128
      %v3297 = vadd.f32 %v3021, %v3131
      %v3298 = vadd.f32 %v3022, %v3138
      %v3299 = vadd.f32 %v3023, %v3143
      %v3300 = vadd.f32 %v3024, %v3150
      %v3301 = vadd.f32 %v3025, %v3153
      %v3302 = vadd.f32 %v3026, %v3160
      %v3303 = vadd.f32 %v3027, %v3165
      %v3304 = vadd.f32 %v3028, %v3172
      %v3305 = vadd.f32 %v3029, %v3175
      %v3306 = vadd.f32 %v3030, %v3182
      %v3307 = vadd.f32 %v3031, %v3187
      %v3308 = vadd.f32 %v3032, %v3194
      %v3309 = vadd.f32 %v3033, %v3197
      %v3310 = vadd.f32 %v3034, %v3204
      %v3311 = vadd.f32 %v3035, %v3209
      %v3312 = vadd.f32 %v3036, %v3216
      %v3313 = vadd.f32 %v3037, %v3219
      %v3314 = vadd.f32 %v3038, %v3226
      %v3315 = vadd.f32 %v3039, %v3231
      %v3316 = vadd.f32 %v3040, %v3238
      %v3317 = vadd.f32 %v3041, %v3241
      %v3318 = vadd.f32 %v3042, %v3248
      %v3319 = vadd.f32 %v3043, %v3253
      %v3320 = vadd.f32 %v3044, %v3260
      %v3321 = vadd.f32 %v3045, %v3263
      %v3322 = vadd.f32 %v3046, %v3270
      %v3323 = vadd.f32 %v3047, %v3275
      %s3324 = scalar_lea.vmem %s1, 14
      %v3325 = vld [vmem:[%s3324] sm:$0x3]
      %v3327 = vsel %vm687, %v3325, 0
      %3329 = vmatprep.subr.bf16.mxu0 0
      %3330 = vmatpush1.bf16.msra.mxu0 %v3327
      %3331 = vmatprep.subr.bf16.mxu0 0
      %3332 = vmatpush1.bf16.msra.mxu0 0
      %3333 = vmatprep.subr.bf16.mxu0 0
      %3334 = vmatpush1.bf16.msra.mxu0 0
      %3335 = vmatprep.subr.bf16.mxu0 0
      %3336 = vmatpush1.bf16.msra.mxu0 0
      %3337 = vmatprep.subr.bf16.mxu0 0
      %3338 = vmatpush1.bf16.msra.mxu0 0
      %3339 = vmatprep.subr.bf16.mxu0 0
      %3340 = vmatpush1.bf16.msra.mxu0 0
      %3341 = vmatprep.subr.bf16.mxu0 0
      %3342 = vmatpush1.bf16.msra.mxu0 0
      %3343 = vmatprep.subr.bf16.mxu0 0
      %3344 = vmatpush1.bf16.msra.mxu0 0
      %3345 = vmatprep.subr.bf16.mxu0 0
      %3346 = vmatpush1.bf16.msra.mxu0 0
      %3347 = vmatprep.subr.bf16.mxu0 0
      %3348 = vmatpush1.bf16.msra.mxu0 0
      %3349 = vmatprep.subr.bf16.mxu0 0
      %3350 = vmatpush1.bf16.msra.mxu0 0
      %3351 = vmatprep.subr.bf16.mxu0 0
      %3352 = vmatpush1.bf16.msra.mxu0 0
      %3353 = vmatprep.subr.bf16.mxu0 0
      %3354 = vmatpush1.bf16.msra.mxu0 0
      %3355 = vmatprep.subr.bf16.mxu0 0
      %3356 = vmatpush1.bf16.msra.mxu0 0
      %3357 = vmatprep.subr.bf16.mxu0 0
      %3358 = vmatpush1.bf16.msra.mxu0 0
      %3359 = vmatprep.subr.bf16.mxu0 0
      %3360 = vmatpush1.bf16.msra.mxu0 0
      %3361 = vmatprep.mubr.bf16.mxu0 0
      %3362 = vmatmul.mubr.bf16.gmra.mrb[0].mxu0 %v601
      %v3363 = vpop.f32.mrb[0].mxu0
      %v3364 = vpop.f32.mrb[0].mxu0
      %v3365 = vpop.f32.mrb[0].mxu0
      %v3366 = vpop.f32.mrb[0].mxu0
      %3367 = vmatprep.mubr.bf16.mxu0 0
      %3368 = vmatmul.mubr.bf16.gmra.mrb[0].mxu0 %v604
      %v3369 = vpop.f32.mrb[0].mxu0
      %v3370 = vpop.f32.mrb[0].mxu0
      %v3371 = vpop.f32.mrb[0].mxu0
      %v3372 = vpop.f32.mrb[0].mxu0
      %3373 = vmatprep.mubr.bf16.mxu0 0
      %3374 = vmatmul.mubr.bf16.gmra.mrb[0].mxu0 %v607
      %v3375 = vpop.f32.mrb[0].mxu0
      %v3376 = vpop.f32.mrb[0].mxu0
      %v3377 = vpop.f32.mrb[0].mxu0
      %v3378 = vpop.f32.mrb[0].mxu0
      %3379 = vmatprep.mubr.bf16.mxu0 0
      %3380 = vmatmul.mubr.bf16.gmra.mrb[0].mxu0 %v610
      %v3381 = vpop.f32.mrb[0].mxu0
      %v3382 = vadd.f32 0.0, %v3381
      %v3383 = vpop.f32.mrb[0].mxu0
      %v3384 = vpop.f32.mrb[0].mxu0
      %v3385 = vadd.f32 0.0, %v3384
      %v3386 = vpop.f32.mrb[0].mxu0
      %3387 = vmatprep.mubr.bf16.mxu0 0
      %3388 = vmatmul.mubr.bf16.gmra.mrb[0].mxu0 %v613
      %v3389 = vpop.f32.mrb[0].mxu0
      %v3390 = vadd.f32 0.0, %v3389
      %v3391 = vpop.f32.mrb[0].mxu0
      %v3392 = vpop.f32.mrb[0].mxu0
      %v3393 = vadd.f32 0.0, %v3392
      %v3394 = vpop.f32.mrb[0].mxu0
      %3395 = vmatprep.mubr.bf16.mxu0 0
      %3396 = vmatmul.mubr.bf16.gmra.mrb[0].mxu0 %v616
      %v3397 = vpop.f32.mrb[0].mxu0
      %v3398 = vadd.f32 0.0, %v3397
      %v3399 = vpop.f32.mrb[0].mxu0
      %v3400 = vpop.f32.mrb[0].mxu0
      %v3401 = vadd.f32 0.0, %v3400
      %v3402 = vpop.f32.mrb[0].mxu0
      %3403 = vmatprep.mubr.bf16.mxu0 0
      %3404 = vmatmul.mubr.bf16.gmra.mrb[0].mxu0 %v619
      %v3405 = vpop.f32.mrb[0].mxu0
      %v3406 = vadd.f32 0.0, %v3405
      %v3407 = vpop.f32.mrb[0].mxu0
      %v3408 = vpop.f32.mrb[0].mxu0
      %v3409 = vadd.f32 0.0, %v3408
      %v3410 = vpop.f32.mrb[0].mxu0
      %3411 = vmatprep.mubr.bf16.mxu0 0
      %3412 = vmatmul.mubr.bf16.gmra.mrb[0].mxu0 %v622
      %v3413 = vpop.f32.mrb[0].mxu0
      %v3414 = vadd.f32 0.0, %v3413
      %v3415 = vpop.f32.mrb[0].mxu0
      %v3416 = vpop.f32.mrb[0].mxu0
      %v3417 = vadd.f32 0.0, %v3416
      %v3418 = vpop.f32.mrb[0].mxu0
      %3419 = vmatprep.mubr.bf16.mxu0 0
      %3420 = vmatmul.mubr.bf16.gmra.mrb[0].mxu0 %v625
      %v3421 = vpop.f32.mrb[0].mxu0
      %v3422 = vadd.f32 0.0, %v3421
      %v3423 = vpop.f32.mrb[0].mxu0
      %v3424 = vpop.f32.mrb[0].mxu0
      %v3425 = vadd.f32 0.0, %v3424
      %v3426 = vpop.f32.mrb[0].mxu0
      %3427 = vmatprep.mubr.bf16.mxu0 0
      %3428 = vmatmul.mubr.bf16.gmra.mrb[0].mxu0 %v628
      %v3429 = vpop.f32.mrb[0].mxu0
      %v3430 = vadd.f32 0.0, %v3429
      %v3431 = vpop.f32.mrb[0].mxu0
      %v3432 = vpop.f32.mrb[0].mxu0
      %v3433 = vadd.f32 0.0, %v3432
      %v3434 = vpop.f32.mrb[0].mxu0
      %3435 = vmatprep.mubr.bf16.mxu0 0
      %3436 = vmatmul.mubr.bf16.gmra.mrb[0].mxu0 %v631
      %v3437 = vpop.f32.mrb[0].mxu0
      %v3438 = vadd.f32 0.0, %v3437
      %v3439 = vpop.f32.mrb[0].mxu0
      %v3440 = vpop.f32.mrb[0].mxu0
      %v3441 = vadd.f32 0.0, %v3440
      %v3442 = vpop.f32.mrb[0].mxu0
      %3443 = vmatprep.mubr.bf16.mxu0 0
      %3444 = vmatmul.mubr.bf16.gmra.mrb[0].mxu0 %v634
      %v3445 = vpop.f32.mrb[0].mxu0
      %v3446 = vadd.f32 0.0, %v3445
      %v3447 = vpop.f32.mrb[0].mxu0
      %v3448 = vpop.f32.mrb[0].mxu0
      %v3449 = vadd.f32 0.0, %v3448
      %v3450 = vpop.f32.mrb[0].mxu0
      %3451 = vmatprep.mubr.bf16.mxu0 0
      %3452 = vmatmul.mubr.bf16.gmra.mrb[0].mxu0 %v637
      %v3453 = vpop.f32.mrb[0].mxu0
      %v3454 = vadd.f32 0.0, %v3453
      %v3455 = vpop.f32.mrb[0].mxu0
      %v3456 = vpop.f32.mrb[0].mxu0
      %v3457 = vadd.f32 0.0, %v3456
      %v3458 = vpop.f32.mrb[0].mxu0
      %3459 = vmatprep.mubr.bf16.mxu0 0
      %3460 = vmatmul.mubr.bf16.gmra.mrb[0].mxu0 %v640
      %v3461 = vpop.f32.mrb[0].mxu0
      %v3462 = vadd.f32 0.0, %v3461
      %v3463 = vpop.f32.mrb[0].mxu0
      %v3464 = vpop.f32.mrb[0].mxu0
      %v3465 = vadd.f32 0.0, %v3464
      %v3466 = vpop.f32.mrb[0].mxu0
      %3467 = vmatprep.mubr.bf16.mxu0 0
      %3468 = vmatmul.mubr.bf16.gmra.mrb[0].mxu0 %v643
      %v3469 = vpop.f32.mrb[0].mxu0
      %v3470 = vadd.f32 0.0, %v3469
      %v3471 = vpop.f32.mrb[0].mxu0
      %v3472 = vpop.f32.mrb[0].mxu0
      %v3473 = vadd.f32 0.0, %v3472
      %v3474 = vpop.f32.mrb[0].mxu0
      %3475 = vmatprep.mubr.bf16.mxu0 0
      %3476 = vmatmul.mubr.bf16.gmra.mrb[0].mxu0 %v646
      %v3477 = vpop.f32.mrb[0].mxu0
      %v3478 = vadd.f32 0.0, %v3477
      %v3479 = vpop.f32.mrb[0].mxu0
      %v3480 = vpop.f32.mrb[0].mxu0
      %v3481 = vadd.f32 0.0, %v3480
      %v3482 = vpop.f32.mrb[0].mxu0
      %3483 = vmatprep.mubr.bf16.mxu0 0
      %3484 = vmatmul.mubr.bf16.gmra.mrb[0].mxu0 %v649
      %v3485 = vpop.f32.mrb[0].mxu0
      %v3486 = vadd.f32 0.0, %v3485
      %v3487 = vpop.f32.mrb[0].mxu0
      %v3488 = vpop.f32.mrb[0].mxu0
      %v3489 = vadd.f32 0.0, %v3488
      %v3490 = vpop.f32.mrb[0].mxu0
      %3491 = vmatprep.mubr.bf16.mxu0 0
      %3492 = vmatmul.mubr.bf16.gmra.mrb[0].mxu0 %v652
      %v3493 = vpop.f32.mrb[0].mxu0
      %v3494 = vadd.f32 0.0, %v3493
      %v3495 = vpop.f32.mrb[0].mxu0
      %v3496 = vpop.f32.mrb[0].mxu0
      %v3497 = vadd.f32 0.0, %v3496
      %v3498 = vpop.f32.mrb[0].mxu0
      %3499 = vmatprep.mubr.bf16.mxu0 0
      %3500 = vmatmul.mubr.bf16.gmra.mrb[0].mxu0 %v655
      %v3501 = vpop.f32.mrb[0].mxu0
      %v3502 = vadd.f32 0.0, %v3501
      %v3503 = vpop.f32.mrb[0].mxu0
      %v3504 = vpop.f32.mrb[0].mxu0
      %v3505 = vadd.f32 0.0, %v3504
      %v3506 = vpop.f32.mrb[0].mxu0
      %3507 = vmatprep.mubr.bf16.mxu0 0
      %3508 = vmatmul.mubr.bf16.gmra.mrb[0].mxu0 %v658
      %v3509 = vpop.f32.mrb[0].mxu0
      %v3510 = vadd.f32 0.0, %v3509
      %v3511 = vpop.f32.mrb[0].mxu0
      %v3512 = vpop.f32.mrb[0].mxu0
      %v3513 = vadd.f32 0.0, %v3512
      %v3514 = vpop.f32.mrb[0].mxu0
      %3515 = vmatprep.mubr.bf16.mxu0 0
      %3516 = vmatmul.mubr.bf16.gmra.mrb[0].mxu0 %v661
      %v3517 = vpop.f32.mrb[0].mxu0
      %v3518 = vadd.f32 0.0, %v3517
      %v3519 = vpop.f32.mrb[0].mxu0
      %v3520 = vpop.f32.mrb[0].mxu0
      %v3521 = vadd.f32 0.0, %v3520
      %v3522 = vpop.f32.mrb[0].mxu0
      %3523 = vmatprep.mubr.bf16.mxu0 0
      %3524 = vmatmul.mubr.bf16.gmra.mrb[0].mxu0 %v664
      %v3525 = vpop.f32.mrb[0].mxu0
      %v3526 = vadd.f32 0.0, %v3525
      %v3527 = vpop.f32.mrb[0].mxu0
      %v3528 = vpop.f32.mrb[0].mxu0
      %v3529 = vadd.f32 0.0, %v3528
      %v3530 = vpop.f32.mrb[0].mxu0
      %3531 = vmatprep.mubr.bf16.mxu0 0
      %3532 = vmatmul.mubr.bf16.gmra.mrb[0].mxu0 %v667
      %v3533 = vpop.f32.mrb[0].mxu0
      %v3534 = vadd.f32 0.0, %v3533
      %v3535 = vpop.f32.mrb[0].mxu0
      %v3536 = vpop.f32.mrb[0].mxu0
      %v3537 = vadd.f32 0.0, %v3536
      %v3538 = vpop.f32.mrb[0].mxu0
      %3539 = vmatprep.mubr.bf16.mxu0 0
      %3540 = vmatmul.mubr.bf16.gmra.mrb[0].mxu0 %v670
      %v3541 = vpop.f32.mrb[0].mxu0
      %v3542 = vadd.f32 0.0, %v3541
      %v3543 = vpop.f32.mrb[0].mxu0
      %v3544 = vpop.f32.mrb[0].mxu0
      %v3545 = vadd.f32 0.0, %v3544
      %v3546 = vpop.f32.mrb[0].mxu0
      %3547 = vmatprep.mubr.bf16.mxu0 0
      %3548 = vmatmul.mubr.bf16.gmra.mrb[0].mxu0 %v673
      %v3549 = vpop.f32.mrb[0].mxu0
      %v3550 = vadd.f32 0.0, %v3549
      %v3551 = vpop.f32.mrb[0].mxu0
      %v3552 = vpop.f32.mrb[0].mxu0
      %v3553 = vadd.f32 0.0, %v3552
      %v3554 = vpop.f32.mrb[0].mxu0
      %3555 = vmatprep.mubr.bf16.mxu0 0
      %3556 = vmatmul.mubr.bf16.gmra.mrb[0].mxu0 %v676
      %v3557 = vpop.f32.mrb[0].mxu0
      %v3558 = vadd.f32 0.0, %v3557
      %v3559 = vpop.f32.mrb[0].mxu0
      %v3560 = vpop.f32.mrb[0].mxu0
      %v3561 = vadd.f32 0.0, %v3560
      %v3562 = vpop.f32.mrb[0].mxu0
      %3563 = vmatprep.mubr.bf16.mxu0 0
      %3564 = vmatmul.mubr.bf16.gmra.mrb[0].mxu0 %v679
      %v3565 = vpop.f32.mrb[0].mxu0
      %v3566 = vadd.f32 0.0, %v3565
      %v3567 = vpop.f32.mrb[0].mxu0
      %v3568 = vpop.f32.mrb[0].mxu0
      %v3569 = vadd.f32 0.0, %v3568
      %v3570 = vpop.f32.mrb[0].mxu0
      %3571 = vmatprep.mubr.bf16.mxu0 0
      %3572 = vmatmul.mubr.bf16.gmra.mrb[0].mxu0 %v682
      %v3573 = vpop.f32.mrb[0].mxu0
      %v3574 = vpop.f32.mrb[0].mxu0
      %v3575 = vpop.f32.mrb[0].mxu0
      %v3576 = vpop.f32.mrb[0].mxu0
      %3577 = vmatprep.mubr.bf16.mxu0 0
      %3578 = vmatmul.mubr.bf16.gmra.mrb[0].mxu0 %v685
      %v3579 = vpop.f32.mrb[0].mxu0
      %v3580 = vpop.f32.mrb[0].mxu0
      %v3581 = vpop.f32.mrb[0].mxu0
      %v3582 = vpop.f32.mrb[0].mxu0
      %3583 = vdwg.mxu0
      %v3632 = vrot.slane %v3382, 1
      %v3633 = vrot.slane %v3385, 1
      %v3634 = vsel %vm1270, %v3632, %v3633
      %v3635 = vrot.slane %v3390, 1
      %v3636 = vsel %vm1270, %v3633, %v3635
      %v3637 = vrot.slane %v3393, 1
      %v3638 = vrot.slane %v3398, 1
      %v3639 = vsel %vm1270, %v3637, %v3638
      %v3640 = vrot.slane %v3401, 1
      %v3641 = vsel %vm1270, %v3638, %v3640
      %v3642 = vrot.slane %v3406, 1
      %v3643 = vrot.slane %v3409, 1
      %v3644 = vsel %vm1270, %v3642, %v3643
      %v3645 = vrot.slane %v3414, 1
      %v3646 = vsel %vm1270, %v3643, %v3645
      %v3647 = vrot.slane %v3417, 1
      %v3648 = vrot.slane %v3422, 1
      %v3649 = vsel %vm1270, %v3647, %v3648
      %v3650 = vrot.slane %v3425, 1
      %v3651 = vsel %vm1270, %v3648, %v3650
      %v3652 = vrot.slane %v3430, 1
      %v3653 = vrot.slane %v3433, 1
      %v3654 = vsel %vm1270, %v3652, %v3653
      %v3655 = vrot.slane %v3438, 1
      %v3656 = vsel %vm1270, %v3653, %v3655
      %v3657 = vrot.slane %v3441, 1
      %v3658 = vrot.slane %v3446, 1
      %v3659 = vsel %vm1270, %v3657, %v3658
      %v3660 = vrot.slane %v3449, 1
      %v3661 = vsel %vm1270, %v3658, %v3660
      %v3662 = vrot.slane %v3454, 1
      %v3663 = vrot.slane %v3457, 1
      %v3664 = vsel %vm1270, %v3662, %v3663
      %v3665 = vrot.slane %v3462, 1
      %v3666 = vsel %vm1270, %v3663, %v3665
      %v3667 = vrot.slane %v3465, 1
      %v3668 = vrot.slane %v3470, 1
      %v3669 = vsel %vm1270, %v3667, %v3668
      %v3670 = vrot.slane %v3473, 1
      %v3671 = vsel %vm1270, %v3668, %v3670
      %v3672 = vrot.slane %v3478, 1
      %v3673 = vrot.slane %v3481, 1
      %v3674 = vsel %vm1270, %v3672, %v3673
      %v3675 = vrot.slane %v3486, 1
      %v3676 = vsel %vm1270, %v3673, %v3675
      %v3677 = vrot.slane %v3489, 1
      %v3678 = vrot.slane %v3494, 1
      %v3679 = vsel %vm1270, %v3677, %v3678
      %v3680 = vrot.slane %v3497, 1
      %v3681 = vsel %vm1270, %v3678, %v3680
      %v3682 = vrot.slane %v3502, 1
      %v3683 = vrot.slane %v3505, 1
      %v3684 = vsel %vm1270, %v3682, %v3683
      %v3685 = vrot.slane %v3510, 1
      %v3686 = vsel %vm1270, %v3683, %v3685
      %v3687 = vrot.slane %v3513, 1
      %v3688 = vrot.slane %v3518, 1
      %v3689 = vsel %vm1270, %v3687, %v3688
      %v3690 = vrot.slane %v3521, 1
      %v3691 = vsel %vm1270, %v3688, %v3690
      %v3692 = vrot.slane %v3526, 1
      %v3693 = vrot.slane %v3529, 1
      %v3694 = vsel %vm1270, %v3692, %v3693
      %v3695 = vrot.slane %v3534, 1
      %v3696 = vsel %vm1270, %v3693, %v3695
      %v3697 = vrot.slane %v3537, 1
      %v3698 = vrot.slane %v3542, 1
      %v3699 = vsel %vm1270, %v3697, %v3698
      %v3700 = vrot.slane %v3545, 1
      %v3701 = vsel %vm1270, %v3698, %v3700
      %v3702 = vrot.slane %v3550, 1
      %v3703 = vrot.slane %v3553, 1
      %v3704 = vsel %vm1270, %v3702, %v3703
      %v3705 = vrot.slane %v3558, 1
      %v3706 = vsel %vm1270, %v3703, %v3705
      %v3707 = vrot.slane %v3561, 1
      %v3708 = vrot.slane %v3566, 1
      %v3709 = vsel %vm1270, %v3707, %v3708
      %v3710 = vrot.slane %v3569, 1
      %v3711 = vsel %vm1270, %v3708, %v3710
      %v3744 = vadd.f32 %v3292, %v3634
      %v3745 = vadd.f32 %v3293, %v3636
      %v3746 = vadd.f32 %v3294, %v3639
      %v3747 = vadd.f32 %v3295, %v3641
      %v3748 = vadd.f32 %v3296, %v3644
      %v3749 = vadd.f32 %v3297, %v3646
      %v3750 = vadd.f32 %v3298, %v3649
      %v3751 = vadd.f32 %v3299, %v3651
      %v3752 = vadd.f32 %v3300, %v3654
      %v3753 = vadd.f32 %v3301, %v3656
      %v3754 = vadd.f32 %v3302, %v3659
      %v3755 = vadd.f32 %v3303, %v3661
      %v3756 = vadd.f32 %v3304, %v3664
      %v3757 = vadd.f32 %v3305, %v3666
      %v3758 = vadd.f32 %v3306, %v3669
      %v3759 = vadd.f32 %v3307, %v3671
      %v3760 = vadd.f32 %v3308, %v3674
      %v3761 = vadd.f32 %v3309, %v3676
      %v3762 = vadd.f32 %v3310, %v3679
      %v3763 = vadd.f32 %v3311, %v3681
      %v3764 = vadd.f32 %v3312, %v3684
      %v3765 = vadd.f32 %v3313, %v3686
      %v3766 = vadd.f32 %v3314, %v3689
      %v3767 = vadd.f32 %v3315, %v3691
      %v3768 = vadd.f32 %v3316, %v3694
      %v3769 = vadd.f32 %v3317, %v3696
      %v3770 = vadd.f32 %v3318, %v3699
      %v3771 = vadd.f32 %v3319, %v3701
      %v3772 = vadd.f32 %v3320, %v3704
      %v3773 = vadd.f32 %v3321, %v3706
      %v3774 = vadd.f32 %v3322, %v3709
      %v3775 = vadd.f32 %v3323, %v3711
      %s3776 = scalar_lea.vmem %s1, 16
      %v3777 = vld [vmem:[%s3776] sm:$0x3]
      %v3779 = vsel %vm687, %v3777, 0
      %3781 = vmatprep.subr.bf16.mxu0 0
      %3782 = vmatpush1.bf16.msra.mxu0 %v3779
      %3783 = vmatprep.subr.bf16.mxu0 0
      %3784 = vmatpush1.bf16.msra.mxu0 0
      %3785 = vmatprep.subr.bf16.mxu0 0
      %3786 = vmatpush1.bf16.msra.mxu0 0
      %3787 = vmatprep.subr.bf16.mxu0 0
      %3788 = vmatpush1.bf16.msra.mxu0 0
      %3789 = vmatprep.subr.bf16.mxu0 0
      %3790 = vmatpush1.bf16.msra.mxu0 0
      %3791 = vmatprep.subr.bf16.mxu0 0
      %3792 = vmatpush1.bf16.msra.mxu0 0
      %3793 = vmatprep.subr.bf16.mxu0 0
      %3794 = vmatpush1.bf16.msra.mxu0 0
      %3795 = vmatprep.subr.bf16.mxu0 0
      %3796 = vmatpush1.bf16.msra.mxu0 0
      %3797 = vmatprep.subr.bf16.mxu0 0
      %3798 = vmatpush1.bf16.msra.mxu0 0
      %3799 = vmatprep.subr.bf16.mxu0 0
      %3800 = vmatpush1.bf16.msra.mxu0 0
      %3801 = vmatprep.subr.bf16.mxu0 0
      %3802 = vmatpush1.bf16.msra.mxu0 0
      %3803 = vmatprep.subr.bf16.mxu0 0
      %3804 = vmatpush1.bf16.msra.mxu0 0
      %3805 = vmatprep.subr.bf16.mxu0 0
      %3806 = vmatpush1.bf16.msra.mxu0 0
      %3807 = vmatprep.subr.bf16.mxu0 0
      %3808 = vmatpush1.bf16.msra.mxu0 0
      %3809 = vmatprep.subr.bf16.mxu0 0
      %3810 = vmatpush1.bf16.msra.mxu0 0
      %3811 = vmatprep.subr.bf16.mxu0 0
      %3812 = vmatpush1.bf16.msra.mxu0 0
      %3813 = vmatprep.mubr.bf16.mxu0 0
      %3814 = vmatmul.mubr.bf16.gmra.mrb[0].mxu0 %v601
      %v3815 = vpop.f32.mrb[0].mxu0
      %v3816 = vpop.f32.mrb[0].mxu0
      %v3817 = vpop.f32.mrb[0].mxu0
      %v3818 = vpop.f32.mrb[0].mxu0
      %3819 = vmatprep.mubr.bf16.mxu0 0
      %3820 = vmatmul.mubr.bf16.gmra.mrb[0].mxu0 %v604
      %v3821 = vpop.f32.mrb[0].mxu0
      %v3822 = vpop.f32.mrb[0].mxu0
      %v3823 = vpop.f32.mrb[0].mxu0
      %v3824 = vpop.f32.mrb[0].mxu0
      %3825 = vmatprep.mubr.bf16.mxu0 0
      %3826 = vmatmul.mubr.bf16.gmra.mrb[0].mxu0 %v607
      %v3827 = vpop.f32.mrb[0].mxu0
      %v3828 = vpop.f32.mrb[0].mxu0
      %v3829 = vpop.f32.mrb[0].mxu0
      %v3830 = vpop.f32.mrb[0].mxu0
      %3831 = vmatprep.mubr.bf16.mxu0 0
      %3832 = vmatmul.mubr.bf16.gmra.mrb[0].mxu0 %v610
      %v3833 = vpop.f32.mrb[0].mxu0
      %v3834 = vadd.f32 0.0, %v3833
      %v3835 = vpop.f32.mrb[0].mxu0
      %v3836 = vpop.f32.mrb[0].mxu0
      %v3837 = vadd.f32 0.0, %v3836
      %v3838 = vpop.f32.mrb[0].mxu0
      %3839 = vmatprep.mubr.bf16.mxu0 0
      %3840 = vmatmul.mubr.bf16.gmra.mrb[0].mxu0 %v613
      %v3841 = vpop.f32.mrb[0].mxu0
      %v3842 = vadd.f32 0.0, %v3841
      %v3843 = vpop.f32.mrb[0].mxu0
      %v3844 = vpop.f32.mrb[0].mxu0
      %v3845 = vadd.f32 0.0, %v3844
      %v3846 = vpop.f32.mrb[0].mxu0
      %3847 = vmatprep.mubr.bf16.mxu0 0
      %3848 = vmatmul.mubr.bf16.gmra.mrb[0].mxu0 %v616
      %v3849 = vpop.f32.mrb[0].mxu0
      %v3850 = vadd.f32 0.0, %v3849
      %v3851 = vpop.f32.mrb[0].mxu0
      %v3852 = vpop.f32.mrb[0].mxu0
      %v3853 = vadd.f32 0.0, %v3852
      %v3854 = vpop.f32.mrb[0].mxu0
      %3855 = vmatprep.mubr.bf16.mxu0 0
      %3856 = vmatmul.mubr.bf16.gmra.mrb[0].mxu0 %v619
      %v3857 = vpop.f32.mrb[0].mxu0
      %v3858 = vadd.f32 0.0, %v3857
      %v3859 = vpop.f32.mrb[0].mxu0
      %v3860 = vpop.f32.mrb[0].mxu0
      %v3861 = vadd.f32 0.0, %v3860
      %v3862 = vpop.f32.mrb[0].mxu0
      %3863 = vmatprep.mubr.bf16.mxu0 0
      %3864 = vmatmul.mubr.bf16.gmra.mrb[0].mxu0 %v622
      %v3865 = vpop.f32.mrb[0].mxu0
      %v3866 = vadd.f32 0.0, %v3865
      %v3867 = vpop.f32.mrb[0].mxu0
      %v3868 = vpop.f32.mrb[0].mxu0
      %v3869 = vadd.f32 0.0, %v3868
      %v3870 = vpop.f32.mrb[0].mxu0
      %3871 = vmatprep.mubr.bf16.mxu0 0
      %3872 = vmatmul.mubr.bf16.gmra.mrb[0].mxu0 %v625
      %v3873 = vpop.f32.mrb[0].mxu0
      %v3874 = vadd.f32 0.0, %v3873
      %v3875 = vpop.f32.mrb[0].mxu0
      %v3876 = vpop.f32.mrb[0].mxu0
      %v3877 = vadd.f32 0.0, %v3876
      %v3878 = vpop.f32.mrb[0].mxu0
      %3879 = vmatprep.mubr.bf16.mxu0 0
      %3880 = vmatmul.mubr.bf16.gmra.mrb[0].mxu0 %v628
      %v3881 = vpop.f32.mrb[0].mxu0
      %v3882 = vadd.f32 0.0, %v3881
      %v3883 = vpop.f32.mrb[0].mxu0
      %v3884 = vpop.f32.mrb[0].mxu0
      %v3885 = vadd.f32 0.0, %v3884
      %v3886 = vpop.f32.mrb[0].mxu0
      %3887 = vmatprep.mubr.bf16.mxu0 0
      %3888 = vmatmul.mubr.bf16.gmra.mrb[0].mxu0 %v631
      %v3889 = vpop.f32.mrb[0].mxu0
      %v3890 = vadd.f32 0.0, %v3889
      %v3891 = vpop.f32.mrb[0].mxu0
      %v3892 = vpop.f32.mrb[0].mxu0
      %v3893 = vadd.f32 0.0, %v3892
      %v3894 = vpop.f32.mrb[0].mxu0
      %3895 = vmatprep.mubr.bf16.mxu0 0
      %3896 = vmatmul.mubr.bf16.gmra.mrb[0].mxu0 %v634
      %v3897 = vpop.f32.mrb[0].mxu0
      %v3898 = vadd.f32 0.0, %v3897
      %v3899 = vpop.f32.mrb[0].mxu0
      %v3900 = vpop.f32.mrb[0].mxu0
      %v3901 = vadd.f32 0.0, %v3900
      %v3902 = vpop.f32.mrb[0].mxu0
      %3903 = vmatprep.mubr.bf16.mxu0 0
      %3904 = vmatmul.mubr.bf16.gmra.mrb[0].mxu0 %v637
      %v3905 = vpop.f32.mrb[0].mxu0
      %v3906 = vadd.f32 0.0, %v3905
      %v3907 = vpop.f32.mrb[0].mxu0
      %v3908 = vpop.f32.mrb[0].mxu0
      %v3909 = vadd.f32 0.0, %v3908
      %v3910 = vpop.f32.mrb[0].mxu0
      %3911 = vmatprep.mubr.bf16.mxu0 0
      %3912 = vmatmul.mubr.bf16.gmra.mrb[0].mxu0 %v640
      %v3913 = vpop.f32.mrb[0].mxu0
      %v3914 = vadd.f32 0.0, %v3913
      %v3915 = vpop.f32.mrb[0].mxu0
      %v3916 = vpop.f32.mrb[0].mxu0
      %v3917 = vadd.f32 0.0, %v3916
      %v3918 = vpop.f32.mrb[0].mxu0
      %3919 = vmatprep.mubr.bf16.mxu0 0
      %3920 = vmatmul.mubr.bf16.gmra.mrb[0].mxu0 %v643
      %v3921 = vpop.f32.mrb[0].mxu0
      %v3922 = vadd.f32 0.0, %v3921
      %v3923 = vpop.f32.mrb[0].mxu0
      %v3924 = vpop.f32.mrb[0].mxu0
      %v3925 = vadd.f32 0.0, %v3924
      %v3926 = vpop.f32.mrb[0].mxu0
      %3927 = vmatprep.mubr.bf16.mxu0 0
      %3928 = vmatmul.mubr.bf16.gmra.mrb[0].mxu0 %v646
      %v3929 = vpop.f32.mrb[0].mxu0
      %v3930 = vadd.f32 0.0, %v3929
      %v3931 = vpop.f32.mrb[0].mxu0
      %v3932 = vpop.f32.mrb[0].mxu0
      %v3933 = vadd.f32 0.0, %v3932
      %v3934 = vpop.f32.mrb[0].mxu0
      %3935 = vmatprep.mubr.bf16.mxu0 0
      %3936 = vmatmul.mubr.bf16.gmra.mrb[0].mxu0 %v649
      %v3937 = vpop.f32.mrb[0].mxu0
      %v3938 = vadd.f32 0.0, %v3937
      %v3939 = vpop.f32.mrb[0].mxu0
      %v3940 = vpop.f32.mrb[0].mxu0
      %v3941 = vadd.f32 0.0, %v3940
      %v3942 = vpop.f32.mrb[0].mxu0
      %3943 = vmatprep.mubr.bf16.mxu0 0
      %3944 = vmatmul.mubr.bf16.gmra.mrb[0].mxu0 %v652
      %v3945 = vpop.f32.mrb[0].mxu0
      %v3946 = vadd.f32 0.0, %v3945
      %v3947 = vpop.f32.mrb[0].mxu0
      %v3948 = vpop.f32.mrb[0].mxu0
      %v3949 = vadd.f32 0.0, %v3948
      %v3950 = vpop.f32.mrb[0].mxu0
      %3951 = vmatprep.mubr.bf16.mxu0 0
      %3952 = vmatmul.mubr.bf16.gmra.mrb[0].mxu0 %v655
      %v3953 = vpop.f32.mrb[0].mxu0
      %v3954 = vadd.f32 0.0, %v3953
      %v3955 = vpop.f32.mrb[0].mxu0
      %v3956 = vpop.f32.mrb[0].mxu0
      %v3957 = vadd.f32 0.0, %v3956
      %v3958 = vpop.f32.mrb[0].mxu0
      %3959 = vmatprep.mubr.bf16.mxu0 0
      %3960 = vmatmul.mubr.bf16.gmra.mrb[0].mxu0 %v658
      %v3961 = vpop.f32.mrb[0].mxu0
      %v3962 = vadd.f32 0.0, %v3961
      %v3963 = vpop.f32.mrb[0].mxu0
      %v3964 = vpop.f32.mrb[0].mxu0
      %v3965 = vadd.f32 0.0, %v3964
      %v3966 = vpop.f32.mrb[0].mxu0
      %3967 = vmatprep.mubr.bf16.mxu0 0
      %3968 = vmatmul.mubr.bf16.gmra.mrb[0].mxu0 %v661
      %v3969 = vpop.f32.mrb[0].mxu0
      %v3970 = vadd.f32 0.0, %v3969
      %v3971 = vpop.f32.mrb[0].mxu0
      %v3972 = vpop.f32.mrb[0].mxu0
      %v3973 = vadd.f32 0.0, %v3972
      %v3974 = vpop.f32.mrb[0].mxu0
      %3975 = vmatprep.mubr.bf16.mxu0 0
      %3976 = vmatmul.mubr.bf16.gmra.mrb[0].mxu0 %v664
      %v3977 = vpop.f32.mrb[0].mxu0
      %v3978 = vadd.f32 0.0, %v3977
      %v3979 = vpop.f32.mrb[0].mxu0
      %v3980 = vpop.f32.mrb[0].mxu0
      %v3981 = vadd.f32 0.0, %v3980
      %v3982 = vpop.f32.mrb[0].mxu0
      %3983 = vmatprep.mubr.bf16.mxu0 0
      %3984 = vmatmul.mubr.bf16.gmra.mrb[0].mxu0 %v667
      %v3985 = vpop.f32.mrb[0].mxu0
      %v3986 = vadd.f32 0.0, %v3985
      %v3987 = vpop.f32.mrb[0].mxu0
      %v3988 = vpop.f32.mrb[0].mxu0
      %v3989 = vadd.f32 0.0, %v3988
      %v3990 = vpop.f32.mrb[0].mxu0
      %3991 = vmatprep.mubr.bf16.mxu0 0
      %3992 = vmatmul.mubr.bf16.gmra.mrb[0].mxu0 %v670
      %v3993 = vpop.f32.mrb[0].mxu0
      %v3994 = vadd.f32 0.0, %v3993
      %v3995 = vpop.f32.mrb[0].mxu0
      %v3996 = vpop.f32.mrb[0].mxu0
      %v3997 = vadd.f32 0.0, %v3996
      %v3998 = vpop.f32.mrb[0].mxu0
      %3999 = vmatprep.mubr.bf16.mxu0 0
      %4000 = vmatmul.mubr.bf16.gmra.mrb[0].mxu0 %v673
      %v4001 = vpop.f32.mrb[0].mxu0
      %v4002 = vadd.f32 0.0, %v4001
      %v4003 = vpop.f32.mrb[0].mxu0
      %v4004 = vpop.f32.mrb[0].mxu0
      %v4005 = vadd.f32 0.0, %v4004
      %v4006 = vpop.f32.mrb[0].mxu0
      %4007 = vmatprep.mubr.bf16.mxu0 0
      %4008 = vmatmul.mubr.bf16.gmra.mrb[0].mxu0 %v676
      %v4009 = vpop.f32.mrb[0].mxu0
      %v4010 = vadd.f32 0.0, %v4009
      %v4011 = vpop.f32.mrb[0].mxu0
      %v4012 = vpop.f32.mrb[0].mxu0
      %v4013 = vadd.f32 0.0, %v4012
      %v4014 = vpop.f32.mrb[0].mxu0
      %4015 = vmatprep.mubr.bf16.mxu0 0
      %4016 = vmatmul.mubr.bf16.gmra.mrb[0].mxu0 %v679
      %v4017 = vpop.f32.mrb[0].mxu0
      %v4018 = vadd.f32 0.0, %v4017
      %v4019 = vpop.f32.mrb[0].mxu0
      %v4020 = vpop.f32.mrb[0].mxu0
      %v4021 = vadd.f32 0.0, %v4020
      %v4022 = vpop.f32.mrb[0].mxu0
      %4023 = vmatprep.mubr.bf16.mxu0 0
      %4024 = vmatmul.mubr.bf16.gmra.mrb[0].mxu0 %v682
      %v4025 = vpop.f32.mrb[0].mxu0
      %v4026 = vpop.f32.mrb[0].mxu0
      %v4027 = vpop.f32.mrb[0].mxu0
      %v4028 = vpop.f32.mrb[0].mxu0
      %4029 = vmatprep.mubr.bf16.mxu0 0
      %4030 = vmatmul.mubr.bf16.gmra.mrb[0].mxu0 %v685
      %v4031 = vpop.f32.mrb[0].mxu0
      %v4032 = vpop.f32.mrb[0].mxu0
      %v4033 = vpop.f32.mrb[0].mxu0
      %v4034 = vpop.f32.mrb[0].mxu0
      %4035 = vdwg.mxu0
      %v4084 = vrot.slane %v3834, 2
      %v4085 = vrot.slane %v3837, 2
      %v4086 = vsel %vm1723, %v4084, %v4085
      %v4087 = vrot.slane %v3842, 2
      %v4088 = vsel %vm1723, %v4085, %v4087
      %v4089 = vrot.slane %v3845, 2
      %v4090 = vrot.slane %v3850, 2
      %v4091 = vsel %vm1723, %v4089, %v4090
      %v4092 = vrot.slane %v3853, 2
      %v4093 = vsel %vm1723, %v4090, %v4092
      %v4094 = vrot.slane %v3858, 2
      %v4095 = vrot.slane %v3861, 2
      %v4096 = vsel %vm1723, %v4094, %v4095
      %v4097 = vrot.slane %v3866, 2
      %v4098 = vsel %vm1723, %v4095, %v4097
      %v4099 = vrot.slane %v3869, 2
      %v4100 = vrot.slane %v3874, 2
      %v4101 = vsel %vm1723, %v4099, %v4100
      %v4102 = vrot.slane %v3877, 2
      %v4103 = vsel %vm1723, %v4100, %v4102
      %v4104 = vrot.slane %v3882, 2
      %v4105 = vrot.slane %v3885, 2
      %v4106 = vsel %vm1723, %v4104, %v4105
      %v4107 = vrot.slane %v3890, 2
      %v4108 = vsel %vm1723, %v4105, %v4107
      %v4109 = vrot.slane %v3893, 2
      %v4110 = vrot.slane %v3898, 2
      %v4111 = vsel %vm1723, %v4109, %v4110
      %v4112 = vrot.slane %v3901, 2
      %v4113 = vsel %vm1723, %v4110, %v4112
      %v4114 = vrot.slane %v3906, 2
      %v4115 = vrot.slane %v3909, 2
      %v4116 = vsel %vm1723, %v4114, %v4115
      %v4117 = vrot.slane %v3914, 2
      %v4118 = vsel %vm1723, %v4115, %v4117
      %v4119 = vrot.slane %v3917, 2
      %v4120 = vrot.slane %v3922, 2
      %v4121 = vsel %vm1723, %v4119, %v4120
      %v4122 = vrot.slane %v3925, 2
      %v4123 = vsel %vm1723, %v4120, %v4122
      %v4124 = vrot.slane %v3930, 2
      %v4125 = vrot.slane %v3933, 2
      %v4126 = vsel %vm1723, %v4124, %v4125
      %v4127 = vrot.slane %v3938, 2
      %v4128 = vsel %vm1723, %v4125, %v4127
      %v4129 = vrot.slane %v3941, 2
      %v4130 = vrot.slane %v3946, 2
      %v4131 = vsel %vm1723, %v4129, %v4130
      %v4132 = vrot.slane %v3949, 2
      %v4133 = vsel %vm1723, %v4130, %v4132
      %v4134 = vrot.slane %v3954, 2
      %v4135 = vrot.slane %v3957, 2
      %v4136 = vsel %vm1723, %v4134, %v4135
      %v4137 = vrot.slane %v3962, 2
      %v4138 = vsel %vm1723, %v4135, %v4137
      %v4139 = vrot.slane %v3965, 2
      %v4140 = vrot.slane %v3970, 2
      %v4141 = vsel %vm1723, %v4139, %v4140
      %v4142 = vrot.slane %v3973, 2
      %v4143 = vsel %vm1723, %v4140, %v4142
      %v4144 = vrot.slane %v3978, 2
      %v4145 = vrot.slane %v3981, 2
      %v4146 = vsel %vm1723, %v4144, %v4145
      %v4147 = vrot.slane %v3986, 2
      %v4148 = vsel %vm1723, %v4145, %v4147
      %v4149 = vrot.slane %v3989, 2
      %v4150 = vrot.slane %v3994, 2
      %v4151 = vsel %vm1723, %v4149, %v4150
      %v4152 = vrot.slane %v3997, 2
      %v4153 = vsel %vm1723, %v4150, %v4152
      %v4154 = vrot.slane %v4002, 2
      %v4155 = vrot.slane %v4005, 2
      %v4156 = vsel %vm1723, %v4154, %v4155
      %v4157 = vrot.slane %v4010, 2
      %v4158 = vsel %vm1723, %v4155, %v4157
      %v4159 = vrot.slane %v4013, 2
      %v4160 = vrot.slane %v4018, 2
      %v4161 = vsel %vm1723, %v4159, %v4160
      %v4162 = vrot.slane %v4021, 2
      %v4163 = vsel %vm1723, %v4160, %v4162
      %v4196 = vadd.f32 %v3744, %v4086
      %v4197 = vadd.f32 %v3745, %v4088
      %v4198 = vadd.f32 %v3746, %v4091
      %v4199 = vadd.f32 %v3747, %v4093
      %v4200 = vadd.f32 %v3748, %v4096
      %v4201 = vadd.f32 %v3749, %v4098
      %v4202 = vadd.f32 %v3750, %v4101
      %v4203 = vadd.f32 %v3751, %v4103
      %v4204 = vadd.f32 %v3752, %v4106
      %v4205 = vadd.f32 %v3753, %v4108
      %v4206 = vadd.f32 %v3754, %v4111
      %v4207 = vadd.f32 %v3755, %v4113
      %v4208 = vadd.f32 %v3756, %v4116
      %v4209 = vadd.f32 %v3757, %v4118
      %v4210 = vadd.f32 %v3758, %v4121
      %v4211 = vadd.f32 %v3759, %v4123
      %v4212 = vadd.f32 %v3760, %v4126
      %v4213 = vadd.f32 %v3761, %v4128
      %v4214 = vadd.f32 %v3762, %v4131
      %v4215 = vadd.f32 %v3763, %v4133
      %v4216 = vadd.f32 %v3764, %v4136
      %v4217 = vadd.f32 %v3765, %v4138
      %v4218 = vadd.f32 %v3766, %v4141
      %v4219 = vadd.f32 %v3767, %v4143
      %v4220 = vadd.f32 %v3768, %v4146
      %v4221 = vadd.f32 %v3769, %v4148
      %v4222 = vadd.f32 %v3770, %v4151
      %v4223 = vadd.f32 %v3771, %v4153
      %v4224 = vadd.f32 %v3772, %v4156
      %v4225 = vadd.f32 %v3773, %v4158
      %v4226 = vadd.f32 %v3774, %v4161
      %v4227 = vadd.f32 %v3775, %v4163
      %v4228 = vsel %vm367, %v4196, 0.0
      %v4229 = vsel %vm367, %v4198, 0.0
      %v4230 = vadd.f32 %v4228, %v4229
      %v4231 = vsel %vm367, %v4200, 0.0
      %v4232 = vadd.f32 %v4230, %v4231
      %v4233 = vsel %vm367, %v4202, 0.0
      %v4234 = vadd.f32 %v4232, %v4233
      %v4235 = vsel %vm367, %v4204, 0.0
      %v4236 = vadd.f32 %v4234, %v4235
      %v4237 = vsel %vm367, %v4206, 0.0
      %v4238 = vadd.f32 %v4236, %v4237
      %v4239 = vsel %vm367, %v4208, 0.0
      %v4240 = vadd.f32 %v4238, %v4239
      %v4241 = vsel %vm367, %v4210, 0.0
      %v4242 = vadd.f32 %v4240, %v4241
      %v4243 = vsel %vm367, %v4212, 0.0
      %v4244 = vadd.f32 %v4242, %v4243
      %v4245 = vsel %vm367, %v4214, 0.0
      %v4246 = vadd.f32 %v4244, %v4245
      %v4247 = vsel %vm367, %v4216, 0.0
      %v4248 = vadd.f32 %v4246, %v4247
      %v4249 = vsel %vm367, %v4218, 0.0
      %v4250 = vadd.f32 %v4248, %v4249
      %v4251 = vsel %vm367, %v4220, 0.0
      %v4252 = vadd.f32 %v4250, %v4251
      %v4253 = vsel %vm367, %v4222, 0.0
      %v4254 = vadd.f32 %v4252, %v4253
      %v4255 = vsel %vm367, %v4224, 0.0
      %v4256 = vadd.f32 %v4254, %v4255
      %v4257 = vsel %vm367, %v4226, 0.0
      %v4258 = vadd.f32 %v4256, %v4257
      %v4259 = vsel %vm367, %v4197, 0.0
      %v4260 = vsel %vm367, %v4199, 0.0
      %v4261 = vadd.f32 %v4259, %v4260
      %v4262 = vsel %vm367, %v4201, 0.0
      %v4263 = vadd.f32 %v4261, %v4262
      %v4264 = vsel %vm367, %v4203, 0.0
      %v4265 = vadd.f32 %v4263, %v4264
      %v4266 = vsel %vm367, %v4205, 0.0
      %v4267 = vadd.f32 %v4265, %v4266
      %v4268 = vsel %vm367, %v4207, 0.0
      %v4269 = vadd.f32 %v4267, %v4268
      %v4270 = vsel %vm367, %v4209, 0.0
      %v4271 = vadd.f32 %v4269, %v4270
      %v4272 = vsel %vm367, %v4211, 0.0
      %v4273 = vadd.f32 %v4271, %v4272
      %v4274 = vsel %vm367, %v4213, 0.0
      %v4275 = vadd.f32 %v4273, %v4274
      %v4276 = vsel %vm367, %v4215, 0.0
      %v4277 = vadd.f32 %v4275, %v4276
      %v4278 = vsel %vm367, %v4217, 0.0
      %v4279 = vadd.f32 %v4277, %v4278
      %v4280 = vsel %vm367, %v4219, 0.0
      %v4281 = vadd.f32 %v4279, %v4280
      %v4282 = vsel %vm367, %v4221, 0.0
      %v4283 = vadd.f32 %v4281, %v4282
      %v4284 = vsel %vm367, %v4223, 0.0
      %v4285 = vadd.f32 %v4283, %v4284
      %v4286 = vsel %vm367, %v4225, 0.0
      %v4287 = vadd.f32 %v4285, %v4286
      %v4288 = vsel %vm367, %v4227, 0.0
      %v4289 = vadd.f32 %v4287, %v4288
      %v4290 = vsel %vm367, %v4258, 0.0
      %v4291 = vsel %vm367, %v4289, 0.0
      %v4292 = vadd.f32 %v4290, %v4291
      %v4293 = vrot.slane %v4292, 4
      %v4294 = vadd.f32 %v4292, %v4293
      %v4295 = vrot.slane %v4294, 2
      %v4296 = vadd.f32 %v4294, %v4295
      %v4297 = vrot.slane %v4296, 1
      %v4298 = vadd.f32 %v4296, %v4297
      %v4299 = vmul.f32 %v4196, %v4196
      %v4300 = vmul.f32 %v4197, %v4197
      %v4301 = vmul.f32 %v4198, %v4198
      %v4302 = vmul.f32 %v4199, %v4199
      %v4303 = vmul.f32 %v4200, %v4200
      %v4304 = vmul.f32 %v4201, %v4201
      %v4305 = vmul.f32 %v4202, %v4202
      %v4306 = vmul.f32 %v4203, %v4203
      %v4307 = vmul.f32 %v4204, %v4204
      %v4308 = vmul.f32 %v4205, %v4205
      %v4309 = vmul.f32 %v4206, %v4206
      %v4310 = vmul.f32 %v4207, %v4207
      %v4311 = vmul.f32 %v4208, %v4208
      %v4312 = vmul.f32 %v4209, %v4209
      %v4313 = vmul.f32 %v4210, %v4210
      %v4314 = vmul.f32 %v4211, %v4211
      %v4315 = vmul.f32 %v4212, %v4212
      %v4316 = vmul.f32 %v4213, %v4213
      %v4317 = vmul.f32 %v4214, %v4214
      %v4318 = vmul.f32 %v4215, %v4215
      %v4319 = vmul.f32 %v4216, %v4216
      %v4320 = vmul.f32 %v4217, %v4217
      %v4321 = vmul.f32 %v4218, %v4218
      %v4322 = vmul.f32 %v4219, %v4219
      %v4323 = vmul.f32 %v4220, %v4220
      %v4324 = vmul.f32 %v4221, %v4221
      %v4325 = vmul.f32 %v4222, %v4222
      %v4326 = vmul.f32 %v4223, %v4223
      %v4327 = vmul.f32 %v4224, %v4224
      %v4328 = vmul.f32 %v4225, %v4225
      %v4329 = vmul.f32 %v4226, %v4226
      %v4330 = vmul.f32 %v4227, %v4227
      %v4331 = vsel %vm367, %v4299, 0.0
      %v4332 = vsel %vm367, %v4301, 0.0
      %v4333 = vadd.f32 %v4331, %v4332
      %v4334 = vsel %vm367, %v4303, 0.0
      %v4335 = vadd.f32 %v4333, %v4334
      %v4336 = vsel %vm367, %v4305, 0.0
      %v4337 = vadd.f32 %v4335, %v4336
      %v4338 = vsel %vm367, %v4307, 0.0
      %v4339 = vadd.f32 %v4337, %v4338
      %v4340 = vsel %vm367, %v4309, 0.0
      %v4341 = vadd.f32 %v4339, %v4340
      %v4342 = vsel %vm367, %v4311, 0.0
      %v4343 = vadd.f32 %v4341, %v4342
      %v4344 = vsel %vm367, %v4313, 0.0
      %v4345 = vadd.f32 %v4343, %v4344
      %v4346 = vsel %vm367, %v4315, 0.0
      %v4347 = vadd.f32 %v4345, %v4346
      %v4348 = vsel %vm367, %v4317, 0.0
      %v4349 = vadd.f32 %v4347, %v4348
      %v4350 = vsel %vm367, %v4319, 0.0
      %v4351 = vadd.f32 %v4349, %v4350
      %v4352 = vsel %vm367, %v4321, 0.0
      %v4353 = vadd.f32 %v4351, %v4352
      %v4354 = vsel %vm367, %v4323, 0.0
      %v4355 = vadd.f32 %v4353, %v4354
      %v4356 = vsel %vm367, %v4325, 0.0
      %v4357 = vadd.f32 %v4355, %v4356
      %v4358 = vsel %vm367, %v4327, 0.0
      %v4359 = vadd.f32 %v4357, %v4358
      %v4360 = vsel %vm367, %v4329, 0.0
      %v4361 = vadd.f32 %v4359, %v4360
      %v4362 = vsel %vm367, %v4300, 0.0
      %v4363 = vsel %vm367, %v4302, 0.0
      %v4364 = vadd.f32 %v4362, %v4363
      %v4365 = vsel %vm367, %v4304, 0.0
      %v4366 = vadd.f32 %v4364, %v4365
      %v4367 = vsel %vm367, %v4306, 0.0
      %v4368 = vadd.f32 %v4366, %v4367
      %v4369 = vsel %vm367, %v4308, 0.0
      %v4370 = vadd.f32 %v4368, %v4369
      %v4371 = vsel %vm367, %v4310, 0.0
      %v4372 = vadd.f32 %v4370, %v4371
      %v4373 = vsel %vm367, %v4312, 0.0
      %v4374 = vadd.f32 %v4372, %v4373
      %v4375 = vsel %vm367, %v4314, 0.0
      %v4376 = vadd.f32 %v4374, %v4375
      %v4377 = vsel %vm367, %v4316, 0.0
      %v4378 = vadd.f32 %v4376, %v4377
      %v4379 = vsel %vm367, %v4318, 0.0
      %v4380 = vadd.f32 %v4378, %v4379
      %v4381 = vsel %vm367, %v4320, 0.0
      %v4382 = vadd.f32 %v4380, %v4381
      %v4383 = vsel %vm367, %v4322, 0.0
      %v4384 = vadd.f32 %v4382, %v4383
      %v4385 = vsel %vm367, %v4324, 0.0
      %v4386 = vadd.f32 %v4384, %v4385
      %v4387 = vsel %vm367, %v4326, 0.0
      %v4388 = vadd.f32 %v4386, %v4387
      %v4389 = vsel %vm367, %v4328, 0.0
      %v4390 = vadd.f32 %v4388, %v4389
      %v4391 = vsel %vm367, %v4330, 0.0
      %v4392 = vadd.f32 %v4390, %v4391
      %v4393 = vsel %vm367, %v4361, 0.0
      %v4394 = vsel %vm367, %v4392, 0.0
      %v4395 = vadd.f32 %v4393, %v4394
      %v4396 = vrot.slane %v4395, 4
      %v4397 = vadd.f32 %v4395, %v4396
      %v4398 = vrot.slane %v4397, 2
      %v4399 = vadd.f32 %v4397, %v4398
      %v4400 = vrot.slane %v4399, 1
      %v4401 = vadd.f32 %v4399, %v4400
      %v4402 = vmul.f32 %v4298, 0.00390625
      %v4403 = vmul.f32 %v4401, 0.00390625
      %v4404 = vmul.f32 %v4402, %v4402
      %v4405 = vsub.f32 %v4403, %v4404
      %v4406 = vmax.f32 %v4405, 0.0
      %v4407 = vld [vmem:[%s3] sm:$0x1]
      %v4408 = vadd.f32 %v4406, 1e-05
      %v4409 = vrsqrt.pop %v4408
      %v4410 = vmul.f32 %v4407, %v4409
      %v4411 = vld [vmem:[%s4] sm:$0x1]
      %v4412 = vmul.f32 %v4402, %v4410
      %v4413 = vsub.f32 %v4411, %v4412
      %v4415 = vlaneseq
      %v4416 = vshrl.u32 %v4415, 7
      %v4417 = vsub.s32 0, %v4416
      %v4418 = vrot.slane %v4410, %v4417
      %v4420 = vmul.f32 %v4196, %v4418
      %v4421 = vmul.f32 %v4197, %v4418
      %v4422 = vmul.f32 %v4198, %v4418
      %v4423 = vmul.f32 %v4199, %v4418
      %v4424 = vmul.f32 %v4200, %v4418
      %v4425 = vmul.f32 %v4201, %v4418
      %v4426 = vmul.f32 %v4202, %v4418
      %v4427 = vmul.f32 %v4203, %v4418
      %v4428 = vmul.f32 %v4204, %v4418
      %v4429 = vmul.f32 %v4205, %v4418
      %v4430 = vmul.f32 %v4206, %v4418
      %v4431 = vmul.f32 %v4207, %v4418
      %v4432 = vmul.f32 %v4208, %v4418
      %v4433 = vmul.f32 %v4209, %v4418
      %v4434 = vmul.f32 %v4210, %v4418
      %v4435 = vmul.f32 %v4211, %v4418
      %v4436 = vmul.f32 %v4212, %v4418
      %v4437 = vmul.f32 %v4213, %v4418
      %v4438 = vmul.f32 %v4214, %v4418
      %v4439 = vmul.f32 %v4215, %v4418
      %v4440 = vmul.f32 %v4216, %v4418
      %v4441 = vmul.f32 %v4217, %v4418
      %v4442 = vmul.f32 %v4218, %v4418
      %v4443 = vmul.f32 %v4219, %v4418
      %v4444 = vmul.f32 %v4220, %v4418
      %v4445 = vmul.f32 %v4221, %v4418
      %v4446 = vmul.f32 %v4222, %v4418
      %v4447 = vmul.f32 %v4223, %v4418
      %v4448 = vmul.f32 %v4224, %v4418
      %v4449 = vmul.f32 %v4225, %v4418
      %v4450 = vmul.f32 %v4226, %v4418
      %v4451 = vmul.f32 %v4227, %v4418
      %v4453 = vlaneseq
      %v4454 = vshrl.u32 %v4453, 7
      %v4455 = vsub.s32 0, %v4454
      %v4456 = vrot.slane %v4413, %v4455
      %v4458 = vadd.f32 %v4420, %v4456
      %v4459 = vadd.f32 %v4421, %v4456
      %v4460 = vadd.f32 %v4422, %v4456
      %v4461 = vadd.f32 %v4423, %v4456
      %v4462 = vadd.f32 %v4424, %v4456
      %v4463 = vadd.f32 %v4425, %v4456
      %v4464 = vadd.f32 %v4426, %v4456
      %v4465 = vadd.f32 %v4427, %v4456
      %v4466 = vadd.f32 %v4428, %v4456
      %v4467 = vadd.f32 %v4429, %v4456
      %v4468 = vadd.f32 %v4430, %v4456
      %v4469 = vadd.f32 %v4431, %v4456
      %v4470 = vadd.f32 %v4432, %v4456
      %v4471 = vadd.f32 %v4433, %v4456
      %v4472 = vadd.f32 %v4434, %v4456
      %v4473 = vadd.f32 %v4435, %v4456
      %v4474 = vadd.f32 %v4436, %v4456
      %v4475 = vadd.f32 %v4437, %v4456
      %v4476 = vadd.f32 %v4438, %v4456
      %v4477 = vadd.f32 %v4439, %v4456
      %v4478 = vadd.f32 %v4440, %v4456
      %v4479 = vadd.f32 %v4441, %v4456
      %v4480 = vadd.f32 %v4442, %v4456
      %v4481 = vadd.f32 %v4443, %v4456
      %v4482 = vadd.f32 %v4444, %v4456
      %v4483 = vadd.f32 %v4445, %v4456
      %v4484 = vadd.f32 %v4446, %v4456
      %v4485 = vadd.f32 %v4447, %v4456
      %v4486 = vadd.f32 %v4448, %v4456
      %v4487 = vadd.f32 %v4449, %v4456
      %v4488 = vadd.f32 %v4450, %v4456
      %v4489 = vadd.f32 %v4451, %v4456
      %v4490 = vmax.f32 %v4458, 0.0
      %v4491 = vmax.f32 %v4459, 0.0
      %v4492 = vmax.f32 %v4460, 0.0
      %v4493 = vmax.f32 %v4461, 0.0
      %v4494 = vmax.f32 %v4462, 0.0
      %v4495 = vmax.f32 %v4463, 0.0
      %v4496 = vmax.f32 %v4464, 0.0
      %v4497 = vmax.f32 %v4465, 0.0
      %v4498 = vmax.f32 %v4466, 0.0
      %v4499 = vmax.f32 %v4467, 0.0
      %v4500 = vmax.f32 %v4468, 0.0
      %v4501 = vmax.f32 %v4469, 0.0
      %v4502 = vmax.f32 %v4470, 0.0
      %v4503 = vmax.f32 %v4471, 0.0
      %v4504 = vmax.f32 %v4472, 0.0
      %v4505 = vmax.f32 %v4473, 0.0
      %v4506 = vmax.f32 %v4474, 0.0
      %v4507 = vmax.f32 %v4475, 0.0
      %v4508 = vmax.f32 %v4476, 0.0
      %v4509 = vmax.f32 %v4477, 0.0
      %v4510 = vmax.f32 %v4478, 0.0
      %v4511 = vmax.f32 %v4479, 0.0
      %v4512 = vmax.f32 %v4480, 0.0
      %v4513 = vmax.f32 %v4481, 0.0
      %v4514 = vmax.f32 %v4482, 0.0
      %v4515 = vmax.f32 %v4483, 0.0
      %v4516 = vmax.f32 %v4484, 0.0
      %v4517 = vmax.f32 %v4485, 0.0
      %v4518 = vmax.f32 %v4486, 0.0
      %v4519 = vmax.f32 %v4487, 0.0
      %v4520 = vmax.f32 %v4488, 0.0
      %v4521 = vmax.f32 %v4489, 0.0
      %4522 = vst.msk [vmem:[%s366 + $0x1] sm:$0xff] %vm367, %v4490
      %4523 = vst.msk [vmem:[%s366 + $0x9] sm:$0xff] %vm367, %v4491
      %4524 = vst.msk [vmem:[%s366 + $0x19] sm:$0xff] %vm367, %v4492
      %4525 = vst.msk [vmem:[%s366 + $0x21] sm:$0xff] %vm367, %v4493
      %4526 = vst.msk [vmem:[%s366 + $0x31] sm:$0xff] %vm367, %v4494
      %4527 = vst.msk [vmem:[%s366 + $0x39] sm:$0xff] %vm367, %v4495
      %4528 = vst.msk [vmem:[%s366 + $0x49] sm:$0xff] %vm367, %v4496
      %4529 = vst.msk [vmem:[%s366 + $0x51] sm:$0xff] %vm367, %v4497
      %4530 = vst.msk [vmem:[%s366 + $0x61] sm:$0xff] %vm367, %v4498
      %4531 = vst.msk [vmem:[%s366 + $0x69] sm:$0xff] %vm367, %v4499
      %4532 = vst.msk [vmem:[%s366 + $0x79] sm:$0xff] %vm367, %v4500
      %4533 = vst.msk [vmem:[%s366 + $0x81] sm:$0xff] %vm367, %v4501
      %4534 = vst.msk [vmem:[%s366 + $0x91] sm:$0xff] %vm367, %v4502
      %4535 = vst.msk [vmem:[%s366 + $0x99] sm:$0xff] %vm367, %v4503
      %4536 = vst.msk [vmem:[%s366 + $0xa9] sm:$0xff] %vm367, %v4504
      %4537 = vst.msk [vmem:[%s366 + $0xb1] sm:$0xff] %vm367, %v4505
      %4538 = vst.msk [vmem:[%s366 + $0xc1] sm:$0xff] %vm367, %v4506
      %4539 = vst.msk [vmem:[%s366 + $0xc9] sm:$0xff] %vm367, %v4507
      %4540 = vst.msk [vmem:[%s366 + $0xd9] sm:$0xff] %vm367, %v4508
      %4541 = vst.msk [vmem:[%s366 + $0xe1] sm:$0xff] %vm367, %v4509
      %4542 = vst.msk [vmem:[%s366 + $0xf1] sm:$0xff] %vm367, %v4510
      %4543 = vst.msk [vmem:[%s366 + $0xf9] sm:$0xff] %vm367, %v4511
      %4544 = vst.msk [vmem:[%s366 + $0x109] sm:$0xff] %vm367, %v4512
      %4545 = vst.msk [vmem:[%s366 + $0x111] sm:$0xff] %vm367, %v4513
      %4546 = vst.msk [vmem:[%s366 + $0x121] sm:$0xff] %vm367, %v4514
      %4547 = vst.msk [vmem:[%s366 + $0x129] sm:$0xff] %vm367, %v4515
      %4548 = vst.msk [vmem:[%s366 + $0x139] sm:$0xff] %vm367, %v4516
      %4549 = vst.msk [vmem:[%s366 + $0x141] sm:$0xff] %vm367, %v4517
      %4550 = vst.msk [vmem:[%s366 + $0x151] sm:$0xff] %vm367, %v4518
      %4551 = vst.msk [vmem:[%s366 + $0x159] sm:$0xff] %vm367, %v4519
      %4552 = vst.msk [vmem:[%s366 + $0x169] sm:$0xff] %vm367, %v4520
      %4553 = vst.msk [vmem:[%s366 + $0x171] sm:$0xff] %vm367, %v4521
      %4554 = vst.msk [vmem:[#allocation2 + $0x1] sm:$0xff] %vm367, %v4492
      %4555 = vst.msk [vmem:[#allocation2 + $0x9] sm:$0xff] %vm367, %v4493
      %4556 = vst.msk [vmem:[%s402 + $0x1] sm:$0xff] %vm367, %v4518
      %4557 = vst.msk [vmem:[%s402 + $0x9] sm:$0xff] %vm367, %v4519
      %4558 = vst.msk [vmem:[%s405] sm:$0xff] %vm367, 0.0
      %4559 = vst.msk [vmem:[%s405 + $0x8] sm:$0xff] %vm367, 0.0
      %4560 = vst.msk [vmem:[%s405 + $0x10] sm:$0xff] %vm367, 0.0
      %4561 = vst.msk [vmem:[#allocation2 + $0x12] sm:$0x3f] %vm409, 0.0
      %4562 = vst.msk [vmem:[#allocation2 + $0x2a] sm:$0x3f] %vm409, 0.0
      %4563 = vst.msk [vmem:[#allocation2 + $0x42] sm:$0x3f] %vm409, 0.0
      %4564 = vst.msk [vmem:[#allocation2 + $0x5a] sm:$0x3f] %vm409, 0.0
      %4565 = vst.msk [vmem:[#allocation2 + $0x72] sm:$0x3f] %vm409, 0.0
      %4566 = vst.msk [vmem:[#allocation2 + $0x8a] sm:$0x3f] %vm409, 0.0
      %4567 = vst.msk [vmem:[#allocation2 + $0xa2] sm:$0x3f] %vm409, 0.0
      %4568 = vst.msk [vmem:[#allocation2 + $0xba] sm:$0x3f] %vm409, 0.0
      %4569 = vst.msk [vmem:[#allocation2 + $0xd2] sm:$0x3f] %vm409, 0.0
      %4570 = vst.msk [vmem:[#allocation2 + $0xea] sm:$0x3f] %vm409, 0.0
      %4571 = vst.msk [vmem:[#allocation2 + $0x102] sm:$0x3f] %vm409, 0.0
      %4572 = vst.msk [vmem:[#allocation2 + $0x11a] sm:$0x3f] %vm409, 0.0
      %4573 = vst.msk [vmem:[#allocation2 + $0x132] sm:$0x3f] %vm409, 0.0
      %4574 = vst.msk [vmem:[#allocation2 + $0x14a] sm:$0x3f] %vm409, 0.0
      %4575 = vst.msk [vmem:[#allocation2 + $0x162] sm:$0x3f] %vm409, 0.0
      %4576 = vst.msk [vmem:[#allocation2 + $0x17a] sm:$0x3f] %vm409, 0.0
      %4577 = vst.msk [vmem:[#allocation2 + $0x192] sm:$0x3f] %vm409, 0.0
      %4578 = vst.msk [vmem:[#allocation2 + $0x1aa] sm:$0x3f] %vm409, 0.0
      %4579 = vst.msk [vmem:[#allocation2 + $0x1c2] sm:$0x3f] %vm409, 0.0
      %v4580 = vld [vmem:[#allocation2 + $0x2] sm:$0x1]
      %v4581 = vld [vmem:[#allocation2 + $0x1a] sm:$0x1]
      %v4582 = vld [vmem:[#allocation2 + $0x32] sm:$0x1]
      %v4583 = vld [vmem:[#allocation2 + $0x4a] sm:$0x1]
      %v4584 = vld [vmem:[#allocation2 + $0x62] sm:$0x1]
      %v4585 = vld [vmem:[#allocation2 + $0x7a] sm:$0x1]
      %v4586 = vld [vmem:[#allocation2 + $0x92] sm:$0x1]
      %v4587 = vld [vmem:[#allocation2 + $0xaa] sm:$0x1]
      %v4588 = vld [vmem:[#allocation2 + $0xc2] sm:$0x1]
      %v4589 = vld [vmem:[#allocation2 + $0xda] sm:$0x1]
      %v4590 = vld [vmem:[#allocation2 + $0xf2] sm:$0x1]
      %v4591 = vld [vmem:[#allocation2 + $0x10a] sm:$0x1]
      %v4592 = vld [vmem:[#allocation2 + $0x122] sm:$0x1]
      %v4593 = vld [vmem:[#allocation2 + $0x13a] sm:$0x1]
      %v4594 = vld [vmem:[#allocation2 + $0x152] sm:$0x1]
      %v4595 = vld [vmem:[#allocation2 + $0x16a] sm:$0x1]
      %v4596 = vld [vmem:[#allocation2 + $0x182] sm:$0x1]
      %v4597 = vld [vmem:[#allocation2 + $0x19a] sm:$0x1]
      %v4598 = vld [vmem:[#allocation2 + $0x1b2] sm:$0x1]
      %4599 = vst.msk [vmem:[#allocation2] sm:$0x1] %vm448, %v4580
      %4600 = vst.msk [vmem:[#allocation2 + $0x18] sm:$0x1] %vm448, %v4581
      %4601 = vst.msk [vmem:[#allocation2 + $0x30] sm:$0x1] %vm448, %v4582
      %4602 = vst.msk [vmem:[#allocation2 + $0x48] sm:$0x1] %vm448, %v4583
      %4603 = vst.msk [vmem:[#allocation2 + $0x60] sm:$0x1] %vm448, %v4584
      %4604 = vst.msk [vmem:[#allocation2 + $0x78] sm:$0x1] %vm448, %v4585
      %4605 = vst.msk [vmem:[#allocation2 + $0x90] sm:$0x1] %vm448, %v4586
      %4606 = vst.msk [vmem:[#allocation2 + $0xa8] sm:$0x1] %vm448, %v4587
      %4607 = vst.msk [vmem:[#allocation2 + $0xc0] sm:$0x1] %vm448, %v4588
      %4608 = vst.msk [vmem:[#allocation2 + $0xd8] sm:$0x1] %vm448, %v4589
      %4609 = vst.msk [vmem:[#allocation2 + $0xf0] sm:$0x1] %vm448, %v4590
      %4610 = vst.msk [vmem:[#allocation2 + $0x108] sm:$0x1] %vm448, %v4591
      %4611 = vst.msk [vmem:[#allocation2 + $0x120] sm:$0x1] %vm448, %v4592
      %4612 = vst.msk [vmem:[#allocation2 + $0x138] sm:$0x1] %vm448, %v4593
      %4613 = vst.msk [vmem:[#allocation2 + $0x150] sm:$0x1] %vm448, %v4594
      %4614 = vst.msk [vmem:[#allocation2 + $0x168] sm:$0x1] %vm448, %v4595
      %4615 = vst.msk [vmem:[#allocation2 + $0x180] sm:$0x1] %vm448, %v4596
      %4616 = vst.msk [vmem:[#allocation2 + $0x198] sm:$0x1] %vm448, %v4597
      %4617 = vst.msk [vmem:[#allocation2 + $0x1b0] sm:$0x1] %vm448, %v4598
      %v4618 = vld [vmem:[#allocation2 + $0xf] sm:$0x1]
      %v4619 = vld [vmem:[#allocation2 + $0x27] sm:$0x1]
      %v4620 = vld [vmem:[#allocation2 + $0x3f] sm:$0x1]
      %v4621 = vld [vmem:[#allocation2 + $0x57] sm:$0x1]
      %v4622 = vld [vmem:[#allocation2 + $0x6f] sm:$0x1]
      %v4623 = vld [vmem:[#allocation2 + $0x87] sm:$0x1]
      %v4624 = vld [vmem:[#allocation2 + $0x9f] sm:$0x1]
      %v4625 = vld [vmem:[#allocation2 + $0xb7] sm:$0x1]
      %v4626 = vld [vmem:[#allocation2 + $0xcf] sm:$0x1]
      %v4627 = vld [vmem:[#allocation2 + $0xe7] sm:$0x1]
      %v4628 = vld [vmem:[#allocation2 + $0xff] sm:$0x1]
      %v4629 = vld [vmem:[#allocation2 + $0x117] sm:$0x1]
      %v4630 = vld [vmem:[#allocation2 + $0x12f] sm:$0x1]
      %v4631 = vld [vmem:[#allocation2 + $0x147] sm:$0x1]
      %v4632 = vld [vmem:[#allocation2 + $0x15f] sm:$0x1]
      %v4633 = vld [vmem:[#allocation2 + $0x177] sm:$0x1]
      %v4634 = vld [vmem:[#allocation2 + $0x18f] sm:$0x1]
      %v4635 = vld [vmem:[#allocation2 + $0x1a7] sm:$0x1]
      %v4636 = vld [vmem:[#allocation2 + $0x1bf] sm:$0x1]
      %4637 = vst.msk [vmem:[#allocation2 + $0x11] sm:$0x1] %vm448, %v4618
      %4638 = vst.msk [vmem:[#allocation2 + $0x29] sm:$0x1] %vm448, %v4619
      %4639 = vst.msk [vmem:[#allocation2 + $0x41] sm:$0x1] %vm448, %v4620
      %4640 = vst.msk [vmem:[#allocation2 + $0x59] sm:$0x1] %vm448, %v4621
      %4641 = vst.msk [vmem:[#allocation2 + $0x71] sm:$0x1] %vm448, %v4622
      %4642 = vst.msk [vmem:[#allocation2 + $0x89] sm:$0x1] %vm448, %v4623
      %4643 = vst.msk [vmem:[#allocation2 + $0xa1] sm:$0x1] %vm448, %v4624
      %4644 = vst.msk [vmem:[#allocation2 + $0xb9] sm:$0x1] %vm448, %v4625
      %4645 = vst.msk [vmem:[#allocation2 + $0xd1] sm:$0x1] %vm448, %v4626
      %4646 = vst.msk [vmem:[#allocation2 + $0xe9] sm:$0x1] %vm448, %v4627
      %4647 = vst.msk [vmem:[#allocation2 + $0x101] sm:$0x1] %vm448, %v4628
      %4648 = vst.msk [vmem:[#allocation2 + $0x119] sm:$0x1] %vm448, %v4629
      %4649 = vst.msk [vmem:[#allocation2 + $0x131] sm:$0x1] %vm448, %v4630
      %4650 = vst.msk [vmem:[#allocation2 + $0x149] sm:$0x1] %vm448, %v4631
      %4651 = vst.msk [vmem:[#allocation2 + $0x161] sm:$0x1] %vm448, %v4632
      %4652 = vst.msk [vmem:[#allocation2 + $0x179] sm:$0x1] %vm448, %v4633
      %4653 = vst.msk [vmem:[#allocation2 + $0x191] sm:$0x1] %vm448, %v4634
      %4654 = vst.msk [vmem:[#allocation2 + $0x1a9] sm:$0x1] %vm448, %v4635
      %4655 = vst.msk [vmem:[#allocation2 + $0x1c1] sm:$0x1] %vm448, %v4636
      %v4656 = vld [vmem:[#allocation2] sm:$0xff]
      %v4657 = vld [vmem:[#allocation2 + $0x8] sm:$0xff]
      %v4658 = vld [vmem:[#allocation2 + $0x10] sm:$0xff]
      %v4659 = vld [vmem:[#allocation2 + $0x18] sm:$0xff]
      %v4660 = vld [vmem:[#allocation2 + $0x20] sm:$0xff]
      %v4661 = vld [vmem:[#allocation2 + $0x28] sm:$0xff]
      %v4662 = vld [vmem:[#allocation2 + $0x30] sm:$0xff]
      %v4663 = vld [vmem:[#allocation2 + $0x38] sm:$0xff]
      %v4664 = vld [vmem:[#allocation2 + $0x40] sm:$0xff]
      %v4665 = vld [vmem:[#allocation2 + $0x48] sm:$0xff]
      %v4666 = vld [vmem:[#allocation2 + $0x50] sm:$0xff]
      %v4667 = vld [vmem:[#allocation2 + $0x58] sm:$0xff]
      %v4668 = vld [vmem:[#allocation2 + $0x60] sm:$0xff]
      %v4669 = vld [vmem:[#allocation2 + $0x68] sm:$0xff]
      %v4670 = vld [vmem:[#allocation2 + $0x70] sm:$0xff]
      %v4671 = vld [vmem:[#allocation2 + $0x78] sm:$0xff]
      %v4672 = vld [vmem:[#allocation2 + $0x80] sm:$0xff]
      %v4673 = vld [vmem:[#allocation2 + $0x88] sm:$0xff]
      %v4674 = vld [vmem:[#allocation2 + $0x90] sm:$0xff]
      %v4675 = vld [vmem:[#allocation2 + $0x98] sm:$0xff]
      %v4676 = vld [vmem:[#allocation2 + $0xa0] sm:$0xff]
      %v4677 = vld [vmem:[#allocation2 + $0xa8] sm:$0xff]
      %v4678 = vld [vmem:[#allocation2 + $0xb0] sm:$0xff]
      %v4679 = vld [vmem:[#allocation2 + $0xb8] sm:$0xff]
      %v4680 = vld [vmem:[#allocation2 + $0xc0] sm:$0xff]
      %v4681 = vld [vmem:[#allocation2 + $0xc8] sm:$0xff]
      %v4682 = vld [vmem:[#allocation2 + $0xd0] sm:$0xff]
      %v4683 = vld [vmem:[#allocation2 + $0xd8] sm:$0xff]
      %v4684 = vld [vmem:[#allocation2 + $0xe0] sm:$0xff]
      %v4685 = vld [vmem:[#allocation2 + $0xe8] sm:$0xff]
      %v4686 = vld [vmem:[#allocation2 + $0xf0] sm:$0xff]
      %v4687 = vld [vmem:[#allocation2 + $0xf8] sm:$0xff]
      %v4688 = vld [vmem:[#allocation2 + $0x100] sm:$0xff]
      %v4689 = vld [vmem:[#allocation2 + $0x108] sm:$0xff]
      %v4690 = vld [vmem:[#allocation2 + $0x110] sm:$0xff]
      %v4691 = vld [vmem:[#allocation2 + $0x118] sm:$0xff]
      %v4692 = vld [vmem:[#allocation2 + $0x120] sm:$0xff]
      %v4693 = vld [vmem:[#allocation2 + $0x128] sm:$0xff]
      %v4694 = vld [vmem:[#allocation2 + $0x130] sm:$0xff]
      %v4695 = vld [vmem:[#allocation2 + $0x138] sm:$0xff]
      %v4696 = vld [vmem:[#allocation2 + $0x140] sm:$0xff]
      %v4697 = vld [vmem:[#allocation2 + $0x148] sm:$0xff]
      %v4698 = vld [vmem:[#allocation2 + $0x150] sm:$0xff]
      %v4699 = vld [vmem:[#allocation2 + $0x158] sm:$0xff]
      %v4700 = vld [vmem:[#allocation2 + $0x160] sm:$0xff]
      %v4701 = vld [vmem:[#allocation2 + $0x168] sm:$0xff]
      %v4702 = vld [vmem:[#allocation2 + $0x170] sm:$0xff]
      %v4703 = vld [vmem:[#allocation2 + $0x178] sm:$0xff]
      %v4704 = vld [vmem:[#allocation2 + $0x180] sm:$0xff]
      %v4705 = vld [vmem:[#allocation2 + $0x188] sm:$0xff]
      %v4706 = vld [vmem:[#allocation2 + $0x190] sm:$0xff]
      %v4707 = vld [vmem:[#allocation2 + $0x198] sm:$0xff]
      %v4708 = vld [vmem:[#allocation2 + $0x1a0] sm:$0xff]
      %v4709 = vld [vmem:[#allocation2 + $0x1a8] sm:$0xff]
      %v4710 = vld [vmem:[#allocation2 + $0x1b0] sm:$0xff]
      %v4711 = vld [vmem:[#allocation2 + $0x1b8] sm:$0xff]
      %v4712 = vld [vmem:[#allocation2 + $0x1c0] sm:$0xff]
      %v4713 = vpack.c.bf16 %v4657, %v4656
      %v4714 = vpack.c.bf16 %v4659, %v4658
      %v4715 = vpack.c.bf16 %v4661, %v4660
      %v4716 = vpack.c.bf16 %v4663, %v4662
      %v4717 = vpack.c.bf16 %v4665, %v4664
      %v4718 = vpack.c.bf16 %v4667, %v4666
      %v4719 = vpack.c.bf16 %v4669, %v4668
      %v4720 = vpack.c.bf16 %v4671, %v4670
      %v4721 = vpack.c.bf16 %v4673, %v4672
      %v4722 = vpack.c.bf16 %v4675, %v4674
      %v4723 = vpack.c.bf16 %v4677, %v4676
      %v4724 = vpack.c.bf16 %v4679, %v4678
      %v4725 = vpack.c.bf16 %v4681, %v4680
      %v4726 = vpack.c.bf16 %v4683, %v4682
      %v4727 = vpack.c.bf16 %v4685, %v4684
      %v4728 = vpack.c.bf16 %v4687, %v4686
      %v4729 = vpack.c.bf16 %v4689, %v4688
      %v4730 = vpack.c.bf16 %v4691, %v4690
      %v4731 = vpack.c.bf16 %v4693, %v4692
      %v4732 = vpack.c.bf16 %v4695, %v4694
      %v4733 = vpack.c.bf16 %v4697, %v4696
      %v4734 = vpack.c.bf16 %v4699, %v4698
      %v4735 = vpack.c.bf16 %v4701, %v4700
      %v4736 = vpack.c.bf16 %v4703, %v4702
      %v4737 = vpack.c.bf16 %v4705, %v4704
      %v4738 = vpack.c.bf16 %v4707, %v4706
      %v4739 = vpack.c.bf16 %v4709, %v4708
      %v4740 = vpack.c.bf16 %v4711, %v4710
      %v4741 = vpack.c.bf16 %v4712, %v4712
      %v4742 = vld [vmem:[%s6] sm:$0x1]
      %v4744 = vlaneseq
      %v4745 = vshrl.u32 %v4744, 7
      %v4746 = vsub.s32 0, %v4745
      %v4747 = vrot.slane %v4742, %v4746
      %v4749 = vld [vmem:[%s5] sm:$0x3]
      %v4751 = vsel %vm367, %v4713, 0
      %v4754 = vsel %vm367, %v4714, 0
      %v4757 = vsel %vm367, %v4715, 0
      %v4760 = vsel %vm367, %v4716, 0
      %v4763 = vsel %vm367, %v4717, 0
      %v4766 = vsel %vm367, %v4718, 0
      %v4769 = vsel %vm367, %v4719, 0
      %v4772 = vsel %vm367, %v4720, 0
      %v4775 = vsel %vm367, %v4721, 0
      %v4778 = vsel %vm367, %v4722, 0
      %v4781 = vsel %vm367, %v4723, 0
      %v4784 = vsel %vm367, %v4724, 0
      %v4787 = vsel %vm367, %v4725, 0
      %v4790 = vsel %vm367, %v4726, 0
      %v4793 = vsel %vm367, %v4727, 0
      %v4796 = vsel %vm367, %v4728, 0
      %v4799 = vsel %vm367, %v4729, 0
      %v4802 = vsel %vm367, %v4730, 0
      %v4805 = vsel %vm367, %v4731, 0
      %v4808 = vsel %vm367, %v4732, 0
      %v4811 = vsel %vm367, %v4733, 0
      %v4814 = vsel %vm367, %v4734, 0
      %v4817 = vsel %vm367, %v4735, 0
      %v4820 = vsel %vm367, %v4736, 0
      %v4823 = vsel %vm367, %v4737, 0
      %v4826 = vsel %vm367, %v4738, 0
      %v4829 = vsel %vm367, %v4739, 0
      %v4832 = vsel %vm367, %v4740, 0
      %v4835 = vsel %vm367, %v4741, 0
      %v4838 = vsel %vm687, %v4749, 0
      %4840 = vmatprep.subr.bf16.mxu0 0
      %4841 = vmatpush1.bf16.msra.mxu0 %v4838
      %4842 = vmatprep.subr.bf16.mxu0 0
      %4843 = vmatpush1.bf16.msra.mxu0 0
      %4844 = vmatprep.subr.bf16.mxu0 0
      %4845 = vmatpush1.bf16.msra.mxu0 0
      %4846 = vmatprep.subr.bf16.mxu0 0
      %4847 = vmatpush1.bf16.msra.mxu0 0
      %4848 = vmatprep.subr.bf16.mxu0 0
      %4849 = vmatpush1.bf16.msra.mxu0 0
      %4850 = vmatprep.subr.bf16.mxu0 0
      %4851 = vmatpush1.bf16.msra.mxu0 0
      %4852 = vmatprep.subr.bf16.mxu0 0
      %4853 = vmatpush1.bf16.msra.mxu0 0
      %4854 = vmatprep.subr.bf16.mxu0 0
      %4855 = vmatpush1.bf16.msra.mxu0 0
      %4856 = vmatprep.subr.bf16.mxu0 0
      %4857 = vmatpush1.bf16.msra.mxu0 0
      %4858 = vmatprep.subr.bf16.mxu0 0
      %4859 = vmatpush1.bf16.msra.mxu0 0
      %4860 = vmatprep.subr.bf16.mxu0 0
      %4861 = vmatpush1.bf16.msra.mxu0 0
      %4862 = vmatprep.subr.bf16.mxu0 0
      %4863 = vmatpush1.bf16.msra.mxu0 0
      %4864 = vmatprep.subr.bf16.mxu0 0
      %4865 = vmatpush1.bf16.msra.mxu0 0
      %4866 = vmatprep.subr.bf16.mxu0 0
      %4867 = vmatpush1.bf16.msra.mxu0 0
      %4868 = vmatprep.subr.bf16.mxu0 0
      %4869 = vmatpush1.bf16.msra.mxu0 0
      %4870 = vmatprep.subr.bf16.mxu0 0
      %4871 = vmatpush1.bf16.msra.mxu0 0
      %4872 = vmatprep.mubr.bf16.mxu0 0
      %4873 = vmatmul.mubr.bf16.gmra.mrb[0].mxu0 %v4751
      %v4874 = vpop.f32.mrb[0].mxu0
      %v4875 = vadd.f32 0.0, %v4874
      %v4876 = vpop.f32.mrb[0].mxu0
      %v4877 = vpop.f32.mrb[0].mxu0
      %v4878 = vadd.f32 0.0, %v4877
      %v4879 = vpop.f32.mrb[0].mxu0
      %4880 = vmatprep.mubr.bf16.mxu0 0
      %4881 = vmatmul.mubr.bf16.gmra.mrb[0].mxu0 %v4754
      %v4882 = vpop.f32.mrb[0].mxu0
      %v4883 = vpop.f32.mrb[0].mxu0
      %v4884 = vpop.f32.mrb[0].mxu0
      %v4885 = vadd.f32 0.0, %v4884
      %v4886 = vpop.f32.mrb[0].mxu0
      %4887 = vmatprep.mubr.bf16.mxu0 0
      %4888 = vmatmul.mubr.bf16.gmra.mrb[0].mxu0 %v4757
      %v4889 = vpop.f32.mrb[0].mxu0
      %v4890 = vadd.f32 0.0, %v4889
      %v4891 = vpop.f32.mrb[0].mxu0
      %v4892 = vpop.f32.mrb[0].mxu0
      %v4893 = vpop.f32.mrb[0].mxu0
      %4894 = vmatprep.mubr.bf16.mxu0 0
      %4895 = vmatmul.mubr.bf16.gmra.mrb[0].mxu0 %v4760
      %v4896 = vpop.f32.mrb[0].mxu0
      %v4897 = vadd.f32 0.0, %v4896
      %v4898 = vpop.f32.mrb[0].mxu0
      %v4899 = vpop.f32.mrb[0].mxu0
      %v4900 = vadd.f32 0.0, %v4899
      %v4901 = vpop.f32.mrb[0].mxu0
      %4902 = vmatprep.mubr.bf16.mxu0 0
      %4903 = vmatmul.mubr.bf16.gmra.mrb[0].mxu0 %v4763
      %v4904 = vpop.f32.mrb[0].mxu0
      %v4905 = vpop.f32.mrb[0].mxu0
      %v4906 = vpop.f32.mrb[0].mxu0
      %v4907 = vadd.f32 0.0, %v4906
      %v4908 = vpop.f32.mrb[0].mxu0
      %4909 = vmatprep.mubr.bf16.mxu0 0
      %4910 = vmatmul.mubr.bf16.gmra.mrb[0].mxu0 %v4766
      %v4911 = vpop.f32.mrb[0].mxu0
      %v4912 = vadd.f32 0.0, %v4911
      %v4913 = vpop.f32.mrb[0].mxu0
      %v4914 = vpop.f32.mrb[0].mxu0
      %v4915 = vpop.f32.mrb[0].mxu0
      %4916 = vmatprep.mubr.bf16.mxu0 0
      %4917 = vmatmul.mubr.bf16.gmra.mrb[0].mxu0 %v4769
      %v4918 = vpop.f32.mrb[0].mxu0
      %v4919 = vadd.f32 0.0, %v4918
      %v4920 = vpop.f32.mrb[0].mxu0
      %v4921 = vpop.f32.mrb[0].mxu0
      %v4922 = vadd.f32 0.0, %v4921
      %v4923 = vpop.f32.mrb[0].mxu0
      %4924 = vmatprep.mubr.bf16.mxu0 0
      %4925 = vmatmul.mubr.bf16.gmra.mrb[0].mxu0 %v4772
      %v4926 = vpop.f32.mrb[0].mxu0
      %v4927 = vpop.f32.mrb[0].mxu0
      %v4928 = vpop.f32.mrb[0].mxu0
      %v4929 = vadd.f32 0.0, %v4928
      %v4930 = vpop.f32.mrb[0].mxu0
      %4931 = vmatprep.mubr.bf16.mxu0 0
      %4932 = vmatmul.mubr.bf16.gmra.mrb[0].mxu0 %v4775
      %v4933 = vpop.f32.mrb[0].mxu0
      %v4934 = vadd.f32 0.0, %v4933
      %v4935 = vpop.f32.mrb[0].mxu0
      %v4936 = vpop.f32.mrb[0].mxu0
      %v4937 = vpop.f32.mrb[0].mxu0
      %4938 = vmatprep.mubr.bf16.mxu0 0
      %4939 = vmatmul.mubr.bf16.gmra.mrb[0].mxu0 %v4778
      %v4940 = vpop.f32.mrb[0].mxu0
      %v4941 = vadd.f32 0.0, %v4940
      %v4942 = vpop.f32.mrb[0].mxu0
      %v4943 = vpop.f32.mrb[0].mxu0
      %v4944 = vadd.f32 0.0, %v4943
      %v4945 = vpop.f32.mrb[0].mxu0
      %4946 = vmatprep.mubr.bf16.mxu0 0
      %4947 = vmatmul.mubr.bf16.gmra.mrb[0].mxu0 %v4781
      %v4948 = vpop.f32.mrb[0].mxu0
      %v4949 = vpop.f32.mrb[0].mxu0
      %v4950 = vpop.f32.mrb[0].mxu0
      %v4951 = vadd.f32 0.0, %v4950
      %v4952 = vpop.f32.mrb[0].mxu0
      %4953 = vmatprep.mubr.bf16.mxu0 0
      %4954 = vmatmul.mubr.bf16.gmra.mrb[0].mxu0 %v4784
      %v4955 = vpop.f32.mrb[0].mxu0
      %v4956 = vadd.f32 0.0, %v4955
      %v4957 = vpop.f32.mrb[0].mxu0
      %v4958 = vpop.f32.mrb[0].mxu0
      %v4959 = vpop.f32.mrb[0].mxu0
      %4960 = vmatprep.mubr.bf16.mxu0 0
      %4961 = vmatmul.mubr.bf16.gmra.mrb[0].mxu0 %v4787
      %v4962 = vpop.f32.mrb[0].mxu0
      %v4963 = vadd.f32 0.0, %v4962
      %v4964 = vpop.f32.mrb[0].mxu0
      %v4965 = vpop.f32.mrb[0].mxu0
      %v4966 = vadd.f32 0.0, %v4965
      %v4967 = vpop.f32.mrb[0].mxu0
      %4968 = vmatprep.mubr.bf16.mxu0 0
      %4969 = vmatmul.mubr.bf16.gmra.mrb[0].mxu0 %v4790
      %v4970 = vpop.f32.mrb[0].mxu0
      %v4971 = vpop.f32.mrb[0].mxu0
      %v4972 = vpop.f32.mrb[0].mxu0
      %v4973 = vadd.f32 0.0, %v4972
      %v4974 = vpop.f32.mrb[0].mxu0
      %4975 = vmatprep.mubr.bf16.mxu0 0
      %4976 = vmatmul.mubr.bf16.gmra.mrb[0].mxu0 %v4793
      %v4977 = vpop.f32.mrb[0].mxu0
      %v4978 = vadd.f32 0.0, %v4977
      %v4979 = vpop.f32.mrb[0].mxu0
      %v4980 = vpop.f32.mrb[0].mxu0
      %v4981 = vpop.f32.mrb[0].mxu0
      %4982 = vmatprep.mubr.bf16.mxu0 0
      %4983 = vmatmul.mubr.bf16.gmra.mrb[0].mxu0 %v4796
      %v4984 = vpop.f32.mrb[0].mxu0
      %v4985 = vadd.f32 0.0, %v4984
      %v4986 = vpop.f32.mrb[0].mxu0
      %v4987 = vpop.f32.mrb[0].mxu0
      %v4988 = vadd.f32 0.0, %v4987
      %v4989 = vpop.f32.mrb[0].mxu0
      %4990 = vmatprep.mubr.bf16.mxu0 0
      %4991 = vmatmul.mubr.bf16.gmra.mrb[0].mxu0 %v4799
      %v4992 = vpop.f32.mrb[0].mxu0
      %v4993 = vpop.f32.mrb[0].mxu0
      %v4994 = vpop.f32.mrb[0].mxu0
      %v4995 = vadd.f32 0.0, %v4994
      %v4996 = vpop.f32.mrb[0].mxu0
      %4997 = vmatprep.mubr.bf16.mxu0 0
      %4998 = vmatmul.mubr.bf16.gmra.mrb[0].mxu0 %v4802
      %v4999 = vpop.f32.mrb[0].mxu0
      %v5000 = vadd.f32 0.0, %v4999
      %v5001 = vpop.f32.mrb[0].mxu0
      %v5002 = vpop.f32.mrb[0].mxu0
      %v5003 = vpop.f32.mrb[0].mxu0
      %5004 = vmatprep.mubr.bf16.mxu0 0
      %5005 = vmatmul.mubr.bf16.gmra.mrb[0].mxu0 %v4805
      %v5006 = vpop.f32.mrb[0].mxu0
      %v5007 = vadd.f32 0.0, %v5006
      %v5008 = vpop.f32.mrb[0].mxu0
      %v5009 = vpop.f32.mrb[0].mxu0
      %v5010 = vadd.f32 0.0, %v5009
      %v5011 = vpop.f32.mrb[0].mxu0
      %5012 = vmatprep.mubr.bf16.mxu0 0
      %5013 = vmatmul.mubr.bf16.gmra.mrb[0].mxu0 %v4808
      %v5014 = vpop.f32.mrb[0].mxu0
      %v5015 = vpop.f32.mrb[0].mxu0
      %v5016 = vpop.f32.mrb[0].mxu0
      %v5017 = vadd.f32 0.0, %v5016
      %v5018 = vpop.f32.mrb[0].mxu0
      %5019 = vmatprep.mubr.bf16.mxu0 0
      %5020 = vmatmul.mubr.bf16.gmra.mrb[0].mxu0 %v4811
      %v5021 = vpop.f32.mrb[0].mxu0
      %v5022 = vadd.f32 0.0, %v5021
      %v5023 = vpop.f32.mrb[0].mxu0
      %v5024 = vpop.f32.mrb[0].mxu0
      %v5025 = vpop.f32.mrb[0].mxu0
      %5026 = vmatprep.mubr.bf16.mxu0 0
      %5027 = vmatmul.mubr.bf16.gmra.mrb[0].mxu0 %v4814
      %v5028 = vpop.f32.mrb[0].mxu0
      %v5029 = vadd.f32 0.0, %v5028
      %v5030 = vpop.f32.mrb[0].mxu0
      %v5031 = vpop.f32.mrb[0].mxu0
      %v5032 = vadd.f32 0.0, %v5031
      %v5033 = vpop.f32.mrb[0].mxu0
      %5034 = vmatprep.mubr.bf16.mxu0 0
      %5035 = vmatmul.mubr.bf16.gmra.mrb[0].mxu0 %v4817
      %v5036 = vpop.f32.mrb[0].mxu0
      %v5037 = vpop.f32.mrb[0].mxu0
      %v5038 = vpop.f32.mrb[0].mxu0
      %v5039 = vadd.f32 0.0, %v5038
      %v5040 = vpop.f32.mrb[0].mxu0
      %5041 = vmatprep.mubr.bf16.mxu0 0
      %5042 = vmatmul.mubr.bf16.gmra.mrb[0].mxu0 %v4820
      %v5043 = vpop.f32.mrb[0].mxu0
      %v5044 = vadd.f32 0.0, %v5043
      %v5045 = vpop.f32.mrb[0].mxu0
      %v5046 = vpop.f32.mrb[0].mxu0
      %v5047 = vpop.f32.mrb[0].mxu0
      %5048 = vmatprep.mubr.bf16.mxu0 0
      %5049 = vmatmul.mubr.bf16.gmra.mrb[0].mxu0 %v4823
      %v5050 = vpop.f32.mrb[0].mxu0
      %v5051 = vpop.f32.mrb[0].mxu0
      %v5052 = vpop.f32.mrb[0].mxu0
      %v5053 = vpop.f32.mrb[0].mxu0
      %5054 = vmatprep.mubr.bf16.mxu0 0
      %5055 = vmatmul.mubr.bf16.gmra.mrb[0].mxu0 %v4826
      %v5056 = vpop.f32.mrb[0].mxu0
      %v5057 = vpop.f32.mrb[0].mxu0
      %v5058 = vpop.f32.mrb[0].mxu0
      %v5059 = vpop.f32.mrb[0].mxu0
      %5060 = vmatprep.mubr.bf16.mxu0 0
      %5061 = vmatmul.mubr.bf16.gmra.mrb[0].mxu0 %v4829
      %v5062 = vpop.f32.mrb[0].mxu0
      %v5063 = vpop.f32.mrb[0].mxu0
      %v5064 = vpop.f32.mrb[0].mxu0
      %v5065 = vpop.f32.mrb[0].mxu0
      %5066 = vmatprep.mubr.bf16.mxu0 0
      %5067 = vmatmul.mubr.bf16.gmra.mrb[0].mxu0 %v4832
      %v5068 = vpop.f32.mrb[0].mxu0
      %v5069 = vpop.f32.mrb[0].mxu0
      %v5070 = vpop.f32.mrb[0].mxu0
      %v5071 = vpop.f32.mrb[0].mxu0
      %5072 = vmatprep.mubr.bf16.mxu0 0
      %5073 = vmatmul.mubr.bf16.gmra.mrb[0].mxu0 %v4835
      %v5074 = vpop.f32.mrb[0].mxu0
      %v5075 = vpop.f32.mrb[0].mxu0
      %v5076 = vpop.f32.mrb[0].mxu0
      %v5077 = vpop.f32.mrb[0].mxu0
      %5078 = vdwg.mxu0
      %v5079 = vadd.f32 %v4747, %v4875
      %v5080 = vadd.f32 %v4747, %v4878
      %v5081 = vadd.f32 %v4747, %v4885
      %v5082 = vadd.f32 %v4747, %v4890
      %v5083 = vadd.f32 %v4747, %v4897
      %v5084 = vadd.f32 %v4747, %v4900
      %v5085 = vadd.f32 %v4747, %v4907
      %v5086 = vadd.f32 %v4747, %v4912
      %v5087 = vadd.f32 %v4747, %v4919
      %v5088 = vadd.f32 %v4747, %v4922
      %v5089 = vadd.f32 %v4747, %v4929
      %v5090 = vadd.f32 %v4747, %v4934
      %v5091 = vadd.f32 %v4747, %v4941
      %v5092 = vadd.f32 %v4747, %v4944
      %v5093 = vadd.f32 %v4747, %v4951
      %v5094 = vadd.f32 %v4747, %v4956
      %v5095 = vadd.f32 %v4747, %v4963
      %v5096 = vadd.f32 %v4747, %v4966
      %v5097 = vadd.f32 %v4747, %v4973
      %v5098 = vadd.f32 %v4747, %v4978
      %v5099 = vadd.f32 %v4747, %v4985
      %v5100 = vadd.f32 %v4747, %v4988
      %v5101 = vadd.f32 %v4747, %v4995
      %v5102 = vadd.f32 %v4747, %v5000
      %v5103 = vadd.f32 %v4747, %v5007
      %v5104 = vadd.f32 %v4747, %v5010
      %v5105 = vadd.f32 %v4747, %v5017
      %v5106 = vadd.f32 %v4747, %v5022
      %v5107 = vadd.f32 %v4747, %v5029
      %v5108 = vadd.f32 %v4747, %v5032
      %v5109 = vadd.f32 %v4747, %v5039
      %v5110 = vadd.f32 %v4747, %v5044
      %s5111 = scalar_lea.vmem %s5, 2
      %v5112 = vld [vmem:[%s5111] sm:$0x3]
      %v5114 = vsel %vm687, %v5112, 0
      %5116 = vmatprep.subr.bf16.mxu0 0
      %5117 = vmatpush1.bf16.msra.mxu0 %v5114
      %5118 = vmatprep.subr.bf16.mxu0 0
      %5119 = vmatpush1.bf16.msra.mxu0 0
      %5120 = vmatprep.subr.bf16.mxu0 0
      %5121 = vmatpush1.bf16.msra.mxu0 0
      %5122 = vmatprep.subr.bf16.mxu0 0
      %5123 = vmatpush1.bf16.msra.mxu0 0
      %5124 = vmatprep.subr.bf16.mxu0 0
      %5125 = vmatpush1.bf16.msra.mxu0 0
      %5126 = vmatprep.subr.bf16.mxu0 0
      %5127 = vmatpush1.bf16.msra.mxu0 0
      %5128 = vmatprep.subr.bf16.mxu0 0
      %5129 = vmatpush1.bf16.msra.mxu0 0
      %5130 = vmatprep.subr.bf16.mxu0 0
      %5131 = vmatpush1.bf16.msra.mxu0 0
      %5132 = vmatprep.subr.bf16.mxu0 0
      %5133 = vmatpush1.bf16.msra.mxu0 0
      %5134 = vmatprep.subr.bf16.mxu0 0
      %5135 = vmatpush1.bf16.msra.mxu0 0
      %5136 = vmatprep.subr.bf16.mxu0 0
      %5137 = vmatpush1.bf16.msra.mxu0 0
      %5138 = vmatprep.subr.bf16.mxu0 0
      %5139 = vmatpush1.bf16.msra.mxu0 0
      %5140 = vmatprep.subr.bf16.mxu0 0
      %5141 = vmatpush1.bf16.msra.mxu0 0
      %5142 = vmatprep.subr.bf16.mxu0 0
      %5143 = vmatpush1.bf16.msra.mxu0 0
      %5144 = vmatprep.subr.bf16.mxu0 0
      %5145 = vmatpush1.bf16.msra.mxu0 0
      %5146 = vmatprep.subr.bf16.mxu0 0
      %5147 = vmatpush1.bf16.msra.mxu0 0
      %5148 = vmatprep.mubr.bf16.mxu0 0
      %5149 = vmatmul.mubr.bf16.gmra.mrb[0].mxu0 %v4751
      %v5150 = vpop.f32.mrb[0].mxu0
      %v5151 = vadd.f32 0.0, %v5150
      %v5152 = vpop.f32.mrb[0].mxu0
      %v5153 = vpop.f32.mrb[0].mxu0
      %v5154 = vadd.f32 0.0, %v5153
      %v5155 = vpop.f32.mrb[0].mxu0
      %5156 = vmatprep.mubr.bf16.mxu0 0
      %5157 = vmatmul.mubr.bf16.gmra.mrb[0].mxu0 %v4754
      %v5158 = vpop.f32.mrb[0].mxu0
      %v5159 = vadd.f32 0.0, %v5158
      %v5160 = vpop.f32.mrb[0].mxu0
      %v5161 = vpop.f32.mrb[0].mxu0
      %v5162 = vadd.f32 0.0, %v5161
      %v5163 = vpop.f32.mrb[0].mxu0
      %5164 = vmatprep.mubr.bf16.mxu0 0
      %5165 = vmatmul.mubr.bf16.gmra.mrb[0].mxu0 %v4757
      %v5166 = vpop.f32.mrb[0].mxu0
      %v5167 = vadd.f32 0.0, %v5166
      %v5168 = vpop.f32.mrb[0].mxu0
      %v5169 = vpop.f32.mrb[0].mxu0
      %v5170 = vadd.f32 0.0, %v5169
      %v5171 = vpop.f32.mrb[0].mxu0
      %5172 = vmatprep.mubr.bf16.mxu0 0
      %5173 = vmatmul.mubr.bf16.gmra.mrb[0].mxu0 %v4760
      %v5174 = vpop.f32.mrb[0].mxu0
      %v5175 = vadd.f32 0.0, %v5174
      %v5176 = vpop.f32.mrb[0].mxu0
      %v5177 = vpop.f32.mrb[0].mxu0
      %v5178 = vadd.f32 0.0, %v5177
      %v5179 = vpop.f32.mrb[0].mxu0
      %5180 = vmatprep.mubr.bf16.mxu0 0
      %5181 = vmatmul.mubr.bf16.gmra.mrb[0].mxu0 %v4763
      %v5182 = vpop.f32.mrb[0].mxu0
      %v5183 = vadd.f32 0.0, %v5182
      %v5184 = vpop.f32.mrb[0].mxu0
      %v5185 = vpop.f32.mrb[0].mxu0
      %v5186 = vadd.f32 0.0, %v5185
      %v5187 = vpop.f32.mrb[0].mxu0
      %5188 = vmatprep.mubr.bf16.mxu0 0
      %5189 = vmatmul.mubr.bf16.gmra.mrb[0].mxu0 %v4766
      %v5190 = vpop.f32.mrb[0].mxu0
      %v5191 = vadd.f32 0.0, %v5190
      %v5192 = vpop.f32.mrb[0].mxu0
      %v5193 = vpop.f32.mrb[0].mxu0
      %v5194 = vadd.f32 0.0, %v5193
      %v5195 = vpop.f32.mrb[0].mxu0
      %5196 = vmatprep.mubr.bf16.mxu0 0
      %5197 = vmatmul.mubr.bf16.gmra.mrb[0].mxu0 %v4769
      %v5198 = vpop.f32.mrb[0].mxu0
      %v5199 = vadd.f32 0.0, %v5198
      %v5200 = vpop.f32.mrb[0].mxu0
      %v5201 = vpop.f32.mrb[0].mxu0
      %v5202 = vadd.f32 0.0, %v5201
      %v5203 = vpop.f32.mrb[0].mxu0
      %5204 = vmatprep.mubr.bf16.mxu0 0
      %5205 = vmatmul.mubr.bf16.gmra.mrb[0].mxu0 %v4772
      %v5206 = vpop.f32.mrb[0].mxu0
      %v5207 = vadd.f32 0.0, %v5206
      %v5208 = vpop.f32.mrb[0].mxu0
      %v5209 = vpop.f32.mrb[0].mxu0
      %v5210 = vadd.f32 0.0, %v5209
      %v5211 = vpop.f32.mrb[0].mxu0
      %5212 = vmatprep.mubr.bf16.mxu0 0
      %5213 = vmatmul.mubr.bf16.gmra.mrb[0].mxu0 %v4775
      %v5214 = vpop.f32.mrb[0].mxu0
      %v5215 = vadd.f32 0.0, %v5214
      %v5216 = vpop.f32.mrb[0].mxu0
      %v5217 = vpop.f32.mrb[0].mxu0
      %v5218 = vadd.f32 0.0, %v5217
      %v5219 = vpop.f32.mrb[0].mxu0
      %5220 = vmatprep.mubr.bf16.mxu0 0
      %5221 = vmatmul.mubr.bf16.gmra.mrb[0].mxu0 %v4778
      %v5222 = vpop.f32.mrb[0].mxu0
      %v5223 = vadd.f32 0.0, %v5222
      %v5224 = vpop.f32.mrb[0].mxu0
      %v5225 = vpop.f32.mrb[0].mxu0
      %v5226 = vadd.f32 0.0, %v5225
      %v5227 = vpop.f32.mrb[0].mxu0
      %5228 = vmatprep.mubr.bf16.mxu0 0
      %5229 = vmatmul.mubr.bf16.gmra.mrb[0].mxu0 %v4781
      %v5230 = vpop.f32.mrb[0].mxu0
      %v5231 = vadd.f32 0.0, %v5230
      %v5232 = vpop.f32.mrb[0].mxu0
      %v5233 = vpop.f32.mrb[0].mxu0
      %v5234 = vadd.f32 0.0, %v5233
      %v5235 = vpop.f32.mrb[0].mxu0
      %5236 = vmatprep.mubr.bf16.mxu0 0
      %5237 = vmatmul.mubr.bf16.gmra.mrb[0].mxu0 %v4784
      %v5238 = vpop.f32.mrb[0].mxu0
      %v5239 = vadd.f32 0.0, %v5238
      %v5240 = vpop.f32.mrb[0].mxu0
      %v5241 = vpop.f32.mrb[0].mxu0
      %v5242 = vadd.f32 0.0, %v5241
      %v5243 = vpop.f32.mrb[0].mxu0
      %5244 = vmatprep.mubr.bf16.mxu0 0
      %5245 = vmatmul.mubr.bf16.gmra.mrb[0].mxu0 %v4787
      %v5246 = vpop.f32.mrb[0].mxu0
      %v5247 = vadd.f32 0.0, %v5246
      %v5248 = vpop.f32.mrb[0].mxu0
      %v5249 = vpop.f32.mrb[0].mxu0
      %v5250 = vadd.f32 0.0, %v5249
      %v5251 = vpop.f32.mrb[0].mxu0
      %5252 = vmatprep.mubr.bf16.mxu0 0
      %5253 = vmatmul.mubr.bf16.gmra.mrb[0].mxu0 %v4790
      %v5254 = vpop.f32.mrb[0].mxu0
      %v5255 = vadd.f32 0.0, %v5254
      %v5256 = vpop.f32.mrb[0].mxu0
      %v5257 = vpop.f32.mrb[0].mxu0
      %v5258 = vadd.f32 0.0, %v5257
      %v5259 = vpop.f32.mrb[0].mxu0
      %5260 = vmatprep.mubr.bf16.mxu0 0
      %5261 = vmatmul.mubr.bf16.gmra.mrb[0].mxu0 %v4793
      %v5262 = vpop.f32.mrb[0].mxu0
      %v5263 = vadd.f32 0.0, %v5262
      %v5264 = vpop.f32.mrb[0].mxu0
      %v5265 = vpop.f32.mrb[0].mxu0
      %v5266 = vadd.f32 0.0, %v5265
      %v5267 = vpop.f32.mrb[0].mxu0
      %5268 = vmatprep.mubr.bf16.mxu0 0
      %5269 = vmatmul.mubr.bf16.gmra.mrb[0].mxu0 %v4796
      %v5270 = vpop.f32.mrb[0].mxu0
      %v5271 = vadd.f32 0.0, %v5270
      %v5272 = vpop.f32.mrb[0].mxu0
      %v5273 = vpop.f32.mrb[0].mxu0
      %v5274 = vadd.f32 0.0, %v5273
      %v5275 = vpop.f32.mrb[0].mxu0
      %5276 = vmatprep.mubr.bf16.mxu0 0
      %5277 = vmatmul.mubr.bf16.gmra.mrb[0].mxu0 %v4799
      %v5278 = vpop.f32.mrb[0].mxu0
      %v5279 = vadd.f32 0.0, %v5278
      %v5280 = vpop.f32.mrb[0].mxu0
      %v5281 = vpop.f32.mrb[0].mxu0
      %v5282 = vadd.f32 0.0, %v5281
      %v5283 = vpop.f32.mrb[0].mxu0
      %5284 = vmatprep.mubr.bf16.mxu0 0
      %5285 = vmatmul.mubr.bf16.gmra.mrb[0].mxu0 %v4802
      %v5286 = vpop.f32.mrb[0].mxu0
      %v5287 = vadd.f32 0.0, %v5286
      %v5288 = vpop.f32.mrb[0].mxu0
      %v5289 = vpop.f32.mrb[0].mxu0
      %v5290 = vadd.f32 0.0, %v5289
      %v5291 = vpop.f32.mrb[0].mxu0
      %5292 = vmatprep.mubr.bf16.mxu0 0
      %5293 = vmatmul.mubr.bf16.gmra.mrb[0].mxu0 %v4805
      %v5294 = vpop.f32.mrb[0].mxu0
      %v5295 = vadd.f32 0.0, %v5294
      %v5296 = vpop.f32.mrb[0].mxu0
      %v5297 = vpop.f32.mrb[0].mxu0
      %v5298 = vadd.f32 0.0, %v5297
      %v5299 = vpop.f32.mrb[0].mxu0
      %5300 = vmatprep.mubr.bf16.mxu0 0
      %5301 = vmatmul.mubr.bf16.gmra.mrb[0].mxu0 %v4808
      %v5302 = vpop.f32.mrb[0].mxu0
      %v5303 = vadd.f32 0.0, %v5302
      %v5304 = vpop.f32.mrb[0].mxu0
      %v5305 = vpop.f32.mrb[0].mxu0
      %v5306 = vadd.f32 0.0, %v5305
      %v5307 = vpop.f32.mrb[0].mxu0
      %5308 = vmatprep.mubr.bf16.mxu0 0
      %5309 = vmatmul.mubr.bf16.gmra.mrb[0].mxu0 %v4811
      %v5310 = vpop.f32.mrb[0].mxu0
      %v5311 = vadd.f32 0.0, %v5310
      %v5312 = vpop.f32.mrb[0].mxu0
      %v5313 = vpop.f32.mrb[0].mxu0
      %v5314 = vadd.f32 0.0, %v5313
      %v5315 = vpop.f32.mrb[0].mxu0
      %5316 = vmatprep.mubr.bf16.mxu0 0
      %5317 = vmatmul.mubr.bf16.gmra.mrb[0].mxu0 %v4814
      %v5318 = vpop.f32.mrb[0].mxu0
      %v5319 = vadd.f32 0.0, %v5318
      %v5320 = vpop.f32.mrb[0].mxu0
      %v5321 = vpop.f32.mrb[0].mxu0
      %v5322 = vadd.f32 0.0, %v5321
      %v5323 = vpop.f32.mrb[0].mxu0
      %5324 = vmatprep.mubr.bf16.mxu0 0
      %5325 = vmatmul.mubr.bf16.gmra.mrb[0].mxu0 %v4817
      %v5326 = vpop.f32.mrb[0].mxu0
      %v5327 = vadd.f32 0.0, %v5326
      %v5328 = vpop.f32.mrb[0].mxu0
      %v5329 = vpop.f32.mrb[0].mxu0
      %v5330 = vadd.f32 0.0, %v5329
      %v5331 = vpop.f32.mrb[0].mxu0
      %5332 = vmatprep.mubr.bf16.mxu0 0
      %5333 = vmatmul.mubr.bf16.gmra.mrb[0].mxu0 %v4820
      %v5334 = vpop.f32.mrb[0].mxu0
      %v5335 = vadd.f32 0.0, %v5334
      %v5336 = vpop.f32.mrb[0].mxu0
      %v5337 = vpop.f32.mrb[0].mxu0
      %v5338 = vadd.f32 0.0, %v5337
      %v5339 = vpop.f32.mrb[0].mxu0
      %5340 = vmatprep.mubr.bf16.mxu0 0
      %5341 = vmatmul.mubr.bf16.gmra.mrb[0].mxu0 %v4823
      %v5342 = vpop.f32.mrb[0].mxu0
      %v5343 = vpop.f32.mrb[0].mxu0
      %v5344 = vpop.f32.mrb[0].mxu0
      %v5345 = vpop.f32.mrb[0].mxu0
      %5346 = vmatprep.mubr.bf16.mxu0 0
      %5347 = vmatmul.mubr.bf16.gmra.mrb[0].mxu0 %v4826
      %v5348 = vpop.f32.mrb[0].mxu0
      %v5349 = vpop.f32.mrb[0].mxu0
      %v5350 = vpop.f32.mrb[0].mxu0
      %v5351 = vpop.f32.mrb[0].mxu0
      %5352 = vmatprep.mubr.bf16.mxu0 0
      %5353 = vmatmul.mubr.bf16.gmra.mrb[0].mxu0 %v4829
      %v5354 = vpop.f32.mrb[0].mxu0
      %v5355 = vpop.f32.mrb[0].mxu0
      %v5356 = vpop.f32.mrb[0].mxu0
      %v5357 = vpop.f32.mrb[0].mxu0
      %5358 = vmatprep.mubr.bf16.mxu0 0
      %5359 = vmatmul.mubr.bf16.gmra.mrb[0].mxu0 %v4832
      %v5360 = vpop.f32.mrb[0].mxu0
      %v5361 = vpop.f32.mrb[0].mxu0
      %v5362 = vpop.f32.mrb[0].mxu0
      %v5363 = vpop.f32.mrb[0].mxu0
      %5364 = vmatprep.mubr.bf16.mxu0 0
      %5365 = vmatmul.mubr.bf16.gmra.mrb[0].mxu0 %v4835
      %v5366 = vpop.f32.mrb[0].mxu0
      %v5367 = vpop.f32.mrb[0].mxu0
      %v5368 = vpop.f32.mrb[0].mxu0
      %v5369 = vpop.f32.mrb[0].mxu0
      %5370 = vdwg.mxu0
      %v5419 = vrot.slane %v5151, 1
      %v5420 = vrot.slane %v5154, 1
      %v5421 = vsel %vm1270, %v5419, %v5420
      %v5422 = vrot.slane %v5159, 1
      %v5423 = vsel %vm1270, %v5420, %v5422
      %v5424 = vrot.slane %v5162, 1
      %v5425 = vrot.slane %v5167, 1
      %v5426 = vsel %vm1270, %v5424, %v5425
      %v5427 = vrot.slane %v5170, 1
      %v5428 = vsel %vm1270, %v5425, %v5427
      %v5429 = vrot.slane %v5175, 1
      %v5430 = vrot.slane %v5178, 1
      %v5431 = vsel %vm1270, %v5429, %v5430
      %v5432 = vrot.slane %v5183, 1
      %v5433 = vsel %vm1270, %v5430, %v5432
      %v5434 = vrot.slane %v5186, 1
      %v5435 = vrot.slane %v5191, 1
      %v5436 = vsel %vm1270, %v5434, %v5435
      %v5437 = vrot.slane %v5194, 1
      %v5438 = vsel %vm1270, %v5435, %v5437
      %v5439 = vrot.slane %v5199, 1
      %v5440 = vrot.slane %v5202, 1
      %v5441 = vsel %vm1270, %v5439, %v5440
      %v5442 = vrot.slane %v5207, 1
      %v5443 = vsel %vm1270, %v5440, %v5442
      %v5444 = vrot.slane %v5210, 1
      %v5445 = vrot.slane %v5215, 1
      %v5446 = vsel %vm1270, %v5444, %v5445
      %v5447 = vrot.slane %v5218, 1
      %v5448 = vsel %vm1270, %v5445, %v5447
      %v5449 = vrot.slane %v5223, 1
      %v5450 = vrot.slane %v5226, 1
      %v5451 = vsel %vm1270, %v5449, %v5450
      %v5452 = vrot.slane %v5231, 1
      %v5453 = vsel %vm1270, %v5450, %v5452
      %v5454 = vrot.slane %v5234, 1
      %v5455 = vrot.slane %v5239, 1
      %v5456 = vsel %vm1270, %v5454, %v5455
      %v5457 = vrot.slane %v5242, 1
      %v5458 = vsel %vm1270, %v5455, %v5457
      %v5459 = vrot.slane %v5247, 1
      %v5460 = vrot.slane %v5250, 1
      %v5461 = vsel %vm1270, %v5459, %v5460
      %v5462 = vrot.slane %v5255, 1
      %v5463 = vsel %vm1270, %v5460, %v5462
      %v5464 = vrot.slane %v5258, 1
      %v5465 = vrot.slane %v5263, 1
      %v5466 = vsel %vm1270, %v5464, %v5465
      %v5467 = vrot.slane %v5266, 1
      %v5468 = vsel %vm1270, %v5465, %v5467
      %v5469 = vrot.slane %v5271, 1
      %v5470 = vrot.slane %v5274, 1
      %v5471 = vsel %vm1270, %v5469, %v5470
      %v5472 = vrot.slane %v5279, 1
      %v5473 = vsel %vm1270, %v5470, %v5472
      %v5474 = vrot.slane %v5282, 1
      %v5475 = vrot.slane %v5287, 1
      %v5476 = vsel %vm1270, %v5474, %v5475
      %v5477 = vrot.slane %v5290, 1
      %v5478 = vsel %vm1270, %v5475, %v5477
      %v5479 = vrot.slane %v5295, 1
      %v5480 = vrot.slane %v5298, 1
      %v5481 = vsel %vm1270, %v5479, %v5480
      %v5482 = vrot.slane %v5303, 1
      %v5483 = vsel %vm1270, %v5480, %v5482
      %v5484 = vrot.slane %v5306, 1
      %v5485 = vrot.slane %v5311, 1
      %v5486 = vsel %vm1270, %v5484, %v5485
      %v5487 = vrot.slane %v5314, 1
      %v5488 = vsel %vm1270, %v5485, %v5487
      %v5489 = vrot.slane %v5319, 1
      %v5490 = vrot.slane %v5322, 1
      %v5491 = vsel %vm1270, %v5489, %v5490
      %v5492 = vrot.slane %v5327, 1
      %v5493 = vsel %vm1270, %v5490, %v5492
      %v5494 = vrot.slane %v5330, 1
      %v5495 = vrot.slane %v5335, 1
      %v5496 = vsel %vm1270, %v5494, %v5495
      %v5497 = vrot.slane %v5338, 1
      %v5498 = vsel %vm1270, %v5495, %v5497
      %v5531 = vadd.f32 %v5079, %v5421
      %v5532 = vadd.f32 %v5080, %v5423
      %v5533 = vadd.f32 %v5081, %v5426
      %v5534 = vadd.f32 %v5082, %v5428
      %v5535 = vadd.f32 %v5083, %v5431
      %v5536 = vadd.f32 %v5084, %v5433
      %v5537 = vadd.f32 %v5085, %v5436
      %v5538 = vadd.f32 %v5086, %v5438
      %v5539 = vadd.f32 %v5087, %v5441
      %v5540 = vadd.f32 %v5088, %v5443
      %v5541 = vadd.f32 %v5089, %v5446
      %v5542 = vadd.f32 %v5090, %v5448
      %v5543 = vadd.f32 %v5091, %v5451
      %v5544 = vadd.f32 %v5092, %v5453
      %v5545 = vadd.f32 %v5093, %v5456
      %v5546 = vadd.f32 %v5094, %v5458
      %v5547 = vadd.f32 %v5095, %v5461
      %v5548 = vadd.f32 %v5096, %v5463
      %v5549 = vadd.f32 %v5097, %v5466
      %v5550 = vadd.f32 %v5098, %v5468
      %v5551 = vadd.f32 %v5099, %v5471
      %v5552 = vadd.f32 %v5100, %v5473
      %v5553 = vadd.f32 %v5101, %v5476
      %v5554 = vadd.f32 %v5102, %v5478
      %v5555 = vadd.f32 %v5103, %v5481
      %v5556 = vadd.f32 %v5104, %v5483
      %v5557 = vadd.f32 %v5105, %v5486
      %v5558 = vadd.f32 %v5106, %v5488
      %v5559 = vadd.f32 %v5107, %v5491
      %v5560 = vadd.f32 %v5108, %v5493
      %v5561 = vadd.f32 %v5109, %v5496
      %v5562 = vadd.f32 %v5110, %v5498
      %s5563 = scalar_lea.vmem %s5, 4
      %v5564 = vld [vmem:[%s5563] sm:$0x3]
      %v5566 = vsel %vm687, %v5564, 0
      %5568 = vmatprep.subr.bf16.mxu0 0
      %5569 = vmatpush1.bf16.msra.mxu0 %v5566
      %5570 = vmatprep.subr.bf16.mxu0 0
      %5571 = vmatpush1.bf16.msra.mxu0 0
      %5572 = vmatprep.subr.bf16.mxu0 0
      %5573 = vmatpush1.bf16.msra.mxu0 0
      %5574 = vmatprep.subr.bf16.mxu0 0
      %5575 = vmatpush1.bf16.msra.mxu0 0
      %5576 = vmatprep.subr.bf16.mxu0 0
      %5577 = vmatpush1.bf16.msra.mxu0 0
      %5578 = vmatprep.subr.bf16.mxu0 0
      %5579 = vmatpush1.bf16.msra.mxu0 0
      %5580 = vmatprep.subr.bf16.mxu0 0
      %5581 = vmatpush1.bf16.msra.mxu0 0
      %5582 = vmatprep.subr.bf16.mxu0 0
      %5583 = vmatpush1.bf16.msra.mxu0 0
      %5584 = vmatprep.subr.bf16.mxu0 0
      %5585 = vmatpush1.bf16.msra.mxu0 0
      %5586 = vmatprep.subr.bf16.mxu0 0
      %5587 = vmatpush1.bf16.msra.mxu0 0
      %5588 = vmatprep.subr.bf16.mxu0 0
      %5589 = vmatpush1.bf16.msra.mxu0 0
      %5590 = vmatprep.subr.bf16.mxu0 0
      %5591 = vmatpush1.bf16.msra.mxu0 0
      %5592 = vmatprep.subr.bf16.mxu0 0
      %5593 = vmatpush1.bf16.msra.mxu0 0
      %5594 = vmatprep.subr.bf16.mxu0 0
      %5595 = vmatpush1.bf16.msra.mxu0 0
      %5596 = vmatprep.subr.bf16.mxu0 0
      %5597 = vmatpush1.bf16.msra.mxu0 0
      %5598 = vmatprep.subr.bf16.mxu0 0
      %5599 = vmatpush1.bf16.msra.mxu0 0
      %5600 = vmatprep.mubr.bf16.mxu0 0
      %5601 = vmatmul.mubr.bf16.gmra.mrb[0].mxu0 %v4751
      %v5602 = vpop.f32.mrb[0].mxu0
      %v5603 = vadd.f32 0.0, %v5602
      %v5604 = vpop.f32.mrb[0].mxu0
      %v5605 = vpop.f32.mrb[0].mxu0
      %v5606 = vadd.f32 0.0, %v5605
      %v5607 = vpop.f32.mrb[0].mxu0
      %5608 = vmatprep.mubr.bf16.mxu0 0
      %5609 = vmatmul.mubr.bf16.gmra.mrb[0].mxu0 %v4754
      %v5610 = vpop.f32.mrb[0].mxu0
      %v5611 = vadd.f32 0.0, %v5610
      %v5612 = vpop.f32.mrb[0].mxu0
      %v5613 = vpop.f32.mrb[0].mxu0
      %v5614 = vadd.f32 0.0, %v5613
      %v5615 = vpop.f32.mrb[0].mxu0
      %5616 = vmatprep.mubr.bf16.mxu0 0
      %5617 = vmatmul.mubr.bf16.gmra.mrb[0].mxu0 %v4757
      %v5618 = vpop.f32.mrb[0].mxu0
      %v5619 = vadd.f32 0.0, %v5618
      %v5620 = vpop.f32.mrb[0].mxu0
      %v5621 = vpop.f32.mrb[0].mxu0
      %v5622 = vadd.f32 0.0, %v5621
      %v5623 = vpop.f32.mrb[0].mxu0
      %5624 = vmatprep.mubr.bf16.mxu0 0
      %5625 = vmatmul.mubr.bf16.gmra.mrb[0].mxu0 %v4760
      %v5626 = vpop.f32.mrb[0].mxu0
      %v5627 = vadd.f32 0.0, %v5626
      %v5628 = vpop.f32.mrb[0].mxu0
      %v5629 = vpop.f32.mrb[0].mxu0
      %v5630 = vadd.f32 0.0, %v5629
      %v5631 = vpop.f32.mrb[0].mxu0
      %5632 = vmatprep.mubr.bf16.mxu0 0
      %5633 = vmatmul.mubr.bf16.gmra.mrb[0].mxu0 %v4763
      %v5634 = vpop.f32.mrb[0].mxu0
      %v5635 = vadd.f32 0.0, %v5634
      %v5636 = vpop.f32.mrb[0].mxu0
      %v5637 = vpop.f32.mrb[0].mxu0
      %v5638 = vadd.f32 0.0, %v5637
      %v5639 = vpop.f32.mrb[0].mxu0
      %5640 = vmatprep.mubr.bf16.mxu0 0
      %5641 = vmatmul.mubr.bf16.gmra.mrb[0].mxu0 %v4766
      %v5642 = vpop.f32.mrb[0].mxu0
      %v5643 = vadd.f32 0.0, %v5642
      %v5644 = vpop.f32.mrb[0].mxu0
      %v5645 = vpop.f32.mrb[0].mxu0
      %v5646 = vadd.f32 0.0, %v5645
      %v5647 = vpop.f32.mrb[0].mxu0
      %5648 = vmatprep.mubr.bf16.mxu0 0
      %5649 = vmatmul.mubr.bf16.gmra.mrb[0].mxu0 %v4769
      %v5650 = vpop.f32.mrb[0].mxu0
      %v5651 = vadd.f32 0.0, %v5650
      %v5652 = vpop.f32.mrb[0].mxu0
      %v5653 = vpop.f32.mrb[0].mxu0
      %v5654 = vadd.f32 0.0, %v5653
      %v5655 = vpop.f32.mrb[0].mxu0
      %5656 = vmatprep.mubr.bf16.mxu0 0
      %5657 = vmatmul.mubr.bf16.gmra.mrb[0].mxu0 %v4772
      %v5658 = vpop.f32.mrb[0].mxu0
      %v5659 = vadd.f32 0.0, %v5658
      %v5660 = vpop.f32.mrb[0].mxu0
      %v5661 = vpop.f32.mrb[0].mxu0
      %v5662 = vadd.f32 0.0, %v5661
      %v5663 = vpop.f32.mrb[0].mxu0
      %5664 = vmatprep.mubr.bf16.mxu0 0
      %5665 = vmatmul.mubr.bf16.gmra.mrb[0].mxu0 %v4775
      %v5666 = vpop.f32.mrb[0].mxu0
      %v5667 = vadd.f32 0.0, %v5666
      %v5668 = vpop.f32.mrb[0].mxu0
      %v5669 = vpop.f32.mrb[0].mxu0
      %v5670 = vadd.f32 0.0, %v5669
      %v5671 = vpop.f32.mrb[0].mxu0
      %5672 = vmatprep.mubr.bf16.mxu0 0
      %5673 = vmatmul.mubr.bf16.gmra.mrb[0].mxu0 %v4778
      %v5674 = vpop.f32.mrb[0].mxu0
      %v5675 = vadd.f32 0.0, %v5674
      %v5676 = vpop.f32.mrb[0].mxu0
      %v5677 = vpop.f32.mrb[0].mxu0
      %v5678 = vadd.f32 0.0, %v5677
      %v5679 = vpop.f32.mrb[0].mxu0
      %5680 = vmatprep.mubr.bf16.mxu0 0
      %5681 = vmatmul.mubr.bf16.gmra.mrb[0].mxu0 %v4781
      %v5682 = vpop.f32.mrb[0].mxu0
      %v5683 = vadd.f32 0.0, %v5682
      %v5684 = vpop.f32.mrb[0].mxu0
      %v5685 = vpop.f32.mrb[0].mxu0
      %v5686 = vadd.f32 0.0, %v5685
      %v5687 = vpop.f32.mrb[0].mxu0
      %5688 = vmatprep.mubr.bf16.mxu0 0
      %5689 = vmatmul.mubr.bf16.gmra.mrb[0].mxu0 %v4784
      %v5690 = vpop.f32.mrb[0].mxu0
      %v5691 = vadd.f32 0.0, %v5690
      %v5692 = vpop.f32.mrb[0].mxu0
      %v5693 = vpop.f32.mrb[0].mxu0
      %v5694 = vadd.f32 0.0, %v5693
      %v5695 = vpop.f32.mrb[0].mxu0
      %5696 = vmatprep.mubr.bf16.mxu0 0
      %5697 = vmatmul.mubr.bf16.gmra.mrb[0].mxu0 %v4787
      %v5698 = vpop.f32.mrb[0].mxu0
      %v5699 = vadd.f32 0.0, %v5698
      %v5700 = vpop.f32.mrb[0].mxu0
      %v5701 = vpop.f32.mrb[0].mxu0
      %v5702 = vadd.f32 0.0, %v5701
      %v5703 = vpop.f32.mrb[0].mxu0
      %5704 = vmatprep.mubr.bf16.mxu0 0
      %5705 = vmatmul.mubr.bf16.gmra.mrb[0].mxu0 %v4790
      %v5706 = vpop.f32.mrb[0].mxu0
      %v5707 = vadd.f32 0.0, %v5706
      %v5708 = vpop.f32.mrb[0].mxu0
      %v5709 = vpop.f32.mrb[0].mxu0
      %v5710 = vadd.f32 0.0, %v5709
      %v5711 = vpop.f32.mrb[0].mxu0
      %5712 = vmatprep.mubr.bf16.mxu0 0
      %5713 = vmatmul.mubr.bf16.gmra.mrb[0].mxu0 %v4793
      %v5714 = vpop.f32.mrb[0].mxu0
      %v5715 = vadd.f32 0.0, %v5714
      %v5716 = vpop.f32.mrb[0].mxu0
      %v5717 = vpop.f32.mrb[0].mxu0
      %v5718 = vadd.f32 0.0, %v5717
      %v5719 = vpop.f32.mrb[0].mxu0
      %5720 = vmatprep.mubr.bf16.mxu0 0
      %5721 = vmatmul.mubr.bf16.gmra.mrb[0].mxu0 %v4796
      %v5722 = vpop.f32.mrb[0].mxu0
      %v5723 = vadd.f32 0.0, %v5722
      %v5724 = vpop.f32.mrb[0].mxu0
      %v5725 = vpop.f32.mrb[0].mxu0
      %v5726 = vadd.f32 0.0, %v5725
      %v5727 = vpop.f32.mrb[0].mxu0
      %5728 = vmatprep.mubr.bf16.mxu0 0
      %5729 = vmatmul.mubr.bf16.gmra.mrb[0].mxu0 %v4799
      %v5730 = vpop.f32.mrb[0].mxu0
      %v5731 = vadd.f32 0.0, %v5730
      %v5732 = vpop.f32.mrb[0].mxu0
      %v5733 = vpop.f32.mrb[0].mxu0
      %v5734 = vadd.f32 0.0, %v5733
      %v5735 = vpop.f32.mrb[0].mxu0
      %5736 = vmatprep.mubr.bf16.mxu0 0
      %5737 = vmatmul.mubr.bf16.gmra.mrb[0].mxu0 %v4802
      %v5738 = vpop.f32.mrb[0].mxu0
      %v5739 = vadd.f32 0.0, %v5738
      %v5740 = vpop.f32.mrb[0].mxu0
      %v5741 = vpop.f32.mrb[0].mxu0
      %v5742 = vadd.f32 0.0, %v5741
      %v5743 = vpop.f32.mrb[0].mxu0
      %5744 = vmatprep.mubr.bf16.mxu0 0
      %5745 = vmatmul.mubr.bf16.gmra.mrb[0].mxu0 %v4805
      %v5746 = vpop.f32.mrb[0].mxu0
      %v5747 = vadd.f32 0.0, %v5746
      %v5748 = vpop.f32.mrb[0].mxu0
      %v5749 = vpop.f32.mrb[0].mxu0
      %v5750 = vadd.f32 0.0, %v5749
      %v5751 = vpop.f32.mrb[0].mxu0
      %5752 = vmatprep.mubr.bf16.mxu0 0
      %5753 = vmatmul.mubr.bf16.gmra.mrb[0].mxu0 %v4808
      %v5754 = vpop.f32.mrb[0].mxu0
      %v5755 = vadd.f32 0.0, %v5754
      %v5756 = vpop.f32.mrb[0].mxu0
      %v5757 = vpop.f32.mrb[0].mxu0
      %v5758 = vadd.f32 0.0, %v5757
      %v5759 = vpop.f32.mrb[0].mxu0
      %5760 = vmatprep.mubr.bf16.mxu0 0
      %5761 = vmatmul.mubr.bf16.gmra.mrb[0].mxu0 %v4811
      %v5762 = vpop.f32.mrb[0].mxu0
      %v5763 = vadd.f32 0.0, %v5762
      %v5764 = vpop.f32.mrb[0].mxu0
      %v5765 = vpop.f32.mrb[0].mxu0
      %v5766 = vadd.f32 0.0, %v5765
      %v5767 = vpop.f32.mrb[0].mxu0
      %5768 = vmatprep.mubr.bf16.mxu0 0
      %5769 = vmatmul.mubr.bf16.gmra.mrb[0].mxu0 %v4814
      %v5770 = vpop.f32.mrb[0].mxu0
      %v5771 = vadd.f32 0.0, %v5770
      %v5772 = vpop.f32.mrb[0].mxu0
      %v5773 = vpop.f32.mrb[0].mxu0
      %v5774 = vadd.f32 0.0, %v5773
      %v5775 = vpop.f32.mrb[0].mxu0
      %5776 = vmatprep.mubr.bf16.mxu0 0
      %5777 = vmatmul.mubr.bf16.gmra.mrb[0].mxu0 %v4817
      %v5778 = vpop.f32.mrb[0].mxu0
      %v5779 = vadd.f32 0.0, %v5778
      %v5780 = vpop.f32.mrb[0].mxu0
      %v5781 = vpop.f32.mrb[0].mxu0
      %v5782 = vadd.f32 0.0, %v5781
      %v5783 = vpop.f32.mrb[0].mxu0
      %5784 = vmatprep.mubr.bf16.mxu0 0
      %5785 = vmatmul.mubr.bf16.gmra.mrb[0].mxu0 %v4820
      %v5786 = vpop.f32.mrb[0].mxu0
      %v5787 = vadd.f32 0.0, %v5786
      %v5788 = vpop.f32.mrb[0].mxu0
      %v5789 = vpop.f32.mrb[0].mxu0
      %v5790 = vadd.f32 0.0, %v5789
      %v5791 = vpop.f32.mrb[0].mxu0
      %5792 = vmatprep.mubr.bf16.mxu0 0
      %5793 = vmatmul.mubr.bf16.gmra.mrb[0].mxu0 %v4823
      %v5794 = vpop.f32.mrb[0].mxu0
      %v5795 = vpop.f32.mrb[0].mxu0
      %v5796 = vpop.f32.mrb[0].mxu0
      %v5797 = vpop.f32.mrb[0].mxu0
      %5798 = vmatprep.mubr.bf16.mxu0 0
      %5799 = vmatmul.mubr.bf16.gmra.mrb[0].mxu0 %v4826
      %v5800 = vpop.f32.mrb[0].mxu0
      %v5801 = vpop.f32.mrb[0].mxu0
      %v5802 = vpop.f32.mrb[0].mxu0
      %v5803 = vpop.f32.mrb[0].mxu0
      %5804 = vmatprep.mubr.bf16.mxu0 0
      %5805 = vmatmul.mubr.bf16.gmra.mrb[0].mxu0 %v4829
      %v5806 = vpop.f32.mrb[0].mxu0
      %v5807 = vpop.f32.mrb[0].mxu0
      %v5808 = vpop.f32.mrb[0].mxu0
      %v5809 = vpop.f32.mrb[0].mxu0
      %5810 = vmatprep.mubr.bf16.mxu0 0
      %5811 = vmatmul.mubr.bf16.gmra.mrb[0].mxu0 %v4832
      %v5812 = vpop.f32.mrb[0].mxu0
      %v5813 = vpop.f32.mrb[0].mxu0
      %v5814 = vpop.f32.mrb[0].mxu0
      %v5815 = vpop.f32.mrb[0].mxu0
      %5816 = vmatprep.mubr.bf16.mxu0 0
      %5817 = vmatmul.mubr.bf16.gmra.mrb[0].mxu0 %v4835
      %v5818 = vpop.f32.mrb[0].mxu0
      %v5819 = vpop.f32.mrb[0].mxu0
      %v5820 = vpop.f32.mrb[0].mxu0
      %v5821 = vpop.f32.mrb[0].mxu0
      %5822 = vdwg.mxu0
      %v5871 = vrot.slane %v5603, 2
      %v5872 = vrot.slane %v5606, 2
      %v5873 = vsel %vm1723, %v5871, %v5872
      %v5874 = vrot.slane %v5611, 2
      %v5875 = vsel %vm1723, %v5872, %v5874
      %v5876 = vrot.slane %v5614, 2
      %v5877 = vrot.slane %v5619, 2
      %v5878 = vsel %vm1723, %v5876, %v5877
      %v5879 = vrot.slane %v5622, 2
      %v5880 = vsel %vm1723, %v5877, %v5879
      %v5881 = vrot.slane %v5627, 2
      %v5882 = vrot.slane %v5630, 2
      %v5883 = vsel %vm1723, %v5881, %v5882
      %v5884 = vrot.slane %v5635, 2
      %v5885 = vsel %vm1723, %v5882, %v5884
      %v5886 = vrot.slane %v5638, 2
      %v5887 = vrot.slane %v5643, 2
      %v5888 = vsel %vm1723, %v5886, %v5887
      %v5889 = vrot.slane %v5646, 2
      %v5890 = vsel %vm1723, %v5887, %v5889
      %v5891 = vrot.slane %v5651, 2
      %v5892 = vrot.slane %v5654, 2
      %v5893 = vsel %vm1723, %v5891, %v5892
      %v5894 = vrot.slane %v5659, 2
      %v5895 = vsel %vm1723, %v5892, %v5894
      %v5896 = vrot.slane %v5662, 2
      %v5897 = vrot.slane %v5667, 2
      %v5898 = vsel %vm1723, %v5896, %v5897
      %v5899 = vrot.slane %v5670, 2
      %v5900 = vsel %vm1723, %v5897, %v5899
      %v5901 = vrot.slane %v5675, 2
      %v5902 = vrot.slane %v5678, 2
      %v5903 = vsel %vm1723, %v5901, %v5902
      %v5904 = vrot.slane %v5683, 2
      %v5905 = vsel %vm1723, %v5902, %v5904
      %v5906 = vrot.slane %v5686, 2
      %v5907 = vrot.slane %v5691, 2
      %v5908 = vsel %vm1723, %v5906, %v5907
      %v5909 = vrot.slane %v5694, 2
      %v5910 = vsel %vm1723, %v5907, %v5909
      %v5911 = vrot.slane %v5699, 2
      %v5912 = vrot.slane %v5702, 2
      %v5913 = vsel %vm1723, %v5911, %v5912
      %v5914 = vrot.slane %v5707, 2
      %v5915 = vsel %vm1723, %v5912, %v5914
      %v5916 = vrot.slane %v5710, 2
      %v5917 = vrot.slane %v5715, 2
      %v5918 = vsel %vm1723, %v5916, %v5917
      %v5919 = vrot.slane %v5718, 2
      %v5920 = vsel %vm1723, %v5917, %v5919
      %v5921 = vrot.slane %v5723, 2
      %v5922 = vrot.slane %v5726, 2
      %v5923 = vsel %vm1723, %v5921, %v5922
      %v5924 = vrot.slane %v5731, 2
      %v5925 = vsel %vm1723, %v5922, %v5924
      %v5926 = vrot.slane %v5734, 2
      %v5927 = vrot.slane %v5739, 2
      %v5928 = vsel %vm1723, %v5926, %v5927
      %v5929 = vrot.slane %v5742, 2
      %v5930 = vsel %vm1723, %v5927, %v5929
      %v5931 = vrot.slane %v5747, 2
      %v5932 = vrot.slane %v5750, 2
      %v5933 = vsel %vm1723, %v5931, %v5932
      %v5934 = vrot.slane %v5755, 2
      %v5935 = vsel %vm1723, %v5932, %v5934
      %v5936 = vrot.slane %v5758, 2
      %v5937 = vrot.slane %v5763, 2
      %v5938 = vsel %vm1723, %v5936, %v5937
      %v5939 = vrot.slane %v5766, 2
      %v5940 = vsel %vm1723, %v5937, %v5939
      %v5941 = vrot.slane %v5771, 2
      %v5942 = vrot.slane %v5774, 2
      %v5943 = vsel %vm1723, %v5941, %v5942
      %v5944 = vrot.slane %v5779, 2
      %v5945 = vsel %vm1723, %v5942, %v5944
      %v5946 = vrot.slane %v5782, 2
      %v5947 = vrot.slane %v5787, 2
      %v5948 = vsel %vm1723, %v5946, %v5947
      %v5949 = vrot.slane %v5790, 2
      %v5950 = vsel %vm1723, %v5947, %v5949
      %v5983 = vadd.f32 %v5531, %v5873
      %v5984 = vadd.f32 %v5532, %v5875
      %v5985 = vadd.f32 %v5533, %v5878
      %v5986 = vadd.f32 %v5534, %v5880
      %v5987 = vadd.f32 %v5535, %v5883
      %v5988 = vadd.f32 %v5536, %v5885
      %v5989 = vadd.f32 %v5537, %v5888
      %v5990 = vadd.f32 %v5538, %v5890
      %v5991 = vadd.f32 %v5539, %v5893
      %v5992 = vadd.f32 %v5540, %v5895
      %v5993 = vadd.f32 %v5541, %v5898
      %v5994 = vadd.f32 %v5542, %v5900
      %v5995 = vadd.f32 %v5543, %v5903
      %v5996 = vadd.f32 %v5544, %v5905
      %v5997 = vadd.f32 %v5545, %v5908
      %v5998 = vadd.f32 %v5546, %v5910
      %v5999 = vadd.f32 %v5547, %v5913
      %v6000 = vadd.f32 %v5548, %v5915
      %v6001 = vadd.f32 %v5549, %v5918
      %v6002 = vadd.f32 %v5550, %v5920
      %v6003 = vadd.f32 %v5551, %v5923
      %v6004 = vadd.f32 %v5552, %v5925
      %v6005 = vadd.f32 %v5553, %v5928
      %v6006 = vadd.f32 %v5554, %v5930
      %v6007 = vadd.f32 %v5555, %v5933
      %v6008 = vadd.f32 %v5556, %v5935
      %v6009 = vadd.f32 %v5557, %v5938
      %v6010 = vadd.f32 %v5558, %v5940
      %v6011 = vadd.f32 %v5559, %v5943
      %v6012 = vadd.f32 %v5560, %v5945
      %v6013 = vadd.f32 %v5561, %v5948
      %v6014 = vadd.f32 %v5562, %v5950
      %s6015 = scalar_lea.vmem %s5, 6
      %v6016 = vld [vmem:[%s6015] sm:$0x3]
      %v6018 = vsel %vm687, %v6016, 0
      %6020 = vmatprep.subr.bf16.mxu0 0
      %6021 = vmatpush1.bf16.msra.mxu0 %v6018
      %6022 = vmatprep.subr.bf16.mxu0 0
      %6023 = vmatpush1.bf16.msra.mxu0 0
      %6024 = vmatprep.subr.bf16.mxu0 0
      %6025 = vmatpush1.bf16.msra.mxu0 0
      %6026 = vmatprep.subr.bf16.mxu0 0
      %6027 = vmatpush1.bf16.msra.mxu0 0
      %6028 = vmatprep.subr.bf16.mxu0 0
      %6029 = vmatpush1.bf16.msra.mxu0 0
      %6030 = vmatprep.subr.bf16.mxu0 0
      %6031 = vmatpush1.bf16.msra.mxu0 0
      %6032 = vmatprep.subr.bf16.mxu0 0
      %6033 = vmatpush1.bf16.msra.mxu0 0
      %6034 = vmatprep.subr.bf16.mxu0 0
      %6035 = vmatpush1.bf16.msra.mxu0 0
      %6036 = vmatprep.subr.bf16.mxu0 0
      %6037 = vmatpush1.bf16.msra.mxu0 0
      %6038 = vmatprep.subr.bf16.mxu0 0
      %6039 = vmatpush1.bf16.msra.mxu0 0
      %6040 = vmatprep.subr.bf16.mxu0 0
      %6041 = vmatpush1.bf16.msra.mxu0 0
      %6042 = vmatprep.subr.bf16.mxu0 0
      %6043 = vmatpush1.bf16.msra.mxu0 0
      %6044 = vmatprep.subr.bf16.mxu0 0
      %6045 = vmatpush1.bf16.msra.mxu0 0
      %6046 = vmatprep.subr.bf16.mxu0 0
      %6047 = vmatpush1.bf16.msra.mxu0 0
      %6048 = vmatprep.subr.bf16.mxu0 0
      %6049 = vmatpush1.bf16.msra.mxu0 0
      %6050 = vmatprep.subr.bf16.mxu0 0
      %6051 = vmatpush1.bf16.msra.mxu0 0
      %6052 = vmatprep.mubr.bf16.mxu0 0
      %6053 = vmatmul.mubr.bf16.gmra.mrb[0].mxu0 %v4751
      %v6054 = vpop.f32.mrb[0].mxu0
      %v6055 = vpop.f32.mrb[0].mxu0
      %v6056 = vpop.f32.mrb[0].mxu0
      %v6057 = vpop.f32.mrb[0].mxu0
      %6058 = vmatprep.mubr.bf16.mxu0 0
      %6059 = vmatmul.mubr.bf16.gmra.mrb[0].mxu0 %v4754
      %v6060 = vpop.f32.mrb[0].mxu0
      %v6061 = vpop.f32.mrb[0].mxu0
      %v6062 = vpop.f32.mrb[0].mxu0
      %v6063 = vadd.f32 0.0, %v6062
      %v6064 = vpop.f32.mrb[0].mxu0
      %6065 = vmatprep.mubr.bf16.mxu0 0
      %6066 = vmatmul.mubr.bf16.gmra.mrb[0].mxu0 %v4757
      %v6067 = vpop.f32.mrb[0].mxu0
      %v6068 = vadd.f32 0.0, %v6067
      %v6069 = vpop.f32.mrb[0].mxu0
      %v6070 = vpop.f32.mrb[0].mxu0
      %v6071 = vpop.f32.mrb[0].mxu0
      %6072 = vmatprep.mubr.bf16.mxu0 0
      %6073 = vmatmul.mubr.bf16.gmra.mrb[0].mxu0 %v4760
      %v6074 = vpop.f32.mrb[0].mxu0
      %v6075 = vadd.f32 0.0, %v6074
      %v6076 = vpop.f32.mrb[0].mxu0
      %v6077 = vpop.f32.mrb[0].mxu0
      %v6078 = vadd.f32 0.0, %v6077
      %v6079 = vpop.f32.mrb[0].mxu0
      %6080 = vmatprep.mubr.bf16.mxu0 0
      %6081 = vmatmul.mubr.bf16.gmra.mrb[0].mxu0 %v4763
      %v6082 = vpop.f32.mrb[0].mxu0
      %v6083 = vpop.f32.mrb[0].mxu0
      %v6084 = vpop.f32.mrb[0].mxu0
      %v6085 = vadd.f32 0.0, %v6084
      %v6086 = vpop.f32.mrb[0].mxu0
      %6087 = vmatprep.mubr.bf16.mxu0 0
      %6088 = vmatmul.mubr.bf16.gmra.mrb[0].mxu0 %v4766
      %v6089 = vpop.f32.mrb[0].mxu0
      %v6090 = vadd.f32 0.0, %v6089
      %v6091 = vpop.f32.mrb[0].mxu0
      %v6092 = vpop.f32.mrb[0].mxu0
      %v6093 = vpop.f32.mrb[0].mxu0
      %6094 = vmatprep.mubr.bf16.mxu0 0
      %6095 = vmatmul.mubr.bf16.gmra.mrb[0].mxu0 %v4769
      %v6096 = vpop.f32.mrb[0].mxu0
      %v6097 = vadd.f32 0.0, %v6096
      %v6098 = vpop.f32.mrb[0].mxu0
      %v6099 = vpop.f32.mrb[0].mxu0
      %v6100 = vadd.f32 0.0, %v6099
      %v6101 = vpop.f32.mrb[0].mxu0
      %6102 = vmatprep.mubr.bf16.mxu0 0
      %6103 = vmatmul.mubr.bf16.gmra.mrb[0].mxu0 %v4772
      %v6104 = vpop.f32.mrb[0].mxu0
      %v6105 = vpop.f32.mrb[0].mxu0
      %v6106 = vpop.f32.mrb[0].mxu0
      %v6107 = vadd.f32 0.0, %v6106
      %v6108 = vpop.f32.mrb[0].mxu0
      %6109 = vmatprep.mubr.bf16.mxu0 0
      %6110 = vmatmul.mubr.bf16.gmra.mrb[0].mxu0 %v4775
      %v6111 = vpop.f32.mrb[0].mxu0
      %v6112 = vadd.f32 0.0, %v6111
      %v6113 = vpop.f32.mrb[0].mxu0
      %v6114 = vpop.f32.mrb[0].mxu0
      %v6115 = vpop.f32.mrb[0].mxu0
      %6116 = vmatprep.mubr.bf16.mxu0 0
      %6117 = vmatmul.mubr.bf16.gmra.mrb[0].mxu0 %v4778
      %v6118 = vpop.f32.mrb[0].mxu0
      %v6119 = vadd.f32 0.0, %v6118
      %v6120 = vpop.f32.mrb[0].mxu0
      %v6121 = vpop.f32.mrb[0].mxu0
      %v6122 = vadd.f32 0.0, %v6121
      %v6123 = vpop.f32.mrb[0].mxu0
      %6124 = vmatprep.mubr.bf16.mxu0 0
      %6125 = vmatmul.mubr.bf16.gmra.mrb[0].mxu0 %v4781
      %v6126 = vpop.f32.mrb[0].mxu0
      %v6127 = vpop.f32.mrb[0].mxu0
      %v6128 = vpop.f32.mrb[0].mxu0
      %v6129 = vadd.f32 0.0, %v6128
      %v6130 = vpop.f32.mrb[0].mxu0
      %6131 = vmatprep.mubr.bf16.mxu0 0
      %6132 = vmatmul.mubr.bf16.gmra.mrb[0].mxu0 %v4784
      %v6133 = vpop.f32.mrb[0].mxu0
      %v6134 = vadd.f32 0.0, %v6133
      %v6135 = vpop.f32.mrb[0].mxu0
      %v6136 = vpop.f32.mrb[0].mxu0
      %v6137 = vpop.f32.mrb[0].mxu0
      %6138 = vmatprep.mubr.bf16.mxu0 0
      %6139 = vmatmul.mubr.bf16.gmra.mrb[0].mxu0 %v4787
      %v6140 = vpop.f32.mrb[0].mxu0
      %v6141 = vadd.f32 0.0, %v6140
      %v6142 = vpop.f32.mrb[0].mxu0
      %v6143 = vpop.f32.mrb[0].mxu0
      %v6144 = vadd.f32 0.0, %v6143
      %v6145 = vpop.f32.mrb[0].mxu0
      %6146 = vmatprep.mubr.bf16.mxu0 0
      %6147 = vmatmul.mubr.bf16.gmra.mrb[0].mxu0 %v4790
      %v6148 = vpop.f32.mrb[0].mxu0
      %v6149 = vpop.f32.mrb[0].mxu0
      %v6150 = vpop.f32.mrb[0].mxu0
      %v6151 = vadd.f32 0.0, %v6150
      %v6152 = vpop.f32.mrb[0].mxu0
      %6153 = vmatprep.mubr.bf16.mxu0 0
      %6154 = vmatmul.mubr.bf16.gmra.mrb[0].mxu0 %v4793
      %v6155 = vpop.f32.mrb[0].mxu0
      %v6156 = vadd.f32 0.0, %v6155
      %v6157 = vpop.f32.mrb[0].mxu0
      %v6158 = vpop.f32.mrb[0].mxu0
      %v6159 = vpop.f32.mrb[0].mxu0
      %6160 = vmatprep.mubr.bf16.mxu0 0
      %6161 = vmatmul.mubr.bf16.gmra.mrb[0].mxu0 %v4796
      %v6162 = vpop.f32.mrb[0].mxu0
      %v6163 = vadd.f32 0.0, %v6162
      %v6164 = vpop.f32.mrb[0].mxu0
      %v6165 = vpop.f32.mrb[0].mxu0
      %v6166 = vadd.f32 0.0, %v6165
      %v6167 = vpop.f32.mrb[0].mxu0
      %6168 = vmatprep.mubr.bf16.mxu0 0
      %6169 = vmatmul.mubr.bf16.gmra.mrb[0].mxu0 %v4799
      %v6170 = vpop.f32.mrb[0].mxu0
      %v6171 = vpop.f32.mrb[0].mxu0
      %v6172 = vpop.f32.mrb[0].mxu0
      %v6173 = vadd.f32 0.0, %v6172
      %v6174 = vpop.f32.mrb[0].mxu0
      %6175 = vmatprep.mubr.bf16.mxu0 0
      %6176 = vmatmul.mubr.bf16.gmra.mrb[0].mxu0 %v4802
      %v6177 = vpop.f32.mrb[0].mxu0
      %v6178 = vadd.f32 0.0, %v6177
      %v6179 = vpop.f32.mrb[0].mxu0
      %v6180 = vpop.f32.mrb[0].mxu0
      %v6181 = vpop.f32.mrb[0].mxu0
      %6182 = vmatprep.mubr.bf16.mxu0 0
      %6183 = vmatmul.mubr.bf16.gmra.mrb[0].mxu0 %v4805
      %v6184 = vpop.f32.mrb[0].mxu0
      %v6185 = vadd.f32 0.0, %v6184
      %v6186 = vpop.f32.mrb[0].mxu0
      %v6187 = vpop.f32.mrb[0].mxu0
      %v6188 = vadd.f32 0.0, %v6187
      %v6189 = vpop.f32.mrb[0].mxu0
      %6190 = vmatprep.mubr.bf16.mxu0 0
      %6191 = vmatmul.mubr.bf16.gmra.mrb[0].mxu0 %v4808
      %v6192 = vpop.f32.mrb[0].mxu0
      %v6193 = vpop.f32.mrb[0].mxu0
      %v6194 = vpop.f32.mrb[0].mxu0
      %v6195 = vadd.f32 0.0, %v6194
      %v6196 = vpop.f32.mrb[0].mxu0
      %6197 = vmatprep.mubr.bf16.mxu0 0
      %6198 = vmatmul.mubr.bf16.gmra.mrb[0].mxu0 %v4811
      %v6199 = vpop.f32.mrb[0].mxu0
      %v6200 = vadd.f32 0.0, %v6199
      %v6201 = vpop.f32.mrb[0].mxu0
      %v6202 = vpop.f32.mrb[0].mxu0
      %v6203 = vpop.f32.mrb[0].mxu0
      %6204 = vmatprep.mubr.bf16.mxu0 0
      %6205 = vmatmul.mubr.bf16.gmra.mrb[0].mxu0 %v4814
      %v6206 = vpop.f32.mrb[0].mxu0
      %v6207 = vadd.f32 0.0, %v6206
      %v6208 = vpop.f32.mrb[0].mxu0
      %v6209 = vpop.f32.mrb[0].mxu0
      %v6210 = vadd.f32 0.0, %v6209
      %v6211 = vpop.f32.mrb[0].mxu0
      %6212 = vmatprep.mubr.bf16.mxu0 0
      %6213 = vmatmul.mubr.bf16.gmra.mrb[0].mxu0 %v4817
      %v6214 = vpop.f32.mrb[0].mxu0
      %v6215 = vpop.f32.mrb[0].mxu0
      %v6216 = vpop.f32.mrb[0].mxu0
      %v6217 = vadd.f32 0.0, %v6216
      %v6218 = vpop.f32.mrb[0].mxu0
      %6219 = vmatprep.mubr.bf16.mxu0 0
      %6220 = vmatmul.mubr.bf16.gmra.mrb[0].mxu0 %v4820
      %v6221 = vpop.f32.mrb[0].mxu0
      %v6222 = vadd.f32 0.0, %v6221
      %v6223 = vpop.f32.mrb[0].mxu0
      %v6224 = vpop.f32.mrb[0].mxu0
      %v6225 = vpop.f32.mrb[0].mxu0
      %6226 = vmatprep.mubr.bf16.mxu0 0
      %6227 = vmatmul.mubr.bf16.gmra.mrb[0].mxu0 %v4823
      %v6228 = vpop.f32.mrb[0].mxu0
      %v6229 = vadd.f32 0.0, %v6228
      %v6230 = vpop.f32.mrb[0].mxu0
      %v6231 = vpop.f32.mrb[0].mxu0
      %v6232 = vadd.f32 0.0, %v6231
      %v6233 = vpop.f32.mrb[0].mxu0
      %6234 = vmatprep.mubr.bf16.mxu0 0
      %6235 = vmatmul.mubr.bf16.gmra.mrb[0].mxu0 %v4826
      %v6236 = vpop.f32.mrb[0].mxu0
      %v6237 = vpop.f32.mrb[0].mxu0
      %v6238 = vpop.f32.mrb[0].mxu0
      %v6239 = vpop.f32.mrb[0].mxu0
      %6240 = vmatprep.mubr.bf16.mxu0 0
      %6241 = vmatmul.mubr.bf16.gmra.mrb[0].mxu0 %v4829
      %v6242 = vpop.f32.mrb[0].mxu0
      %v6243 = vpop.f32.mrb[0].mxu0
      %v6244 = vpop.f32.mrb[0].mxu0
      %v6245 = vpop.f32.mrb[0].mxu0
      %6246 = vmatprep.mubr.bf16.mxu0 0
      %6247 = vmatmul.mubr.bf16.gmra.mrb[0].mxu0 %v4832
      %v6248 = vpop.f32.mrb[0].mxu0
      %v6249 = vpop.f32.mrb[0].mxu0
      %v6250 = vpop.f32.mrb[0].mxu0
      %v6251 = vpop.f32.mrb[0].mxu0
      %6252 = vmatprep.mubr.bf16.mxu0 0
      %6253 = vmatmul.mubr.bf16.gmra.mrb[0].mxu0 %v4835
      %v6254 = vpop.f32.mrb[0].mxu0
      %v6255 = vpop.f32.mrb[0].mxu0
      %v6256 = vpop.f32.mrb[0].mxu0
      %v6257 = vpop.f32.mrb[0].mxu0
      %6258 = vdwg.mxu0
      %v6259 = vadd.f32 %v5983, %v6063
      %v6260 = vadd.f32 %v5984, %v6068
      %v6261 = vadd.f32 %v5985, %v6075
      %v6262 = vadd.f32 %v5986, %v6078
      %v6263 = vadd.f32 %v5987, %v6085
      %v6264 = vadd.f32 %v5988, %v6090
      %v6265 = vadd.f32 %v5989, %v6097
      %v6266 = vadd.f32 %v5990, %v6100
      %v6267 = vadd.f32 %v5991, %v6107
      %v6268 = vadd.f32 %v5992, %v6112
      %v6269 = vadd.f32 %v5993, %v6119
      %v6270 = vadd.f32 %v5994, %v6122
      %v6271 = vadd.f32 %v5995, %v6129
      %v6272 = vadd.f32 %v5996, %v6134
      %v6273 = vadd.f32 %v5997, %v6141
      %v6274 = vadd.f32 %v5998, %v6144
      %v6275 = vadd.f32 %v5999, %v6151
      %v6276 = vadd.f32 %v6000, %v6156
      %v6277 = vadd.f32 %v6001, %v6163
      %v6278 = vadd.f32 %v6002, %v6166
      %v6279 = vadd.f32 %v6003, %v6173
      %v6280 = vadd.f32 %v6004, %v6178
      %v6281 = vadd.f32 %v6005, %v6185
      %v6282 = vadd.f32 %v6006, %v6188
      %v6283 = vadd.f32 %v6007, %v6195
      %v6284 = vadd.f32 %v6008, %v6200
      %v6285 = vadd.f32 %v6009, %v6207
      %v6286 = vadd.f32 %v6010, %v6210
      %v6287 = vadd.f32 %v6011, %v6217
      %v6288 = vadd.f32 %v6012, %v6222
      %v6289 = vadd.f32 %v6013, %v6229
      %v6290 = vadd.f32 %v6014, %v6232
      %s6291 = scalar_lea.vmem %s5, 8
      %v6292 = vld [vmem:[%s6291] sm:$0x3]
      %v6294 = vsel %vm687, %v6292, 0
      %6296 = vmatprep.subr.bf16.mxu0 0
      %6297 = vmatpush1.bf16.msra.mxu0 %v6294
      %6298 = vmatprep.subr.bf16.mxu0 0
      %6299 = vmatpush1.bf16.msra.mxu0 0
      %6300 = vmatprep.subr.bf16.mxu0 0
      %6301 = vmatpush1.bf16.msra.mxu0 0
      %6302 = vmatprep.subr.bf16.mxu0 0
      %6303 = vmatpush1.bf16.msra.mxu0 0
      %6304 = vmatprep.subr.bf16.mxu0 0
      %6305 = vmatpush1.bf16.msra.mxu0 0
      %6306 = vmatprep.subr.bf16.mxu0 0
      %6307 = vmatpush1.bf16.msra.mxu0 0
      %6308 = vmatprep.subr.bf16.mxu0 0
      %6309 = vmatpush1.bf16.msra.mxu0 0
      %6310 = vmatprep.subr.bf16.mxu0 0
      %6311 = vmatpush1.bf16.msra.mxu0 0
      %6312 = vmatprep.subr.bf16.mxu0 0
      %6313 = vmatpush1.bf16.msra.mxu0 0
      %6314 = vmatprep.subr.bf16.mxu0 0
      %6315 = vmatpush1.bf16.msra.mxu0 0
      %6316 = vmatprep.subr.bf16.mxu0 0
      %6317 = vmatpush1.bf16.msra.mxu0 0
      %6318 = vmatprep.subr.bf16.mxu0 0
      %6319 = vmatpush1.bf16.msra.mxu0 0
      %6320 = vmatprep.subr.bf16.mxu0 0
      %6321 = vmatpush1.bf16.msra.mxu0 0
      %6322 = vmatprep.subr.bf16.mxu0 0
      %6323 = vmatpush1.bf16.msra.mxu0 0
      %6324 = vmatprep.subr.bf16.mxu0 0
      %6325 = vmatpush1.bf16.msra.mxu0 0
      %6326 = vmatprep.subr.bf16.mxu0 0
      %6327 = vmatpush1.bf16.msra.mxu0 0
      %6328 = vmatprep.mubr.bf16.mxu0 0
      %6329 = vmatmul.mubr.bf16.gmra.mrb[0].mxu0 %v4751
      %v6330 = vpop.f32.mrb[0].mxu0
      %v6331 = vpop.f32.mrb[0].mxu0
      %v6332 = vpop.f32.mrb[0].mxu0
      %v6333 = vpop.f32.mrb[0].mxu0
      %6334 = vmatprep.mubr.bf16.mxu0 0
      %6335 = vmatmul.mubr.bf16.gmra.mrb[0].mxu0 %v4754
      %v6336 = vpop.f32.mrb[0].mxu0
      %v6337 = vpop.f32.mrb[0].mxu0
      %v6338 = vpop.f32.mrb[0].mxu0
      %v6339 = vadd.f32 0.0, %v6338
      %v6340 = vpop.f32.mrb[0].mxu0
      %6341 = vmatprep.mubr.bf16.mxu0 0
      %6342 = vmatmul.mubr.bf16.gmra.mrb[0].mxu0 %v4757
      %v6343 = vpop.f32.mrb[0].mxu0
      %v6344 = vadd.f32 0.0, %v6343
      %v6345 = vpop.f32.mrb[0].mxu0
      %v6346 = vpop.f32.mrb[0].mxu0
      %v6347 = vadd.f32 0.0, %v6346
      %v6348 = vpop.f32.mrb[0].mxu0
      %6349 = vmatprep.mubr.bf16.mxu0 0
      %6350 = vmatmul.mubr.bf16.gmra.mrb[0].mxu0 %v4760
      %v6351 = vpop.f32.mrb[0].mxu0
      %v6352 = vadd.f32 0.0, %v6351
      %v6353 = vpop.f32.mrb[0].mxu0
      %v6354 = vpop.f32.mrb[0].mxu0
      %v6355 = vadd.f32 0.0, %v6354
      %v6356 = vpop.f32.mrb[0].mxu0
      %6357 = vmatprep.mubr.bf16.mxu0 0
      %6358 = vmatmul.mubr.bf16.gmra.mrb[0].mxu0 %v4763
      %v6359 = vpop.f32.mrb[0].mxu0
      %v6360 = vadd.f32 0.0, %v6359
      %v6361 = vpop.f32.mrb[0].mxu0
      %v6362 = vpop.f32.mrb[0].mxu0
      %v6363 = vadd.f32 0.0, %v6362
      %v6364 = vpop.f32.mrb[0].mxu0
      %6365 = vmatprep.mubr.bf16.mxu0 0
      %6366 = vmatmul.mubr.bf16.gmra.mrb[0].mxu0 %v4766
      %v6367 = vpop.f32.mrb[0].mxu0
      %v6368 = vadd.f32 0.0, %v6367
      %v6369 = vpop.f32.mrb[0].mxu0
      %v6370 = vpop.f32.mrb[0].mxu0
      %v6371 = vadd.f32 0.0, %v6370
      %v6372 = vpop.f32.mrb[0].mxu0
      %6373 = vmatprep.mubr.bf16.mxu0 0
      %6374 = vmatmul.mubr.bf16.gmra.mrb[0].mxu0 %v4769
      %v6375 = vpop.f32.mrb[0].mxu0
      %v6376 = vadd.f32 0.0, %v6375
      %v6377 = vpop.f32.mrb[0].mxu0
      %v6378 = vpop.f32.mrb[0].mxu0
      %v6379 = vadd.f32 0.0, %v6378
      %v6380 = vpop.f32.mrb[0].mxu0
      %6381 = vmatprep.mubr.bf16.mxu0 0
      %6382 = vmatmul.mubr.bf16.gmra.mrb[0].mxu0 %v4772
      %v6383 = vpop.f32.mrb[0].mxu0
      %v6384 = vadd.f32 0.0, %v6383
      %v6385 = vpop.f32.mrb[0].mxu0
      %v6386 = vpop.f32.mrb[0].mxu0
      %v6387 = vadd.f32 0.0, %v6386
      %v6388 = vpop.f32.mrb[0].mxu0
      %6389 = vmatprep.mubr.bf16.mxu0 0
      %6390 = vmatmul.mubr.bf16.gmra.mrb[0].mxu0 %v4775
      %v6391 = vpop.f32.mrb[0].mxu0
      %v6392 = vadd.f32 0.0, %v6391
      %v6393 = vpop.f32.mrb[0].mxu0
      %v6394 = vpop.f32.mrb[0].mxu0
      %v6395 = vadd.f32 0.0, %v6394
      %v6396 = vpop.f32.mrb[0].mxu0
      %6397 = vmatprep.mubr.bf16.mxu0 0
      %6398 = vmatmul.mubr.bf16.gmra.mrb[0].mxu0 %v4778
      %v6399 = vpop.f32.mrb[0].mxu0
      %v6400 = vadd.f32 0.0, %v6399
      %v6401 = vpop.f32.mrb[0].mxu0
      %v6402 = vpop.f32.mrb[0].mxu0
      %v6403 = vadd.f32 0.0, %v6402
      %v6404 = vpop.f32.mrb[0].mxu0
      %6405 = vmatprep.mubr.bf16.mxu0 0
      %6406 = vmatmul.mubr.bf16.gmra.mrb[0].mxu0 %v4781
      %v6407 = vpop.f32.mrb[0].mxu0
      %v6408 = vadd.f32 0.0, %v6407
      %v6409 = vpop.f32.mrb[0].mxu0
      %v6410 = vpop.f32.mrb[0].mxu0
      %v6411 = vadd.f32 0.0, %v6410
      %v6412 = vpop.f32.mrb[0].mxu0
      %6413 = vmatprep.mubr.bf16.mxu0 0
      %6414 = vmatmul.mubr.bf16.gmra.mrb[0].mxu0 %v4784
      %v6415 = vpop.f32.mrb[0].mxu0
      %v6416 = vadd.f32 0.0, %v6415
      %v6417 = vpop.f32.mrb[0].mxu0
      %v6418 = vpop.f32.mrb[0].mxu0
      %v6419 = vadd.f32 0.0, %v6418
      %v6420 = vpop.f32.mrb[0].mxu0
      %6421 = vmatprep.mubr.bf16.mxu0 0
      %6422 = vmatmul.mubr.bf16.gmra.mrb[0].mxu0 %v4787
      %v6423 = vpop.f32.mrb[0].mxu0
      %v6424 = vadd.f32 0.0, %v6423
      %v6425 = vpop.f32.mrb[0].mxu0
      %v6426 = vpop.f32.mrb[0].mxu0
      %v6427 = vadd.f32 0.0, %v6426
      %v6428 = vpop.f32.mrb[0].mxu0
      %6429 = vmatprep.mubr.bf16.mxu0 0
      %6430 = vmatmul.mubr.bf16.gmra.mrb[0].mxu0 %v4790
      %v6431 = vpop.f32.mrb[0].mxu0
      %v6432 = vadd.f32 0.0, %v6431
      %v6433 = vpop.f32.mrb[0].mxu0
      %v6434 = vpop.f32.mrb[0].mxu0
      %v6435 = vadd.f32 0.0, %v6434
      %v6436 = vpop.f32.mrb[0].mxu0
      %6437 = vmatprep.mubr.bf16.mxu0 0
      %6438 = vmatmul.mubr.bf16.gmra.mrb[0].mxu0 %v4793
      %v6439 = vpop.f32.mrb[0].mxu0
      %v6440 = vadd.f32 0.0, %v6439
      %v6441 = vpop.f32.mrb[0].mxu0
      %v6442 = vpop.f32.mrb[0].mxu0
      %v6443 = vadd.f32 0.0, %v6442
      %v6444 = vpop.f32.mrb[0].mxu0
      %6445 = vmatprep.mubr.bf16.mxu0 0
      %6446 = vmatmul.mubr.bf16.gmra.mrb[0].mxu0 %v4796
      %v6447 = vpop.f32.mrb[0].mxu0
      %v6448 = vadd.f32 0.0, %v6447
      %v6449 = vpop.f32.mrb[0].mxu0
      %v6450 = vpop.f32.mrb[0].mxu0
      %v6451 = vadd.f32 0.0, %v6450
      %v6452 = vpop.f32.mrb[0].mxu0
      %6453 = vmatprep.mubr.bf16.mxu0 0
      %6454 = vmatmul.mubr.bf16.gmra.mrb[0].mxu0 %v4799
      %v6455 = vpop.f32.mrb[0].mxu0
      %v6456 = vadd.f32 0.0, %v6455
      %v6457 = vpop.f32.mrb[0].mxu0
      %v6458 = vpop.f32.mrb[0].mxu0
      %v6459 = vadd.f32 0.0, %v6458
      %v6460 = vpop.f32.mrb[0].mxu0
      %6461 = vmatprep.mubr.bf16.mxu0 0
      %6462 = vmatmul.mubr.bf16.gmra.mrb[0].mxu0 %v4802
      %v6463 = vpop.f32.mrb[0].mxu0
      %v6464 = vadd.f32 0.0, %v6463
      %v6465 = vpop.f32.mrb[0].mxu0
      %v6466 = vpop.f32.mrb[0].mxu0
      %v6467 = vadd.f32 0.0, %v6466
      %v6468 = vpop.f32.mrb[0].mxu0
      %6469 = vmatprep.mubr.bf16.mxu0 0
      %6470 = vmatmul.mubr.bf16.gmra.mrb[0].mxu0 %v4805
      %v6471 = vpop.f32.mrb[0].mxu0
      %v6472 = vadd.f32 0.0, %v6471
      %v6473 = vpop.f32.mrb[0].mxu0
      %v6474 = vpop.f32.mrb[0].mxu0
      %v6475 = vadd.f32 0.0, %v6474
      %v6476 = vpop.f32.mrb[0].mxu0
      %6477 = vmatprep.mubr.bf16.mxu0 0
      %6478 = vmatmul.mubr.bf16.gmra.mrb[0].mxu0 %v4808
      %v6479 = vpop.f32.mrb[0].mxu0
      %v6480 = vadd.f32 0.0, %v6479
      %v6481 = vpop.f32.mrb[0].mxu0
      %v6482 = vpop.f32.mrb[0].mxu0
      %v6483 = vadd.f32 0.0, %v6482
      %v6484 = vpop.f32.mrb[0].mxu0
      %6485 = vmatprep.mubr.bf16.mxu0 0
      %6486 = vmatmul.mubr.bf16.gmra.mrb[0].mxu0 %v4811
      %v6487 = vpop.f32.mrb[0].mxu0
      %v6488 = vadd.f32 0.0, %v6487
      %v6489 = vpop.f32.mrb[0].mxu0
      %v6490 = vpop.f32.mrb[0].mxu0
      %v6491 = vadd.f32 0.0, %v6490
      %v6492 = vpop.f32.mrb[0].mxu0
      %6493 = vmatprep.mubr.bf16.mxu0 0
      %6494 = vmatmul.mubr.bf16.gmra.mrb[0].mxu0 %v4814
      %v6495 = vpop.f32.mrb[0].mxu0
      %v6496 = vadd.f32 0.0, %v6495
      %v6497 = vpop.f32.mrb[0].mxu0
      %v6498 = vpop.f32.mrb[0].mxu0
      %v6499 = vadd.f32 0.0, %v6498
      %v6500 = vpop.f32.mrb[0].mxu0
      %6501 = vmatprep.mubr.bf16.mxu0 0
      %6502 = vmatmul.mubr.bf16.gmra.mrb[0].mxu0 %v4817
      %v6503 = vpop.f32.mrb[0].mxu0
      %v6504 = vadd.f32 0.0, %v6503
      %v6505 = vpop.f32.mrb[0].mxu0
      %v6506 = vpop.f32.mrb[0].mxu0
      %v6507 = vadd.f32 0.0, %v6506
      %v6508 = vpop.f32.mrb[0].mxu0
      %6509 = vmatprep.mubr.bf16.mxu0 0
      %6510 = vmatmul.mubr.bf16.gmra.mrb[0].mxu0 %v4820
      %v6511 = vpop.f32.mrb[0].mxu0
      %v6512 = vadd.f32 0.0, %v6511
      %v6513 = vpop.f32.mrb[0].mxu0
      %v6514 = vpop.f32.mrb[0].mxu0
      %v6515 = vadd.f32 0.0, %v6514
      %v6516 = vpop.f32.mrb[0].mxu0
      %6517 = vmatprep.mubr.bf16.mxu0 0
      %6518 = vmatmul.mubr.bf16.gmra.mrb[0].mxu0 %v4823
      %v6519 = vpop.f32.mrb[0].mxu0
      %v6520 = vadd.f32 0.0, %v6519
      %v6521 = vpop.f32.mrb[0].mxu0
      %v6522 = vpop.f32.mrb[0].mxu0
      %v6523 = vadd.f32 0.0, %v6522
      %v6524 = vpop.f32.mrb[0].mxu0
      %6525 = vmatprep.mubr.bf16.mxu0 0
      %6526 = vmatmul.mubr.bf16.gmra.mrb[0].mxu0 %v4826
      %v6527 = vpop.f32.mrb[0].mxu0
      %v6528 = vadd.f32 0.0, %v6527
      %v6529 = vpop.f32.mrb[0].mxu0
      %v6530 = vpop.f32.mrb[0].mxu0
      %v6531 = vpop.f32.mrb[0].mxu0
      %6532 = vmatprep.mubr.bf16.mxu0 0
      %6533 = vmatmul.mubr.bf16.gmra.mrb[0].mxu0 %v4829
      %v6534 = vpop.f32.mrb[0].mxu0
      %v6535 = vpop.f32.mrb[0].mxu0
      %v6536 = vpop.f32.mrb[0].mxu0
      %v6537 = vpop.f32.mrb[0].mxu0
      %6538 = vmatprep.mubr.bf16.mxu0 0
      %6539 = vmatmul.mubr.bf16.gmra.mrb[0].mxu0 %v4832
      %v6540 = vpop.f32.mrb[0].mxu0
      %v6541 = vpop.f32.mrb[0].mxu0
      %v6542 = vpop.f32.mrb[0].mxu0
      %v6543 = vpop.f32.mrb[0].mxu0
      %6544 = vmatprep.mubr.bf16.mxu0 0
      %6545 = vmatmul.mubr.bf16.gmra.mrb[0].mxu0 %v4835
      %v6546 = vpop.f32.mrb[0].mxu0
      %v6547 = vpop.f32.mrb[0].mxu0
      %v6548 = vpop.f32.mrb[0].mxu0
      %v6549 = vpop.f32.mrb[0].mxu0
      %6550 = vdwg.mxu0
      %v6599 = vrot.slane %v6339, 1
      %v6600 = vrot.slane %v6344, 1
      %v6601 = vsel %vm1270, %v6599, %v6600
      %v6602 = vrot.slane %v6347, 1
      %v6603 = vsel %vm1270, %v6600, %v6602
      %v6604 = vrot.slane %v6352, 1
      %v6605 = vrot.slane %v6355, 1
      %v6606 = vsel %vm1270, %v6604, %v6605
      %v6607 = vrot.slane %v6360, 1
      %v6608 = vsel %vm1270, %v6605, %v6607
      %v6609 = vrot.slane %v6363, 1
      %v6610 = vrot.slane %v6368, 1
      %v6611 = vsel %vm1270, %v6609, %v6610
      %v6612 = vrot.slane %v6371, 1
      %v6613 = vsel %vm1270, %v6610, %v6612
      %v6614 = vrot.slane %v6376, 1
      %v6615 = vrot.slane %v6379, 1
      %v6616 = vsel %vm1270, %v6614, %v6615
      %v6617 = vrot.slane %v6384, 1
      %v6618 = vsel %vm1270, %v6615, %v6617
      %v6619 = vrot.slane %v6387, 1
      %v6620 = vrot.slane %v6392, 1
      %v6621 = vsel %vm1270, %v6619, %v6620
      %v6622 = vrot.slane %v6395, 1
      %v6623 = vsel %vm1270, %v6620, %v6622
      %v6624 = vrot.slane %v6400, 1
      %v6625 = vrot.slane %v6403, 1
      %v6626 = vsel %vm1270, %v6624, %v6625
      %v6627 = vrot.slane %v6408, 1
      %v6628 = vsel %vm1270, %v6625, %v6627
      %v6629 = vrot.slane %v6411, 1
      %v6630 = vrot.slane %v6416, 1
      %v6631 = vsel %vm1270, %v6629, %v6630
      %v6632 = vrot.slane %v6419, 1
      %v6633 = vsel %vm1270, %v6630, %v6632
      %v6634 = vrot.slane %v6424, 1
      %v6635 = vrot.slane %v6427, 1
      %v6636 = vsel %vm1270, %v6634, %v6635
      %v6637 = vrot.slane %v6432, 1
      %v6638 = vsel %vm1270, %v6635, %v6637
      %v6639 = vrot.slane %v6435, 1
      %v6640 = vrot.slane %v6440, 1
      %v6641 = vsel %vm1270, %v6639, %v6640
      %v6642 = vrot.slane %v6443, 1
      %v6643 = vsel %vm1270, %v6640, %v6642
      %v6644 = vrot.slane %v6448, 1
      %v6645 = vrot.slane %v6451, 1
      %v6646 = vsel %vm1270, %v6644, %v6645
      %v6647 = vrot.slane %v6456, 1
      %v6648 = vsel %vm1270, %v6645, %v6647
      %v6649 = vrot.slane %v6459, 1
      %v6650 = vrot.slane %v6464, 1
      %v6651 = vsel %vm1270, %v6649, %v6650
      %v6652 = vrot.slane %v6467, 1
      %v6653 = vsel %vm1270, %v6650, %v6652
      %v6654 = vrot.slane %v6472, 1
      %v6655 = vrot.slane %v6475, 1
      %v6656 = vsel %vm1270, %v6654, %v6655
      %v6657 = vrot.slane %v6480, 1
      %v6658 = vsel %vm1270, %v6655, %v6657
      %v6659 = vrot.slane %v6483, 1
      %v6660 = vrot.slane %v6488, 1
      %v6661 = vsel %vm1270, %v6659, %v6660
      %v6662 = vrot.slane %v6491, 1
      %v6663 = vsel %vm1270, %v6660, %v6662
      %v6664 = vrot.slane %v6496, 1
      %v6665 = vrot.slane %v6499, 1
      %v6666 = vsel %vm1270, %v6664, %v6665
      %v6667 = vrot.slane %v6504, 1
      %v6668 = vsel %vm1270, %v6665, %v6667
      %v6669 = vrot.slane %v6507, 1
      %v6670 = vrot.slane %v6512, 1
      %v6671 = vsel %vm1270, %v6669, %v6670
      %v6672 = vrot.slane %v6515, 1
      %v6673 = vsel %vm1270, %v6670, %v6672
      %v6674 = vrot.slane %v6520, 1
      %v6675 = vrot.slane %v6523, 1
      %v6676 = vsel %vm1270, %v6674, %v6675
      %v6677 = vrot.slane %v6528, 1
      %v6678 = vsel %vm1270, %v6675, %v6677
      %v6711 = vadd.f32 %v6259, %v6601
      %v6712 = vadd.f32 %v6260, %v6603
      %v6713 = vadd.f32 %v6261, %v6606
      %v6714 = vadd.f32 %v6262, %v6608
      %v6715 = vadd.f32 %v6263, %v6611
      %v6716 = vadd.f32 %v6264, %v6613
      %v6717 = vadd.f32 %v6265, %v6616
      %v6718 = vadd.f32 %v6266, %v6618
      %v6719 = vadd.f32 %v6267, %v6621
      %v6720 = vadd.f32 %v6268, %v6623
      %v6721 = vadd.f32 %v6269, %v6626
      %v6722 = vadd.f32 %v6270, %v6628
      %v6723 = vadd.f32 %v6271, %v6631
      %v6724 = vadd.f32 %v6272, %v6633
      %v6725 = vadd.f32 %v6273, %v6636
      %v6726 = vadd.f32 %v6274, %v6638
      %v6727 = vadd.f32 %v6275, %v6641
      %v6728 = vadd.f32 %v6276, %v6643
      %v6729 = vadd.f32 %v6277, %v6646
      %v6730 = vadd.f32 %v6278, %v6648
      %v6731 = vadd.f32 %v6279, %v6651
      %v6732 = vadd.f32 %v6280, %v6653
      %v6733 = vadd.f32 %v6281, %v6656
      %v6734 = vadd.f32 %v6282, %v6658
      %v6735 = vadd.f32 %v6283, %v6661
      %v6736 = vadd.f32 %v6284, %v6663
      %v6737 = vadd.f32 %v6285, %v6666
      %v6738 = vadd.f32 %v6286, %v6668
      %v6739 = vadd.f32 %v6287, %v6671
      %v6740 = vadd.f32 %v6288, %v6673
      %v6741 = vadd.f32 %v6289, %v6676
      %v6742 = vadd.f32 %v6290, %v6678
      %s6743 = scalar_lea.vmem %s5, 10
      %v6744 = vld [vmem:[%s6743] sm:$0x3]
      %v6746 = vsel %vm687, %v6744, 0
      %6748 = vmatprep.subr.bf16.mxu0 0
      %6749 = vmatpush1.bf16.msra.mxu0 %v6746
      %6750 = vmatprep.subr.bf16.mxu0 0
      %6751 = vmatpush1.bf16.msra.mxu0 0
      %6752 = vmatprep.subr.bf16.mxu0 0
      %6753 = vmatpush1.bf16.msra.mxu0 0
      %6754 = vmatprep.subr.bf16.mxu0 0
      %6755 = vmatpush1.bf16.msra.mxu0 0
      %6756 = vmatprep.subr.bf16.mxu0 0
      %6757 = vmatpush1.bf16.msra.mxu0 0
      %6758 = vmatprep.subr.bf16.mxu0 0
      %6759 = vmatpush1.bf16.msra.mxu0 0
      %6760 = vmatprep.subr.bf16.mxu0 0
      %6761 = vmatpush1.bf16.msra.mxu0 0
      %6762 = vmatprep.subr.bf16.mxu0 0
      %6763 = vmatpush1.bf16.msra.mxu0 0
      %6764 = vmatprep.subr.bf16.mxu0 0
      %6765 = vmatpush1.bf16.msra.mxu0 0
      %6766 = vmatprep.subr.bf16.mxu0 0
      %6767 = vmatpush1.bf16.msra.mxu0 0
      %6768 = vmatprep.subr.bf16.mxu0 0
      %6769 = vmatpush1.bf16.msra.mxu0 0
      %6770 = vmatprep.subr.bf16.mxu0 0
      %6771 = vmatpush1.bf16.msra.mxu0 0
      %6772 = vmatprep.subr.bf16.mxu0 0
      %6773 = vmatpush1.bf16.msra.mxu0 0
      %6774 = vmatprep.subr.bf16.mxu0 0
      %6775 = vmatpush1.bf16.msra.mxu0 0
      %6776 = vmatprep.subr.bf16.mxu0 0
      %6777 = vmatpush1.bf16.msra.mxu0 0
      %6778 = vmatprep.subr.bf16.mxu0 0
      %6779 = vmatpush1.bf16.msra.mxu0 0
      %6780 = vmatprep.mubr.bf16.mxu0 0
      %6781 = vmatmul.mubr.bf16.gmra.mrb[0].mxu0 %v4751
      %v6782 = vpop.f32.mrb[0].mxu0
      %v6783 = vpop.f32.mrb[0].mxu0
      %v6784 = vpop.f32.mrb[0].mxu0
      %v6785 = vpop.f32.mrb[0].mxu0
      %6786 = vmatprep.mubr.bf16.mxu0 0
      %6787 = vmatmul.mubr.bf16.gmra.mrb[0].mxu0 %v4754
      %v6788 = vpop.f32.mrb[0].mxu0
      %v6789 = vpop.f32.mrb[0].mxu0
      %v6790 = vpop.f32.mrb[0].mxu0
      %v6791 = vadd.f32 0.0, %v6790
      %v6792 = vpop.f32.mrb[0].mxu0
      %6793 = vmatprep.mubr.bf16.mxu0 0
      %6794 = vmatmul.mubr.bf16.gmra.mrb[0].mxu0 %v4757
      %v6795 = vpop.f32.mrb[0].mxu0
      %v6796 = vadd.f32 0.0, %v6795
      %v6797 = vpop.f32.mrb[0].mxu0
      %v6798 = vpop.f32.mrb[0].mxu0
      %v6799 = vadd.f32 0.0, %v6798
      %v6800 = vpop.f32.mrb[0].mxu0
      %6801 = vmatprep.mubr.bf16.mxu0 0
      %6802 = vmatmul.mubr.bf16.gmra.mrb[0].mxu0 %v4760
      %v6803 = vpop.f32.mrb[0].mxu0
      %v6804 = vadd.f32 0.0, %v6803
      %v6805 = vpop.f32.mrb[0].mxu0
      %v6806 = vpop.f32.mrb[0].mxu0
      %v6807 = vadd.f32 0.0, %v6806
      %v6808 = vpop.f32.mrb[0].mxu0
      %6809 = vmatprep.mubr.bf16.mxu0 0
      %6810 = vmatmul.mubr.bf16.gmra.mrb[0].mxu0 %v4763
      %v6811 = vpop.f32.mrb[0].mxu0
      %v6812 = vadd.f32 0.0, %v6811
      %v6813 = vpop.f32.mrb[0].mxu0
      %v6814 = vpop.f32.mrb[0].mxu0
      %v6815 = vadd.f32 0.0, %v6814
      %v6816 = vpop.f32.mrb[0].mxu0
      %6817 = vmatprep.mubr.bf16.mxu0 0
      %6818 = vmatmul.mubr.bf16.gmra.mrb[0].mxu0 %v4766
      %v6819 = vpop.f32.mrb[0].mxu0
      %v6820 = vadd.f32 0.0, %v6819
      %v6821 = vpop.f32.mrb[0].mxu0
      %v6822 = vpop.f32.mrb[0].mxu0
      %v6823 = vadd.f32 0.0, %v6822
      %v6824 = vpop.f32.mrb[0].mxu0
      %6825 = vmatprep.mubr.bf16.mxu0 0
      %6826 = vmatmul.mubr.bf16.gmra.mrb[0].mxu0 %v4769
      %v6827 = vpop.f32.mrb[0].mxu0
      %v6828 = vadd.f32 0.0, %v6827
      %v6829 = vpop.f32.mrb[0].mxu0
      %v6830 = vpop.f32.mrb[0].mxu0
      %v6831 = vadd.f32 0.0, %v6830
      %v6832 = vpop.f32.mrb[0].mxu0
      %6833 = vmatprep.mubr.bf16.mxu0 0
      %6834 = vmatmul.mubr.bf16.gmra.mrb[0].mxu0 %v4772
      %v6835 = vpop.f32.mrb[0].mxu0
      %v6836 = vadd.f32 0.0, %v6835
      %v6837 = vpop.f32.mrb[0].mxu0
      %v6838 = vpop.f32.mrb[0].mxu0
      %v6839 = vadd.f32 0.0, %v6838
      %v6840 = vpop.f32.mrb[0].mxu0
      %6841 = vmatprep.mubr.bf16.mxu0 0
      %6842 = vmatmul.mubr.bf16.gmra.mrb[0].mxu0 %v4775
      %v6843 = vpop.f32.mrb[0].mxu0
      %v6844 = vadd.f32 0.0, %v6843
      %v6845 = vpop.f32.mrb[0].mxu0
      %v6846 = vpop.f32.mrb[0].mxu0
      %v6847 = vadd.f32 0.0, %v6846
      %v6848 = vpop.f32.mrb[0].mxu0
      %6849 = vmatprep.mubr.bf16.mxu0 0
      %6850 = vmatmul.mubr.bf16.gmra.mrb[0].mxu0 %v4778
      %v6851 = vpop.f32.mrb[0].mxu0
      %v6852 = vadd.f32 0.0, %v6851
      %v6853 = vpop.f32.mrb[0].mxu0
      %v6854 = vpop.f32.mrb[0].mxu0
      %v6855 = vadd.f32 0.0, %v6854
      %v6856 = vpop.f32.mrb[0].mxu0
      %6857 = vmatprep.mubr.bf16.mxu0 0
      %6858 = vmatmul.mubr.bf16.gmra.mrb[0].mxu0 %v4781
      %v6859 = vpop.f32.mrb[0].mxu0
      %v6860 = vadd.f32 0.0, %v6859
      %v6861 = vpop.f32.mrb[0].mxu0
      %v6862 = vpop.f32.mrb[0].mxu0
      %v6863 = vadd.f32 0.0, %v6862
      %v6864 = vpop.f32.mrb[0].mxu0
      %6865 = vmatprep.mubr.bf16.mxu0 0
      %6866 = vmatmul.mubr.bf16.gmra.mrb[0].mxu0 %v4784
      %v6867 = vpop.f32.mrb[0].mxu0
      %v6868 = vadd.f32 0.0, %v6867
      %v6869 = vpop.f32.mrb[0].mxu0
      %v6870 = vpop.f32.mrb[0].mxu0
      %v6871 = vadd.f32 0.0, %v6870
      %v6872 = vpop.f32.mrb[0].mxu0
      %6873 = vmatprep.mubr.bf16.mxu0 0
      %6874 = vmatmul.mubr.bf16.gmra.mrb[0].mxu0 %v4787
      %v6875 = vpop.f32.mrb[0].mxu0
      %v6876 = vadd.f32 0.0, %v6875
      %v6877 = vpop.f32.mrb[0].mxu0
      %v6878 = vpop.f32.mrb[0].mxu0
      %v6879 = vadd.f32 0.0, %v6878
      %v6880 = vpop.f32.mrb[0].mxu0
      %6881 = vmatprep.mubr.bf16.mxu0 0
      %6882 = vmatmul.mubr.bf16.gmra.mrb[0].mxu0 %v4790
      %v6883 = vpop.f32.mrb[0].mxu0
      %v6884 = vadd.f32 0.0, %v6883
      %v6885 = vpop.f32.mrb[0].mxu0
      %v6886 = vpop.f32.mrb[0].mxu0
      %v6887 = vadd.f32 0.0, %v6886
      %v6888 = vpop.f32.mrb[0].mxu0
      %6889 = vmatprep.mubr.bf16.mxu0 0
      %6890 = vmatmul.mubr.bf16.gmra.mrb[0].mxu0 %v4793
      %v6891 = vpop.f32.mrb[0].mxu0
      %v6892 = vadd.f32 0.0, %v6891
      %v6893 = vpop.f32.mrb[0].mxu0
      %v6894 = vpop.f32.mrb[0].mxu0
      %v6895 = vadd.f32 0.0, %v6894
      %v6896 = vpop.f32.mrb[0].mxu0
      %6897 = vmatprep.mubr.bf16.mxu0 0
      %6898 = vmatmul.mubr.bf16.gmra.mrb[0].mxu0 %v4796
      %v6899 = vpop.f32.mrb[0].mxu0
      %v6900 = vadd.f32 0.0, %v6899
      %v6901 = vpop.f32.mrb[0].mxu0
      %v6902 = vpop.f32.mrb[0].mxu0
      %v6903 = vadd.f32 0.0, %v6902
      %v6904 = vpop.f32.mrb[0].mxu0
      %6905 = vmatprep.mubr.bf16.mxu0 0
      %6906 = vmatmul.mubr.bf16.gmra.mrb[0].mxu0 %v4799
      %v6907 = vpop.f32.mrb[0].mxu0
      %v6908 = vadd.f32 0.0, %v6907
      %v6909 = vpop.f32.mrb[0].mxu0
      %v6910 = vpop.f32.mrb[0].mxu0
      %v6911 = vadd.f32 0.0, %v6910
      %v6912 = vpop.f32.mrb[0].mxu0
      %6913 = vmatprep.mubr.bf16.mxu0 0
      %6914 = vmatmul.mubr.bf16.gmra.mrb[0].mxu0 %v4802
      %v6915 = vpop.f32.mrb[0].mxu0
      %v6916 = vadd.f32 0.0, %v6915
      %v6917 = vpop.f32.mrb[0].mxu0
      %v6918 = vpop.f32.mrb[0].mxu0
      %v6919 = vadd.f32 0.0, %v6918
      %v6920 = vpop.f32.mrb[0].mxu0
      %6921 = vmatprep.mubr.bf16.mxu0 0
      %6922 = vmatmul.mubr.bf16.gmra.mrb[0].mxu0 %v4805
      %v6923 = vpop.f32.mrb[0].mxu0
      %v6924 = vadd.f32 0.0, %v6923
      %v6925 = vpop.f32.mrb[0].mxu0
      %v6926 = vpop.f32.mrb[0].mxu0
      %v6927 = vadd.f32 0.0, %v6926
      %v6928 = vpop.f32.mrb[0].mxu0
      %6929 = vmatprep.mubr.bf16.mxu0 0
      %6930 = vmatmul.mubr.bf16.gmra.mrb[0].mxu0 %v4808
      %v6931 = vpop.f32.mrb[0].mxu0
      %v6932 = vadd.f32 0.0, %v6931
      %v6933 = vpop.f32.mrb[0].mxu0
      %v6934 = vpop.f32.mrb[0].mxu0
      %v6935 = vadd.f32 0.0, %v6934
      %v6936 = vpop.f32.mrb[0].mxu0
      %6937 = vmatprep.mubr.bf16.mxu0 0
      %6938 = vmatmul.mubr.bf16.gmra.mrb[0].mxu0 %v4811
      %v6939 = vpop.f32.mrb[0].mxu0
      %v6940 = vadd.f32 0.0, %v6939
      %v6941 = vpop.f32.mrb[0].mxu0
      %v6942 = vpop.f32.mrb[0].mxu0
      %v6943 = vadd.f32 0.0, %v6942
      %v6944 = vpop.f32.mrb[0].mxu0
      %6945 = vmatprep.mubr.bf16.mxu0 0
      %6946 = vmatmul.mubr.bf16.gmra.mrb[0].mxu0 %v4814
      %v6947 = vpop.f32.mrb[0].mxu0
      %v6948 = vadd.f32 0.0, %v6947
      %v6949 = vpop.f32.mrb[0].mxu0
      %v6950 = vpop.f32.mrb[0].mxu0
      %v6951 = vadd.f32 0.0, %v6950
      %v6952 = vpop.f32.mrb[0].mxu0
      %6953 = vmatprep.mubr.bf16.mxu0 0
      %6954 = vmatmul.mubr.bf16.gmra.mrb[0].mxu0 %v4817
      %v6955 = vpop.f32.mrb[0].mxu0
      %v6956 = vadd.f32 0.0, %v6955
      %v6957 = vpop.f32.mrb[0].mxu0
      %v6958 = vpop.f32.mrb[0].mxu0
      %v6959 = vadd.f32 0.0, %v6958
      %v6960 = vpop.f32.mrb[0].mxu0
      %6961 = vmatprep.mubr.bf16.mxu0 0
      %6962 = vmatmul.mubr.bf16.gmra.mrb[0].mxu0 %v4820
      %v6963 = vpop.f32.mrb[0].mxu0
      %v6964 = vadd.f32 0.0, %v6963
      %v6965 = vpop.f32.mrb[0].mxu0
      %v6966 = vpop.f32.mrb[0].mxu0
      %v6967 = vadd.f32 0.0, %v6966
      %v6968 = vpop.f32.mrb[0].mxu0
      %6969 = vmatprep.mubr.bf16.mxu0 0
      %6970 = vmatmul.mubr.bf16.gmra.mrb[0].mxu0 %v4823
      %v6971 = vpop.f32.mrb[0].mxu0
      %v6972 = vadd.f32 0.0, %v6971
      %v6973 = vpop.f32.mrb[0].mxu0
      %v6974 = vpop.f32.mrb[0].mxu0
      %v6975 = vadd.f32 0.0, %v6974
      %v6976 = vpop.f32.mrb[0].mxu0
      %6977 = vmatprep.mubr.bf16.mxu0 0
      %6978 = vmatmul.mubr.bf16.gmra.mrb[0].mxu0 %v4826
      %v6979 = vpop.f32.mrb[0].mxu0
      %v6980 = vadd.f32 0.0, %v6979
      %v6981 = vpop.f32.mrb[0].mxu0
      %v6982 = vpop.f32.mrb[0].mxu0
      %v6983 = vpop.f32.mrb[0].mxu0
      %6984 = vmatprep.mubr.bf16.mxu0 0
      %6985 = vmatmul.mubr.bf16.gmra.mrb[0].mxu0 %v4829
      %v6986 = vpop.f32.mrb[0].mxu0
      %v6987 = vpop.f32.mrb[0].mxu0
      %v6988 = vpop.f32.mrb[0].mxu0
      %v6989 = vpop.f32.mrb[0].mxu0
      %6990 = vmatprep.mubr.bf16.mxu0 0
      %6991 = vmatmul.mubr.bf16.gmra.mrb[0].mxu0 %v4832
      %v6992 = vpop.f32.mrb[0].mxu0
      %v6993 = vpop.f32.mrb[0].mxu0
      %v6994 = vpop.f32.mrb[0].mxu0
      %v6995 = vpop.f32.mrb[0].mxu0
      %6996 = vmatprep.mubr.bf16.mxu0 0
      %6997 = vmatmul.mubr.bf16.gmra.mrb[0].mxu0 %v4835
      %v6998 = vpop.f32.mrb[0].mxu0
      %v6999 = vpop.f32.mrb[0].mxu0
      %v7000 = vpop.f32.mrb[0].mxu0
      %v7001 = vpop.f32.mrb[0].mxu0
      %7002 = vdwg.mxu0
      %v7051 = vrot.slane %v6791, 2
      %v7052 = vrot.slane %v6796, 2
      %v7053 = vsel %vm1723, %v7051, %v7052
      %v7054 = vrot.slane %v6799, 2
      %v7055 = vsel %vm1723, %v7052, %v7054
      %v7056 = vrot.slane %v6804, 2
      %v7057 = vrot.slane %v6807, 2
      %v7058 = vsel %vm1723, %v7056, %v7057
      %v7059 = vrot.slane %v6812, 2
      %v7060 = vsel %vm1723, %v7057, %v7059
      %v7061 = vrot.slane %v6815, 2
      %v7062 = vrot.slane %v6820, 2
      %v7063 = vsel %vm1723, %v7061, %v7062
      %v7064 = vrot.slane %v6823, 2
      %v7065 = vsel %vm1723, %v7062, %v7064
      %v7066 = vrot.slane %v6828, 2
      %v7067 = vrot.slane %v6831, 2
      %v7068 = vsel %vm1723, %v7066, %v7067
      %v7069 = vrot.slane %v6836, 2
      %v7070 = vsel %vm1723, %v7067, %v7069
      %v7071 = vrot.slane %v6839, 2
      %v7072 = vrot.slane %v6844, 2
      %v7073 = vsel %vm1723, %v7071, %v7072
      %v7074 = vrot.slane %v6847, 2
      %v7075 = vsel %vm1723, %v7072, %v7074
      %v7076 = vrot.slane %v6852, 2
      %v7077 = vrot.slane %v6855, 2
      %v7078 = vsel %vm1723, %v7076, %v7077
      %v7079 = vrot.slane %v6860, 2
      %v7080 = vsel %vm1723, %v7077, %v7079
      %v7081 = vrot.slane %v6863, 2
      %v7082 = vrot.slane %v6868, 2
      %v7083 = vsel %vm1723, %v7081, %v7082
      %v7084 = vrot.slane %v6871, 2
      %v7085 = vsel %vm1723, %v7082, %v7084
      %v7086 = vrot.slane %v6876, 2
      %v7087 = vrot.slane %v6879, 2
      %v7088 = vsel %vm1723, %v7086, %v7087
      %v7089 = vrot.slane %v6884, 2
      %v7090 = vsel %vm1723, %v7087, %v7089
      %v7091 = vrot.slane %v6887, 2
      %v7092 = vrot.slane %v6892, 2
      %v7093 = vsel %vm1723, %v7091, %v7092
      %v7094 = vrot.slane %v6895, 2
      %v7095 = vsel %vm1723, %v7092, %v7094
      %v7096 = vrot.slane %v6900, 2
      %v7097 = vrot.slane %v6903, 2
      %v7098 = vsel %vm1723, %v7096, %v7097
      %v7099 = vrot.slane %v6908, 2
      %v7100 = vsel %vm1723, %v7097, %v7099
      %v7101 = vrot.slane %v6911, 2
      %v7102 = vrot.slane %v6916, 2
      %v7103 = vsel %vm1723, %v7101, %v7102
      %v7104 = vrot.slane %v6919, 2
      %v7105 = vsel %vm1723, %v7102, %v7104
      %v7106 = vrot.slane %v6924, 2
      %v7107 = vrot.slane %v6927, 2
      %v7108 = vsel %vm1723, %v7106, %v7107
      %v7109 = vrot.slane %v6932, 2
      %v7110 = vsel %vm1723, %v7107, %v7109
      %v7111 = vrot.slane %v6935, 2
      %v7112 = vrot.slane %v6940, 2
      %v7113 = vsel %vm1723, %v7111, %v7112
      %v7114 = vrot.slane %v6943, 2
      %v7115 = vsel %vm1723, %v7112, %v7114
      %v7116 = vrot.slane %v6948, 2
      %v7117 = vrot.slane %v6951, 2
      %v7118 = vsel %vm1723, %v7116, %v7117
      %v7119 = vrot.slane %v6956, 2
      %v7120 = vsel %vm1723, %v7117, %v7119
      %v7121 = vrot.slane %v6959, 2
      %v7122 = vrot.slane %v6964, 2
      %v7123 = vsel %vm1723, %v7121, %v7122
      %v7124 = vrot.slane %v6967, 2
      %v7125 = vsel %vm1723, %v7122, %v7124
      %v7126 = vrot.slane %v6972, 2
      %v7127 = vrot.slane %v6975, 2
      %v7128 = vsel %vm1723, %v7126, %v7127
      %v7129 = vrot.slane %v6980, 2
      %v7130 = vsel %vm1723, %v7127, %v7129
      %v7163 = vadd.f32 %v6711, %v7053
      %v7164 = vadd.f32 %v6712, %v7055
      %v7165 = vadd.f32 %v6713, %v7058
      %v7166 = vadd.f32 %v6714, %v7060
      %v7167 = vadd.f32 %v6715, %v7063
      %v7168 = vadd.f32 %v6716, %v7065
      %v7169 = vadd.f32 %v6717, %v7068
      %v7170 = vadd.f32 %v6718, %v7070
      %v7171 = vadd.f32 %v6719, %v7073
      %v7172 = vadd.f32 %v6720, %v7075
      %v7173 = vadd.f32 %v6721, %v7078
      %v7174 = vadd.f32 %v6722, %v7080
      %v7175 = vadd.f32 %v6723, %v7083
      %v7176 = vadd.f32 %v6724, %v7085
      %v7177 = vadd.f32 %v6725, %v7088
      %v7178 = vadd.f32 %v6726, %v7090
      %v7179 = vadd.f32 %v6727, %v7093
      %v7180 = vadd.f32 %v6728, %v7095
      %v7181 = vadd.f32 %v6729, %v7098
      %v7182 = vadd.f32 %v6730, %v7100
      %v7183 = vadd.f32 %v6731, %v7103
      %v7184 = vadd.f32 %v6732, %v7105
      %v7185 = vadd.f32 %v6733, %v7108
      %v7186 = vadd.f32 %v6734, %v7110
      %v7187 = vadd.f32 %v6735, %v7113
      %v7188 = vadd.f32 %v6736, %v7115
      %v7189 = vadd.f32 %v6737, %v7118
      %v7190 = vadd.f32 %v6738, %v7120
      %v7191 = vadd.f32 %v6739, %v7123
      %v7192 = vadd.f32 %v6740, %v7125
      %v7193 = vadd.f32 %v6741, %v7128
      %v7194 = vadd.f32 %v6742, %v7130
      %s7195 = scalar_lea.vmem %s5, 12
      %v7196 = vld [vmem:[%s7195] sm:$0x3]
      %v7198 = vsel %vm687, %v7196, 0
      %7200 = vmatprep.subr.bf16.mxu0 0
      %7201 = vmatpush1.bf16.msra.mxu0 %v7198
      %7202 = vmatprep.subr.bf16.mxu0 0
      %7203 = vmatpush1.bf16.msra.mxu0 0
      %7204 = vmatprep.subr.bf16.mxu0 0
      %7205 = vmatpush1.bf16.msra.mxu0 0
      %7206 = vmatprep.subr.bf16.mxu0 0
      %7207 = vmatpush1.bf16.msra.mxu0 0
      %7208 = vmatprep.subr.bf16.mxu0 0
      %7209 = vmatpush1.bf16.msra.mxu0 0
      %7210 = vmatprep.subr.bf16.mxu0 0
      %7211 = vmatpush1.bf16.msra.mxu0 0
      %7212 = vmatprep.subr.bf16.mxu0 0
      %7213 = vmatpush1.bf16.msra.mxu0 0
      %7214 = vmatprep.subr.bf16.mxu0 0
      %7215 = vmatpush1.bf16.msra.mxu0 0
      %7216 = vmatprep.subr.bf16.mxu0 0
      %7217 = vmatpush1.bf16.msra.mxu0 0
      %7218 = vmatprep.subr.bf16.mxu0 0
      %7219 = vmatpush1.bf16.msra.mxu0 0
      %7220 = vmatprep.subr.bf16.mxu0 0
      %7221 = vmatpush1.bf16.msra.mxu0 0
      %7222 = vmatprep.subr.bf16.mxu0 0
      %7223 = vmatpush1.bf16.msra.mxu0 0
      %7224 = vmatprep.subr.bf16.mxu0 0
      %7225 = vmatpush1.bf16.msra.mxu0 0
      %7226 = vmatprep.subr.bf16.mxu0 0
      %7227 = vmatpush1.bf16.msra.mxu0 0
      %7228 = vmatprep.subr.bf16.mxu0 0
      %7229 = vmatpush1.bf16.msra.mxu0 0
      %7230 = vmatprep.subr.bf16.mxu0 0
      %7231 = vmatpush1.bf16.msra.mxu0 0
      %7232 = vmatprep.mubr.bf16.mxu0 0
      %7233 = vmatmul.mubr.bf16.gmra.mrb[0].mxu0 %v4751
      %v7234 = vpop.f32.mrb[0].mxu0
      %v7235 = vpop.f32.mrb[0].mxu0
      %v7236 = vpop.f32.mrb[0].mxu0
      %v7237 = vpop.f32.mrb[0].mxu0
      %7238 = vmatprep.mubr.bf16.mxu0 0
      %7239 = vmatmul.mubr.bf16.gmra.mrb[0].mxu0 %v4754
      %v7240 = vpop.f32.mrb[0].mxu0
      %v7241 = vpop.f32.mrb[0].mxu0
      %v7242 = vpop.f32.mrb[0].mxu0
      %v7243 = vpop.f32.mrb[0].mxu0
      %7244 = vmatprep.mubr.bf16.mxu0 0
      %7245 = vmatmul.mubr.bf16.gmra.mrb[0].mxu0 %v4757
      %v7246 = vpop.f32.mrb[0].mxu0
      %v7247 = vpop.f32.mrb[0].mxu0
      %v7248 = vpop.f32.mrb[0].mxu0
      %v7249 = vpop.f32.mrb[0].mxu0
      %7250 = vmatprep.mubr.bf16.mxu0 0
      %7251 = vmatmul.mubr.bf16.gmra.mrb[0].mxu0 %v4760
      %v7252 = vpop.f32.mrb[0].mxu0
      %v7253 = vadd.f32 0.0, %v7252
      %v7254 = vpop.f32.mrb[0].mxu0
      %v7255 = vpop.f32.mrb[0].mxu0
      %v7256 = vadd.f32 0.0, %v7255
      %v7257 = vpop.f32.mrb[0].mxu0
      %7258 = vmatprep.mubr.bf16.mxu0 0
      %7259 = vmatmul.mubr.bf16.gmra.mrb[0].mxu0 %v4763
      %v7260 = vpop.f32.mrb[0].mxu0
      %v7261 = vpop.f32.mrb[0].mxu0
      %v7262 = vpop.f32.mrb[0].mxu0
      %v7263 = vadd.f32 0.0, %v7262
      %v7264 = vpop.f32.mrb[0].mxu0
      %7265 = vmatprep.mubr.bf16.mxu0 0
      %7266 = vmatmul.mubr.bf16.gmra.mrb[0].mxu0 %v4766
      %v7267 = vpop.f32.mrb[0].mxu0
      %v7268 = vadd.f32 0.0, %v7267
      %v7269 = vpop.f32.mrb[0].mxu0
      %v7270 = vpop.f32.mrb[0].mxu0
      %v7271 = vpop.f32.mrb[0].mxu0
      %7272 = vmatprep.mubr.bf16.mxu0 0
      %7273 = vmatmul.mubr.bf16.gmra.mrb[0].mxu0 %v4769
      %v7274 = vpop.f32.mrb[0].mxu0
      %v7275 = vadd.f32 0.0, %v7274
      %v7276 = vpop.f32.mrb[0].mxu0
      %v7277 = vpop.f32.mrb[0].mxu0
      %v7278 = vadd.f32 0.0, %v7277
      %v7279 = vpop.f32.mrb[0].mxu0
      %7280 = vmatprep.mubr.bf16.mxu0 0
      %7281 = vmatmul.mubr.bf16.gmra.mrb[0].mxu0 %v4772
      %v7282 = vpop.f32.mrb[0].mxu0
      %v7283 = vpop.f32.mrb[0].mxu0
      %v7284 = vpop.f32.mrb[0].mxu0
      %v7285 = vadd.f32 0.0, %v7284
      %v7286 = vpop.f32.mrb[0].mxu0
      %7287 = vmatprep.mubr.bf16.mxu0 0
      %7288 = vmatmul.mubr.bf16.gmra.mrb[0].mxu0 %v4775
      %v7289 = vpop.f32.mrb[0].mxu0
      %v7290 = vadd.f32 0.0, %v7289
      %v7291 = vpop.f32.mrb[0].mxu0
      %v7292 = vpop.f32.mrb[0].mxu0
      %v7293 = vpop.f32.mrb[0].mxu0
      %7294 = vmatprep.mubr.bf16.mxu0 0
      %7295 = vmatmul.mubr.bf16.gmra.mrb[0].mxu0 %v4778
      %v7296 = vpop.f32.mrb[0].mxu0
      %v7297 = vadd.f32 0.0, %v7296
      %v7298 = vpop.f32.mrb[0].mxu0
      %v7299 = vpop.f32.mrb[0].mxu0
      %v7300 = vadd.f32 0.0, %v7299
      %v7301 = vpop.f32.mrb[0].mxu0
      %7302 = vmatprep.mubr.bf16.mxu0 0
      %7303 = vmatmul.mubr.bf16.gmra.mrb[0].mxu0 %v4781
      %v7304 = vpop.f32.mrb[0].mxu0
      %v7305 = vpop.f32.mrb[0].mxu0
      %v7306 = vpop.f32.mrb[0].mxu0
      %v7307 = vadd.f32 0.0, %v7306
      %v7308 = vpop.f32.mrb[0].mxu0
      %7309 = vmatprep.mubr.bf16.mxu0 0
      %7310 = vmatmul.mubr.bf16.gmra.mrb[0].mxu0 %v4784
      %v7311 = vpop.f32.mrb[0].mxu0
      %v7312 = vadd.f32 0.0, %v7311
      %v7313 = vpop.f32.mrb[0].mxu0
      %v7314 = vpop.f32.mrb[0].mxu0
      %v7315 = vpop.f32.mrb[0].mxu0
      %7316 = vmatprep.mubr.bf16.mxu0 0
      %7317 = vmatmul.mubr.bf16.gmra.mrb[0].mxu0 %v4787
      %v7318 = vpop.f32.mrb[0].mxu0
      %v7319 = vadd.f32 0.0, %v7318
      %v7320 = vpop.f32.mrb[0].mxu0
      %v7321 = vpop.f32.mrb[0].mxu0
      %v7322 = vadd.f32 0.0, %v7321
      %v7323 = vpop.f32.mrb[0].mxu0
      %7324 = vmatprep.mubr.bf16.mxu0 0
      %7325 = vmatmul.mubr.bf16.gmra.mrb[0].mxu0 %v4790
      %v7326 = vpop.f32.mrb[0].mxu0
      %v7327 = vpop.f32.mrb[0].mxu0
      %v7328 = vpop.f32.mrb[0].mxu0
      %v7329 = vadd.f32 0.0, %v7328
      %v7330 = vpop.f32.mrb[0].mxu0
      %7331 = vmatprep.mubr.bf16.mxu0 0
      %7332 = vmatmul.mubr.bf16.gmra.mrb[0].mxu0 %v4793
      %v7333 = vpop.f32.mrb[0].mxu0
      %v7334 = vadd.f32 0.0, %v7333
      %v7335 = vpop.f32.mrb[0].mxu0
      %v7336 = vpop.f32.mrb[0].mxu0
      %v7337 = vpop.f32.mrb[0].mxu0
      %7338 = vmatprep.mubr.bf16.mxu0 0
      %7339 = vmatmul.mubr.bf16.gmra.mrb[0].mxu0 %v4796
      %v7340 = vpop.f32.mrb[0].mxu0
      %v7341 = vadd.f32 0.0, %v7340
      %v7342 = vpop.f32.mrb[0].mxu0
      %v7343 = vpop.f32.mrb[0].mxu0
      %v7344 = vadd.f32 0.0, %v7343
      %v7345 = vpop.f32.mrb[0].mxu0
      %7346 = vmatprep.mubr.bf16.mxu0 0
      %7347 = vmatmul.mubr.bf16.gmra.mrb[0].mxu0 %v4799
      %v7348 = vpop.f32.mrb[0].mxu0
      %v7349 = vpop.f32.mrb[0].mxu0
      %v7350 = vpop.f32.mrb[0].mxu0
      %v7351 = vadd.f32 0.0, %v7350
      %v7352 = vpop.f32.mrb[0].mxu0
      %7353 = vmatprep.mubr.bf16.mxu0 0
      %7354 = vmatmul.mubr.bf16.gmra.mrb[0].mxu0 %v4802
      %v7355 = vpop.f32.mrb[0].mxu0
      %v7356 = vadd.f32 0.0, %v7355
      %v7357 = vpop.f32.mrb[0].mxu0
      %v7358 = vpop.f32.mrb[0].mxu0
      %v7359 = vpop.f32.mrb[0].mxu0
      %7360 = vmatprep.mubr.bf16.mxu0 0
      %7361 = vmatmul.mubr.bf16.gmra.mrb[0].mxu0 %v4805
      %v7362 = vpop.f32.mrb[0].mxu0
      %v7363 = vadd.f32 0.0, %v7362
      %v7364 = vpop.f32.mrb[0].mxu0
      %v7365 = vpop.f32.mrb[0].mxu0
      %v7366 = vadd.f32 0.0, %v7365
      %v7367 = vpop.f32.mrb[0].mxu0
      %7368 = vmatprep.mubr.bf16.mxu0 0
      %7369 = vmatmul.mubr.bf16.gmra.mrb[0].mxu0 %v4808
      %v7370 = vpop.f32.mrb[0].mxu0
      %v7371 = vpop.f32.mrb[0].mxu0
      %v7372 = vpop.f32.mrb[0].mxu0
      %v7373 = vadd.f32 0.0, %v7372
      %v7374 = vpop.f32.mrb[0].mxu0
      %7375 = vmatprep.mubr.bf16.mxu0 0
      %7376 = vmatmul.mubr.bf16.gmra.mrb[0].mxu0 %v4811
      %v7377 = vpop.f32.mrb[0].mxu0
      %v7378 = vadd.f32 0.0, %v7377
      %v7379 = vpop.f32.mrb[0].mxu0
      %v7380 = vpop.f32.mrb[0].mxu0
      %v7381 = vpop.f32.mrb[0].mxu0
      %7382 = vmatprep.mubr.bf16.mxu0 0
      %7383 = vmatmul.mubr.bf16.gmra.mrb[0].mxu0 %v4814
      %v7384 = vpop.f32.mrb[0].mxu0
      %v7385 = vadd.f32 0.0, %v7384
      %v7386 = vpop.f32.mrb[0].mxu0
      %v7387 = vpop.f32.mrb[0].mxu0
      %v7388 = vadd.f32 0.0, %v7387
      %v7389 = vpop.f32.mrb[0].mxu0
      %7390 = vmatprep.mubr.bf16.mxu0 0
      %7391 = vmatmul.mubr.bf16.gmra.mrb[0].mxu0 %v4817
      %v7392 = vpop.f32.mrb[0].mxu0
      %v7393 = vpop.f32.mrb[0].mxu0
      %v7394 = vpop.f32.mrb[0].mxu0
      %v7395 = vadd.f32 0.0, %v7394
      %v7396 = vpop.f32.mrb[0].mxu0
      %7397 = vmatprep.mubr.bf16.mxu0 0
      %7398 = vmatmul.mubr.bf16.gmra.mrb[0].mxu0 %v4820
      %v7399 = vpop.f32.mrb[0].mxu0
      %v7400 = vadd.f32 0.0, %v7399
      %v7401 = vpop.f32.mrb[0].mxu0
      %v7402 = vpop.f32.mrb[0].mxu0
      %v7403 = vpop.f32.mrb[0].mxu0
      %7404 = vmatprep.mubr.bf16.mxu0 0
      %7405 = vmatmul.mubr.bf16.gmra.mrb[0].mxu0 %v4823
      %v7406 = vpop.f32.mrb[0].mxu0
      %v7407 = vadd.f32 0.0, %v7406
      %v7408 = vpop.f32.mrb[0].mxu0
      %v7409 = vpop.f32.mrb[0].mxu0
      %v7410 = vadd.f32 0.0, %v7409
      %v7411 = vpop.f32.mrb[0].mxu0
      %7412 = vmatprep.mubr.bf16.mxu0 0
      %7413 = vmatmul.mubr.bf16.gmra.mrb[0].mxu0 %v4826
      %v7414 = vpop.f32.mrb[0].mxu0
      %v7415 = vpop.f32.mrb[0].mxu0
      %v7416 = vpop.f32.mrb[0].mxu0
      %v7417 = vadd.f32 0.0, %v7416
      %v7418 = vpop.f32.mrb[0].mxu0
      %7419 = vmatprep.mubr.bf16.mxu0 0
      %7420 = vmatmul.mubr.bf16.gmra.mrb[0].mxu0 %v4829
      %v7421 = vpop.f32.mrb[0].mxu0
      %v7422 = vadd.f32 0.0, %v7421
      %v7423 = vpop.f32.mrb[0].mxu0
      %v7424 = vpop.f32.mrb[0].mxu0
      %v7425 = vpop.f32.mrb[0].mxu0
      %7426 = vmatprep.mubr.bf16.mxu0 0
      %7427 = vmatmul.mubr.bf16.gmra.mrb[0].mxu0 %v4832
      %v7428 = vpop.f32.mrb[0].mxu0
      %v7429 = vpop.f32.mrb[0].mxu0
      %v7430 = vpop.f32.mrb[0].mxu0
      %v7431 = vpop.f32.mrb[0].mxu0
      %7432 = vmatprep.mubr.bf16.mxu0 0
      %7433 = vmatmul.mubr.bf16.gmra.mrb[0].mxu0 %v4835
      %v7434 = vpop.f32.mrb[0].mxu0
      %v7435 = vpop.f32.mrb[0].mxu0
      %v7436 = vpop.f32.mrb[0].mxu0
      %v7437 = vpop.f32.mrb[0].mxu0
      %7438 = vdwg.mxu0
      %v7439 = vadd.f32 %v7163, %v7253
      %v7440 = vadd.f32 %v7164, %v7256
      %v7441 = vadd.f32 %v7165, %v7263
      %v7442 = vadd.f32 %v7166, %v7268
      %v7443 = vadd.f32 %v7167, %v7275
      %v7444 = vadd.f32 %v7168, %v7278
      %v7445 = vadd.f32 %v7169, %v7285
      %v7446 = vadd.f32 %v7170, %v7290
      %v7447 = vadd.f32 %v7171, %v7297
      %v7448 = vadd.f32 %v7172, %v7300
      %v7449 = vadd.f32 %v7173, %v7307
      %v7450 = vadd.f32 %v7174, %v7312
      %v7451 = vadd.f32 %v7175, %v7319
      %v7452 = vadd.f32 %v7176, %v7322
      %v7453 = vadd.f32 %v7177, %v7329
      %v7454 = vadd.f32 %v7178, %v7334
      %v7455 = vadd.f32 %v7179, %v7341
      %v7456 = vadd.f32 %v7180, %v7344
      %v7457 = vadd.f32 %v7181, %v7351
      %v7458 = vadd.f32 %v7182, %v7356
      %v7459 = vadd.f32 %v7183, %v7363
      %v7460 = vadd.f32 %v7184, %v7366
      %v7461 = vadd.f32 %v7185, %v7373
      %v7462 = vadd.f32 %v7186, %v7378
      %v7463 = vadd.f32 %v7187, %v7385
      %v7464 = vadd.f32 %v7188, %v7388
      %v7465 = vadd.f32 %v7189, %v7395
      %v7466 = vadd.f32 %v7190, %v7400
      %v7467 = vadd.f32 %v7191, %v7407
      %v7468 = vadd.f32 %v7192, %v7410
      %v7469 = vadd.f32 %v7193, %v7417
      %v7470 = vadd.f32 %v7194, %v7422
      %s7471 = scalar_lea.vmem %s5, 14
      %v7472 = vld [vmem:[%s7471] sm:$0x3]
      %v7474 = vsel %vm687, %v7472, 0
      %7476 = vmatprep.subr.bf16.mxu0 0
      %7477 = vmatpush1.bf16.msra.mxu0 %v7474
      %7478 = vmatprep.subr.bf16.mxu0 0
      %7479 = vmatpush1.bf16.msra.mxu0 0
      %7480 = vmatprep.subr.bf16.mxu0 0
      %7481 = vmatpush1.bf16.msra.mxu0 0
      %7482 = vmatprep.subr.bf16.mxu0 0
      %7483 = vmatpush1.bf16.msra.mxu0 0
      %7484 = vmatprep.subr.bf16.mxu0 0
      %7485 = vmatpush1.bf16.msra.mxu0 0
      %7486 = vmatprep.subr.bf16.mxu0 0
      %7487 = vmatpush1.bf16.msra.mxu0 0
      %7488 = vmatprep.subr.bf16.mxu0 0
      %7489 = vmatpush1.bf16.msra.mxu0 0
      %7490 = vmatprep.subr.bf16.mxu0 0
      %7491 = vmatpush1.bf16.msra.mxu0 0
      %7492 = vmatprep.subr.bf16.mxu0 0
      %7493 = vmatpush1.bf16.msra.mxu0 0
      %7494 = vmatprep.subr.bf16.mxu0 0
      %7495 = vmatpush1.bf16.msra.mxu0 0
      %7496 = vmatprep.subr.bf16.mxu0 0
      %7497 = vmatpush1.bf16.msra.mxu0 0
      %7498 = vmatprep.subr.bf16.mxu0 0
      %7499 = vmatpush1.bf16.msra.mxu0 0
      %7500 = vmatprep.subr.bf16.mxu0 0
      %7501 = vmatpush1.bf16.msra.mxu0 0
      %7502 = vmatprep.subr.bf16.mxu0 0
      %7503 = vmatpush1.bf16.msra.mxu0 0
      %7504 = vmatprep.subr.bf16.mxu0 0
      %7505 = vmatpush1.bf16.msra.mxu0 0
      %7506 = vmatprep.subr.bf16.mxu0 0
      %7507 = vmatpush1.bf16.msra.mxu0 0
      %7508 = vmatprep.mubr.bf16.mxu0 0
      %7509 = vmatmul.mubr.bf16.gmra.mrb[0].mxu0 %v4751
      %v7510 = vpop.f32.mrb[0].mxu0
      %v7511 = vpop.f32.mrb[0].mxu0
      %v7512 = vpop.f32.mrb[0].mxu0
      %v7513 = vpop.f32.mrb[0].mxu0
      %7514 = vmatprep.mubr.bf16.mxu0 0
      %7515 = vmatmul.mubr.bf16.gmra.mrb[0].mxu0 %v4754
      %v7516 = vpop.f32.mrb[0].mxu0
      %v7517 = vpop.f32.mrb[0].mxu0
      %v7518 = vpop.f32.mrb[0].mxu0
      %v7519 = vpop.f32.mrb[0].mxu0
      %7520 = vmatprep.mubr.bf16.mxu0 0
      %7521 = vmatmul.mubr.bf16.gmra.mrb[0].mxu0 %v4757
      %v7522 = vpop.f32.mrb[0].mxu0
      %v7523 = vpop.f32.mrb[0].mxu0
      %v7524 = vpop.f32.mrb[0].mxu0
      %v7525 = vpop.f32.mrb[0].mxu0
      %7526 = vmatprep.mubr.bf16.mxu0 0
      %7527 = vmatmul.mubr.bf16.gmra.mrb[0].mxu0 %v4760
      %v7528 = vpop.f32.mrb[0].mxu0
      %v7529 = vadd.f32 0.0, %v7528
      %v7530 = vpop.f32.mrb[0].mxu0
      %v7531 = vpop.f32.mrb[0].mxu0
      %v7532 = vadd.f32 0.0, %v7531
      %v7533 = vpop.f32.mrb[0].mxu0
      %7534 = vmatprep.mubr.bf16.mxu0 0
      %7535 = vmatmul.mubr.bf16.gmra.mrb[0].mxu0 %v4763
      %v7536 = vpop.f32.mrb[0].mxu0
      %v7537 = vadd.f32 0.0, %v7536
      %v7538 = vpop.f32.mrb[0].mxu0
      %v7539 = vpop.f32.mrb[0].mxu0
      %v7540 = vadd.f32 0.0, %v7539
      %v7541 = vpop.f32.mrb[0].mxu0
      %7542 = vmatprep.mubr.bf16.mxu0 0
      %7543 = vmatmul.mubr.bf16.gmra.mrb[0].mxu0 %v4766
      %v7544 = vpop.f32.mrb[0].mxu0
      %v7545 = vadd.f32 0.0, %v7544
      %v7546 = vpop.f32.mrb[0].mxu0
      %v7547 = vpop.f32.mrb[0].mxu0
      %v7548 = vadd.f32 0.0, %v7547
      %v7549 = vpop.f32.mrb[0].mxu0
      %7550 = vmatprep.mubr.bf16.mxu0 0
      %7551 = vmatmul.mubr.bf16.gmra.mrb[0].mxu0 %v4769
      %v7552 = vpop.f32.mrb[0].mxu0
      %v7553 = vadd.f32 0.0, %v7552
      %v7554 = vpop.f32.mrb[0].mxu0
      %v7555 = vpop.f32.mrb[0].mxu0
      %v7556 = vadd.f32 0.0, %v7555
      %v7557 = vpop.f32.mrb[0].mxu0
      %7558 = vmatprep.mubr.bf16.mxu0 0
      %7559 = vmatmul.mubr.bf16.gmra.mrb[0].mxu0 %v4772
      %v7560 = vpop.f32.mrb[0].mxu0
      %v7561 = vadd.f32 0.0, %v7560
      %v7562 = vpop.f32.mrb[0].mxu0
      %v7563 = vpop.f32.mrb[0].mxu0
      %v7564 = vadd.f32 0.0, %v7563
      %v7565 = vpop.f32.mrb[0].mxu0
      %7566 = vmatprep.mubr.bf16.mxu0 0
      %7567 = vmatmul.mubr.bf16.gmra.mrb[0].mxu0 %v4775
      %v7568 = vpop.f32.mrb[0].mxu0
      %v7569 = vadd.f32 0.0, %v7568
      %v7570 = vpop.f32.mrb[0].mxu0
      %v7571 = vpop.f32.mrb[0].mxu0
      %v7572 = vadd.f32 0.0, %v7571
      %v7573 = vpop.f32.mrb[0].mxu0
      %7574 = vmatprep.mubr.bf16.mxu0 0
      %7575 = vmatmul.mubr.bf16.gmra.mrb[0].mxu0 %v4778
      %v7576 = vpop.f32.mrb[0].mxu0
      %v7577 = vadd.f32 0.0, %v7576
      %v7578 = vpop.f32.mrb[0].mxu0
      %v7579 = vpop.f32.mrb[0].mxu0
      %v7580 = vadd.f32 0.0, %v7579
      %v7581 = vpop.f32.mrb[0].mxu0
      %7582 = vmatprep.mubr.bf16.mxu0 0
      %7583 = vmatmul.mubr.bf16.gmra.mrb[0].mxu0 %v4781
      %v7584 = vpop.f32.mrb[0].mxu0
      %v7585 = vadd.f32 0.0, %v7584
      %v7586 = vpop.f32.mrb[0].mxu0
      %v7587 = vpop.f32.mrb[0].mxu0
      %v7588 = vadd.f32 0.0, %v7587
      %v7589 = vpop.f32.mrb[0].mxu0
      %7590 = vmatprep.mubr.bf16.mxu0 0
      %7591 = vmatmul.mubr.bf16.gmra.mrb[0].mxu0 %v4784
      %v7592 = vpop.f32.mrb[0].mxu0
      %v7593 = vadd.f32 0.0, %v7592
      %v7594 = vpop.f32.mrb[0].mxu0
      %v7595 = vpop.f32.mrb[0].mxu0
      %v7596 = vadd.f32 0.0, %v7595
      %v7597 = vpop.f32.mrb[0].mxu0
      %7598 = vmatprep.mubr.bf16.mxu0 0
      %7599 = vmatmul.mubr.bf16.gmra.mrb[0].mxu0 %v4787
      %v7600 = vpop.f32.mrb[0].mxu0
      %v7601 = vadd.f32 0.0, %v7600
      %v7602 = vpop.f32.mrb[0].mxu0
      %v7603 = vpop.f32.mrb[0].mxu0
      %v7604 = vadd.f32 0.0, %v7603
      %v7605 = vpop.f32.mrb[0].mxu0
      %7606 = vmatprep.mubr.bf16.mxu0 0
      %7607 = vmatmul.mubr.bf16.gmra.mrb[0].mxu0 %v4790
      %v7608 = vpop.f32.mrb[0].mxu0
      %v7609 = vadd.f32 0.0, %v7608
      %v7610 = vpop.f32.mrb[0].mxu0
      %v7611 = vpop.f32.mrb[0].mxu0
      %v7612 = vadd.f32 0.0, %v7611
      %v7613 = vpop.f32.mrb[0].mxu0
      %7614 = vmatprep.mubr.bf16.mxu0 0
      %7615 = vmatmul.mubr.bf16.gmra.mrb[0].mxu0 %v4793
      %v7616 = vpop.f32.mrb[0].mxu0
      %v7617 = vadd.f32 0.0, %v7616
      %v7618 = vpop.f32.mrb[0].mxu0
      %v7619 = vpop.f32.mrb[0].mxu0
      %v7620 = vadd.f32 0.0, %v7619
      %v7621 = vpop.f32.mrb[0].mxu0
      %7622 = vmatprep.mubr.bf16.mxu0 0
      %7623 = vmatmul.mubr.bf16.gmra.mrb[0].mxu0 %v4796
      %v7624 = vpop.f32.mrb[0].mxu0
      %v7625 = vadd.f32 0.0, %v7624
      %v7626 = vpop.f32.mrb[0].mxu0
      %v7627 = vpop.f32.mrb[0].mxu0
      %v7628 = vadd.f32 0.0, %v7627
      %v7629 = vpop.f32.mrb[0].mxu0
      %7630 = vmatprep.mubr.bf16.mxu0 0
      %7631 = vmatmul.mubr.bf16.gmra.mrb[0].mxu0 %v4799
      %v7632 = vpop.f32.mrb[0].mxu0
      %v7633 = vadd.f32 0.0, %v7632
      %v7634 = vpop.f32.mrb[0].mxu0
      %v7635 = vpop.f32.mrb[0].mxu0
      %v7636 = vadd.f32 0.0, %v7635
      %v7637 = vpop.f32.mrb[0].mxu0
      %7638 = vmatprep.mubr.bf16.mxu0 0
      %7639 = vmatmul.mubr.bf16.gmra.mrb[0].mxu0 %v4802
      %v7640 = vpop.f32.mrb[0].mxu0
      %v7641 = vadd.f32 0.0, %v7640
      %v7642 = vpop.f32.mrb[0].mxu0
      %v7643 = vpop.f32.mrb[0].mxu0
      %v7644 = vadd.f32 0.0, %v7643
      %v7645 = vpop.f32.mrb[0].mxu0
      %7646 = vmatprep.mubr.bf16.mxu0 0
      %7647 = vmatmul.mubr.bf16.gmra.mrb[0].mxu0 %v4805
      %v7648 = vpop.f32.mrb[0].mxu0
      %v7649 = vadd.f32 0.0, %v7648
      %v7650 = vpop.f32.mrb[0].mxu0
      %v7651 = vpop.f32.mrb[0].mxu0
      %v7652 = vadd.f32 0.0, %v7651
      %v7653 = vpop.f32.mrb[0].mxu0
      %7654 = vmatprep.mubr.bf16.mxu0 0
      %7655 = vmatmul.mubr.bf16.gmra.mrb[0].mxu0 %v4808
      %v7656 = vpop.f32.mrb[0].mxu0
      %v7657 = vadd.f32 0.0, %v7656
      %v7658 = vpop.f32.mrb[0].mxu0
      %v7659 = vpop.f32.mrb[0].mxu0
      %v7660 = vadd.f32 0.0, %v7659
      %v7661 = vpop.f32.mrb[0].mxu0
      %7662 = vmatprep.mubr.bf16.mxu0 0
      %7663 = vmatmul.mubr.bf16.gmra.mrb[0].mxu0 %v4811
      %v7664 = vpop.f32.mrb[0].mxu0
      %v7665 = vadd.f32 0.0, %v7664
      %v7666 = vpop.f32.mrb[0].mxu0
      %v7667 = vpop.f32.mrb[0].mxu0
      %v7668 = vadd.f32 0.0, %v7667
      %v7669 = vpop.f32.mrb[0].mxu0
      %7670 = vmatprep.mubr.bf16.mxu0 0
      %7671 = vmatmul.mubr.bf16.gmra.mrb[0].mxu0 %v4814
      %v7672 = vpop.f32.mrb[0].mxu0
      %v7673 = vadd.f32 0.0, %v7672
      %v7674 = vpop.f32.mrb[0].mxu0
      %v7675 = vpop.f32.mrb[0].mxu0
      %v7676 = vadd.f32 0.0, %v7675
      %v7677 = vpop.f32.mrb[0].mxu0
      %7678 = vmatprep.mubr.bf16.mxu0 0
      %7679 = vmatmul.mubr.bf16.gmra.mrb[0].mxu0 %v4817
      %v7680 = vpop.f32.mrb[0].mxu0
      %v7681 = vadd.f32 0.0, %v7680
      %v7682 = vpop.f32.mrb[0].mxu0
      %v7683 = vpop.f32.mrb[0].mxu0
      %v7684 = vadd.f32 0.0, %v7683
      %v7685 = vpop.f32.mrb[0].mxu0
      %7686 = vmatprep.mubr.bf16.mxu0 0
      %7687 = vmatmul.mubr.bf16.gmra.mrb[0].mxu0 %v4820
      %v7688 = vpop.f32.mrb[0].mxu0
      %v7689 = vadd.f32 0.0, %v7688
      %v7690 = vpop.f32.mrb[0].mxu0
      %v7691 = vpop.f32.mrb[0].mxu0
      %v7692 = vadd.f32 0.0, %v7691
      %v7693 = vpop.f32.mrb[0].mxu0
      %7694 = vmatprep.mubr.bf16.mxu0 0
      %7695 = vmatmul.mubr.bf16.gmra.mrb[0].mxu0 %v4823
      %v7696 = vpop.f32.mrb[0].mxu0
      %v7697 = vadd.f32 0.0, %v7696
      %v7698 = vpop.f32.mrb[0].mxu0
      %v7699 = vpop.f32.mrb[0].mxu0
      %v7700 = vadd.f32 0.0, %v7699
      %v7701 = vpop.f32.mrb[0].mxu0
      %7702 = vmatprep.mubr.bf16.mxu0 0
      %7703 = vmatmul.mubr.bf16.gmra.mrb[0].mxu0 %v4826
      %v7704 = vpop.f32.mrb[0].mxu0
      %v7705 = vadd.f32 0.0, %v7704
      %v7706 = vpop.f32.mrb[0].mxu0
      %v7707 = vpop.f32.mrb[0].mxu0
      %v7708 = vadd.f32 0.0, %v7707
      %v7709 = vpop.f32.mrb[0].mxu0
      %7710 = vmatprep.mubr.bf16.mxu0 0
      %7711 = vmatmul.mubr.bf16.gmra.mrb[0].mxu0 %v4829
      %v7712 = vpop.f32.mrb[0].mxu0
      %v7713 = vadd.f32 0.0, %v7712
      %v7714 = vpop.f32.mrb[0].mxu0
      %v7715 = vpop.f32.mrb[0].mxu0
      %v7716 = vadd.f32 0.0, %v7715
      %v7717 = vpop.f32.mrb[0].mxu0
      %7718 = vmatprep.mubr.bf16.mxu0 0
      %7719 = vmatmul.mubr.bf16.gmra.mrb[0].mxu0 %v4832
      %v7720 = vpop.f32.mrb[0].mxu0
      %v7721 = vpop.f32.mrb[0].mxu0
      %v7722 = vpop.f32.mrb[0].mxu0
      %v7723 = vpop.f32.mrb[0].mxu0
      %7724 = vmatprep.mubr.bf16.mxu0 0
      %7725 = vmatmul.mubr.bf16.gmra.mrb[0].mxu0 %v4835
      %v7726 = vpop.f32.mrb[0].mxu0
      %v7727 = vpop.f32.mrb[0].mxu0
      %v7728 = vpop.f32.mrb[0].mxu0
      %v7729 = vpop.f32.mrb[0].mxu0
      %7730 = vdwg.mxu0
      %v7779 = vrot.slane %v7529, 1
      %v7780 = vrot.slane %v7532, 1
      %v7781 = vsel %vm1270, %v7779, %v7780
      %v7782 = vrot.slane %v7537, 1
      %v7783 = vsel %vm1270, %v7780, %v7782
      %v7784 = vrot.slane %v7540, 1
      %v7785 = vrot.slane %v7545, 1
      %v7786 = vsel %vm1270, %v7784, %v7785
      %v7787 = vrot.slane %v7548, 1
      %v7788 = vsel %vm1270, %v7785, %v7787
      %v7789 = vrot.slane %v7553, 1
      %v7790 = vrot.slane %v7556, 1
      %v7791 = vsel %vm1270, %v7789, %v7790
      %v7792 = vrot.slane %v7561, 1
      %v7793 = vsel %vm1270, %v7790, %v7792
      %v7794 = vrot.slane %v7564, 1
      %v7795 = vrot.slane %v7569, 1
      %v7796 = vsel %vm1270, %v7794, %v7795
      %v7797 = vrot.slane %v7572, 1
      %v7798 = vsel %vm1270, %v7795, %v7797
      %v7799 = vrot.slane %v7577, 1
      %v7800 = vrot.slane %v7580, 1
      %v7801 = vsel %vm1270, %v7799, %v7800
      %v7802 = vrot.slane %v7585, 1
      %v7803 = vsel %vm1270, %v7800, %v7802
      %v7804 = vrot.slane %v7588, 1
      %v7805 = vrot.slane %v7593, 1
      %v7806 = vsel %vm1270, %v7804, %v7805
      %v7807 = vrot.slane %v7596, 1
      %v7808 = vsel %vm1270, %v7805, %v7807
      %v7809 = vrot.slane %v7601, 1
      %v7810 = vrot.slane %v7604, 1
      %v7811 = vsel %vm1270, %v7809, %v7810
      %v7812 = vrot.slane %v7609, 1
      %v7813 = vsel %vm1270, %v7810, %v7812
      %v7814 = vrot.slane %v7612, 1
      %v7815 = vrot.slane %v7617, 1
      %v7816 = vsel %vm1270, %v7814, %v7815
      %v7817 = vrot.slane %v7620, 1
      %v7818 = vsel %vm1270, %v7815, %v7817
      %v7819 = vrot.slane %v7625, 1
      %v7820 = vrot.slane %v7628, 1
      %v7821 = vsel %vm1270, %v7819, %v7820
      %v7822 = vrot.slane %v7633, 1
      %v7823 = vsel %vm1270, %v7820, %v7822
      %v7824 = vrot.slane %v7636, 1
      %v7825 = vrot.slane %v7641, 1
      %v7826 = vsel %vm1270, %v7824, %v7825
      %v7827 = vrot.slane %v7644, 1
      %v7828 = vsel %vm1270, %v7825, %v7827
      %v7829 = vrot.slane %v7649, 1
      %v7830 = vrot.slane %v7652, 1
      %v7831 = vsel %vm1270, %v7829, %v7830
      %v7832 = vrot.slane %v7657, 1
      %v7833 = vsel %vm1270, %v7830, %v7832
      %v7834 = vrot.slane %v7660, 1
      %v7835 = vrot.slane %v7665, 1
      %v7836 = vsel %vm1270, %v7834, %v7835
      %v7837 = vrot.slane %v7668, 1
      %v7838 = vsel %vm1270, %v7835, %v7837
      %v7839 = vrot.slane %v7673, 1
      %v7840 = vrot.slane %v7676, 1
      %v7841 = vsel %vm1270, %v7839, %v7840
      %v7842 = vrot.slane %v7681, 1
      %v7843 = vsel %vm1270, %v7840, %v7842
      %v7844 = vrot.slane %v7684, 1
      %v7845 = vrot.slane %v7689, 1
      %v7846 = vsel %vm1270, %v7844, %v7845
      %v7847 = vrot.slane %v7692, 1
      %v7848 = vsel %vm1270, %v7845, %v7847
      %v7849 = vrot.slane %v7697, 1
      %v7850 = vrot.slane %v7700, 1
      %v7851 = vsel %vm1270, %v7849, %v7850
      %v7852 = vrot.slane %v7705, 1
      %v7853 = vsel %vm1270, %v7850, %v7852
      %v7854 = vrot.slane %v7708, 1
      %v7855 = vrot.slane %v7713, 1
      %v7856 = vsel %vm1270, %v7854, %v7855
      %v7857 = vrot.slane %v7716, 1
      %v7858 = vsel %vm1270, %v7855, %v7857
      %v7891 = vadd.f32 %v7439, %v7781
      %v7892 = vadd.f32 %v7440, %v7783
      %v7893 = vadd.f32 %v7441, %v7786
      %v7894 = vadd.f32 %v7442, %v7788
      %v7895 = vadd.f32 %v7443, %v7791
      %v7896 = vadd.f32 %v7444, %v7793
      %v7897 = vadd.f32 %v7445, %v7796
      %v7898 = vadd.f32 %v7446, %v7798
      %v7899 = vadd.f32 %v7447, %v7801
      %v7900 = vadd.f32 %v7448, %v7803
      %v7901 = vadd.f32 %v7449, %v7806
      %v7902 = vadd.f32 %v7450, %v7808
      %v7903 = vadd.f32 %v7451, %v7811
      %v7904 = vadd.f32 %v7452, %v7813
      %v7905 = vadd.f32 %v7453, %v7816
      %v7906 = vadd.f32 %v7454, %v7818
      %v7907 = vadd.f32 %v7455, %v7821
      %v7908 = vadd.f32 %v7456, %v7823
      %v7909 = vadd.f32 %v7457, %v7826
      %v7910 = vadd.f32 %v7458, %v7828
      %v7911 = vadd.f32 %v7459, %v7831
      %v7912 = vadd.f32 %v7460, %v7833
      %v7913 = vadd.f32 %v7461, %v7836
      %v7914 = vadd.f32 %v7462, %v7838
      %v7915 = vadd.f32 %v7463, %v7841
      %v7916 = vadd.f32 %v7464, %v7843
      %v7917 = vadd.f32 %v7465, %v7846
      %v7918 = vadd.f32 %v7466, %v7848
      %v7919 = vadd.f32 %v7467, %v7851
      %v7920 = vadd.f32 %v7468, %v7853
      %v7921 = vadd.f32 %v7469, %v7856
      %v7922 = vadd.f32 %v7470, %v7858
      %s7923 = scalar_lea.vmem %s5, 16
      %v7924 = vld [vmem:[%s7923] sm:$0x3]
      %v7926 = vsel %vm687, %v7924, 0
      %7928 = vmatprep.subr.bf16.mxu0 0
      %7929 = vmatpush1.bf16.msra.mxu0 %v7926
      %7930 = vmatprep.subr.bf16.mxu0 0
      %7931 = vmatpush1.bf16.msra.mxu0 0
      %7932 = vmatprep.subr.bf16.mxu0 0
      %7933 = vmatpush1.bf16.msra.mxu0 0
      %7934 = vmatprep.subr.bf16.mxu0 0
      %7935 = vmatpush1.bf16.msra.mxu0 0
      %7936 = vmatprep.subr.bf16.mxu0 0
      %7937 = vmatpush1.bf16.msra.mxu0 0
      %7938 = vmatprep.subr.bf16.mxu0 0
      %7939 = vmatpush1.bf16.msra.mxu0 0
      %7940 = vmatprep.subr.bf16.mxu0 0
      %7941 = vmatpush1.bf16.msra.mxu0 0
      %7942 = vmatprep.subr.bf16.mxu0 0
      %7943 = vmatpush1.bf16.msra.mxu0 0
      %7944 = vmatprep.subr.bf16.mxu0 0
      %7945 = vmatpush1.bf16.msra.mxu0 0
      %7946 = vmatprep.subr.bf16.mxu0 0
      %7947 = vmatpush1.bf16.msra.mxu0 0
      %7948 = vmatprep.subr.bf16.mxu0 0
      %7949 = vmatpush1.bf16.msra.mxu0 0
      %7950 = vmatprep.subr.bf16.mxu0 0
      %7951 = vmatpush1.bf16.msra.mxu0 0
      %7952 = vmatprep.subr.bf16.mxu0 0
      %7953 = vmatpush1.bf16.msra.mxu0 0
      %7954 = vmatprep.subr.bf16.mxu0 0
      %7955 = vmatpush1.bf16.msra.mxu0 0
      %7956 = vmatprep.subr.bf16.mxu0 0
      %7957 = vmatpush1.bf16.msra.mxu0 0
      %7958 = vmatprep.subr.bf16.mxu0 0
      %7959 = vmatpush1.bf16.msra.mxu0 0
      %7960 = vmatprep.mubr.bf16.mxu0 0
      %7961 = vmatmul.mubr.bf16.gmra.mrb[0].mxu0 %v4751
      %v7962 = vpop.f32.mrb[0].mxu0
      %v7963 = vpop.f32.mrb[0].mxu0
      %v7964 = vpop.f32.mrb[0].mxu0
      %v7965 = vpop.f32.mrb[0].mxu0
      %7966 = vmatprep.mubr.bf16.mxu0 0
      %7967 = vmatmul.mubr.bf16.gmra.mrb[0].mxu0 %v4754
      %v7968 = vpop.f32.mrb[0].mxu0
      %v7969 = vpop.f32.mrb[0].mxu0
      %v7970 = vpop.f32.mrb[0].mxu0
      %v7971 = vpop.f32.mrb[0].mxu0
      %7972 = vmatprep.mubr.bf16.mxu0 0
      %7973 = vmatmul.mubr.bf16.gmra.mrb[0].mxu0 %v4757
      %v7974 = vpop.f32.mrb[0].mxu0
      %v7975 = vpop.f32.mrb[0].mxu0
      %v7976 = vpop.f32.mrb[0].mxu0
      %v7977 = vpop.f32.mrb[0].mxu0
      %7978 = vmatprep.mubr.bf16.mxu0 0
      %7979 = vmatmul.mubr.bf16.gmra.mrb[0].mxu0 %v4760
      %v7980 = vpop.f32.mrb[0].mxu0
      %v7981 = vadd.f32 0.0, %v7980
      %v7982 = vpop.f32.mrb[0].mxu0
      %v7983 = vpop.f32.mrb[0].mxu0
      %v7984 = vadd.f32 0.0, %v7983
      %v7985 = vpop.f32.mrb[0].mxu0
      %7986 = vmatprep.mubr.bf16.mxu0 0
      %7987 = vmatmul.mubr.bf16.gmra.mrb[0].mxu0 %v4763
      %v7988 = vpop.f32.mrb[0].mxu0
      %v7989 = vadd.f32 0.0, %v7988
      %v7990 = vpop.f32.mrb[0].mxu0
      %v7991 = vpop.f32.mrb[0].mxu0
      %v7992 = vadd.f32 0.0, %v7991
      %v7993 = vpop.f32.mrb[0].mxu0
      %7994 = vmatprep.mubr.bf16.mxu0 0
      %7995 = vmatmul.mubr.bf16.gmra.mrb[0].mxu0 %v4766
      %v7996 = vpop.f32.mrb[0].mxu0
      %v7997 = vadd.f32 0.0, %v7996
      %v7998 = vpop.f32.mrb[0].mxu0
      %v7999 = vpop.f32.mrb[0].mxu0
      %v8000 = vadd.f32 0.0, %v7999
      %v8001 = vpop.f32.mrb[0].mxu0
      %8002 = vmatprep.mubr.bf16.mxu0 0
      %8003 = vmatmul.mubr.bf16.gmra.mrb[0].mxu0 %v4769
      %v8004 = vpop.f32.mrb[0].mxu0
      %v8005 = vadd.f32 0.0, %v8004
      %v8006 = vpop.f32.mrb[0].mxu0
      %v8007 = vpop.f32.mrb[0].mxu0
      %v8008 = vadd.f32 0.0, %v8007
      %v8009 = vpop.f32.mrb[0].mxu0
      %8010 = vmatprep.mubr.bf16.mxu0 0
      %8011 = vmatmul.mubr.bf16.gmra.mrb[0].mxu0 %v4772
      %v8012 = vpop.f32.mrb[0].mxu0
      %v8013 = vadd.f32 0.0, %v8012
      %v8014 = vpop.f32.mrb[0].mxu0
      %v8015 = vpop.f32.mrb[0].mxu0
      %v8016 = vadd.f32 0.0, %v8015
      %v8017 = vpop.f32.mrb[0].mxu0
      %8018 = vmatprep.mubr.bf16.mxu0 0
      %8019 = vmatmul.mubr.bf16.gmra.mrb[0].mxu0 %v4775
      %v8020 = vpop.f32.mrb[0].mxu0
      %v8021 = vadd.f32 0.0, %v8020
      %v8022 = vpop.f32.mrb[0].mxu0
      %v8023 = vpop.f32.mrb[0].mxu0
      %v8024 = vadd.f32 0.0, %v8023
      %v8025 = vpop.f32.mrb[0].mxu0
      %8026 = vmatprep.mubr.bf16.mxu0 0
      %8027 = vmatmul.mubr.bf16.gmra.mrb[0].mxu0 %v4778
      %v8028 = vpop.f32.mrb[0].mxu0
      %v8029 = vadd.f32 0.0, %v8028
      %v8030 = vpop.f32.mrb[0].mxu0
      %v8031 = vpop.f32.mrb[0].mxu0
      %v8032 = vadd.f32 0.0, %v8031
      %v8033 = vpop.f32.mrb[0].mxu0
      %8034 = vmatprep.mubr.bf16.mxu0 0
      %8035 = vmatmul.mubr.bf16.gmra.mrb[0].mxu0 %v4781
      %v8036 = vpop.f32.mrb[0].mxu0
      %v8037 = vadd.f32 0.0, %v8036
      %v8038 = vpop.f32.mrb[0].mxu0
      %v8039 = vpop.f32.mrb[0].mxu0
      %v8040 = vadd.f32 0.0, %v8039
      %v8041 = vpop.f32.mrb[0].mxu0
      %8042 = vmatprep.mubr.bf16.mxu0 0
      %8043 = vmatmul.mubr.bf16.gmra.mrb[0].mxu0 %v4784
      %v8044 = vpop.f32.mrb[0].mxu0
      %v8045 = vadd.f32 0.0, %v8044
      %v8046 = vpop.f32.mrb[0].mxu0
      %v8047 = vpop.f32.mrb[0].mxu0
      %v8048 = vadd.f32 0.0, %v8047
      %v8049 = vpop.f32.mrb[0].mxu0
      %8050 = vmatprep.mubr.bf16.mxu0 0
      %8051 = vmatmul.mubr.bf16.gmra.mrb[0].mxu0 %v4787
      %v8052 = vpop.f32.mrb[0].mxu0
      %v8053 = vadd.f32 0.0, %v8052
      %v8054 = vpop.f32.mrb[0].mxu0
      %v8055 = vpop.f32.mrb[0].mxu0
      %v8056 = vadd.f32 0.0, %v8055
      %v8057 = vpop.f32.mrb[0].mxu0
      %8058 = vmatprep.mubr.bf16.mxu0 0
      %8059 = vmatmul.mubr.bf16.gmra.mrb[0].mxu0 %v4790
      %v8060 = vpop.f32.mrb[0].mxu0
      %v8061 = vadd.f32 0.0, %v8060
      %v8062 = vpop.f32.mrb[0].mxu0
      %v8063 = vpop.f32.mrb[0].mxu0
      %v8064 = vadd.f32 0.0, %v8063
      %v8065 = vpop.f32.mrb[0].mxu0
      %8066 = vmatprep.mubr.bf16.mxu0 0
      %8067 = vmatmul.mubr.bf16.gmra.mrb[0].mxu0 %v4793
      %v8068 = vpop.f32.mrb[0].mxu0
      %v8069 = vadd.f32 0.0, %v8068
      %v8070 = vpop.f32.mrb[0].mxu0
      %v8071 = vpop.f32.mrb[0].mxu0
      %v8072 = vadd.f32 0.0, %v8071
      %v8073 = vpop.f32.mrb[0].mxu0
      %8074 = vmatprep.mubr.bf16.mxu0 0
      %8075 = vmatmul.mubr.bf16.gmra.mrb[0].mxu0 %v4796
      %v8076 = vpop.f32.mrb[0].mxu0
      %v8077 = vadd.f32 0.0, %v8076
      %v8078 = vpop.f32.mrb[0].mxu0
      %v8079 = vpop.f32.mrb[0].mxu0
      %v8080 = vadd.f32 0.0, %v8079
      %v8081 = vpop.f32.mrb[0].mxu0
      %8082 = vmatprep.mubr.bf16.mxu0 0
      %8083 = vmatmul.mubr.bf16.gmra.mrb[0].mxu0 %v4799
      %v8084 = vpop.f32.mrb[0].mxu0
      %v8085 = vadd.f32 0.0, %v8084
      %v8086 = vpop.f32.mrb[0].mxu0
      %v8087 = vpop.f32.mrb[0].mxu0
      %v8088 = vadd.f32 0.0, %v8087
      %v8089 = vpop.f32.mrb[0].mxu0
      %8090 = vmatprep.mubr.bf16.mxu0 0
      %8091 = vmatmul.mubr.bf16.gmra.mrb[0].mxu0 %v4802
      %v8092 = vpop.f32.mrb[0].mxu0
      %v8093 = vadd.f32 0.0, %v8092
      %v8094 = vpop.f32.mrb[0].mxu0
      %v8095 = vpop.f32.mrb[0].mxu0
      %v8096 = vadd.f32 0.0, %v8095
      %v8097 = vpop.f32.mrb[0].mxu0
      %8098 = vmatprep.mubr.bf16.mxu0 0
      %8099 = vmatmul.mubr.bf16.gmra.mrb[0].mxu0 %v4805
      %v8100 = vpop.f32.mrb[0].mxu0
      %v8101 = vadd.f32 0.0, %v8100
      %v8102 = vpop.f32.mrb[0].mxu0
      %v8103 = vpop.f32.mrb[0].mxu0
      %v8104 = vadd.f32 0.0, %v8103
      %v8105 = vpop.f32.mrb[0].mxu0
      %8106 = vmatprep.mubr.bf16.mxu0 0
      %8107 = vmatmul.mubr.bf16.gmra.mrb[0].mxu0 %v4808
      %v8108 = vpop.f32.mrb[0].mxu0
      %v8109 = vadd.f32 0.0, %v8108
      %v8110 = vpop.f32.mrb[0].mxu0
      %v8111 = vpop.f32.mrb[0].mxu0
      %v8112 = vadd.f32 0.0, %v8111
      %v8113 = vpop.f32.mrb[0].mxu0
      %8114 = vmatprep.mubr.bf16.mxu0 0
      %8115 = vmatmul.mubr.bf16.gmra.mrb[0].mxu0 %v4811
      %v8116 = vpop.f32.mrb[0].mxu0
      %v8117 = vadd.f32 0.0, %v8116
      %v8118 = vpop.f32.mrb[0].mxu0
      %v8119 = vpop.f32.mrb[0].mxu0
      %v8120 = vadd.f32 0.0, %v8119
      %v8121 = vpop.f32.mrb[0].mxu0
      %8122 = vmatprep.mubr.bf16.mxu0 0
      %8123 = vmatmul.mubr.bf16.gmra.mrb[0].mxu0 %v4814
      %v8124 = vpop.f32.mrb[0].mxu0
      %v8125 = vadd.f32 0.0, %v8124
      %v8126 = vpop.f32.mrb[0].mxu0
      %v8127 = vpop.f32.mrb[0].mxu0
      %v8128 = vadd.f32 0.0, %v8127
      %v8129 = vpop.f32.mrb[0].mxu0
      %8130 = vmatprep.mubr.bf16.mxu0 0
      %8131 = vmatmul.mubr.bf16.gmra.mrb[0].mxu0 %v4817
      %v8132 = vpop.f32.mrb[0].mxu0
      %v8133 = vadd.f32 0.0, %v8132
      %v8134 = vpop.f32.mrb[0].mxu0
      %v8135 = vpop.f32.mrb[0].mxu0
      %v8136 = vadd.f32 0.0, %v8135
      %v8137 = vpop.f32.mrb[0].mxu0
      %8138 = vmatprep.mubr.bf16.mxu0 0
      %8139 = vmatmul.mubr.bf16.gmra.mrb[0].mxu0 %v4820
      %v8140 = vpop.f32.mrb[0].mxu0
      %v8141 = vadd.f32 0.0, %v8140
      %v8142 = vpop.f32.mrb[0].mxu0
      %v8143 = vpop.f32.mrb[0].mxu0
      %v8144 = vadd.f32 0.0, %v8143
      %v8145 = vpop.f32.mrb[0].mxu0
      %8146 = vmatprep.mubr.bf16.mxu0 0
      %8147 = vmatmul.mubr.bf16.gmra.mrb[0].mxu0 %v4823
      %v8148 = vpop.f32.mrb[0].mxu0
      %v8149 = vadd.f32 0.0, %v8148
      %v8150 = vpop.f32.mrb[0].mxu0
      %v8151 = vpop.f32.mrb[0].mxu0
      %v8152 = vadd.f32 0.0, %v8151
      %v8153 = vpop.f32.mrb[0].mxu0
      %8154 = vmatprep.mubr.bf16.mxu0 0
      %8155 = vmatmul.mubr.bf16.gmra.mrb[0].mxu0 %v4826
      %v8156 = vpop.f32.mrb[0].mxu0
      %v8157 = vadd.f32 0.0, %v8156
      %v8158 = vpop.f32.mrb[0].mxu0
      %v8159 = vpop.f32.mrb[0].mxu0
      %v8160 = vadd.f32 0.0, %v8159
      %v8161 = vpop.f32.mrb[0].mxu0
      %8162 = vmatprep.mubr.bf16.mxu0 0
      %8163 = vmatmul.mubr.bf16.gmra.mrb[0].mxu0 %v4829
      %v8164 = vpop.f32.mrb[0].mxu0
      %v8165 = vadd.f32 0.0, %v8164
      %v8166 = vpop.f32.mrb[0].mxu0
      %v8167 = vpop.f32.mrb[0].mxu0
      %v8168 = vadd.f32 0.0, %v8167
      %v8169 = vpop.f32.mrb[0].mxu0
      %8170 = vmatprep.mubr.bf16.mxu0 0
      %8171 = vmatmul.mubr.bf16.gmra.mrb[0].mxu0 %v4832
      %v8172 = vpop.f32.mrb[0].mxu0
      %v8173 = vpop.f32.mrb[0].mxu0
      %v8174 = vpop.f32.mrb[0].mxu0
      %v8175 = vpop.f32.mrb[0].mxu0
      %8176 = vmatprep.mubr.bf16.mxu0 0
      %8177 = vmatmul.mubr.bf16.gmra.mrb[0].mxu0 %v4835
      %v8178 = vpop.f32.mrb[0].mxu0
      %v8179 = vpop.f32.mrb[0].mxu0
      %v8180 = vpop.f32.mrb[0].mxu0
      %v8181 = vpop.f32.mrb[0].mxu0
      %8182 = vdwg.mxu0
      %v8231 = vrot.slane %v7981, 2
      %v8232 = vrot.slane %v7984, 2
      %v8233 = vsel %vm1723, %v8231, %v8232
      %v8234 = vrot.slane %v7989, 2
      %v8235 = vsel %vm1723, %v8232, %v8234
      %v8236 = vrot.slane %v7992, 2
      %v8237 = vrot.slane %v7997, 2
      %v8238 = vsel %vm1723, %v8236, %v8237
      %v8239 = vrot.slane %v8000, 2
      %v8240 = vsel %vm1723, %v8237, %v8239
      %v8241 = vrot.slane %v8005, 2
      %v8242 = vrot.slane %v8008, 2
      %v8243 = vsel %vm1723, %v8241, %v8242
      %v8244 = vrot.slane %v8013, 2
      %v8245 = vsel %vm1723, %v8242, %v8244
      %v8246 = vrot.slane %v8016, 2
      %v8247 = vrot.slane %v8021, 2
      %v8248 = vsel %vm1723, %v8246, %v8247
      %v8249 = vrot.slane %v8024, 2
      %v8250 = vsel %vm1723, %v8247, %v8249
      %v8251 = vrot.slane %v8029, 2
      %v8252 = vrot.slane %v8032, 2
      %v8253 = vsel %vm1723, %v8251, %v8252
      %v8254 = vrot.slane %v8037, 2
      %v8255 = vsel %vm1723, %v8252, %v8254
      %v8256 = vrot.slane %v8040, 2
      %v8257 = vrot.slane %v8045, 2
      %v8258 = vsel %vm1723, %v8256, %v8257
      %v8259 = vrot.slane %v8048, 2
      %v8260 = vsel %vm1723, %v8257, %v8259
      %v8261 = vrot.slane %v8053, 2
      %v8262 = vrot.slane %v8056, 2
      %v8263 = vsel %vm1723, %v8261, %v8262
      %v8264 = vrot.slane %v8061, 2
      %v8265 = vsel %vm1723, %v8262, %v8264
      %v8266 = vrot.slane %v8064, 2
      %v8267 = vrot.slane %v8069, 2
      %v8268 = vsel %vm1723, %v8266, %v8267
      %v8269 = vrot.slane %v8072, 2
      %v8270 = vsel %vm1723, %v8267, %v8269
      %v8271 = vrot.slane %v8077, 2
      %v8272 = vrot.slane %v8080, 2
      %v8273 = vsel %vm1723, %v8271, %v8272
      %v8274 = vrot.slane %v8085, 2
      %v8275 = vsel %vm1723, %v8272, %v8274
      %v8276 = vrot.slane %v8088, 2
      %v8277 = vrot.slane %v8093, 2
      %v8278 = vsel %vm1723, %v8276, %v8277
      %v8279 = vrot.slane %v8096, 2
      %v8280 = vsel %vm1723, %v8277, %v8279
      %v8281 = vrot.slane %v8101, 2
      %v8282 = vrot.slane %v8104, 2
      %v8283 = vsel %vm1723, %v8281, %v8282
      %v8284 = vrot.slane %v8109, 2
      %v8285 = vsel %vm1723, %v8282, %v8284
      %v8286 = vrot.slane %v8112, 2
      %v8287 = vrot.slane %v8117, 2
      %v8288 = vsel %vm1723, %v8286, %v8287
      %v8289 = vrot.slane %v8120, 2
      %v8290 = vsel %vm1723, %v8287, %v8289
      %v8291 = vrot.slane %v8125, 2
      %v8292 = vrot.slane %v8128, 2
      %v8293 = vsel %vm1723, %v8291, %v8292
      %v8294 = vrot.slane %v8133, 2
      %v8295 = vsel %vm1723, %v8292, %v8294
      %v8296 = vrot.slane %v8136, 2
      %v8297 = vrot.slane %v8141, 2
      %v8298 = vsel %vm1723, %v8296, %v8297
      %v8299 = vrot.slane %v8144, 2
      %v8300 = vsel %vm1723, %v8297, %v8299
      %v8301 = vrot.slane %v8149, 2
      %v8302 = vrot.slane %v8152, 2
      %v8303 = vsel %vm1723, %v8301, %v8302
      %v8304 = vrot.slane %v8157, 2
      %v8305 = vsel %vm1723, %v8302, %v8304
      %v8306 = vrot.slane %v8160, 2
      %v8307 = vrot.slane %v8165, 2
      %v8308 = vsel %vm1723, %v8306, %v8307
      %v8309 = vrot.slane %v8168, 2
      %v8310 = vsel %vm1723, %v8307, %v8309
      %v8343 = vadd.f32 %v7891, %v8233
      %v8344 = vadd.f32 %v7892, %v8235
      %v8345 = vadd.f32 %v7893, %v8238
      %v8346 = vadd.f32 %v7894, %v8240
      %v8347 = vadd.f32 %v7895, %v8243
      %v8348 = vadd.f32 %v7896, %v8245
      %v8349 = vadd.f32 %v7897, %v8248
      %v8350 = vadd.f32 %v7898, %v8250
      %v8351 = vadd.f32 %v7899, %v8253
      %v8352 = vadd.f32 %v7900, %v8255
      %v8353 = vadd.f32 %v7901, %v8258
      %v8354 = vadd.f32 %v7902, %v8260
      %v8355 = vadd.f32 %v7903, %v8263
      %v8356 = vadd.f32 %v7904, %v8265
      %v8357 = vadd.f32 %v7905, %v8268
      %v8358 = vadd.f32 %v7906, %v8270
      %v8359 = vadd.f32 %v7907, %v8273
      %v8360 = vadd.f32 %v7908, %v8275
      %v8361 = vadd.f32 %v7909, %v8278
      %v8362 = vadd.f32 %v7910, %v8280
      %v8363 = vadd.f32 %v7911, %v8283
      %v8364 = vadd.f32 %v7912, %v8285
      %v8365 = vadd.f32 %v7913, %v8288
      %v8366 = vadd.f32 %v7914, %v8290
      %v8367 = vadd.f32 %v7915, %v8293
      %v8368 = vadd.f32 %v7916, %v8295
      %v8369 = vadd.f32 %v7917, %v8298
      %v8370 = vadd.f32 %v7918, %v8300
      %v8371 = vadd.f32 %v7919, %v8303
      %v8372 = vadd.f32 %v7920, %v8305
      %v8373 = vadd.f32 %v7921, %v8308
      %v8374 = vadd.f32 %v7922, %v8310
      %v8375 = vsel %vm367, %v8343, 0.0
      %v8376 = vsel %vm367, %v8345, 0.0
      %v8377 = vadd.f32 %v8375, %v8376
      %v8378 = vsel %vm367, %v8347, 0.0
      %v8379 = vadd.f32 %v8377, %v8378
      %v8380 = vsel %vm367, %v8349, 0.0
      %v8381 = vadd.f32 %v8379, %v8380
      %v8382 = vsel %vm367, %v8351, 0.0
      %v8383 = vadd.f32 %v8381, %v8382
      %v8384 = vsel %vm367, %v8353, 0.0
      %v8385 = vadd.f32 %v8383, %v8384
      %v8386 = vsel %vm367, %v8355, 0.0
      %v8387 = vadd.f32 %v8385, %v8386
      %v8388 = vsel %vm367, %v8357, 0.0
      %v8389 = vadd.f32 %v8387, %v8388
      %v8390 = vsel %vm367, %v8359, 0.0
      %v8391 = vadd.f32 %v8389, %v8390
      %v8392 = vsel %vm367, %v8361, 0.0
      %v8393 = vadd.f32 %v8391, %v8392
      %v8394 = vsel %vm367, %v8363, 0.0
      %v8395 = vadd.f32 %v8393, %v8394
      %v8396 = vsel %vm367, %v8365, 0.0
      %v8397 = vadd.f32 %v8395, %v8396
      %v8398 = vsel %vm367, %v8367, 0.0
      %v8399 = vadd.f32 %v8397, %v8398
      %v8400 = vsel %vm367, %v8369, 0.0
      %v8401 = vadd.f32 %v8399, %v8400
      %v8402 = vsel %vm367, %v8371, 0.0
      %v8403 = vadd.f32 %v8401, %v8402
      %v8404 = vsel %vm367, %v8373, 0.0
      %v8405 = vadd.f32 %v8403, %v8404
      %v8406 = vsel %vm367, %v8344, 0.0
      %v8407 = vsel %vm367, %v8346, 0.0
      %v8408 = vadd.f32 %v8406, %v8407
      %v8409 = vsel %vm367, %v8348, 0.0
      %v8410 = vadd.f32 %v8408, %v8409
      %v8411 = vsel %vm367, %v8350, 0.0
      %v8412 = vadd.f32 %v8410, %v8411
      %v8413 = vsel %vm367, %v8352, 0.0
      %v8414 = vadd.f32 %v8412, %v8413
      %v8415 = vsel %vm367, %v8354, 0.0
      %v8416 = vadd.f32 %v8414, %v8415
      %v8417 = vsel %vm367, %v8356, 0.0
      %v8418 = vadd.f32 %v8416, %v8417
      %v8419 = vsel %vm367, %v8358, 0.0
      %v8420 = vadd.f32 %v8418, %v8419
      %v8421 = vsel %vm367, %v8360, 0.0
      %v8422 = vadd.f32 %v8420, %v8421
      %v8423 = vsel %vm367, %v8362, 0.0
      %v8424 = vadd.f32 %v8422, %v8423
      %v8425 = vsel %vm367, %v8364, 0.0
      %v8426 = vadd.f32 %v8424, %v8425
      %v8427 = vsel %vm367, %v8366, 0.0
      %v8428 = vadd.f32 %v8426, %v8427
      %v8429 = vsel %vm367, %v8368, 0.0
      %v8430 = vadd.f32 %v8428, %v8429
      %v8431 = vsel %vm367, %v8370, 0.0
      %v8432 = vadd.f32 %v8430, %v8431
      %v8433 = vsel %vm367, %v8372, 0.0
      %v8434 = vadd.f32 %v8432, %v8433
      %v8435 = vsel %vm367, %v8374, 0.0
      %v8436 = vadd.f32 %v8434, %v8435
      %v8437 = vsel %vm367, %v8405, 0.0
      %v8438 = vsel %vm367, %v8436, 0.0
      %v8439 = vadd.f32 %v8437, %v8438
      %v8440 = vrot.slane %v8439, 4
      %v8441 = vadd.f32 %v8439, %v8440
      %v8442 = vrot.slane %v8441, 2
      %v8443 = vadd.f32 %v8441, %v8442
      %v8444 = vrot.slane %v8443, 1
      %v8445 = vadd.f32 %v8443, %v8444
      %v8446 = vmul.f32 %v8343, %v8343
      %v8447 = vmul.f32 %v8344, %v8344
      %v8448 = vmul.f32 %v8345, %v8345
      %v8449 = vmul.f32 %v8346, %v8346
      %v8450 = vmul.f32 %v8347, %v8347
      %v8451 = vmul.f32 %v8348, %v8348
      %v8452 = vmul.f32 %v8349, %v8349
      %v8453 = vmul.f32 %v8350, %v8350
      %v8454 = vmul.f32 %v8351, %v8351
      %v8455 = vmul.f32 %v8352, %v8352
      %v8456 = vmul.f32 %v8353, %v8353
      %v8457 = vmul.f32 %v8354, %v8354
      %v8458 = vmul.f32 %v8355, %v8355
      %v8459 = vmul.f32 %v8356, %v8356
      %v8460 = vmul.f32 %v8357, %v8357
      %v8461 = vmul.f32 %v8358, %v8358
      %v8462 = vmul.f32 %v8359, %v8359
      %v8463 = vmul.f32 %v8360, %v8360
      %v8464 = vmul.f32 %v8361, %v8361
      %v8465 = vmul.f32 %v8362, %v8362
      %v8466 = vmul.f32 %v8363, %v8363
      %v8467 = vmul.f32 %v8364, %v8364
      %v8468 = vmul.f32 %v8365, %v8365
      %v8469 = vmul.f32 %v8366, %v8366
      %v8470 = vmul.f32 %v8367, %v8367
      %v8471 = vmul.f32 %v8368, %v8368
      %v8472 = vmul.f32 %v8369, %v8369
      %v8473 = vmul.f32 %v8370, %v8370
      %v8474 = vmul.f32 %v8371, %v8371
      %v8475 = vmul.f32 %v8372, %v8372
      %v8476 = vmul.f32 %v8373, %v8373
      %v8477 = vmul.f32 %v8374, %v8374
      %v8478 = vsel %vm367, %v8446, 0.0
      %v8479 = vsel %vm367, %v8448, 0.0
      %v8480 = vadd.f32 %v8478, %v8479
      %v8481 = vsel %vm367, %v8450, 0.0
      %v8482 = vadd.f32 %v8480, %v8481
      %v8483 = vsel %vm367, %v8452, 0.0
      %v8484 = vadd.f32 %v8482, %v8483
      %v8485 = vsel %vm367, %v8454, 0.0
      %v8486 = vadd.f32 %v8484, %v8485
      %v8487 = vsel %vm367, %v8456, 0.0
      %v8488 = vadd.f32 %v8486, %v8487
      %v8489 = vsel %vm367, %v8458, 0.0
      %v8490 = vadd.f32 %v8488, %v8489
      %v8491 = vsel %vm367, %v8460, 0.0
      %v8492 = vadd.f32 %v8490, %v8491
      %v8493 = vsel %vm367, %v8462, 0.0
      %v8494 = vadd.f32 %v8492, %v8493
      %v8495 = vsel %vm367, %v8464, 0.0
      %v8496 = vadd.f32 %v8494, %v8495
      %v8497 = vsel %vm367, %v8466, 0.0
      %v8498 = vadd.f32 %v8496, %v8497
      %v8499 = vsel %vm367, %v8468, 0.0
      %v8500 = vadd.f32 %v8498, %v8499
      %v8501 = vsel %vm367, %v8470, 0.0
      %v8502 = vadd.f32 %v8500, %v8501
      %v8503 = vsel %vm367, %v8472, 0.0
      %v8504 = vadd.f32 %v8502, %v8503
      %v8505 = vsel %vm367, %v8474, 0.0
      %v8506 = vadd.f32 %v8504, %v8505
      %v8507 = vsel %vm367, %v8476, 0.0
      %v8508 = vadd.f32 %v8506, %v8507
      %v8509 = vsel %vm367, %v8447, 0.0
      %v8510 = vsel %vm367, %v8449, 0.0
      %v8511 = vadd.f32 %v8509, %v8510
      %v8512 = vsel %vm367, %v8451, 0.0
      %v8513 = vadd.f32 %v8511, %v8512
      %v8514 = vsel %vm367, %v8453, 0.0
      %v8515 = vadd.f32 %v8513, %v8514
      %v8516 = vsel %vm367, %v8455, 0.0
      %v8517 = vadd.f32 %v8515, %v8516
      %v8518 = vsel %vm367, %v8457, 0.0
      %v8519 = vadd.f32 %v8517, %v8518
      %v8520 = vsel %vm367, %v8459, 0.0
      %v8521 = vadd.f32 %v8519, %v8520
      %v8522 = vsel %vm367, %v8461, 0.0
      %v8523 = vadd.f32 %v8521, %v8522
      %v8524 = vsel %vm367, %v8463, 0.0
      %v8525 = vadd.f32 %v8523, %v8524
      %v8526 = vsel %vm367, %v8465, 0.0
      %v8527 = vadd.f32 %v8525, %v8526
      %v8528 = vsel %vm367, %v8467, 0.0
      %v8529 = vadd.f32 %v8527, %v8528
      %v8530 = vsel %vm367, %v8469, 0.0
      %v8531 = vadd.f32 %v8529, %v8530
      %v8532 = vsel %vm367, %v8471, 0.0
      %v8533 = vadd.f32 %v8531, %v8532
      %v8534 = vsel %vm367, %v8473, 0.0
      %v8535 = vadd.f32 %v8533, %v8534
      %v8536 = vsel %vm367, %v8475, 0.0
      %v8537 = vadd.f32 %v8535, %v8536
      %v8538 = vsel %vm367, %v8477, 0.0
      %v8539 = vadd.f32 %v8537, %v8538
      %v8540 = vsel %vm367, %v8508, 0.0
      %v8541 = vsel %vm367, %v8539, 0.0
      %v8542 = vadd.f32 %v8540, %v8541
      %v8543 = vrot.slane %v8542, 4
      %v8544 = vadd.f32 %v8542, %v8543
      %v8545 = vrot.slane %v8544, 2
      %v8546 = vadd.f32 %v8544, %v8545
      %v8547 = vrot.slane %v8546, 1
      %v8548 = vadd.f32 %v8546, %v8547
      %v8549 = vmul.f32 %v8445, 0.00390625
      %v8550 = vmul.f32 %v8548, 0.00390625
      %v8551 = vmul.f32 %v8549, %v8549
      %v8552 = vsub.f32 %v8550, %v8551
      %v8553 = vmax.f32 %v8552, 0.0
      %v8554 = vld [vmem:[%s7] sm:$0x1]
      %v8555 = vadd.f32 %v8553, 1e-05
      %v8556 = vrsqrt.pop %v8555
      %v8557 = vmul.f32 %v8554, %v8556
      %v8558 = vld [vmem:[%s8] sm:$0x1]
      %v8559 = vmul.f32 %v8549, %v8557
      %v8560 = vsub.f32 %v8558, %v8559
      %v8562 = vlaneseq
      %v8563 = vshrl.u32 %v8562, 7
      %v8564 = vsub.s32 0, %v8563
      %v8565 = vrot.slane %v8557, %v8564
      %v8567 = vmul.f32 %v8343, %v8565
      %v8568 = vmul.f32 %v8344, %v8565
      %v8569 = vmul.f32 %v8345, %v8565
      %v8570 = vmul.f32 %v8346, %v8565
      %v8571 = vmul.f32 %v8347, %v8565
      %v8572 = vmul.f32 %v8348, %v8565
      %v8573 = vmul.f32 %v8349, %v8565
      %v8574 = vmul.f32 %v8350, %v8565
      %v8575 = vmul.f32 %v8351, %v8565
      %v8576 = vmul.f32 %v8352, %v8565
      %v8577 = vmul.f32 %v8353, %v8565
      %v8578 = vmul.f32 %v8354, %v8565
      %v8579 = vmul.f32 %v8355, %v8565
      %v8580 = vmul.f32 %v8356, %v8565
      %v8581 = vmul.f32 %v8357, %v8565
      %v8582 = vmul.f32 %v8358, %v8565
      %v8583 = vmul.f32 %v8359, %v8565
      %v8584 = vmul.f32 %v8360, %v8565
      %v8585 = vmul.f32 %v8361, %v8565
      %v8586 = vmul.f32 %v8362, %v8565
      %v8587 = vmul.f32 %v8363, %v8565
      %v8588 = vmul.f32 %v8364, %v8565
      %v8589 = vmul.f32 %v8365, %v8565
      %v8590 = vmul.f32 %v8366, %v8565
      %v8591 = vmul.f32 %v8367, %v8565
      %v8592 = vmul.f32 %v8368, %v8565
      %v8593 = vmul.f32 %v8369, %v8565
      %v8594 = vmul.f32 %v8370, %v8565
      %v8595 = vmul.f32 %v8371, %v8565
      %v8596 = vmul.f32 %v8372, %v8565
      %v8597 = vmul.f32 %v8373, %v8565
      %v8598 = vmul.f32 %v8374, %v8565
      %v8600 = vlaneseq
      %v8601 = vshrl.u32 %v8600, 7
      %v8602 = vsub.s32 0, %v8601
      %v8603 = vrot.slane %v8560, %v8602
      %v8605 = vadd.f32 %v8567, %v8603
      %v8606 = vadd.f32 %v8568, %v8603
      %v8607 = vadd.f32 %v8569, %v8603
      %v8608 = vadd.f32 %v8570, %v8603
      %v8609 = vadd.f32 %v8571, %v8603
      %v8610 = vadd.f32 %v8572, %v8603
      %v8611 = vadd.f32 %v8573, %v8603
      %v8612 = vadd.f32 %v8574, %v8603
      %v8613 = vadd.f32 %v8575, %v8603
      %v8614 = vadd.f32 %v8576, %v8603
      %v8615 = vadd.f32 %v8577, %v8603
      %v8616 = vadd.f32 %v8578, %v8603
      %v8617 = vadd.f32 %v8579, %v8603
      %v8618 = vadd.f32 %v8580, %v8603
      %v8619 = vadd.f32 %v8581, %v8603
      %v8620 = vadd.f32 %v8582, %v8603
      %v8621 = vadd.f32 %v8583, %v8603
      %v8622 = vadd.f32 %v8584, %v8603
      %v8623 = vadd.f32 %v8585, %v8603
      %v8624 = vadd.f32 %v8586, %v8603
      %v8625 = vadd.f32 %v8587, %v8603
      %v8626 = vadd.f32 %v8588, %v8603
      %v8627 = vadd.f32 %v8589, %v8603
      %v8628 = vadd.f32 %v8590, %v8603
      %v8629 = vadd.f32 %v8591, %v8603
      %v8630 = vadd.f32 %v8592, %v8603
      %v8631 = vadd.f32 %v8593, %v8603
      %v8632 = vadd.f32 %v8594, %v8603
      %v8633 = vadd.f32 %v8595, %v8603
      %v8634 = vadd.f32 %v8596, %v8603
      %v8635 = vadd.f32 %v8597, %v8603
      %v8636 = vadd.f32 %v8598, %v8603
      %v8637 = vadd.f32 %v8605, %v334
      %v8638 = vadd.f32 %v8606, %v335
      %v8639 = vadd.f32 %v8607, %v336
      %v8640 = vadd.f32 %v8608, %v337
      %v8641 = vadd.f32 %v8609, %v338
      %v8642 = vadd.f32 %v8610, %v339
      %v8643 = vadd.f32 %v8611, %v340
      %v8644 = vadd.f32 %v8612, %v341
      %v8645 = vadd.f32 %v8613, %v342
      %v8646 = vadd.f32 %v8614, %v343
      %v8647 = vadd.f32 %v8615, %v344
      %v8648 = vadd.f32 %v8616, %v345
      %v8649 = vadd.f32 %v8617, %v346
      %v8650 = vadd.f32 %v8618, %v347
      %v8651 = vadd.f32 %v8619, %v348
      %v8652 = vadd.f32 %v8620, %v349
      %v8653 = vadd.f32 %v8621, %v350
      %v8654 = vadd.f32 %v8622, %v351
      %v8655 = vadd.f32 %v8623, %v352
      %v8656 = vadd.f32 %v8624, %v353
      %v8657 = vadd.f32 %v8625, %v354
      %v8658 = vadd.f32 %v8626, %v355
      %v8659 = vadd.f32 %v8627, %v356
      %v8660 = vadd.f32 %v8628, %v357
      %v8661 = vadd.f32 %v8629, %v358
      %v8662 = vadd.f32 %v8630, %v359
      %v8663 = vadd.f32 %v8631, %v360
      %v8664 = vadd.f32 %v8632, %v361
      %v8665 = vadd.f32 %v8633, %v362
      %v8666 = vadd.f32 %v8634, %v363
      %v8667 = vadd.f32 %v8635, %v364
      %v8668 = vadd.f32 %v8636, %v365
      %8669 = vst.msk [vmem:[%s332] sm:$0xff] %vm367, %v8637
      %8670 = vst.msk [vmem:[%s332 + $0x8] sm:$0xff] %vm367, %v8638
      %8671 = vst.msk [vmem:[%s332 + $0x10] sm:$0xff] %vm367, %v8639
      %8672 = vst.msk [vmem:[%s332 + $0x18] sm:$0xff] %vm367, %v8640
      %8673 = vst.msk [vmem:[%s332 + $0x20] sm:$0xff] %vm367, %v8641
      %8674 = vst.msk [vmem:[%s332 + $0x28] sm:$0xff] %vm367, %v8642
      %8675 = vst.msk [vmem:[%s332 + $0x30] sm:$0xff] %vm367, %v8643
      %8676 = vst.msk [vmem:[%s332 + $0x38] sm:$0xff] %vm367, %v8644
      %8677 = vst.msk [vmem:[%s332 + $0x40] sm:$0xff] %vm367, %v8645
      %8678 = vst.msk [vmem:[%s332 + $0x48] sm:$0xff] %vm367, %v8646
      %8679 = vst.msk [vmem:[%s332 + $0x50] sm:$0xff] %vm367, %v8647
      %8680 = vst.msk [vmem:[%s332 + $0x58] sm:$0xff] %vm367, %v8648
      %8681 = vst.msk [vmem:[%s332 + $0x60] sm:$0xff] %vm367, %v8649
      %8682 = vst.msk [vmem:[%s332 + $0x68] sm:$0xff] %vm367, %v8650
      %8683 = vst.msk [vmem:[%s332 + $0x70] sm:$0xff] %vm367, %v8651
      %8684 = vst.msk [vmem:[%s332 + $0x78] sm:$0xff] %vm367, %v8652
      %8685 = vst.msk [vmem:[%s332 + $0x80] sm:$0xff] %vm367, %v8653
      %8686 = vst.msk [vmem:[%s332 + $0x88] sm:$0xff] %vm367, %v8654
      %8687 = vst.msk [vmem:[%s332 + $0x90] sm:$0xff] %vm367, %v8655
      %8688 = vst.msk [vmem:[%s332 + $0x98] sm:$0xff] %vm367, %v8656
      %8689 = vst.msk [vmem:[%s332 + $0xa0] sm:$0xff] %vm367, %v8657
      %8690 = vst.msk [vmem:[%s332 + $0xa8] sm:$0xff] %vm367, %v8658
      %8691 = vst.msk [vmem:[%s332 + $0xb0] sm:$0xff] %vm367, %v8659
      %8692 = vst.msk [vmem:[%s332 + $0xb8] sm:$0xff] %vm367, %v8660
      %8693 = vst.msk [vmem:[%s332 + $0xc0] sm:$0xff] %vm367, %v8661
      %8694 = vst.msk [vmem:[%s332 + $0xc8] sm:$0xff] %vm367, %v8662
      %8695 = vst.msk [vmem:[%s332 + $0xd0] sm:$0xff] %vm367, %v8663
      %8696 = vst.msk [vmem:[%s332 + $0xd8] sm:$0xff] %vm367, %v8664
      %8697 = vst.msk [vmem:[%s332 + $0xe0] sm:$0xff] %vm367, %v8665
      %8698 = vst.msk [vmem:[%s332 + $0xe8] sm:$0xff] %vm367, %v8666
      %8699 = vst.msk [vmem:[%s332 + $0xf0] sm:$0xff] %vm367, %v8667
      %8700 = vst.msk [vmem:[%s332 + $0xf8] sm:$0xff] %vm367, %v8668
      %p8701 = scmp.lt.s32.totalorder %s20, 1
      %s8702 = scalar_select %p8701, %s20, 1
      %s8703 = smul.addr %s8702, 32
      %s8704 = smul.addr %s8703, 8
      %s8705 = scalar_lea.vmem %s9, %s8704
      // Predicated region
      $region57: #{tpu_custom_call.1} parent=55 // pred_check
        %p8706 = pneg %p232
      $region58: #{tpu_custom_call.1} parent=55 // pred_check_branch
        %8708 = sbr.rel (%p8706) target = $region60
      $region59: #{tpu_custom_call.1} parent=55 // pred_region
        _
      $region60: #{tpu_custom_call.1} parent=55 // pred_fallthru
        _
    $region56: #{tpu_custom_call.1} parent=5 // pred_fallthru
      _
    %p8709 = scmp.le.s32.totalorder 2, %s15
    // Predicated region
    $region61: #{tpu_custom_call.1} parent=5 // pred_check
      %p8710 = pneg %p8709
    $region62: #{tpu_custom_call.1} parent=5 // pred_check_branch
      %8712 = sbr.rel (%p8710) target = $region64
    $region63: #{tpu_custom_call.1} parent=5 // pred_region
      %s8713 = ssub.s32 %s15, 2
      // Predicated region
      $region65: #{tpu_custom_call.1} parent=63 // pred_check
        %p8714 = pneg %p238
      $region66: #{tpu_custom_call.1} parent=63 // pred_check_branch
        %8716 = sbr.rel (%p8714) target = $region68
      $region67: #{tpu_custom_call.1} parent=63 // pred_region
        %p8717 = scmp.lt.s32.totalorder %s21, 1
        %s8718 = scalar_select %p8717, %s21, 1
        %s8719 = smul.addr %s8718, 32
        %s8720 = smul.addr %s8719, 8
        %s8721 = scalar_lea.vmem %s9, %s8720
      $region68: #{tpu_custom_call.1} parent=63 // pred_fallthru
        _
    $region64: #{tpu_custom_call.1} parent=5 // pred_fallthru
      _
  $region6: #{tpu_custom_call.1} parent=0 // loop_footer
    %s19 = sadd.s32 1, %s15
  $region7: #{tpu_custom_call.1} parent=0 // loop_footer_branch
    %14 = sbr.rel target = $region3
  $region8: #{tpu_custom_call.1} parent=0 // loop_exit
    _

</llo_original>
